<compile_context>
chip_gen: v7x
topology: tpu7x:2x2x1
jax: 0.10.0
libtpu: 0.0.40
codegen_flags: <defaults>
</compile_context>

<pallas_src>
import jax
import jax.numpy as jnp
from jax import lax
from jax.experimental import pallas as pl
from jax.experimental.pallas import tpu as pltpu

LANE = 128                       # compute lanes for conv/fc (weights zero-padded to this)
FC_TK = 512                      # K-tile for the fc1 reduction (weights stream through VMEM)
NUM_CLASSES = 3
VMEM_LIMIT = 32 * 1024 * 1024    # conservative scoped-VMEM budget (v7x has 64 MiB physical)


def _round_up(x, m):
    return (x + m - 1) // m * m


# ----------------------------------------------------------------------------
# Conv kernel: 3x3 valid conv + bias + ReLU + 2x2 stride-2 max-pool, one image
# per grid step.  9 shifted-window matmuls from the flat input block -> no
# im2col in HBM and no in-kernel reshapes.
# ----------------------------------------------------------------------------
def _make_conv_relu_pool_kernel(H, W, C, Cout):
    Ho, Wo = H - 2, W - 2
    Hp, Wp = Ho // 2, Wo // 2
    # Largest shifted-window length that stays inside the (H*W) input for the
    # (dh=2, dw=2) tap; every valid conv output row index (ho*W + wo) is < M.
    M = Ho * W - 2

    def kernel(x_ref, w_ref, b_ref, o_ref, y_scr):
        # x_ref: (1, H*W, C)      bf16  flat NHWC image
        # w_ref: (9, C, LANE)     bf16  per-tap weights, out-channels zero-padded
        # b_ref: (1, LANE)        f32   bias (zero-padded)
        # o_ref: (1, Hp, Wp, Cout) bf16 pooled output (exact channels -> minimal writeback)
        # y_scr: (M, LANE)        f32   conv+ReLU scratch at full conv resolution
        for t in range(9):                                   # statically unrolled taps
            dh, dw = divmod(t, 3)
            lhs = x_ref[0, pl.ds(dh * W + dw, M), :]         # (M, C) bf16, contiguous load
            contrib = jnp.dot(lhs, w_ref[t], preferred_element_type=jnp.float32)
            if t == 0:
                y_scr[...] = contrib
            else:
                y_scr[...] += contrib
        # Bias + ReLU once (hoisted out of the tap loop; ReLU is monotone so pooling
        # the ReLU'd values matches the module's relu -> maxpool order exactly).
        y_scr[...] = jnp.maximum(y_scr[...] + b_ref[...], 0.0)
        # 2x2 stride-2 max-pool: conv output (ho, wo) lives at scratch row ho*W + wo,
        # so each pooled row hp is a max over four stride-2 row reads.
        for hp in range(Hp):
            base = 2 * hp * W
            m = y_scr[pl.ds(base, Wp, 2), :]
            m = jnp.maximum(m, y_scr[pl.ds(base + 1, Wp, 2), :])
            m = jnp.maximum(m, y_scr[pl.ds(base + W, Wp, 2), :])
            m = jnp.maximum(m, y_scr[pl.ds(base + W + 1, Wp, 2), :])
            o_ref[0, hp, :, :] = m[:, :Cout].astype(o_ref.dtype)

    return kernel, M, Hp, Wp


def conv_relu_pool(x_nhwc, w_taps, bias, out_channels):
    """max_pool2d(relu(conv3x3(x) + b), 2, 2) fused in one Pallas kernel.

    x_nhwc: (B, H, W, Cin) bf16;  w_taps: (9, Cin, LANE) bf16;  bias: (1, LANE) f32.
    Returns (B, Hp, Wp, out_channels) bf16.
    """
    B, H, W, C = x_nhwc.shape
    kernel, M, Hp, Wp = _make_conv_relu_pool_kernel(H, W, C, out_channels)
    x_flat = x_nhwc.reshape(B, H * W, C)      # pure view of NHWC, no data movement

    flops = 2 * B * 9 * M * C * LANE
    bytes_accessed = (x_flat.size * 2 + w_taps.size * 2 + bias.size * 4
                      + B * Hp * Wp * out_channels * 2)

    # TODO(synk): at the real ~994x994 scale, add a pooled-row grid axis (input row
    # window with a 2-row halo via manual DMA) so the f32 conv scratch stays inside
    # the per-generation VMEM budget (<=24-28 MiB on v7x), and pack the 9 taps into
    # a single K=9*Cin matmul (im2col scratch / block-diag weights) for better MXU fill.
    return pl.pallas_call(
        kernel,
        out_shape=jax.ShapeDtypeStruct((B, Hp, Wp, out_channels), jnp.bfloat16),
        grid=(B,),
        in_specs=[
            pl.BlockSpec((1, H * W, C), lambda b: (b, 0, 0)),
            pl.BlockSpec((9, C, LANE), lambda b: (0, 0, 0)),   # weights resident across grid
            pl.BlockSpec((1, LANE), lambda b: (0, 0)),         # bias resident across grid
        ],
        out_specs=pl.BlockSpec((1, Hp, Wp, out_channels), lambda b: (b, 0, 0, 0)),
        scratch_shapes=[pltpu.VMEM((M, LANE), jnp.float32)],
        compiler_params=pltpu.CompilerParams(
            dimension_semantics=("parallel",),                 # >=2 steps: both v7x TCs run
            vmem_limit_bytes=VMEM_LIMIT),
        cost_estimate=pl.CostEstimate(flops=flops, transcendentals=0,
                                      bytes_accessed=bytes_accessed),
    )(x_flat, w_taps, bias)


# ----------------------------------------------------------------------------
# FC head: fc1 tiled over its reduction axis, fc2/fc3/log_softmax in the epilogue.
# ----------------------------------------------------------------------------
def _fc_head_kernel(x_ref, w1_ref, b1_ref, w2_ref, b2_ref, w3_ref, b3_ref,
                    o_ref, acc_ref):
    k = pl.program_id(0)

    @pl.when(k == 0)
    def _init():
        acc_ref[...] = jnp.zeros_like(acc_ref)

    acc_ref[...] += jnp.dot(x_ref[...], w1_ref[...],
                            preferred_element_type=jnp.float32)

    @pl.when(k == pl.num_programs(0) - 1)
    def _epilogue():
        h = jnp.maximum(acc_ref[...] + b1_ref[...], 0.0)                 # fc1 + ReLU
        h = jnp.dot(h.astype(jnp.bfloat16), w2_ref[...],
                    preferred_element_type=jnp.float32) + b2_ref[...]    # fc2
        h = jnp.maximum(h, 0.0)
        y = jnp.dot(h.astype(jnp.bfloat16), w3_ref[...],
                    preferred_element_type=jnp.float32) + b3_ref[...]    # fc3 (padded to 128)
        # log_softmax over the real classes only; padded lanes are masked out.
        col = lax.broadcasted_iota(jnp.int32, y.shape, 1)
        y = jnp.where(col < NUM_CLASSES, y, jnp.float32(-1e30))
        m = jnp.max(y, axis=1, keepdims=True)
        s = y - m
        lse = jnp.log(jnp.sum(jnp.exp(s), axis=1, keepdims=True))
        o_ref[...] = (s - lse).astype(o_ref.dtype)


def fc_head(x, w1, b1, w2, b2, w3, b3):
    """fc1+ReLU -> fc2+ReLU -> fc3 -> log_softmax; fc1 K-tiled so weights never need
    to fit VMEM whole (fixes the 246*246*16-scale lowering failure)."""
    B, F = x.shape
    tk = FC_TK if (F >= FC_TK and F % FC_TK == 0) else F
    grid_k = F // tk

    def resident(shape):
        return pl.BlockSpec(shape, lambda k, _s=shape: (0,) * len(_s))

    return pl.pallas_call(
        _fc_head_kernel,
        out_shape=jax.ShapeDtypeStruct((B, LANE), jnp.float32),
        grid=(grid_k,),
        in_specs=[
            pl.BlockSpec((B, tk), lambda k: (0, k)),
            pl.BlockSpec((tk, LANE), lambda k: (k, 0)),
            resident((1, LANE)),
            resident((LANE, LANE)), resident((1, LANE)),
            resident((LANE, LANE)), resident((1, LANE)),
        ],
        out_specs=pl.BlockSpec((B, LANE), lambda k: (0, 0)),
        scratch_shapes=[pltpu.VMEM((B, LANE), jnp.float32)],
        compiler_params=pltpu.CompilerParams(
            dimension_semantics=("arbitrary",),                # K is a reduction axis
            vmem_limit_bytes=VMEM_LIMIT),
    )(x, w1, b1, w2, b2, w3, b3)


# ----------------------------------------------------------------------------
# Parameters
# ----------------------------------------------------------------------------
def init_params(key, in_hw):
    """Deterministic params in PyTorch shapes (Linear weight = (out, in)).

    NOTE: the original module hard-codes fc1 in-features = 246*246*16 (implies a
    ~994x994 input); here fc1 is scaled to the small demo spatial size.
    """
    h1 = (in_hw - 2) // 2            # after conv1 + pool
    h2 = (h1 - 2) // 2               # after conv2 + pool
    flat = 16 * h2 * h2
    ks = jax.random.split(key, 10)

    def u(k, shape, fan_in):
        bound = 1.0 / jnp.sqrt(jnp.float32(fan_in))
        return jax.random.uniform(k, shape, jnp.float32, -bound, bound)

    params = dict(
        conv1_w=u(ks[0], (6, 3, 3, 3), 3 * 9), conv1_b=u(ks[1], (6,), 3 * 9),
        conv2_w=u(ks[2], (16, 6, 3, 3), 6 * 9), conv2_b=u(ks[3], (16,), 6 * 9),
        fc1_w=u(ks[4], (120, flat), flat), fc1_b=u(ks[5], (120,), flat),
        fc2_w=u(ks[6], (84, 120), 120), fc2_b=u(ks[7], (84,), 120),
        fc3_w=u(ks[8], (3, 84), 84), fc3_b=u(ks[9], (3,), 84),
    )
    return params, h2


def prepare_params(p, pooled_hw):
    """One-time conversion: PyTorch-shaped params -> kernel-ready (padded/permuted/bf16)."""
    def conv_taps(w):
        # (Cout, Cin, 3, 3) -> (9, Cin, LANE) bf16, taps ordered t = dh*3 + dw
        cout, cin = w.shape[0], w.shape[1]
        taps = jnp.transpose(w, (2, 3, 1, 0)).reshape(9, cin, cout)
        return jnp.pad(taps, ((0, 0), (0, 0), (0, LANE - cout))).astype(jnp.bfloat16)

    def pad_bias(b):
        return jnp.pad(b, (0, LANE - b.shape[0])).reshape(1, LANE).astype(jnp.float32)

    def fc_pad(w):
        wm = w.T                                              # (in, out)
        return jnp.pad(wm, ((0, LANE - wm.shape[0]),
                            (0, LANE - wm.shape[1]))).astype(jnp.bfloat16)

    h2 = w2 = pooled_hw
    flat = 16 * h2 * w2
    # Fold PyTorch's NCHW flatten into fc1's weight row order (kernel output is NHWC).
    fc1 = p["fc1_w"].reshape(120, 16, h2, w2)                 # (out, c, h, w)
    fc1_wm = jnp.transpose(fc1, (2, 3, 1, 0)).reshape(flat, 120)
    tk = FC_TK if flat >= FC_TK else _round_up(flat, LANE)
    f_pad = _round_up(flat, tk)
    fc1_wm = jnp.pad(fc1_wm, ((0, f_pad - flat), (0, LANE - 120))).astype(jnp.bfloat16)

    return dict(
        conv1_w9=conv_taps(p["conv1_w"]), conv1_b=pad_bias(p["conv1_b"]),
        conv2_w9=conv_taps(p["conv2_w"]), conv2_b=pad_bias(p["conv2_b"]),
        fc1_wm=fc1_wm, fc1_b=pad_bias(p["fc1_b"]),
        fc2_wm=fc_pad(p["fc2_w"]), fc2_b=pad_bias(p["fc2_b"]),
        fc3_wm=fc_pad(p["fc3_w"]), fc3_b=pad_bias(p["fc3_b"]),
    )


# ----------------------------------------------------------------------------
# Forward pass (matches ConvolutionalNetwork.forward; input is NCHW)
# ----------------------------------------------------------------------------
def convnet_forward(x_nchw, kp):
    # Cast to bf16 BEFORE any layout work (halves all wrapper-side HBM traffic).
    x = jnp.transpose(x_nchw.astype(jnp.bfloat16), (0, 2, 3, 1))       # NHWC bf16
    y = conv_relu_pool(x, kp["conv1_w9"], kp["conv1_b"], out_channels=6)
    y = conv_relu_pool(y, kp["conv2_w9"], kp["conv2_b"], out_channels=16)
    feat = y.reshape(y.shape[0], -1)        # NHWC flatten (fc1 rows pre-permuted to match)
    f_pad = kp["fc1_wm"].shape[0]
    if feat.shape[1] != f_pad:
        feat = jnp.pad(feat, ((0, 0), (0, f_pad - feat.shape[1])))
    logits = fc_head(feat, kp["fc1_wm"], kp["fc1_b"], kp["fc2_wm"], kp["fc2_b"],
                     kp["fc3_wm"], kp["fc3_b"])
    return logits[:, :NUM_CLASSES]


def reference_forward(x_nchw, p):
    """Pure-JAX/XLA reference mirroring the PyTorch module exactly (all f32)."""
    dn = ("NCHW", "OIHW", "NCHW")
    y = lax.conv_general_dilated(x_nchw, p["conv1_w"], (1, 1), "VALID",
                                 dimension_numbers=dn)
    y = jax.nn.relu(y + p["conv1_b"].reshape(1, -1, 1, 1))
    y = lax.reduce_window(y, -jnp.inf, lax.max, (1, 1, 2, 2), (1, 1, 2, 2), "VALID")
    y = lax.conv_general_dilated(y, p["conv2_w"], (1, 1), "VALID",
                                 dimension_numbers=dn)
    y = jax.nn.relu(y + p["conv2_b"].reshape(1, -1, 1, 1))
    y = lax.reduce_window(y, -jnp.inf, lax.max, (1, 1, 2, 2), (1, 1, 2, 2), "VALID")
    y = y.reshape(y.shape[0], -1)                                      # NCHW flatten
    y = jax.nn.relu(y @ p["fc1_w"].T + p["fc1_b"])
    y = jax.nn.relu(y @ p["fc2_w"].T + p["fc2_b"])
    y = y @ p["fc3_w"].T + p["fc3_b"]
    return jax.nn.log_softmax(y, axis=1)


# ----------------------------------------------------------------------------
# Demo
# ----------------------------------------------------------------------------
if __name__ == "__main__":
    key = jax.random.PRNGKey(0)
    k_params, k_x = jax.random.split(key)

    B, C, HW = 2, 3, 16
    x = jax.random.normal(k_x, (B, C, HW, HW), dtype=jnp.float32)      # NCHW input

    torch_params, pooled_hw = init_params(k_params, in_hw=HW)
    kparams = prepare_params(torch_params, pooled_hw)

    out = jax.block_until_ready(jax.jit(convnet_forward)(x, kparams))
    ref = jax.block_until_ready(jax.jit(reference_forward)(x, torch_params))

    assert out.shape == (B, NUM_CLASSES)
    assert bool(jnp.all(jnp.isfinite(out)))
    # log_softmax rows exponentiate-sum to 1
    assert bool(jnp.allclose(jnp.sum(jnp.exp(out), axis=1), 1.0, atol=1e-3))
    # matches the pure-f32 XLA reference (conv/fc operands are bf16 -> loose tol)
    assert bool(jnp.allclose(out, ref, atol=2.5e-1, rtol=0.0))

    print("KERNEL_OK")
</pallas_src>

<mosaic_0001>
module attributes {stable_mosaic.version = 11 : i64} {
  func.func @kernel(%arg0: i32, %arg1: memref<1x256x3xbf16, #tpu.memory_space<vmem>>, %arg2: memref<9x3x128xbf16, #tpu.memory_space<vmem>>, %arg3: memref<1x128xf32, #tpu.memory_space<vmem>>, %arg4: memref<1x7x7x6xbf16, #tpu.memory_space<vmem>>, %arg5: memref<222x128xf32, #tpu.memory_space<vmem>>) attributes {dimension_semantics = [#tpu.dimension_semantics<parallel>], iteration_bounds = array<i64: 2>, scalar_prefetch = 0 : i64, scratch_operands = 1 : i64, tpu.core_type = #tpu.core_type<tc>, window_params = [{transform_indices = @transform_0, window_bounds = array<i64: 1, 256, 3>}, {pipeline_mode = #tpu.pipeline_mode<synchronous>, transform_indices = @transform_1, window_bounds = array<i64: 9, 3, 128>}, {pipeline_mode = #tpu.pipeline_mode<synchronous>, transform_indices = @transform_2, window_bounds = array<i64: 1, 128>}, {transform_indices = @transform_3, window_bounds = array<i64: 1, 7, 7, 6>}]} {
    %c0 = arith.constant 0 : index
    %c0_0 = arith.constant 0 : index
    %c0_1 = arith.constant 0 : index
    %0 = vector.load %arg1[%c0, %c0_0, %c0_1] : memref<1x256x3xbf16, #tpu.memory_space<vmem>>, vector<1x222x3xbf16>
    %1 = vector.shape_cast %0 : vector<1x222x3xbf16> to vector<222x3xbf16>
    %c0_2 = arith.constant 0 : index
    %c0_3 = arith.constant 0 : index
    %c0_4 = arith.constant 0 : index
    %2 = vector.load %arg2[%c0_2, %c0_3, %c0_4] : memref<9x3x128xbf16, #tpu.memory_space<vmem>>, vector<1x3x128xbf16>
    %3 = vector.shape_cast %2 : vector<1x3x128xbf16> to vector<3x128xbf16>
    %cst = arith.constant dense<0.000000e+00> : vector<222x128xf32>
    %4 = tpu.matmul %1, %3, %cst {dimension_numbers = #tpu.dot_dimension_numbers<[1], [0], [0], [1], [0, 0, 1, 1], [], []>} : vector<222x3xbf16>, vector<3x128xbf16>, vector<222x128xf32> -> vector<222x128xf32>
    %c0_5 = arith.constant 0 : index
    %c0_6 = arith.constant 0 : index
    %5 = vector.load %arg5[%c0_5, %c0_6] : memref<222x128xf32, #tpu.memory_space<vmem>>, vector<222x128xf32>
    tpu.vector_store %arg5[%c0_5, %c0_6], %4 {strides = array<i32>} : memref<222x128xf32, #tpu.memory_space<vmem>>, vector<222x128xf32>,
    %c0_7 = arith.constant 0 : index
    %c1 = arith.constant 1 : index
    %c0_8 = arith.constant 0 : index
    %6 = vector.load %arg1[%c0_7, %c1, %c0_8] : memref<1x256x3xbf16, #tpu.memory_space<vmem>>, vector<1x222x3xbf16>
    %7 = vector.shape_cast %6 : vector<1x222x3xbf16> to vector<222x3xbf16>
    %c1_9 = arith.constant 1 : index
    %c0_10 = arith.constant 0 : index
    %c0_11 = arith.constant 0 : index
    %8 = vector.load %arg2[%c1_9, %c0_10, %c0_11] : memref<9x3x128xbf16, #tpu.memory_space<vmem>>, vector<1x3x128xbf16>
    %9 = vector.shape_cast %8 : vector<1x3x128xbf16> to vector<3x128xbf16>
    %cst_12 = arith.constant dense<0.000000e+00> : vector<222x128xf32>
    %10 = tpu.matmul %7, %9, %cst_12 {dimension_numbers = #tpu.dot_dimension_numbers<[1], [0], [0], [1], [0, 0, 1, 1], [], []>} : vector<222x3xbf16>, vector<3x128xbf16>, vector<222x128xf32> -> vector<222x128xf32>
    %c0_13 = arith.constant 0 : index
    %c0_14 = arith.constant 0 : index
    %11 = vector.load %arg5[%c0_13, %c0_14] : memref<222x128xf32, #tpu.memory_space<vmem>>, vector<222x128xf32>
    %12 = arith.addf %11, %10 : vector<222x128xf32>
    %c0_15 = arith.constant 0 : index
    %c0_16 = arith.constant 0 : index
    %13 = vector.load %arg5[%c0_15, %c0_16] : memref<222x128xf32, #tpu.memory_space<vmem>>, vector<222x128xf32>
    tpu.vector_store %arg5[%c0_15, %c0_16], %12 {strides = array<i32>} : memref<222x128xf32, #tpu.memory_space<vmem>>, vector<222x128xf32>,
    %c0_17 = arith.constant 0 : index
    %c2 = arith.constant 2 : index
    %c0_18 = arith.constant 0 : index
    %14 = vector.load %arg1[%c0_17, %c2, %c0_18] : memref<1x256x3xbf16, #tpu.memory_space<vmem>>, vector<1x222x3xbf16>
    %15 = vector.shape_cast %14 : vector<1x222x3xbf16> to vector<222x3xbf16>
    %c2_19 = arith.constant 2 : index
    %c0_20 = arith.constant 0 : index
    %c0_21 = arith.constant 0 : index
    %16 = vector.load %arg2[%c2_19, %c0_20, %c0_21] : memref<9x3x128xbf16, #tpu.memory_space<vmem>>, vector<1x3x128xbf16>
    %17 = vector.shape_cast %16 : vector<1x3x128xbf16> to vector<3x128xbf16>
    %cst_22 = arith.constant dense<0.000000e+00> : vector<222x128xf32>
    %18 = tpu.matmul %15, %17, %cst_22 {dimension_numbers = #tpu.dot_dimension_numbers<[1], [0], [0], [1], [0, 0, 1, 1], [], []>} : vector<222x3xbf16>, vector<3x128xbf16>, vector<222x128xf32> -> vector<222x128xf32>
    %c0_23 = arith.constant 0 : index
    %c0_24 = arith.constant 0 : index
    %19 = vector.load %arg5[%c0_23, %c0_24] : memref<222x128xf32, #tpu.memory_space<vmem>>, vector<222x128xf32>
    %20 = arith.addf %19, %18 : vector<222x128xf32>
    %c0_25 = arith.constant 0 : index
    %c0_26 = arith.constant 0 : index
    %21 = vector.load %arg5[%c0_25, %c0_26] : memref<222x128xf32, #tpu.memory_space<vmem>>, vector<222x128xf32>
    tpu.vector_store %arg5[%c0_25, %c0_26], %20 {strides = array<i32>} : memref<222x128xf32, #tpu.memory_space<vmem>>, vector<222x128xf32>,
    %c0_27 = arith.constant 0 : index
    %c16 = arith.constant 16 : index
    %c0_28 = arith.constant 0 : index
    %22 = vector.load %arg1[%c0_27, %c16, %c0_28] : memref<1x256x3xbf16, #tpu.memory_space<vmem>>, vector<1x222x3xbf16>
    %23 = vector.shape_cast %22 : vector<1x222x3xbf16> to vector<222x3xbf16>
    %c3 = arith.constant 3 : index
    %c0_29 = arith.constant 0 : index
    %c0_30 = arith.constant 0 : index
    %24 = vector.load %arg2[%c3, %c0_29, %c0_30] : memref<9x3x128xbf16, #tpu.memory_space<vmem>>, vector<1x3x128xbf16>
    %25 = vector.shape_cast %24 : vector<1x3x128xbf16> to vector<3x128xbf16>
    %cst_31 = arith.constant dense<0.000000e+00> : vector<222x128xf32>
    %26 = tpu.matmul %23, %25, %cst_31 {dimension_numbers = #tpu.dot_dimension_numbers<[1], [0], [0], [1], [0, 0, 1, 1], [], []>} : vector<222x3xbf16>, vector<3x128xbf16>, vector<222x128xf32> -> vector<222x128xf32>
    %c0_32 = arith.constant 0 : index
    %c0_33 = arith.constant 0 : index
    %27 = vector.load %arg5[%c0_32, %c0_33] : memref<222x128xf32, #tpu.memory_space<vmem>>, vector<222x128xf32>
    %28 = arith.addf %27, %26 : vector<222x128xf32>
    %c0_34 = arith.constant 0 : index
    %c0_35 = arith.constant 0 : index
    %29 = vector.load %arg5[%c0_34, %c0_35] : memref<222x128xf32, #tpu.memory_space<vmem>>, vector<222x128xf32>
    tpu.vector_store %arg5[%c0_34, %c0_35], %28 {strides = array<i32>} : memref<222x128xf32, #tpu.memory_space<vmem>>, vector<222x128xf32>,
    %c0_36 = arith.constant 0 : index
    %c17 = arith.constant 17 : index
    %c0_37 = arith.constant 0 : index
    %30 = vector.load %arg1[%c0_36, %c17, %c0_37] : memref<1x256x3xbf16, #tpu.memory_space<vmem>>, vector<1x222x3xbf16>
    %31 = vector.shape_cast %30 : vector<1x222x3xbf16> to vector<222x3xbf16>
    %c4 = arith.constant 4 : index
    %c0_38 = arith.constant 0 : index
    %c0_39 = arith.constant 0 : index
    %32 = vector.load %arg2[%c4, %c0_38, %c0_39] : memref<9x3x128xbf16, #tpu.memory_space<vmem>>, vector<1x3x128xbf16>
    %33 = vector.shape_cast %32 : vector<1x3x128xbf16> to vector<3x128xbf16>
    %cst_40 = arith.constant dense<0.000000e+00> : vector<222x128xf32>
    %34 = tpu.matmul %31, %33, %cst_40 {dimension_numbers = #tpu.dot_dimension_numbers<[1], [0], [0], [1], [0, 0, 1, 1], [], []>} : vector<222x3xbf16>, vector<3x128xbf16>, vector<222x128xf32> -> vector<222x128xf32>
    %c0_41 = arith.constant 0 : index
    %c0_42 = arith.constant 0 : index
    %35 = vector.load %arg5[%c0_41, %c0_42] : memref<222x128xf32, #tpu.memory_space<vmem>>, vector<222x128xf32>
    %36 = arith.addf %35, %34 : vector<222x128xf32>
    %c0_43 = arith.constant 0 : index
    %c0_44 = arith.constant 0 : index
    %37 = vector.load %arg5[%c0_43, %c0_44] : memref<222x128xf32, #tpu.memory_space<vmem>>, vector<222x128xf32>
    tpu.vector_store %arg5[%c0_43, %c0_44], %36 {strides = array<i32>} : memref<222x128xf32, #tpu.memory_space<vmem>>, vector<222x128xf32>,
    %c0_45 = arith.constant 0 : index
    %c18 = arith.constant 18 : index
    %c0_46 = arith.constant 0 : index
    %38 = vector.load %arg1[%c0_45, %c18, %c0_46] : memref<1x256x3xbf16, #tpu.memory_space<vmem>>, vector<1x222x3xbf16>
    %39 = vector.shape_cast %38 : vector<1x222x3xbf16> to vector<222x3xbf16>
    %c5 = arith.constant 5 : index
    %c0_47 = arith.constant 0 : index
    %c0_48 = arith.constant 0 : index
    %40 = vector.load %arg2[%c5, %c0_47, %c0_48] : memref<9x3x128xbf16, #tpu.memory_space<vmem>>, vector<1x3x128xbf16>
    %41 = vector.shape_cast %40 : vector<1x3x128xbf16> to vector<3x128xbf16>
    %cst_49 = arith.constant dense<0.000000e+00> : vector<222x128xf32>
    %42 = tpu.matmul %39, %41, %cst_49 {dimension_numbers = #tpu.dot_dimension_numbers<[1], [0], [0], [1], [0, 0, 1, 1], [], []>} : vector<222x3xbf16>, vector<3x128xbf16>, vector<222x128xf32> -> vector<222x128xf32>
    %c0_50 = arith.constant 0 : index
    %c0_51 = arith.constant 0 : index
    %43 = vector.load %arg5[%c0_50, %c0_51] : memref<222x128xf32, #tpu.memory_space<vmem>>, vector<222x128xf32>
    %44 = arith.addf %43, %42 : vector<222x128xf32>
    %c0_52 = arith.constant 0 : index
    %c0_53 = arith.constant 0 : index
    %45 = vector.load %arg5[%c0_52, %c0_53] : memref<222x128xf32, #tpu.memory_space<vmem>>, vector<222x128xf32>
    tpu.vector_store %arg5[%c0_52, %c0_53], %44 {strides = array<i32>} : memref<222x128xf32, #tpu.memory_space<vmem>>, vector<222x128xf32>,
    %c0_54 = arith.constant 0 : index
    %c32 = arith.constant 32 : index
    %c0_55 = arith.constant 0 : index
    %46 = vector.load %arg1[%c0_54, %c32, %c0_55] : memref<1x256x3xbf16, #tpu.memory_space<vmem>>, vector<1x222x3xbf16>
    %47 = vector.shape_cast %46 : vector<1x222x3xbf16> to vector<222x3xbf16>
    %c6 = arith.constant 6 : index
    %c0_56 = arith.constant 0 : index
    %c0_57 = arith.constant 0 : index
    %48 = vector.load %arg2[%c6, %c0_56, %c0_57] : memref<9x3x128xbf16, #tpu.memory_space<vmem>>, vector<1x3x128xbf16>
    %49 = vector.shape_cast %48 : vector<1x3x128xbf16> to vector<3x128xbf16>
    %cst_58 = arith.constant dense<0.000000e+00> : vector<222x128xf32>
    %50 = tpu.matmul %47, %49, %cst_58 {dimension_numbers = #tpu.dot_dimension_numbers<[1], [0], [0], [1], [0, 0, 1, 1], [], []>} : vector<222x3xbf16>, vector<3x128xbf16>, vector<222x128xf32> -> vector<222x128xf32>
    %c0_59 = arith.constant 0 : index
    %c0_60 = arith.constant 0 : index
    %51 = vector.load %arg5[%c0_59, %c0_60] : memref<222x128xf32, #tpu.memory_space<vmem>>, vector<222x128xf32>
    %52 = arith.addf %51, %50 : vector<222x128xf32>
    %c0_61 = arith.constant 0 : index
    %c0_62 = arith.constant 0 : index
    %53 = vector.load %arg5[%c0_61, %c0_62] : memref<222x128xf32, #tpu.memory_space<vmem>>, vector<222x128xf32>
    tpu.vector_store %arg5[%c0_61, %c0_62], %52 {strides = array<i32>} : memref<222x128xf32, #tpu.memory_space<vmem>>, vector<222x128xf32>,
    %c0_63 = arith.constant 0 : index
    %c33 = arith.constant 33 : index
    %c0_64 = arith.constant 0 : index
    %54 = vector.load %arg1[%c0_63, %c33, %c0_64] : memref<1x256x3xbf16, #tpu.memory_space<vmem>>, vector<1x222x3xbf16>
    %55 = vector.shape_cast %54 : vector<1x222x3xbf16> to vector<222x3xbf16>
    %c7 = arith.constant 7 : index
    %c0_65 = arith.constant 0 : index
    %c0_66 = arith.constant 0 : index
    %56 = vector.load %arg2[%c7, %c0_65, %c0_66] : memref<9x3x128xbf16, #tpu.memory_space<vmem>>, vector<1x3x128xbf16>
    %57 = vector.shape_cast %56 : vector<1x3x128xbf16> to vector<3x128xbf16>
    %cst_67 = arith.constant dense<0.000000e+00> : vector<222x128xf32>
    %58 = tpu.matmul %55, %57, %cst_67 {dimension_numbers = #tpu.dot_dimension_numbers<[1], [0], [0], [1], [0, 0, 1, 1], [], []>} : vector<222x3xbf16>, vector<3x128xbf16>, vector<222x128xf32> -> vector<222x128xf32>
    %c0_68 = arith.constant 0 : index
    %c0_69 = arith.constant 0 : index
    %59 = vector.load %arg5[%c0_68, %c0_69] : memref<222x128xf32, #tpu.memory_space<vmem>>, vector<222x128xf32>
    %60 = arith.addf %59, %58 : vector<222x128xf32>
    %c0_70 = arith.constant 0 : index
    %c0_71 = arith.constant 0 : index
    %61 = vector.load %arg5[%c0_70, %c0_71] : memref<222x128xf32, #tpu.memory_space<vmem>>, vector<222x128xf32>
    tpu.vector_store %arg5[%c0_70, %c0_71], %60 {strides = array<i32>} : memref<222x128xf32, #tpu.memory_space<vmem>>, vector<222x128xf32>,
    %c0_72 = arith.constant 0 : index
    %c34 = arith.constant 34 : index
    %c0_73 = arith.constant 0 : index
    %62 = vector.load %arg1[%c0_72, %c34, %c0_73] : memref<1x256x3xbf16, #tpu.memory_space<vmem>>, vector<1x222x3xbf16>
    %63 = vector.shape_cast %62 : vector<1x222x3xbf16> to vector<222x3xbf16>
    %c8 = arith.constant 8 : index
    %c0_74 = arith.constant 0 : index
    %c0_75 = arith.constant 0 : index
    %64 = vector.load %arg2[%c8, %c0_74, %c0_75] : memref<9x3x128xbf16, #tpu.memory_space<vmem>>, vector<1x3x128xbf16>
    %65 = vector.shape_cast %64 : vector<1x3x128xbf16> to vector<3x128xbf16>
    %cst_76 = arith.constant dense<0.000000e+00> : vector<222x128xf32>
    %66 = tpu.matmul %63, %65, %cst_76 {dimension_numbers = #tpu.dot_dimension_numbers<[1], [0], [0], [1], [0, 0, 1, 1], [], []>} : vector<222x3xbf16>, vector<3x128xbf16>, vector<222x128xf32> -> vector<222x128xf32>
    %c0_77 = arith.constant 0 : index
    %c0_78 = arith.constant 0 : index
    %67 = vector.load %arg5[%c0_77, %c0_78] : memref<222x128xf32, #tpu.memory_space<vmem>>, vector<222x128xf32>
    %68 = arith.addf %67, %66 : vector<222x128xf32>
    %c0_79 = arith.constant 0 : index
    %c0_80 = arith.constant 0 : index
    %69 = vector.load %arg5[%c0_79, %c0_80] : memref<222x128xf32, #tpu.memory_space<vmem>>, vector<222x128xf32>
    tpu.vector_store %arg5[%c0_79, %c0_80], %68 {strides = array<i32>} : memref<222x128xf32, #tpu.memory_space<vmem>>, vector<222x128xf32>,
    %c0_81 = arith.constant 0 : index
    %c0_82 = arith.constant 0 : index
    %70 = vector.load %arg5[%c0_81, %c0_82] : memref<222x128xf32, #tpu.memory_space<vmem>>, vector<222x128xf32>
    %c0_83 = arith.constant 0 : index
    %c0_84 = arith.constant 0 : index
    %71 = vector.load %arg3[%c0_83, %c0_84] : memref<1x128xf32, #tpu.memory_space<vmem>>, vector<1x128xf32>
    %72 = vector.broadcast %71 : vector<1x128xf32> to vector<222x128xf32>
    %73 = arith.addf %70, %72 : vector<222x128xf32>
    %cst_85 = arith.constant 0.000000e+00 : f32
    %74 = vector.broadcast %cst_85 : f32 to vector<222x128xf32>
    %75 = arith.maximumf %73, %74 : vector<222x128xf32>
    %c0_86 = arith.constant 0 : index
    %c0_87 = arith.constant 0 : index
    %76 = vector.load %arg5[%c0_86, %c0_87] : memref<222x128xf32, #tpu.memory_space<vmem>>, vector<222x128xf32>
    tpu.vector_store %arg5[%c0_86, %c0_87], %75 {strides = array<i32>} : memref<222x128xf32, #tpu.memory_space<vmem>>, vector<222x128xf32>,
    %c0_88 = arith.constant 0 : index
    %c0_89 = arith.constant 0 : index
    %77 = tpu.strided_load %arg5[%c0_88, %c0_89] {strides = array<i32: 2, 1>} : memref<222x128xf32, #tpu.memory_space<vmem>>, vector<7x128xf32>
    %c1_90 = arith.constant 1 : index
    %c0_91 = arith.constant 0 : index
    %78 = tpu.strided_load %arg5[%c1_90, %c0_91] {strides = array<i32: 2, 1>} : memref<222x128xf32, #tpu.memory_space<vmem>>, vector<7x128xf32>
    %79 = arith.maximumf %77, %78 : vector<7x128xf32>
    %c16_92 = arith.constant 16 : index
    %c0_93 = arith.constant 0 : index
    %80 = tpu.strided_load %arg5[%c16_92, %c0_93] {strides = array<i32: 2, 1>} : memref<222x128xf32, #tpu.memory_space<vmem>>, vector<7x128xf32>
    %81 = arith.maximumf %79, %80 : vector<7x128xf32>
    %c17_94 = arith.constant 17 : index
    %c0_95 = arith.constant 0 : index
    %82 = tpu.strided_load %arg5[%c17_94, %c0_95] {strides = array<i32: 2, 1>} : memref<222x128xf32, #tpu.memory_space<vmem>>, vector<7x128xf32>
    %83 = arith.maximumf %81, %82 : vector<7x128xf32>
    %84 = vector.extract_strided_slice %83 {offsets = [0, 0], sizes = [7, 6], strides = [1, 1]} : vector<7x128xf32> to vector<7x6xf32>
    %85 = arith.truncf %84 : vector<7x6xf32> to vector<7x6xbf16>
    %c0_96 = arith.constant 0 : index
    %c0_97 = arith.constant 0 : index
    %c0_98 = arith.constant 0 : index
    %c0_99 = arith.constant 0 : index
    %86 = vector.load %arg4[%c0_96, %c0_97, %c0_98, %c0_99] : memref<1x7x7x6xbf16, #tpu.memory_space<vmem>>, vector<1x1x7x6xbf16>
    %87 = vector.shape_cast %86 : vector<1x1x7x6xbf16> to vector<7x6xbf16>
    %88 = vector.shape_cast %85 : vector<7x6xbf16> to vector<1x1x7x6xbf16>
    tpu.vector_store %arg4[%c0_96, %c0_97, %c0_98, %c0_99], %88 {strides = array<i32>} : memref<1x7x7x6xbf16, #tpu.memory_space<vmem>>, vector<1x1x7x6xbf16>,
    %c32_100 = arith.constant 32 : index
    %c0_101 = arith.constant 0 : index
    %89 = tpu.strided_load %arg5[%c32_100, %c0_101] {strides = array<i32: 2, 1>} : memref<222x128xf32, #tpu.memory_space<vmem>>, vector<7x128xf32>
    %c33_102 = arith.constant 33 : index
    %c0_103 = arith.constant 0 : index
    %90 = tpu.strided_load %arg5[%c33_102, %c0_103] {strides = array<i32: 2, 1>} : memref<222x128xf32, #tpu.memory_space<vmem>>, vector<7x128xf32>
    %91 = arith.maximumf %89, %90 : vector<7x128xf32>
    %c48 = arith.constant 48 : index
    %c0_104 = arith.constant 0 : index
    %92 = tpu.strided_load %arg5[%c48, %c0_104] {strides = array<i32: 2, 1>} : memref<222x128xf32, #tpu.memory_space<vmem>>, vector<7x128xf32>
    %93 = arith.maximumf %91, %92 : vector<7x128xf32>
    %c49 = arith.constant 49 : index
    %c0_105 = arith.constant 0 : index
    %94 = tpu.strided_load %arg5[%c49, %c0_105] {strides = array<i32: 2, 1>} : memref<222x128xf32, #tpu.memory_space<vmem>>, vector<7x128xf32>
    %95 = arith.maximumf %93, %94 : vector<7x128xf32>
    %96 = vector.extract_strided_slice %95 {offsets = [0, 0], sizes = [7, 6], strides = [1, 1]} : vector<7x128xf32> to vector<7x6xf32>
    %97 = arith.truncf %96 : vector<7x6xf32> to vector<7x6xbf16>
    %c0_106 = arith.constant 0 : index
    %c1_107 = arith.constant 1 : index
    %c0_108 = arith.constant 0 : index
    %c0_109 = arith.constant 0 : index
    %98 = vector.load %arg4[%c0_106, %c1_107, %c0_108, %c0_109] : memref<1x7x7x6xbf16, #tpu.memory_space<vmem>>, vector<1x1x7x6xbf16>
    %99 = vector.shape_cast %98 : vector<1x1x7x6xbf16> to vector<7x6xbf16>
    %100 = vector.shape_cast %97 : vector<7x6xbf16> to vector<1x1x7x6xbf16>
    tpu.vector_store %arg4[%c0_106, %c1_107, %c0_108, %c0_109], %100 {strides = array<i32>} : memref<1x7x7x6xbf16, #tpu.memory_space<vmem>>, vector<1x1x7x6xbf16>,
    %c64 = arith.constant 64 : index
    %c0_110 = arith.constant 0 : index
    %101 = tpu.strided_load %arg5[%c64, %c0_110] {strides = array<i32: 2, 1>} : memref<222x128xf32, #tpu.memory_space<vmem>>, vector<7x128xf32>
    %c65 = arith.constant 65 : index
    %c0_111 = arith.constant 0 : index
    %102 = tpu.strided_load %arg5[%c65, %c0_111] {strides = array<i32: 2, 1>} : memref<222x128xf32, #tpu.memory_space<vmem>>, vector<7x128xf32>
    %103 = arith.maximumf %101, %102 : vector<7x128xf32>
    %c80 = arith.constant 80 : index
    %c0_112 = arith.constant 0 : index
    %104 = tpu.strided_load %arg5[%c80, %c0_112] {strides = array<i32: 2, 1>} : memref<222x128xf32, #tpu.memory_space<vmem>>, vector<7x128xf32>
    %105 = arith.maximumf %103, %104 : vector<7x128xf32>
    %c81 = arith.constant 81 : index
    %c0_113 = arith.constant 0 : index
    %106 = tpu.strided_load %arg5[%c81, %c0_113] {strides = array<i32: 2, 1>} : memref<222x128xf32, #tpu.memory_space<vmem>>, vector<7x128xf32>
    %107 = arith.maximumf %105, %106 : vector<7x128xf32>
    %108 = vector.extract_strided_slice %107 {offsets = [0, 0], sizes = [7, 6], strides = [1, 1]} : vector<7x128xf32> to vector<7x6xf32>
    %109 = arith.truncf %108 : vector<7x6xf32> to vector<7x6xbf16>
    %c0_114 = arith.constant 0 : index
    %c2_115 = arith.constant 2 : index
    %c0_116 = arith.constant 0 : index
    %c0_117 = arith.constant 0 : index
    %110 = vector.load %arg4[%c0_114, %c2_115, %c0_116, %c0_117] : memref<1x7x7x6xbf16, #tpu.memory_space<vmem>>, vector<1x1x7x6xbf16>
    %111 = vector.shape_cast %110 : vector<1x1x7x6xbf16> to vector<7x6xbf16>
    %112 = vector.shape_cast %109 : vector<7x6xbf16> to vector<1x1x7x6xbf16>
    tpu.vector_store %arg4[%c0_114, %c2_115, %c0_116, %c0_117], %112 {strides = array<i32>} : memref<1x7x7x6xbf16, #tpu.memory_space<vmem>>, vector<1x1x7x6xbf16>,
    %c96 = arith.constant 96 : index
    %c0_118 = arith.constant 0 : index
    %113 = tpu.strided_load %arg5[%c96, %c0_118] {strides = array<i32: 2, 1>} : memref<222x128xf32, #tpu.memory_space<vmem>>, vector<7x128xf32>
    %c97 = arith.constant 97 : index
    %c0_119 = arith.constant 0 : index
    %114 = tpu.strided_load %arg5[%c97, %c0_119] {strides = array<i32: 2, 1>} : memref<222x128xf32, #tpu.memory_space<vmem>>, vector<7x128xf32>
    %115 = arith.maximumf %113, %114 : vector<7x128xf32>
    %c112 = arith.constant 112 : index
    %c0_120 = arith.constant 0 : index
    %116 = tpu.strided_load %arg5[%c112, %c0_120] {strides = array<i32: 2, 1>} : memref<222x128xf32, #tpu.memory_space<vmem>>, vector<7x128xf32>
    %117 = arith.maximumf %115, %116 : vector<7x128xf32>
    %c113 = arith.constant 113 : index
    %c0_121 = arith.constant 0 : index
    %118 = tpu.strided_load %arg5[%c113, %c0_121] {strides = array<i32: 2, 1>} : memref<222x128xf32, #tpu.memory_space<vmem>>, vector<7x128xf32>
    %119 = arith.maximumf %117, %118 : vector<7x128xf32>
    %120 = vector.extract_strided_slice %119 {offsets = [0, 0], sizes = [7, 6], strides = [1, 1]} : vector<7x128xf32> to vector<7x6xf32>
    %121 = arith.truncf %120 : vector<7x6xf32> to vector<7x6xbf16>
    %c0_122 = arith.constant 0 : index
    %c3_123 = arith.constant 3 : index
    %c0_124 = arith.constant 0 : index
    %c0_125 = arith.constant 0 : index
    %122 = vector.load %arg4[%c0_122, %c3_123, %c0_124, %c0_125] : memref<1x7x7x6xbf16, #tpu.memory_space<vmem>>, vector<1x1x7x6xbf16>
    %123 = vector.shape_cast %122 : vector<1x1x7x6xbf16> to vector<7x6xbf16>
    %124 = vector.shape_cast %121 : vector<7x6xbf16> to vector<1x1x7x6xbf16>
    tpu.vector_store %arg4[%c0_122, %c3_123, %c0_124, %c0_125], %124 {strides = array<i32>} : memref<1x7x7x6xbf16, #tpu.memory_space<vmem>>, vector<1x1x7x6xbf16>,
    %c128 = arith.constant 128 : index
    %c0_126 = arith.constant 0 : index
    %125 = tpu.strided_load %arg5[%c128, %c0_126] {strides = array<i32: 2, 1>} : memref<222x128xf32, #tpu.memory_space<vmem>>, vector<7x128xf32>
    %c129 = arith.constant 129 : index
    %c0_127 = arith.constant 0 : index
    %126 = tpu.strided_load %arg5[%c129, %c0_127] {strides = array<i32: 2, 1>} : memref<222x128xf32, #tpu.memory_space<vmem>>, vector<7x128xf32>
    %127 = arith.maximumf %125, %126 : vector<7x128xf32>
    %c144 = arith.constant 144 : index
    %c0_128 = arith.constant 0 : index
    %128 = tpu.strided_load %arg5[%c144, %c0_128] {strides = array<i32: 2, 1>} : memref<222x128xf32, #tpu.memory_space<vmem>>, vector<7x128xf32>
    %129 = arith.maximumf %127, %128 : vector<7x128xf32>
    %c145 = arith.constant 145 : index
    %c0_129 = arith.constant 0 : index
    %130 = tpu.strided_load %arg5[%c145, %c0_129] {strides = array<i32: 2, 1>} : memref<222x128xf32, #tpu.memory_space<vmem>>, vector<7x128xf32>
    %131 = arith.maximumf %129, %130 : vector<7x128xf32>
    %132 = vector.extract_strided_slice %131 {offsets = [0, 0], sizes = [7, 6], strides = [1, 1]} : vector<7x128xf32> to vector<7x6xf32>
    %133 = arith.truncf %132 : vector<7x6xf32> to vector<7x6xbf16>
    %c0_130 = arith.constant 0 : index
    %c4_131 = arith.constant 4 : index
    %c0_132 = arith.constant 0 : index
    %c0_133 = arith.constant 0 : index
    %134 = vector.load %arg4[%c0_130, %c4_131, %c0_132, %c0_133] : memref<1x7x7x6xbf16, #tpu.memory_space<vmem>>, vector<1x1x7x6xbf16>
    %135 = vector.shape_cast %134 : vector<1x1x7x6xbf16> to vector<7x6xbf16>
    %136 = vector.shape_cast %133 : vector<7x6xbf16> to vector<1x1x7x6xbf16>
    tpu.vector_store %arg4[%c0_130, %c4_131, %c0_132, %c0_133], %136 {strides = array<i32>} : memref<1x7x7x6xbf16, #tpu.memory_space<vmem>>, vector<1x1x7x6xbf16>,
    %c160 = arith.constant 160 : index
    %c0_134 = arith.constant 0 : index
    %137 = tpu.strided_load %arg5[%c160, %c0_134] {strides = array<i32: 2, 1>} : memref<222x128xf32, #tpu.memory_space<vmem>>, vector<7x128xf32>
    %c161 = arith.constant 161 : index
    %c0_135 = arith.constant 0 : index
    %138 = tpu.strided_load %arg5[%c161, %c0_135] {strides = array<i32: 2, 1>} : memref<222x128xf32, #tpu.memory_space<vmem>>, vector<7x128xf32>
    %139 = arith.maximumf %137, %138 : vector<7x128xf32>
    %c176 = arith.constant 176 : index
    %c0_136 = arith.constant 0 : index
    %140 = tpu.strided_load %arg5[%c176, %c0_136] {strides = array<i32: 2, 1>} : memref<222x128xf32, #tpu.memory_space<vmem>>, vector<7x128xf32>
    %141 = arith.maximumf %139, %140 : vector<7x128xf32>
    %c177 = arith.constant 177 : index
    %c0_137 = arith.constant 0 : index
    %142 = tpu.strided_load %arg5[%c177, %c0_137] {strides = array<i32: 2, 1>} : memref<222x128xf32, #tpu.memory_space<vmem>>, vector<7x128xf32>
    %143 = arith.maximumf %141, %142 : vector<7x128xf32>
    %144 = vector.extract_strided_slice %143 {offsets = [0, 0], sizes = [7, 6], strides = [1, 1]} : vector<7x128xf32> to vector<7x6xf32>
    %145 = arith.truncf %144 : vector<7x6xf32> to vector<7x6xbf16>
    %c0_138 = arith.constant 0 : index
    %c5_139 = arith.constant 5 : index
    %c0_140 = arith.constant 0 : index
    %c0_141 = arith.constant 0 : index
    %146 = vector.load %arg4[%c0_138, %c5_139, %c0_140, %c0_141] : memref<1x7x7x6xbf16, #tpu.memory_space<vmem>>, vector<1x1x7x6xbf16>
    %147 = vector.shape_cast %146 : vector<1x1x7x6xbf16> to vector<7x6xbf16>
    %148 = vector.shape_cast %145 : vector<7x6xbf16> to vector<1x1x7x6xbf16>
    tpu.vector_store %arg4[%c0_138, %c5_139, %c0_140, %c0_141], %148 {strides = array<i32>} : memref<1x7x7x6xbf16, #tpu.memory_space<vmem>>, vector<1x1x7x6xbf16>,
    %c192 = arith.constant 192 : index
    %c0_142 = arith.constant 0 : index
    %149 = tpu.strided_load %arg5[%c192, %c0_142] {strides = array<i32: 2, 1>} : memref<222x128xf32, #tpu.memory_space<vmem>>, vector<7x128xf32>
    %c193 = arith.constant 193 : index
    %c0_143 = arith.constant 0 : index
    %150 = tpu.strided_load %arg5[%c193, %c0_143] {strides = array<i32: 2, 1>} : memref<222x128xf32, #tpu.memory_space<vmem>>, vector<7x128xf32>
    %151 = arith.maximumf %149, %150 : vector<7x128xf32>
    %c208 = arith.constant 208 : index
    %c0_144 = arith.constant 0 : index
    %152 = tpu.strided_load %arg5[%c208, %c0_144] {strides = array<i32: 2, 1>} : memref<222x128xf32, #tpu.memory_space<vmem>>, vector<7x128xf32>
    %153 = arith.maximumf %151, %152 : vector<7x128xf32>
    %c209 = arith.constant 209 : index
    %c0_145 = arith.constant 0 : index
    %154 = tpu.strided_load %arg5[%c209, %c0_145] {strides = array<i32: 2, 1>} : memref<222x128xf32, #tpu.memory_space<vmem>>, vector<7x128xf32>
    %155 = arith.maximumf %153, %154 : vector<7x128xf32>
    %156 = vector.extract_strided_slice %155 {offsets = [0, 0], sizes = [7, 6], strides = [1, 1]} : vector<7x128xf32> to vector<7x6xf32>
    %157 = arith.truncf %156 : vector<7x6xf32> to vector<7x6xbf16>
    %c0_146 = arith.constant 0 : index
    %c6_147 = arith.constant 6 : index
    %c0_148 = arith.constant 0 : index
    %c0_149 = arith.constant 0 : index
    %158 = vector.load %arg4[%c0_146, %c6_147, %c0_148, %c0_149] : memref<1x7x7x6xbf16, #tpu.memory_space<vmem>>, vector<1x1x7x6xbf16>
    %159 = vector.shape_cast %158 : vector<1x1x7x6xbf16> to vector<7x6xbf16>
    %160 = vector.shape_cast %157 : vector<7x6xbf16> to vector<1x1x7x6xbf16>
    tpu.vector_store %arg4[%c0_146, %c6_147, %c0_148, %c0_149], %160 {strides = array<i32>} : memref<1x7x7x6xbf16, #tpu.memory_space<vmem>>, vector<1x1x7x6xbf16>,
    return
  }
  func.func @transform_0(%arg0: i32) -> (i32, i32, i32) {
    %c0_i32 = arith.constant 0 : i32
    %c0_i32_0 = arith.constant 0 : i32
    %c0_i32_1 = arith.constant 0 : i32
    return %arg0, %c0_i32, %c0_i32_0 : i32, i32, i32
  }
  func.func @transform_1(%arg0: i32) -> (i32, i32, i32) {
    %c0_i32 = arith.constant 0 : i32
    %c0_i32_0 = arith.constant 0 : i32
    %c0_i32_1 = arith.constant 0 : i32
    %c0_i32_2 = arith.constant 0 : i32
    return %c0_i32, %c0_i32_0, %c0_i32_1 : i32, i32, i32
  }
  func.func @transform_2(%arg0: i32) -> (i32, i32) {
    %c0_i32 = arith.constant 0 : i32
    %c0_i32_0 = arith.constant 0 : i32
    %c0_i32_1 = arith.constant 0 : i32
    return %c0_i32, %c0_i32_0 : i32, i32
  }
  func.func @transform_3(%arg0: i32) -> (i32, i32, i32, i32) {
    %c0_i32 = arith.constant 0 : i32
    %c0_i32_0 = arith.constant 0 : i32
    %c0_i32_1 = arith.constant 0 : i32
    %c0_i32_2 = arith.constant 0 : i32
    return %arg0, %c0_i32, %c0_i32_0, %c0_i32_1 : i32, i32, i32, i32
  }
}

module attributes {stable_mosaic.version = 11 : i64} {
  func.func @kernel(%arg0: i32, %arg1: memref<1x49x6xbf16, #tpu.memory_space<vmem>>, %arg2: memref<9x6x128xbf16, #tpu.memory_space<vmem>>, %arg3: memref<1x128xf32, #tpu.memory_space<vmem>>, %arg4: memref<1x2x2x16xbf16, #tpu.memory_space<vmem>>, %arg5: memref<33x128xf32, #tpu.memory_space<vmem>>) attributes {dimension_semantics = [#tpu.dimension_semantics<parallel>], iteration_bounds = array<i64: 2>, scalar_prefetch = 0 : i64, scratch_operands = 1 : i64, tpu.core_type = #tpu.core_type<tc>, window_params = [{transform_indices = @transform_0, window_bounds = array<i64: 1, 49, 6>}, {pipeline_mode = #tpu.pipeline_mode<synchronous>, transform_indices = @transform_1, window_bounds = array<i64: 9, 6, 128>}, {pipeline_mode = #tpu.pipeline_mode<synchronous>, transform_indices = @transform_2, window_bounds = array<i64: 1, 128>}, {transform_indices = @transform_3, window_bounds = array<i64: 1, 2, 2, 16>}]} {
    %c0 = arith.constant 0 : index
    %c0_0 = arith.constant 0 : index
    %c0_1 = arith.constant 0 : index
    %0 = vector.load %arg1[%c0, %c0_0, %c0_1] : memref<1x49x6xbf16, #tpu.memory_space<vmem>>, vector<1x33x6xbf16>
    %1 = vector.shape_cast %0 : vector<1x33x6xbf16> to vector<33x6xbf16>
    %c0_2 = arith.constant 0 : index
    %c0_3 = arith.constant 0 : index
    %c0_4 = arith.constant 0 : index
    %2 = vector.load %arg2[%c0_2, %c0_3, %c0_4] : memref<9x6x128xbf16, #tpu.memory_space<vmem>>, vector<1x6x128xbf16>
    %3 = vector.shape_cast %2 : vector<1x6x128xbf16> to vector<6x128xbf16>
    %cst = arith.constant dense<0.000000e+00> : vector<33x128xf32>
    %4 = tpu.matmul %1, %3, %cst {dimension_numbers = #tpu.dot_dimension_numbers<[1], [0], [0], [1], [0, 0, 1, 1], [], []>} : vector<33x6xbf16>, vector<6x128xbf16>, vector<33x128xf32> -> vector<33x128xf32>
    %c0_5 = arith.constant 0 : index
    %c0_6 = arith.constant 0 : index
    %5 = vector.load %arg5[%c0_5, %c0_6] : memref<33x128xf32, #tpu.memory_space<vmem>>, vector<33x128xf32>
    tpu.vector_store %arg5[%c0_5, %c0_6], %4 {strides = array<i32>} : memref<33x128xf32, #tpu.memory_space<vmem>>, vector<33x128xf32>,
    %c0_7 = arith.constant 0 : index
    %c1 = arith.constant 1 : index
    %c0_8 = arith.constant 0 : index
    %6 = vector.load %arg1[%c0_7, %c1, %c0_8] : memref<1x49x6xbf16, #tpu.memory_space<vmem>>, vector<1x33x6xbf16>
    %7 = vector.shape_cast %6 : vector<1x33x6xbf16> to vector<33x6xbf16>
    %c1_9 = arith.constant 1 : index
    %c0_10 = arith.constant 0 : index
    %c0_11 = arith.constant 0 : index
    %8 = vector.load %arg2[%c1_9, %c0_10, %c0_11] : memref<9x6x128xbf16, #tpu.memory_space<vmem>>, vector<1x6x128xbf16>
    %9 = vector.shape_cast %8 : vector<1x6x128xbf16> to vector<6x128xbf16>
    %cst_12 = arith.constant dense<0.000000e+00> : vector<33x128xf32>
    %10 = tpu.matmul %7, %9, %cst_12 {dimension_numbers = #tpu.dot_dimension_numbers<[1], [0], [0], [1], [0, 0, 1, 1], [], []>} : vector<33x6xbf16>, vector<6x128xbf16>, vector<33x128xf32> -> vector<33x128xf32>
    %c0_13 = arith.constant 0 : index
    %c0_14 = arith.constant 0 : index
    %11 = vector.load %arg5[%c0_13, %c0_14] : memref<33x128xf32, #tpu.memory_space<vmem>>, vector<33x128xf32>
    %12 = arith.addf %11, %10 : vector<33x128xf32>
    %c0_15 = arith.constant 0 : index
    %c0_16 = arith.constant 0 : index
    %13 = vector.load %arg5[%c0_15, %c0_16] : memref<33x128xf32, #tpu.memory_space<vmem>>, vector<33x128xf32>
    tpu.vector_store %arg5[%c0_15, %c0_16], %12 {strides = array<i32>} : memref<33x128xf32, #tpu.memory_space<vmem>>, vector<33x128xf32>,
    %c0_17 = arith.constant 0 : index
    %c2 = arith.constant 2 : index
    %c0_18 = arith.constant 0 : index
    %14 = vector.load %arg1[%c0_17, %c2, %c0_18] : memref<1x49x6xbf16, #tpu.memory_space<vmem>>, vector<1x33x6xbf16>
    %15 = vector.shape_cast %14 : vector<1x33x6xbf16> to vector<33x6xbf16>
    %c2_19 = arith.constant 2 : index
    %c0_20 = arith.constant 0 : index
    %c0_21 = arith.constant 0 : index
    %16 = vector.load %arg2[%c2_19, %c0_20, %c0_21] : memref<9x6x128xbf16, #tpu.memory_space<vmem>>, vector<1x6x128xbf16>
    %17 = vector.shape_cast %16 : vector<1x6x128xbf16> to vector<6x128xbf16>
    %cst_22 = arith.constant dense<0.000000e+00> : vector<33x128xf32>
    %18 = tpu.matmul %15, %17, %cst_22 {dimension_numbers = #tpu.dot_dimension_numbers<[1], [0], [0], [1], [0, 0, 1, 1], [], []>} : vector<33x6xbf16>, vector<6x128xbf16>, vector<33x128xf32> -> vector<33x128xf32>
    %c0_23 = arith.constant 0 : index
    %c0_24 = arith.constant 0 : index
    %19 = vector.load %arg5[%c0_23, %c0_24] : memref<33x128xf32, #tpu.memory_space<vmem>>, vector<33x128xf32>
    %20 = arith.addf %19, %18 : vector<33x128xf32>
    %c0_25 = arith.constant 0 : index
    %c0_26 = arith.constant 0 : index
    %21 = vector.load %arg5[%c0_25, %c0_26] : memref<33x128xf32, #tpu.memory_space<vmem>>, vector<33x128xf32>
    tpu.vector_store %arg5[%c0_25, %c0_26], %20 {strides = array<i32>} : memref<33x128xf32, #tpu.memory_space<vmem>>, vector<33x128xf32>,
    %c0_27 = arith.constant 0 : index
    %c7 = arith.constant 7 : index
    %c0_28 = arith.constant 0 : index
    %22 = vector.load %arg1[%c0_27, %c7, %c0_28] : memref<1x49x6xbf16, #tpu.memory_space<vmem>>, vector<1x33x6xbf16>
    %23 = vector.shape_cast %22 : vector<1x33x6xbf16> to vector<33x6xbf16>
    %c3 = arith.constant 3 : index
    %c0_29 = arith.constant 0 : index
    %c0_30 = arith.constant 0 : index
    %24 = vector.load %arg2[%c3, %c0_29, %c0_30] : memref<9x6x128xbf16, #tpu.memory_space<vmem>>, vector<1x6x128xbf16>
    %25 = vector.shape_cast %24 : vector<1x6x128xbf16> to vector<6x128xbf16>
    %cst_31 = arith.constant dense<0.000000e+00> : vector<33x128xf32>
    %26 = tpu.matmul %23, %25, %cst_31 {dimension_numbers = #tpu.dot_dimension_numbers<[1], [0], [0], [1], [0, 0, 1, 1], [], []>} : vector<33x6xbf16>, vector<6x128xbf16>, vector<33x128xf32> -> vector<33x128xf32>
    %c0_32 = arith.constant 0 : index
    %c0_33 = arith.constant 0 : index
    %27 = vector.load %arg5[%c0_32, %c0_33] : memref<33x128xf32, #tpu.memory_space<vmem>>, vector<33x128xf32>
    %28 = arith.addf %27, %26 : vector<33x128xf32>
    %c0_34 = arith.constant 0 : index
    %c0_35 = arith.constant 0 : index
    %29 = vector.load %arg5[%c0_34, %c0_35] : memref<33x128xf32, #tpu.memory_space<vmem>>, vector<33x128xf32>
    tpu.vector_store %arg5[%c0_34, %c0_35], %28 {strides = array<i32>} : memref<33x128xf32, #tpu.memory_space<vmem>>, vector<33x128xf32>,
    %c0_36 = arith.constant 0 : index
    %c8 = arith.constant 8 : index
    %c0_37 = arith.constant 0 : index
    %30 = vector.load %arg1[%c0_36, %c8, %c0_37] : memref<1x49x6xbf16, #tpu.memory_space<vmem>>, vector<1x33x6xbf16>
    %31 = vector.shape_cast %30 : vector<1x33x6xbf16> to vector<33x6xbf16>
    %c4 = arith.constant 4 : index
    %c0_38 = arith.constant 0 : index
    %c0_39 = arith.constant 0 : index
    %32 = vector.load %arg2[%c4, %c0_38, %c0_39] : memref<9x6x128xbf16, #tpu.memory_space<vmem>>, vector<1x6x128xbf16>
    %33 = vector.shape_cast %32 : vector<1x6x128xbf16> to vector<6x128xbf16>
    %cst_40 = arith.constant dense<0.000000e+00> : vector<33x128xf32>
    %34 = tpu.matmul %31, %33, %cst_40 {dimension_numbers = #tpu.dot_dimension_numbers<[1], [0], [0], [1], [0, 0, 1, 1], [], []>} : vector<33x6xbf16>, vector<6x128xbf16>, vector<33x128xf32> -> vector<33x128xf32>
    %c0_41 = arith.constant 0 : index
    %c0_42 = arith.constant 0 : index
    %35 = vector.load %arg5[%c0_41, %c0_42] : memref<33x128xf32, #tpu.memory_space<vmem>>, vector<33x128xf32>
    %36 = arith.addf %35, %34 : vector<33x128xf32>
    %c0_43 = arith.constant 0 : index
    %c0_44 = arith.constant 0 : index
    %37 = vector.load %arg5[%c0_43, %c0_44] : memref<33x128xf32, #tpu.memory_space<vmem>>, vector<33x128xf32>
    tpu.vector_store %arg5[%c0_43, %c0_44], %36 {strides = array<i32>} : memref<33x128xf32, #tpu.memory_space<vmem>>, vector<33x128xf32>,
    %c0_45 = arith.constant 0 : index
    %c9 = arith.constant 9 : index
    %c0_46 = arith.constant 0 : index
    %38 = vector.load %arg1[%c0_45, %c9, %c0_46] : memref<1x49x6xbf16, #tpu.memory_space<vmem>>, vector<1x33x6xbf16>
    %39 = vector.shape_cast %38 : vector<1x33x6xbf16> to vector<33x6xbf16>
    %c5 = arith.constant 5 : index
    %c0_47 = arith.constant 0 : index
    %c0_48 = arith.constant 0 : index
    %40 = vector.load %arg2[%c5, %c0_47, %c0_48] : memref<9x6x128xbf16, #tpu.memory_space<vmem>>, vector<1x6x128xbf16>
    %41 = vector.shape_cast %40 : vector<1x6x128xbf16> to vector<6x128xbf16>
    %cst_49 = arith.constant dense<0.000000e+00> : vector<33x128xf32>
    %42 = tpu.matmul %39, %41, %cst_49 {dimension_numbers = #tpu.dot_dimension_numbers<[1], [0], [0], [1], [0, 0, 1, 1], [], []>} : vector<33x6xbf16>, vector<6x128xbf16>, vector<33x128xf32> -> vector<33x128xf32>
    %c0_50 = arith.constant 0 : index
    %c0_51 = arith.constant 0 : index
    %43 = vector.load %arg5[%c0_50, %c0_51] : memref<33x128xf32, #tpu.memory_space<vmem>>, vector<33x128xf32>
    %44 = arith.addf %43, %42 : vector<33x128xf32>
    %c0_52 = arith.constant 0 : index
    %c0_53 = arith.constant 0 : index
    %45 = vector.load %arg5[%c0_52, %c0_53] : memref<33x128xf32, #tpu.memory_space<vmem>>, vector<33x128xf32>
    tpu.vector_store %arg5[%c0_52, %c0_53], %44 {strides = array<i32>} : memref<33x128xf32, #tpu.memory_space<vmem>>, vector<33x128xf32>,
    %c0_54 = arith.constant 0 : index
    %c14 = arith.constant 14 : index
    %c0_55 = arith.constant 0 : index
    %46 = vector.load %arg1[%c0_54, %c14, %c0_55] : memref<1x49x6xbf16, #tpu.memory_space<vmem>>, vector<1x33x6xbf16>
    %47 = vector.shape_cast %46 : vector<1x33x6xbf16> to vector<33x6xbf16>
    %c6 = arith.constant 6 : index
    %c0_56 = arith.constant 0 : index
    %c0_57 = arith.constant 0 : index
    %48 = vector.load %arg2[%c6, %c0_56, %c0_57] : memref<9x6x128xbf16, #tpu.memory_space<vmem>>, vector<1x6x128xbf16>
    %49 = vector.shape_cast %48 : vector<1x6x128xbf16> to vector<6x128xbf16>
    %cst_58 = arith.constant dense<0.000000e+00> : vector<33x128xf32>
    %50 = tpu.matmul %47, %49, %cst_58 {dimension_numbers = #tpu.dot_dimension_numbers<[1], [0], [0], [1], [0, 0, 1, 1], [], []>} : vector<33x6xbf16>, vector<6x128xbf16>, vector<33x128xf32> -> vector<33x128xf32>
    %c0_59 = arith.constant 0 : index
    %c0_60 = arith.constant 0 : index
    %51 = vector.load %arg5[%c0_59, %c0_60] : memref<33x128xf32, #tpu.memory_space<vmem>>, vector<33x128xf32>
    %52 = arith.addf %51, %50 : vector<33x128xf32>
    %c0_61 = arith.constant 0 : index
    %c0_62 = arith.constant 0 : index
    %53 = vector.load %arg5[%c0_61, %c0_62] : memref<33x128xf32, #tpu.memory_space<vmem>>, vector<33x128xf32>
    tpu.vector_store %arg5[%c0_61, %c0_62], %52 {strides = array<i32>} : memref<33x128xf32, #tpu.memory_space<vmem>>, vector<33x128xf32>,
    %c0_63 = arith.constant 0 : index
    %c15 = arith.constant 15 : index
    %c0_64 = arith.constant 0 : index
    %54 = vector.load %arg1[%c0_63, %c15, %c0_64] : memref<1x49x6xbf16, #tpu.memory_space<vmem>>, vector<1x33x6xbf16>
    %55 = vector.shape_cast %54 : vector<1x33x6xbf16> to vector<33x6xbf16>
    %c7_65 = arith.constant 7 : index
    %c0_66 = arith.constant 0 : index
    %c0_67 = arith.constant 0 : index
    %56 = vector.load %arg2[%c7_65, %c0_66, %c0_67] : memref<9x6x128xbf16, #tpu.memory_space<vmem>>, vector<1x6x128xbf16>
    %57 = vector.shape_cast %56 : vector<1x6x128xbf16> to vector<6x128xbf16>
    %cst_68 = arith.constant dense<0.000000e+00> : vector<33x128xf32>
    %58 = tpu.matmul %55, %57, %cst_68 {dimension_numbers = #tpu.dot_dimension_numbers<[1], [0], [0], [1], [0, 0, 1, 1], [], []>} : vector<33x6xbf16>, vector<6x128xbf16>, vector<33x128xf32> -> vector<33x128xf32>
    %c0_69 = arith.constant 0 : index
    %c0_70 = arith.constant 0 : index
    %59 = vector.load %arg5[%c0_69, %c0_70] : memref<33x128xf32, #tpu.memory_space<vmem>>, vector<33x128xf32>
    %60 = arith.addf %59, %58 : vector<33x128xf32>
    %c0_71 = arith.constant 0 : index
    %c0_72 = arith.constant 0 : index
    %61 = vector.load %arg5[%c0_71, %c0_72] : memref<33x128xf32, #tpu.memory_space<vmem>>, vector<33x128xf32>
    tpu.vector_store %arg5[%c0_71, %c0_72], %60 {strides = array<i32>} : memref<33x128xf32, #tpu.memory_space<vmem>>, vector<33x128xf32>,
    %c0_73 = arith.constant 0 : index
    %c16 = arith.constant 16 : index
    %c0_74 = arith.constant 0 : index
    %62 = vector.load %arg1[%c0_73, %c16, %c0_74] : memref<1x49x6xbf16, #tpu.memory_space<vmem>>, vector<1x33x6xbf16>
    %63 = vector.shape_cast %62 : vector<1x33x6xbf16> to vector<33x6xbf16>
    %c8_75 = arith.constant 8 : index
    %c0_76 = arith.constant 0 : index
    %c0_77 = arith.constant 0 : index
    %64 = vector.load %arg2[%c8_75, %c0_76, %c0_77] : memref<9x6x128xbf16, #tpu.memory_space<vmem>>, vector<1x6x128xbf16>
    %65 = vector.shape_cast %64 : vector<1x6x128xbf16> to vector<6x128xbf16>
    %cst_78 = arith.constant dense<0.000000e+00> : vector<33x128xf32>
    %66 = tpu.matmul %63, %65, %cst_78 {dimension_numbers = #tpu.dot_dimension_numbers<[1], [0], [0], [1], [0, 0, 1, 1], [], []>} : vector<33x6xbf16>, vector<6x128xbf16>, vector<33x128xf32> -> vector<33x128xf32>
    %c0_79 = arith.constant 0 : index
    %c0_80 = arith.constant 0 : index
    %67 = vector.load %arg5[%c0_79, %c0_80] : memref<33x128xf32, #tpu.memory_space<vmem>>, vector<33x128xf32>
    %68 = arith.addf %67, %66 : vector<33x128xf32>
    %c0_81 = arith.constant 0 : index
    %c0_82 = arith.constant 0 : index
    %69 = vector.load %arg5[%c0_81, %c0_82] : memref<33x128xf32, #tpu.memory_space<vmem>>, vector<33x128xf32>
    tpu.vector_store %arg5[%c0_81, %c0_82], %68 {strides = array<i32>} : memref<33x128xf32, #tpu.memory_space<vmem>>, vector<33x128xf32>,
    %c0_83 = arith.constant 0 : index
    %c0_84 = arith.constant 0 : index
    %70 = vector.load %arg5[%c0_83, %c0_84] : memref<33x128xf32, #tpu.memory_space<vmem>>, vector<33x128xf32>
    %c0_85 = arith.constant 0 : index
    %c0_86 = arith.constant 0 : index
    %71 = vector.load %arg3[%c0_85, %c0_86] : memref<1x128xf32, #tpu.memory_space<vmem>>, vector<1x128xf32>
    %72 = vector.broadcast %71 : vector<1x128xf32> to vector<33x128xf32>
    %73 = arith.addf %70, %72 : vector<33x128xf32>
    %cst_87 = arith.constant 0.000000e+00 : f32
    %74 = vector.broadcast %cst_87 : f32 to vector<33x128xf32>
    %75 = arith.maximumf %73, %74 : vector<33x128xf32>
    %c0_88 = arith.constant 0 : index
    %c0_89 = arith.constant 0 : index
    %76 = vector.load %arg5[%c0_88, %c0_89] : memref<33x128xf32, #tpu.memory_space<vmem>>, vector<33x128xf32>
    tpu.vector_store %arg5[%c0_88, %c0_89], %75 {strides = array<i32>} : memref<33x128xf32, #tpu.memory_space<vmem>>, vector<33x128xf32>,
    %c0_90 = arith.constant 0 : index
    %c0_91 = arith.constant 0 : index
    %77 = tpu.strided_load %arg5[%c0_90, %c0_91] {strides = array<i32: 2, 1>} : memref<33x128xf32, #tpu.memory_space<vmem>>, vector<2x128xf32>
    %c1_92 = arith.constant 1 : index
    %c0_93 = arith.constant 0 : index
    %78 = tpu.strided_load %arg5[%c1_92, %c0_93] {strides = array<i32: 2, 1>} : memref<33x128xf32, #tpu.memory_space<vmem>>, vector<2x128xf32>
    %79 = arith.maximumf %77, %78 : vector<2x128xf32>
    %c7_94 = arith.constant 7 : index
    %c0_95 = arith.constant 0 : index
    %80 = tpu.strided_load %arg5[%c7_94, %c0_95] {strides = array<i32: 2, 1>} : memref<33x128xf32, #tpu.memory_space<vmem>>, vector<2x128xf32>
    %81 = arith.maximumf %79, %80 : vector<2x128xf32>
    %c8_96 = arith.constant 8 : index
    %c0_97 = arith.constant 0 : index
    %82 = tpu.strided_load %arg5[%c8_96, %c0_97] {strides = array<i32: 2, 1>} : memref<33x128xf32, #tpu.memory_space<vmem>>, vector<2x128xf32>
    %83 = arith.maximumf %81, %82 : vector<2x128xf32>
    %84 = vector.extract_strided_slice %83 {offsets = [0, 0], sizes = [2, 16], strides = [1, 1]} : vector<2x128xf32> to vector<2x16xf32>
    %85 = arith.truncf %84 : vector<2x16xf32> to vector<2x16xbf16>
    %c0_98 = arith.constant 0 : index
    %c0_99 = arith.constant 0 : index
    %c0_100 = arith.constant 0 : index
    %c0_101 = arith.constant 0 : index
    %86 = vector.load %arg4[%c0_98, %c0_99, %c0_100, %c0_101] : memref<1x2x2x16xbf16, #tpu.memory_space<vmem>>, vector<1x1x2x16xbf16>
    %87 = vector.shape_cast %86 : vector<1x1x2x16xbf16> to vector<2x16xbf16>
    %88 = vector.shape_cast %85 : vector<2x16xbf16> to vector<1x1x2x16xbf16>
    tpu.vector_store %arg4[%c0_98, %c0_99, %c0_100, %c0_101], %88 {strides = array<i32>} : memref<1x2x2x16xbf16, #tpu.memory_space<vmem>>, vector<1x1x2x16xbf16>,
    %c14_102 = arith.constant 14 : index
    %c0_103 = arith.constant 0 : index
    %89 = tpu.strided_load %arg5[%c14_102, %c0_103] {strides = array<i32: 2, 1>} : memref<33x128xf32, #tpu.memory_space<vmem>>, vector<2x128xf32>
    %c15_104 = arith.constant 15 : index
    %c0_105 = arith.constant 0 : index
    %90 = tpu.strided_load %arg5[%c15_104, %c0_105] {strides = array<i32: 2, 1>} : memref<33x128xf32, #tpu.memory_space<vmem>>, vector<2x128xf32>
    %91 = arith.maximumf %89, %90 : vector<2x128xf32>
    %c21 = arith.constant 21 : index
    %c0_106 = arith.constant 0 : index
    %92 = tpu.strided_load %arg5[%c21, %c0_106] {strides = array<i32: 2, 1>} : memref<33x128xf32, #tpu.memory_space<vmem>>, vector<2x128xf32>
    %93 = arith.maximumf %91, %92 : vector<2x128xf32>
    %c22 = arith.constant 22 : index
    %c0_107 = arith.constant 0 : index
    %94 = tpu.strided_load %arg5[%c22, %c0_107] {strides = array<i32: 2, 1>} : memref<33x128xf32, #tpu.memory_space<vmem>>, vector<2x128xf32>
    %95 = arith.maximumf %93, %94 : vector<2x128xf32>
    %96 = vector.extract_strided_slice %95 {offsets = [0, 0], sizes = [2, 16], strides = [1, 1]} : vector<2x128xf32> to vector<2x16xf32>
    %97 = arith.truncf %96 : vector<2x16xf32> to vector<2x16xbf16>
    %c0_108 = arith.constant 0 : index
    %c1_109 = arith.constant 1 : index
    %c0_110 = arith.constant 0 : index
    %c0_111 = arith.constant 0 : index
    %98 = vector.load %arg4[%c0_108, %c1_109, %c0_110, %c0_111] : memref<1x2x2x16xbf16, #tpu.memory_space<vmem>>, vector<1x1x2x16xbf16>
    %99 = vector.shape_cast %98 : vector<1x1x2x16xbf16> to vector<2x16xbf16>
    %100 = vector.shape_cast %97 : vector<2x16xbf16> to vector<1x1x2x16xbf16>
    tpu.vector_store %arg4[%c0_108, %c1_109, %c0_110, %c0_111], %100 {strides = array<i32>} : memref<1x2x2x16xbf16, #tpu.memory_space<vmem>>, vector<1x1x2x16xbf16>,
    return
  }
  func.func @transform_0(%arg0: i32) -> (i32, i32, i32) {
    %c0_i32 = arith.constant 0 : i32
    %c0_i32_0 = arith.constant 0 : i32
    %c0_i32_1 = arith.constant 0 : i32
    return %arg0, %c0_i32, %c0_i32_0 : i32, i32, i32
  }
  func.func @transform_1(%arg0: i32) -> (i32, i32, i32) {
    %c0_i32 = arith.constant 0 : i32
    %c0_i32_0 = arith.constant 0 : i32
    %c0_i32_1 = arith.constant 0 : i32
    %c0_i32_2 = arith.constant 0 : i32
    return %c0_i32, %c0_i32_0, %c0_i32_1 : i32, i32, i32
  }
  func.func @transform_2(%arg0: i32) -> (i32, i32) {
    %c0_i32 = arith.constant 0 : i32
    %c0_i32_0 = arith.constant 0 : i32
    %c0_i32_1 = arith.constant 0 : i32
    return %c0_i32, %c0_i32_0 : i32, i32
  }
  func.func @transform_3(%arg0: i32) -> (i32, i32, i32, i32) {
    %c0_i32 = arith.constant 0 : i32
    %c0_i32_0 = arith.constant 0 : i32
    %c0_i32_1 = arith.constant 0 : i32
    %c0_i32_2 = arith.constant 0 : i32
    return %arg0, %c0_i32, %c0_i32_0, %c0_i32_1 : i32, i32, i32, i32
  }
}

module attributes {stable_mosaic.version = 11 : i64} {
  func.func @_fc_head_kernel(%arg0: i32, %arg1: memref<2x128xbf16, #tpu.memory_space<vmem>>, %arg2: memref<128x128xbf16, #tpu.memory_space<vmem>>, %arg3: memref<1x128xf32, #tpu.memory_space<vmem>>, %arg4: memref<128x128xbf16, #tpu.memory_space<vmem>>, %arg5: memref<1x128xf32, #tpu.memory_space<vmem>>, %arg6: memref<128x128xbf16, #tpu.memory_space<vmem>>, %arg7: memref<1x128xf32, #tpu.memory_space<vmem>>, %arg8: memref<2x128xf32, #tpu.memory_space<vmem>>, %arg9: memref<2x128xf32, #tpu.memory_space<vmem>>) attributes {dimension_semantics = [#tpu.dimension_semantics<arbitrary>], iteration_bounds = array<i64: 1>, scalar_prefetch = 0 : i64, scratch_operands = 1 : i64, tpu.core_type = #tpu.core_type<tc>, window_params = [{transform_indices = @transform_0, window_bounds = array<i64: 2, 128>}, {transform_indices = @transform_1, window_bounds = array<i64: 128, 128>}, {pipeline_mode = #tpu.pipeline_mode<synchronous>, transform_indices = @transform_2, window_bounds = array<i64: 1, 128>}, {pipeline_mode = #tpu.pipeline_mode<synchronous>, transform_indices = @transform_3, window_bounds = array<i64: 128, 128>}, {pipeline_mode = #tpu.pipeline_mode<synchronous>, transform_indices = @transform_4, window_bounds = array<i64: 1, 128>}, {pipeline_mode = #tpu.pipeline_mode<synchronous>, transform_indices = @transform_5, window_bounds = array<i64: 128, 128>}, {pipeline_mode = #tpu.pipeline_mode<synchronous>, transform_indices = @transform_6, window_bounds = array<i64: 1, 128>}, {pipeline_mode = #tpu.pipeline_mode<synchronous>, transform_indices = @transform_7, window_bounds = array<i64: 2, 128>}]} {
    %c0_i32 = arith.constant 0 : i32
    %0 = arith.cmpi eq, %arg0, %c0_i32 : i32
    %1 = arith.extui %0 : i1 to i32
    %c0_i32_0 = arith.constant 0 : i32
    %2 = arith.cmpi ne, %1, %c0_i32_0 : i32
    scf.if %2 {
      %cst_10 = arith.constant 0.000000e+00 : f32
      %12 = vector.broadcast %cst_10 : f32 to vector<2x128xf32>
      %c0_11 = arith.constant 0 : index
      %c0_12 = arith.constant 0 : index
      %13 = vector.load %arg9[%c0_11, %c0_12] : memref<2x128xf32, #tpu.memory_space<vmem>>, vector<2x128xf32>
      tpu.vector_store %arg9[%c0_11, %c0_12], %12 {strides = array<i32>} : memref<2x128xf32, #tpu.memory_space<vmem>>, vector<2x128xf32>,
    } else {
    }
    %c0 = arith.constant 0 : index
    %c0_1 = arith.constant 0 : index
    %3 = vector.load %arg9[%c0, %c0_1] : memref<2x128xf32, #tpu.memory_space<vmem>>, vector<2x128xf32>
    %c0_2 = arith.constant 0 : index
    %c0_3 = arith.constant 0 : index
    %4 = vector.load %arg1[%c0_2, %c0_3] : memref<2x128xbf16, #tpu.memory_space<vmem>>, vector<2x128xbf16>
    %c0_4 = arith.constant 0 : index
    %c0_5 = arith.constant 0 : index
    %5 = vector.load %arg2[%c0_4, %c0_5] : memref<128x128xbf16, #tpu.memory_space<vmem>>, vector<128x128xbf16>
    %cst = arith.constant dense<0.000000e+00> : vector<2x128xf32>
    %6 = tpu.matmul %4, %5, %cst {dimension_numbers = #tpu.dot_dimension_numbers<[1], [0], [0], [1], [0, 0, 1, 1], [], []>} : vector<2x128xbf16>, vector<128x128xbf16>, vector<2x128xf32> -> vector<2x128xf32>
    %7 = arith.addf %3, %6 : vector<2x128xf32>
    %c0_6 = arith.constant 0 : index
    %c0_7 = arith.constant 0 : index
    %8 = vector.load %arg9[%c0_6, %c0_7] : memref<2x128xf32, #tpu.memory_space<vmem>>, vector<2x128xf32>
    tpu.vector_store %arg9[%c0_6, %c0_7], %7 {strides = array<i32>} : memref<2x128xf32, #tpu.memory_space<vmem>>, vector<2x128xf32>,
    %c0_i32_8 = arith.constant 0 : i32
    %9 = arith.cmpi eq, %arg0, %c0_i32_8 : i32
    %10 = arith.extui %9 : i1 to i32
    %c0_i32_9 = arith.constant 0 : i32
    %11 = arith.cmpi ne, %10, %c0_i32_9 : i32
    scf.if %11 {
      %c0_10 = arith.constant 0 : index
      %c0_11 = arith.constant 0 : index
      %12 = vector.load %arg9[%c0_10, %c0_11] : memref<2x128xf32, #tpu.memory_space<vmem>>, vector<2x128xf32>
      %c0_12 = arith.constant 0 : index
      %c0_13 = arith.constant 0 : index
      %13 = vector.load %arg3[%c0_12, %c0_13] : memref<1x128xf32, #tpu.memory_space<vmem>>, vector<1x128xf32>
      %14 = vector.broadcast %13 : vector<1x128xf32> to vector<2x128xf32>
      %15 = arith.addf %12, %14 : vector<2x128xf32>
      %cst_14 = arith.constant 0.000000e+00 : f32
      %16 = vector.broadcast %cst_14 : f32 to vector<2x128xf32>
      %17 = arith.maximumf %15, %16 : vector<2x128xf32>
      %18 = arith.truncf %17 : vector<2x128xf32> to vector<2x128xbf16>
      %c0_15 = arith.constant 0 : index
      %c0_16 = arith.constant 0 : index
      %19 = vector.load %arg4[%c0_15, %c0_16] : memref<128x128xbf16, #tpu.memory_space<vmem>>, vector<128x128xbf16>
      %cst_17 = arith.constant dense<0.000000e+00> : vector<2x128xf32>
      %20 = tpu.matmul %18, %19, %cst_17 {dimension_numbers = #tpu.dot_dimension_numbers<[1], [0], [0], [1], [0, 0, 1, 1], [], []>} : vector<2x128xbf16>, vector<128x128xbf16>, vector<2x128xf32> -> vector<2x128xf32>
      %c0_18 = arith.constant 0 : index
      %c0_19 = arith.constant 0 : index
      %21 = vector.load %arg5[%c0_18, %c0_19] : memref<1x128xf32, #tpu.memory_space<vmem>>, vector<1x128xf32>
      %22 = vector.broadcast %21 : vector<1x128xf32> to vector<2x128xf32>
      %23 = arith.addf %20, %22 : vector<2x128xf32>
      %cst_20 = arith.constant 0.000000e+00 : f32
      %24 = vector.broadcast %cst_20 : f32 to vector<2x128xf32>
      %25 = arith.maximumf %23, %24 : vector<2x128xf32>
      %26 = arith.truncf %25 : vector<2x128xf32> to vector<2x128xbf16>
      %c0_21 = arith.constant 0 : index
      %c0_22 = arith.constant 0 : index
      %27 = vector.load %arg6[%c0_21, %c0_22] : memref<128x128xbf16, #tpu.memory_space<vmem>>, vector<128x128xbf16>
      %cst_23 = arith.constant dense<0.000000e+00> : vector<2x128xf32>
      %28 = tpu.matmul %26, %27, %cst_23 {dimension_numbers = #tpu.dot_dimension_numbers<[1], [0], [0], [1], [0, 0, 1, 1], [], []>} : vector<2x128xbf16>, vector<128x128xbf16>, vector<2x128xf32> -> vector<2x128xf32>
      %c0_24 = arith.constant 0 : index
      %c0_25 = arith.constant 0 : index
      %29 = vector.load %arg7[%c0_24, %c0_25] : memref<1x128xf32, #tpu.memory_space<vmem>>, vector<1x128xf32>
      %30 = vector.broadcast %29 : vector<1x128xf32> to vector<2x128xf32>
      %31 = arith.addf %28, %30 : vector<2x128xf32>
      %32 = tpu.iota {dimensions = array<i32: 1>} : vector<2x128xi32>
      %c3_i32 = arith.constant 3 : i32
      %33 = vector.broadcast %c3_i32 : i32 to vector<2x128xi32>
      %34 = arith.cmpi slt, %32, %33 : vector<2x128xi32>
      %cst_26 = arith.constant -1.000000e+30 : f32
      %35 = vector.broadcast %cst_26 : f32 to vector<2x128xf32>
      %36 = arith.select %34, %31, %35 : vector<2x128xi1>, vector<2x128xf32>
      %cst_27 = arith.constant dense<0xFF800000> : vector<2xf32>
      %37 = vector.multi_reduction <maximumf>, %36, %cst_27 [1] : vector<2x128xf32> to vector<2xf32>
      %38 = vector.shape_cast %37 : vector<2xf32> to vector<2x1xf32>
      %39 = vector.broadcast %38 : vector<2x1xf32> to vector<2x128xf32>
      %40 = arith.subf %36, %39 : vector<2x128xf32>
      %41 = math.exp %40 : vector<2x128xf32>
      %cst_28 = arith.constant dense<0.000000e+00> : vector<2xf32>
      %42 = vector.multi_reduction <add>, %41, %cst_28 [1] : vector<2x128xf32> to vector<2xf32>
      %43 = vector.shape_cast %42 : vector<2xf32> to vector<2x1xf32>
      %44 = math.log %43 : vector<2x1xf32>
      %45 = vector.broadcast %44 : vector<2x1xf32> to vector<2x128xf32>
      %46 = arith.subf %40, %45 : vector<2x128xf32>
      %c0_29 = arith.constant 0 : index
      %c0_30 = arith.constant 0 : index
      %47 = vector.load %arg8[%c0_29, %c0_30] : memref<2x128xf32, #tpu.memory_space<vmem>>, vector<2x128xf32>
      tpu.vector_store %arg8[%c0_29, %c0_30], %46 {strides = array<i32>} : memref<2x128xf32, #tpu.memory_space<vmem>>, vector<2x128xf32>,
    } else {
    }
    return
  }
  func.func @transform_0(%arg0: i32) -> (i32, i32) {
    %c0_i32 = arith.constant 0 : i32
    %c0_i32_0 = arith.constant 0 : i32
    return %c0_i32, %arg0 : i32, i32
  }
  func.func @transform_1(%arg0: i32) -> (i32, i32) {
    %c0_i32 = arith.constant 0 : i32
    %c0_i32_0 = arith.constant 0 : i32
    return %arg0, %c0_i32 : i32, i32
  }
  func.func @transform_2(%arg0: i32) -> (i32, i32) {
    %c0_i32 = arith.constant 0 : i32
    %c0_i32_0 = arith.constant 0 : i32
    %c0_i32_1 = arith.constant 0 : i32
    return %c0_i32, %c0_i32_0 : i32, i32
  }
  func.func @transform_3(%arg0: i32) -> (i32, i32) {
    %c0_i32 = arith.constant 0 : i32
    %c0_i32_0 = arith.constant 0 : i32
    %c0_i32_1 = arith.constant 0 : i32
    return %c0_i32, %c0_i32_0 : i32, i32
  }
  func.func @transform_4(%arg0: i32) -> (i32, i32) {
    %c0_i32 = arith.constant 0 : i32
    %c0_i32_0 = arith.constant 0 : i32
    %c0_i32_1 = arith.constant 0 : i32
    return %c0_i32, %c0_i32_0 : i32, i32
  }
  func.func @transform_5(%arg0: i32) -> (i32, i32) {
    %c0_i32 = arith.constant 0 : i32
    %c0_i32_0 = arith.constant 0 : i32
    %c0_i32_1 = arith.constant 0 : i32
    return %c0_i32, %c0_i32_0 : i32, i32
  }
  func.func @transform_6(%arg0: i32) -> (i32, i32) {
    %c0_i32 = arith.constant 0 : i32
    %c0_i32_0 = arith.constant 0 : i32
    %c0_i32_1 = arith.constant 0 : i32
    return %c0_i32, %c0_i32_0 : i32, i32
  }
  func.func @transform_7(%arg0: i32) -> (i32, i32) {
    %c0_i32 = arith.constant 0 : i32
    %c0_i32_0 = arith.constant 0 : i32
    %c0_i32_1 = arith.constant 0 : i32
    return %c0_i32, %c0_i32_0 : i32, i32
  }
}

</mosaic_0001>

<llo_original>
// kernel: convnet_forward.5
$region0: #{convnet_forward.5}
  #allocation0 [shape = 'u32[]', space=smem, size = 0x4, offset = 0x4, fixed_abs, tag = 'smem constant byte address 0x4 - core index']
  #allocation1 [shape = 'u32[144,128]{1,0:T(1,128)}', space=vmem, size = 0x12000, scoped, tag = 'internal scratch']
  #allocation2 [shape = 'f32[2,128]{1,0:T(2,128)}', space=vmem, size = 0x400, scoped, tag = 'scratch operand']
  %s0 = inlined_call_operand.vmem [shape: bf16[2,128], index: 0, kind: input, shape index: {}]
  %s1 = inlined_call_operand.vmem [shape: bf16[128,128], index: 1, kind: input, shape index: {}]
  %s2 = inlined_call_operand.vmem [shape: f32[1,128], index: 2, kind: input, shape index: {}]
  %s3 = inlined_call_operand.vmem [shape: bf16[128,128], index: 3, kind: input, shape index: {}]
  %s4 = inlined_call_operand.vmem [shape: f32[1,128], index: 4, kind: input, shape index: {}]
  %s5 = inlined_call_operand.vmem [shape: bf16[128,128], index: 5, kind: input, shape index: {}]
  %s6 = inlined_call_operand.vmem [shape: f32[1,128], index: 6, kind: input, shape index: {}]
  %s7 = inlined_call_operand.hbm [shape: f32[2,128], index: 7, kind: output, shape index: {}]
  %s8 = sld [smem:[#allocation0]]
  $region46: #{convnet_forward.5} parent=0
    _
  %s10 = ssub.s32 1, %s8
  %s11 = scalar_select 0, %s10, %s8
  $region1: #{convnet_forward.5} parent=0
    #allocation3 [shape = 'u8[1024]{0}', space=vmem, size = 0x400, scoped, tag = 'output window, operand 0, single buffered']
    #allocation4 [shape = 's32[1]{0}', space=sflag, size = 0x4, scoped, tag = 'scoped memory for convnet_forward.5']
    %12 = vsyncpa [#allocation4], 0
    // Predicated region
    $region2: #{convnet_forward.5} parent=1 // pred_check
      _
    $region3: #{convnet_forward.5} parent=1 // pred_check_branch
      %14 = sbr.rel (0) target = $region5
    $region4: #{convnet_forward.5} parent=1 // pred_region
      _
    $region5: #{convnet_forward.5} parent=1 // pred_fallthru
      _
    // Predicated region
    $region6: #{convnet_forward.5} parent=1 // pred_check
      _
    $region7: #{convnet_forward.5} parent=1 // pred_check_branch
      %16 = sbr.rel (0) target = $region9
    $region8: #{convnet_forward.5} parent=1 // pred_region
      _
    $region9: #{convnet_forward.5} parent=1 // pred_fallthru
      _
    // Predicated region
    $region10: #{convnet_forward.5} parent=1 // pred_check
      _
    $region11: #{convnet_forward.5} parent=1 // pred_check_branch
      %18 = sbr.rel (0) target = $region13
    $region12: #{convnet_forward.5} parent=1 // pred_region
      _
    $region13: #{convnet_forward.5} parent=1 // pred_fallthru
      _
    // Predicated region
    $region14: #{convnet_forward.5} parent=1 // pred_check
      _
    $region15: #{convnet_forward.5} parent=1 // pred_check_branch
      %20 = sbr.rel (0) target = $region17
    $region16: #{convnet_forward.5} parent=1 // pred_region
      _
    $region17: #{convnet_forward.5} parent=1 // pred_fallthru
      _
    // Predicated region
    $region18: #{convnet_forward.5} parent=1 // pred_check
      _
    $region19: #{convnet_forward.5} parent=1 // pred_check_branch
      %22 = sbr.rel (0) target = $region21
    $region20: #{convnet_forward.5} parent=1 // pred_region
      _
    $region21: #{convnet_forward.5} parent=1 // pred_fallthru
      _
    // Predicated region
    $region22: #{convnet_forward.5} parent=1 // pred_check
      _
    $region23: #{convnet_forward.5} parent=1 // pred_check_branch
      %24 = sbr.rel (0) target = $region25
    $region24: #{convnet_forward.5} parent=1 // pred_region
      _
    $region25: #{convnet_forward.5} parent=1 // pred_fallthru
      _
    // Predicated region
    $region26: #{convnet_forward.5} parent=1 // pred_check
      _
    $region27: #{convnet_forward.5} parent=1 // pred_check_branch
      %26 = sbr.rel (0) target = $region29
    $region28: #{convnet_forward.5} parent=1 // pred_region
      _
    $region29: #{convnet_forward.5} parent=1 // pred_fallthru
      _
    %p28 = scmp.eq.s32.totalorder 0, 0
    // Predicated region
    $region30: #{convnet_forward.5} parent=1 // pred_check
      %p29 = pneg %p28
    $region31: #{convnet_forward.5} parent=1 // pred_check_branch
      %31 = sbr.rel (%p29) target = $region33
    $region32: #{convnet_forward.5} parent=1 // pred_region
      %32 = vst [vmem:[#allocation2] sm:$0x3] 0.0
    $region33: #{convnet_forward.5} parent=1 // pred_fallthru
      _
    %v33 = vld [vmem:[#allocation2] sm:$0x3]
    %v34 = vld [vmem:[%s0] sm:$0x1]
    %v35 = vld [vmem:[%s1] sm:$0xf]
    %v36 = vld [vmem:[%s1 + $0x4] sm:$0xf]
    %v37 = vld [vmem:[%s1 + $0x8] sm:$0xf]
    %v38 = vld [vmem:[%s1 + $0xc] sm:$0xf]
    %v39 = vld [vmem:[%s1 + $0x10] sm:$0xf]
    %v40 = vld [vmem:[%s1 + $0x14] sm:$0xf]
    %v41 = vld [vmem:[%s1 + $0x18] sm:$0xf]
    %v42 = vld [vmem:[%s1 + $0x1c] sm:$0xf]
    %v43 = vld [vmem:[%s1 + $0x20] sm:$0xf]
    %v44 = vld [vmem:[%s1 + $0x24] sm:$0xf]
    %v45 = vld [vmem:[%s1 + $0x28] sm:$0xf]
    %v46 = vld [vmem:[%s1 + $0x2c] sm:$0xf]
    %v47 = vld [vmem:[%s1 + $0x30] sm:$0xf]
    %v48 = vld [vmem:[%s1 + $0x34] sm:$0xf]
    %v49 = vld [vmem:[%s1 + $0x38] sm:$0xf]
    %v50 = vld [vmem:[%s1 + $0x3c] sm:$0xf]
    %v67 = vunpack.c.l.b16 %v35
    %v68 = vunpack.c.l.b16 %v36
    %v69 = vunpack.c.l.b16 %v37
    %v70 = vunpack.c.l.b16 %v38
    %v71 = vunpack.c.l.b16 %v39
    %v72 = vunpack.c.l.b16 %v40
    %v73 = vunpack.c.l.b16 %v41
    %v74 = vunpack.c.l.b16 %v42
    %v75 = vunpack.c.l.b16 %v43
    %v76 = vunpack.c.l.b16 %v44
    %v77 = vunpack.c.l.b16 %v45
    %v78 = vunpack.c.l.b16 %v46
    %v79 = vunpack.c.l.b16 %v47
    %v80 = vunpack.c.l.b16 %v48
    %v81 = vunpack.c.l.b16 %v49
    %v82 = vunpack.c.l.b16 %v50
    %v83 = vpack.c.b16 %v68, %v67
    %v84 = vpack.c.b16 %v70, %v69
    %v85 = vpack.c.b16 %v72, %v71
    %v86 = vpack.c.b16 %v74, %v73
    %v87 = vpack.c.b16 %v76, %v75
    %v88 = vpack.c.b16 %v78, %v77
    %v89 = vpack.c.b16 %v80, %v79
    %v90 = vpack.c.b16 %v82, %v81
    %99 = vmatprep.subr.bf16.mxu0 0
    %100 = vmatpush1.bf16.msra.mxu0 %v83
    %101 = vmatprep.subr.bf16.mxu0 0
    %102 = vmatpush1.bf16.msra.mxu0 %v84
    %103 = vmatprep.subr.bf16.mxu0 0
    %104 = vmatpush1.bf16.msra.mxu0 %v85
    %105 = vmatprep.subr.bf16.mxu0 0
    %106 = vmatpush1.bf16.msra.mxu0 %v86
    %107 = vmatprep.subr.bf16.mxu0 0
    %108 = vmatpush1.bf16.msra.mxu0 %v87
    %109 = vmatprep.subr.bf16.mxu0 0
    %110 = vmatpush1.bf16.msra.mxu0 %v88
    %111 = vmatprep.subr.bf16.mxu0 0
    %112 = vmatpush1.bf16.msra.mxu0 %v89
    %113 = vmatprep.subr.bf16.mxu0 0
    %114 = vmatpush1.bf16.msra.mxu0 %v90
    %115 = vmatprep.subr.bf16.mxu0 0
    %116 = vmatpush1.bf16.msra.mxu0 0
    %117 = vmatprep.subr.bf16.mxu0 0
    %118 = vmatpush1.bf16.msra.mxu0 0
    %119 = vmatprep.subr.bf16.mxu0 0
    %120 = vmatpush1.bf16.msra.mxu0 0
    %121 = vmatprep.subr.bf16.mxu0 0
    %122 = vmatpush1.bf16.msra.mxu0 0
    %123 = vmatprep.subr.bf16.mxu0 0
    %124 = vmatpush1.bf16.msra.mxu0 0
    %125 = vmatprep.subr.bf16.mxu0 0
    %126 = vmatpush1.bf16.msra.mxu0 0
    %127 = vmatprep.subr.bf16.mxu0 0
    %128 = vmatpush1.bf16.msra.mxu0 0
    %129 = vmatprep.subr.bf16.mxu0 0
    %130 = vmatpush1.bf16.msra.mxu0 0
    %131 = vmatprep.mubr.bf16.mxu0 0
    %132 = vmatmul.mubr.bf16.gmra.mrb[0].mxu0 %v34
    %v133 = vpop.f32.mrb[0].mxu0
    %v134 = vadd.f32 0.0, %v133
    %v135 = vpop.f32.mrb[0].mxu0
    %v136 = vpop.f32.mrb[0].mxu0
    %v137 = vpop.f32.mrb[0].mxu0
    %138 = vdwg.mxu0
    %v139 = vadd.f32 %v33, %v134
    %140 = vst [vmem:[#allocation2] sm:$0x3] %v139
    // Predicated region
    $region34: #{convnet_forward.5} parent=1 // pred_check
      %p141 = pneg %p28
    $region35: #{convnet_forward.5} parent=1 // pred_check_branch
      %143 = sbr.rel (%p141) target = $region37
    $region36: #{convnet_forward.5} parent=1 // pred_region
      %v144 = vld [vmem:[#allocation2] sm:$0x3]
      %v145 = vld [vmem:[%s2] sm:$0x1]
      %v147 = vlaneseq
      %v148 = vshrl.u32 %v147, 7
      %v149 = vsub.s32 0, %v148
      %v150 = vrot.slane %v145, %v149
      %v152 = vadd.f32 %v144, %v150
      %v153 = vmax.f32 %v152, 0.0
      %v154 = vpack.c.bf16 %v153, %v153
      %v155 = vld [vmem:[%s3] sm:$0xf]
      %v156 = vld [vmem:[%s3 + $0x4] sm:$0xf]
      %v157 = vld [vmem:[%s3 + $0x8] sm:$0xf]
      %v158 = vld [vmem:[%s3 + $0xc] sm:$0xf]
      %v159 = vld [vmem:[%s3 + $0x10] sm:$0xf]
      %v160 = vld [vmem:[%s3 + $0x14] sm:$0xf]
      %v161 = vld [vmem:[%s3 + $0x18] sm:$0xf]
      %v162 = vld [vmem:[%s3 + $0x1c] sm:$0xf]
      %v163 = vld [vmem:[%s3 + $0x20] sm:$0xf]
      %v164 = vld [vmem:[%s3 + $0x24] sm:$0xf]
      %v165 = vld [vmem:[%s3 + $0x28] sm:$0xf]
      %v166 = vld [vmem:[%s3 + $0x2c] sm:$0xf]
      %v167 = vld [vmem:[%s3 + $0x30] sm:$0xf]
      %v168 = vld [vmem:[%s3 + $0x34] sm:$0xf]
      %v169 = vld [vmem:[%s3 + $0x38] sm:$0xf]
      %v170 = vld [vmem:[%s3 + $0x3c] sm:$0xf]
      %v171 = vld [vmem:[%s4] sm:$0x1]
      %v173 = vlaneseq
      %v174 = vshrl.u32 %v173, 7
      %v175 = vsub.s32 0, %v174
      %v176 = vrot.slane %v171, %v175
      %v194 = vunpack.c.l.b16 %v155
      %v195 = vunpack.c.l.b16 %v156
      %v196 = vunpack.c.l.b16 %v157
      %v197 = vunpack.c.l.b16 %v158
      %v198 = vunpack.c.l.b16 %v159
      %v199 = vunpack.c.l.b16 %v160
      %v200 = vunpack.c.l.b16 %v161
      %v201 = vunpack.c.l.b16 %v162
      %v202 = vunpack.c.l.b16 %v163
      %v203 = vunpack.c.l.b16 %v164
      %v204 = vunpack.c.l.b16 %v165
      %v205 = vunpack.c.l.b16 %v166
      %v206 = vunpack.c.l.b16 %v167
      %v207 = vunpack.c.l.b16 %v168
      %v208 = vunpack.c.l.b16 %v169
      %v209 = vunpack.c.l.b16 %v170
      %v210 = vpack.c.b16 %v195, %v194
      %v211 = vpack.c.b16 %v197, %v196
      %v212 = vpack.c.b16 %v199, %v198
      %v213 = vpack.c.b16 %v201, %v200
      %v214 = vpack.c.b16 %v203, %v202
      %v215 = vpack.c.b16 %v205, %v204
      %v216 = vpack.c.b16 %v207, %v206
      %v217 = vpack.c.b16 %v209, %v208
      %226 = vmatprep.subr.bf16.mxu0 0
      %227 = vmatpush1.bf16.msra.mxu0 %v210
      %228 = vmatprep.subr.bf16.mxu0 0
      %229 = vmatpush1.bf16.msra.mxu0 %v211
      %230 = vmatprep.subr.bf16.mxu0 0
      %231 = vmatpush1.bf16.msra.mxu0 %v212
      %232 = vmatprep.subr.bf16.mxu0 0
      %233 = vmatpush1.bf16.msra.mxu0 %v213
      %234 = vmatprep.subr.bf16.mxu0 0
      %235 = vmatpush1.bf16.msra.mxu0 %v214
      %236 = vmatprep.subr.bf16.mxu0 0
      %237 = vmatpush1.bf16.msra.mxu0 %v215
      %238 = vmatprep.subr.bf16.mxu0 0
      %239 = vmatpush1.bf16.msra.mxu0 %v216
      %240 = vmatprep.subr.bf16.mxu0 0
      %241 = vmatpush1.bf16.msra.mxu0 %v217
      %242 = vmatprep.subr.bf16.mxu0 0
      %243 = vmatpush1.bf16.msra.mxu0 0
      %244 = vmatprep.subr.bf16.mxu0 0
      %245 = vmatpush1.bf16.msra.mxu0 0
      %246 = vmatprep.subr.bf16.mxu0 0
      %247 = vmatpush1.bf16.msra.mxu0 0
      %248 = vmatprep.subr.bf16.mxu0 0
      %249 = vmatpush1.bf16.msra.mxu0 0
      %250 = vmatprep.subr.bf16.mxu0 0
      %251 = vmatpush1.bf16.msra.mxu0 0
      %252 = vmatprep.subr.bf16.mxu0 0
      %253 = vmatpush1.bf16.msra.mxu0 0
      %254 = vmatprep.subr.bf16.mxu0 0
      %255 = vmatpush1.bf16.msra.mxu0 0
      %256 = vmatprep.subr.bf16.mxu0 0
      %257 = vmatpush1.bf16.msra.mxu0 0
      %258 = vmatprep.mubr.bf16.mxu0 0
      %259 = vmatmul.mubr.bf16.gmra.mrb[0].mxu0 %v154
      %v260 = vpop.f32.mrb[0].mxu0
      %v261 = vadd.f32 %v176, %v260
      %v262 = vpop.f32.mrb[0].mxu0
      %v263 = vpop.f32.mrb[0].mxu0
      %v264 = vpop.f32.mrb[0].mxu0
      %265 = vdwg.mxu0
      %v266 = vmax.f32 %v261, 0.0
      %v267 = vpack.c.bf16 %v266, %v266
      %v268 = vld [vmem:[%s5] sm:$0xf]
      %v269 = vld [vmem:[%s5 + $0x4] sm:$0xf]
      %v270 = vld [vmem:[%s5 + $0x8] sm:$0xf]
      %v271 = vld [vmem:[%s5 + $0xc] sm:$0xf]
      %v272 = vld [vmem:[%s5 + $0x10] sm:$0xf]
      %v273 = vld [vmem:[%s5 + $0x14] sm:$0xf]
      %v274 = vld [vmem:[%s5 + $0x18] sm:$0xf]
      %v275 = vld [vmem:[%s5 + $0x1c] sm:$0xf]
      %v276 = vld [vmem:[%s5 + $0x20] sm:$0xf]
      %v277 = vld [vmem:[%s5 + $0x24] sm:$0xf]
      %v278 = vld [vmem:[%s5 + $0x28] sm:$0xf]
      %v279 = vld [vmem:[%s5 + $0x2c] sm:$0xf]
      %v280 = vld [vmem:[%s5 + $0x30] sm:$0xf]
      %v281 = vld [vmem:[%s5 + $0x34] sm:$0xf]
      %v282 = vld [vmem:[%s5 + $0x38] sm:$0xf]
      %v283 = vld [vmem:[%s5 + $0x3c] sm:$0xf]
      %v284 = vld [vmem:[%s6] sm:$0x1]
      %v286 = vlaneseq
      %v287 = vshrl.u32 %v286, 7
      %v288 = vsub.s32 0, %v287
      %v289 = vrot.slane %v284, %v288
      %v307 = vunpack.c.l.b16 %v268
      %v308 = vunpack.c.l.b16 %v269
      %v309 = vunpack.c.l.b16 %v270
      %v310 = vunpack.c.l.b16 %v271
      %v311 = vunpack.c.l.b16 %v272
      %v312 = vunpack.c.l.b16 %v273
      %v313 = vunpack.c.l.b16 %v274
      %v314 = vunpack.c.l.b16 %v275
      %v315 = vunpack.c.l.b16 %v276
      %v316 = vunpack.c.l.b16 %v277
      %v317 = vunpack.c.l.b16 %v278
      %v318 = vunpack.c.l.b16 %v279
      %v319 = vunpack.c.l.b16 %v280
      %v320 = vunpack.c.l.b16 %v281
      %v321 = vunpack.c.l.b16 %v282
      %v322 = vunpack.c.l.b16 %v283
      %v323 = vpack.c.b16 %v308, %v307
      %v324 = vpack.c.b16 %v310, %v309
      %v325 = vpack.c.b16 %v312, %v311
      %v326 = vpack.c.b16 %v314, %v313
      %v327 = vpack.c.b16 %v316, %v315
      %v328 = vpack.c.b16 %v318, %v317
      %v329 = vpack.c.b16 %v320, %v319
      %v330 = vpack.c.b16 %v322, %v321
      %339 = vmatprep.subr.bf16.mxu0 0
      %340 = vmatpush1.bf16.msra.mxu0 %v323
      %341 = vmatprep.subr.bf16.mxu0 0
      %342 = vmatpush1.bf16.msra.mxu0 %v324
      %343 = vmatprep.subr.bf16.mxu0 0
      %344 = vmatpush1.bf16.msra.mxu0 %v325
      %345 = vmatprep.subr.bf16.mxu0 0
      %346 = vmatpush1.bf16.msra.mxu0 %v326
      %347 = vmatprep.subr.bf16.mxu0 0
      %348 = vmatpush1.bf16.msra.mxu0 %v327
      %349 = vmatprep.subr.bf16.mxu0 0
      %350 = vmatpush1.bf16.msra.mxu0 %v328
      %351 = vmatprep.subr.bf16.mxu0 0
      %352 = vmatpush1.bf16.msra.mxu0 %v329
      %353 = vmatprep.subr.bf16.mxu0 0
      %354 = vmatpush1.bf16.msra.mxu0 %v330
      %355 = vmatprep.subr.bf16.mxu0 0
      %356 = vmatpush1.bf16.msra.mxu0 0
      %357 = vmatprep.subr.bf16.mxu0 0
      %358 = vmatpush1.bf16.msra.mxu0 0
      %359 = vmatprep.subr.bf16.mxu0 0
      %360 = vmatpush1.bf16.msra.mxu0 0
      %361 = vmatprep.subr.bf16.mxu0 0
      %362 = vmatpush1.bf16.msra.mxu0 0
      %363 = vmatprep.subr.bf16.mxu0 0
      %364 = vmatpush1.bf16.msra.mxu0 0
      %365 = vmatprep.subr.bf16.mxu0 0
      %366 = vmatpush1.bf16.msra.mxu0 0
      %367 = vmatprep.subr.bf16.mxu0 0
      %368 = vmatpush1.bf16.msra.mxu0 0
      %369 = vmatprep.subr.bf16.mxu0 0
      %370 = vmatpush1.bf16.msra.mxu0 0
      %371 = vmatprep.mubr.bf16.mxu0 0
      %372 = vmatmul.mubr.bf16.gmra.mrb[0].mxu0 %v267
      %v373 = vpop.f32.mrb[0].mxu0
      %v374 = vadd.f32 %v289, %v373
      %v375 = vpop.f32.mrb[0].mxu0
      %v376 = vpop.f32.mrb[0].mxu0
      %v377 = vpop.f32.mrb[0].mxu0
      %378 = vdwg.mxu0
      %v379 = vlaneseq
      %v380 = vand.u32 %v379, 127
      %vm381 = vcmp.lt.s32.totalorder %v380, 3
      %v382 = vsel %vm381, %v374, -1e+30
      %vm383 = vcmask 1041408
      %v384 = vsel %vm383, %v382, -inf
      %385 = vmax.xlane.f32.xlu0 %v384
      %v386 = vpop.xlane.xlu0 %385
      %v387 = vsub.f32 %v382, %v386
      %v388 = vmul.f32 %v387, 1.442695
      %v389 = vpow.pop %v388
      %v390 = vsel %vm383, %v389, 0.0
      %391 = vadd.xlane.f32.xlu0 %v390
      %v392 = vpop.xlane.xlu0 %391
      %v393 = vlog2.pop %v392
      %v394 = vmul.f32 %v393, 0.6931472
      %v395 = vsub.f32 %v387, %v394
      %396 = vst [vmem:[#allocation3] sm:$0x3] %v395
    $region37: #{convnet_forward.5} parent=1 // pred_fallthru
      _
    // Predicated region
    $region38: #{convnet_forward.5} parent=1 // pred_check
      _
    $region39: #{convnet_forward.5} parent=1 // pred_check_branch
      %398 = sbr.rel (0) target = $region41
    $region40: #{convnet_forward.5} parent=1 // pred_region
      %s400 = ssub.s32 32, 32
      %401 = vsyncadd [#allocation4], %s400
      %s403 = sshll.u32 [#allocation3], 4
      %s404 = int_to_ptr.vmem [resolvable:$true] %s403
      %406 = dma.vmem_to_hbm [thread:$0]  %s404, 32, %s7, [#allocation4]
    $region41: #{convnet_forward.5} parent=1 // pred_fallthru
      _
    // Predicated region
    $region42: #{convnet_forward.5} parent=1 // pred_check
      _
    $region43: #{convnet_forward.5} parent=1 // pred_check_branch
      %408 = sbr.rel (0) target = $region45
    $region44: #{convnet_forward.5} parent=1 // pred_region
      %409 = dma.done [#allocation4], 32
    $region45: #{convnet_forward.5} parent=1 // pred_fallthru
      _
    %410 = vsyncpa [#allocation4], 1

// kernel: convnet_forward.4
$region0: #{convnet_forward.4}
  #allocation0 [shape = 'u32[]', space=smem, size = 0x4, offset = 0x4, fixed_abs, tag = 'smem constant byte address 0x4 - core index']
  #allocation1 [shape = 'u32[144,128]{1,0:T(1,128)}', space=vmem, size = 0x12000, scoped, tag = 'internal scratch']
  #allocation2 [shape = 'f32[33,128]{1,0:T(8,128)}', space=vmem, size = 0x5000, scoped, tag = 'scratch operand']
  %s0 = inlined_call_operand.vmem [shape: bf16[2,49,6], index: 0, kind: input, shape index: {}]
  %s1 = inlined_call_operand.vmem [shape: bf16[9,6,128], index: 1, kind: input, shape index: {}]
  %s2 = inlined_call_operand.vmem [shape: f32[1,128], index: 2, kind: input, shape index: {}]
  %s3 = inlined_call_operand.vmem [shape: bf16[2,2,2,16], index: 3, kind: output, shape index: {}]
  %s4 = sld [smem:[#allocation0]]
  $region45: #{convnet_forward.4} parent=0
    _
  %s6 = ssub.s32 1, %s4
  %s7 = scalar_select 0, %s6, %s4
  loop: start=0, step=1, limit=4
  $region2: #{convnet_forward.4} parent=0 // loop_pre_header
    _
  $region3: #{convnet_forward.4} parent=0 // loop_header
    %s9 = sphi 0, %s13
    %p10 = scmp.ge.s32.totalorder %s9, 4
    %s19 = sphi 0, %s21
    %s22 = sphi 0, %s19
    %s23 = sphi 0, %s22
    %s39 = sphi 0, %s23
    %s43 = sphi 0, %s43
    %s45 = sphi 0, %s43
    %s46 = sphi 0, %s45
    %s60 = sphi 0, %s46
    %s64 = sphi 0, %s64
    %s66 = sphi 0, %s64
    %s67 = sphi 0, %s66
    %s81 = sphi 0, %s67
    %s87 = sphi 0, %s89
    %s90 = sphi 0, %s87
    %s91 = sphi 0, %s90
    %s107 = sphi 0, %s91
  $region4: #{convnet_forward.4} parent=0 // loop_header_branch
    %12 = sbr.rel (%p10) target = $region8
  $region5: #{convnet_forward.4} parent=0 // loop_body
    %s14 = ssub.s32 %s9, 1
    %s15 = ssub.s32 %s9, 2
    %s16 = sadd.s32 %s9, 1
    %s17 = ssub.s32 %s9, %s16
    %p18 = scmp.eq.s32.totalorder %s17, 0
    %s20 = sadd.s32 %s19, 1
    %s21 = scalar_select %p18, %s19, %s20
    %p24 = pneg %p18
    %p25 = scmp.eq.s32.totalorder %s9, 1
    %p26 = por %p24, %p25
    %p27 = scmp.ne.s32.totalorder %s19, %s22
    %p28 = scmp.eq.s32.totalorder %s9, 0
    %p29 = por %p27, %p28
    %p30 = scmp.ne.s32.totalorder %s19, %s22
    %p31 = scmp.eq.s32.totalorder %s14, 1
    %p32 = por %p30, %p31
    %p33 = scmp.ne.s32.totalorder %s22, %s23
    %p34 = scmp.eq.s32.totalorder %s14, 0
    %p35 = por %p33, %p34
    %p36 = scmp.ne.s32.totalorder %s22, %s23
    %p37 = scmp.eq.s32.totalorder %s15, 1
    %p38 = por %p36, %p37
    %p40 = scmp.ne.s32.totalorder %s23, %s39
    %p41 = scmp.eq.s32.totalorder %s15, 0
    %p42 = por %p40, %p41
    %s44 = sadd.s32 %s43, 1
    %p47 = scmp.eq.s32.totalorder %s9, 1
    %p48 = scmp.ne.s32.totalorder %s43, %s45
    %p49 = scmp.eq.s32.totalorder %s9, 0
    %p50 = por %p48, %p49
    %p51 = scmp.ne.s32.totalorder %s43, %s45
    %p52 = scmp.eq.s32.totalorder %s14, 1
    %p53 = por %p51, %p52
    %p54 = scmp.ne.s32.totalorder %s45, %s46
    %p55 = scmp.eq.s32.totalorder %s14, 0
    %p56 = por %p54, %p55
    %p57 = scmp.ne.s32.totalorder %s45, %s46
    %p58 = scmp.eq.s32.totalorder %s15, 1
    %p59 = por %p57, %p58
    %p61 = scmp.ne.s32.totalorder %s46, %s60
    %p62 = scmp.eq.s32.totalorder %s15, 0
    %p63 = por %p61, %p62
    %s65 = sadd.s32 %s64, 1
    %p68 = scmp.eq.s32.totalorder %s9, 1
    %p69 = scmp.ne.s32.totalorder %s64, %s66
    %p70 = scmp.eq.s32.totalorder %s9, 0
    %p71 = por %p69, %p70
    %p72 = scmp.ne.s32.totalorder %s64, %s66
    %p73 = scmp.eq.s32.totalorder %s14, 1
    %p74 = por %p72, %p73
    %p75 = scmp.ne.s32.totalorder %s66, %s67
    %p76 = scmp.eq.s32.totalorder %s14, 0
    %p77 = por %p75, %p76
    %p78 = scmp.ne.s32.totalorder %s66, %s67
    %p79 = scmp.eq.s32.totalorder %s15, 1
    %p80 = por %p78, %p79
    %p82 = scmp.ne.s32.totalorder %s67, %s81
    %p83 = scmp.eq.s32.totalorder %s15, 0
    %p84 = por %p82, %p83
    %s85 = ssub.s32 %s9, %s16
    %p86 = scmp.eq.s32.totalorder %s85, 0
    %s88 = sadd.s32 %s87, 1
    %s89 = scalar_select %p86, %s87, %s88
    %p92 = pneg %p86
    %p93 = scmp.eq.s32.totalorder %s9, 1
    %p94 = por %p92, %p93
    %p95 = scmp.ne.s32.totalorder %s87, %s90
    %p96 = scmp.eq.s32.totalorder %s9, 0
    %p97 = por %p95, %p96
    %p98 = scmp.ne.s32.totalorder %s87, %s90
    %p99 = scmp.eq.s32.totalorder %s14, 1
    %p100 = por %p98, %p99
    %p101 = scmp.ne.s32.totalorder %s90, %s91
    %p102 = scmp.eq.s32.totalorder %s14, 0
    %p103 = por %p101, %p102
    %p104 = scmp.ne.s32.totalorder %s90, %s91
    %p105 = scmp.eq.s32.totalorder %s15, 1
    %p106 = por %p104, %p105
    %p108 = scmp.ne.s32.totalorder %s91, %s107
    %p109 = scmp.eq.s32.totalorder %s15, 0
    %p110 = por %p108, %p109
    %p111 = scmp.le.s32.totalorder 1, %s9
    %p112 = scmp.lt.s32.totalorder %s9, 3
    %p113 = pnand %p111, %p112
    %p114 = pneg %p113
    // Predicated region
    $region9: #{convnet_forward.4} parent=5 // pred_check
      _
    $region10: #{convnet_forward.4} parent=5 // pred_check_branch
      %116 = sbr.rel (%p113) target = $region12
    $region11: #{convnet_forward.4} parent=5 // pred_region
      %s117 = ssub.s32 %s9, 1
      // Predicated region
      $region13: #{convnet_forward.4} parent=11 // pred_check
        %p118 = pneg %p56
      $region14: #{convnet_forward.4} parent=11 // pred_check_branch
        %120 = sbr.rel (%p118) target = $region16
      $region15: #{convnet_forward.4} parent=11 // pred_region
        _
      $region16: #{convnet_forward.4} parent=11 // pred_fallthru
        _
      // Predicated region
      $region17: #{convnet_forward.4} parent=11 // pred_check
        %p121 = pneg %p77
      $region18: #{convnet_forward.4} parent=11 // pred_check_branch
        %123 = sbr.rel (%p121) target = $region20
      $region19: #{convnet_forward.4} parent=11 // pred_region
        _
      $region20: #{convnet_forward.4} parent=11 // pred_fallthru
        _
    $region12: #{convnet_forward.4} parent=5 // pred_fallthru
      _
    %p124 = scmp.lt.s32.totalorder %s9, 2
    // Predicated region
    $region21: #{convnet_forward.4} parent=5 // pred_check
      %p125 = pneg %p124
    $region22: #{convnet_forward.4} parent=5 // pred_check_branch
      %127 = sbr.rel (%p125) target = $region24
    $region23: #{convnet_forward.4} parent=5 // pred_region
      // Predicated region
      $region25: #{convnet_forward.4} parent=23 // pred_check
        %p128 = pneg %p29
      $region26: #{convnet_forward.4} parent=23 // pred_check_branch
        %130 = sbr.rel (%p128) target = $region28
      $region27: #{convnet_forward.4} parent=23 // pred_region
        %p131 = scmp.lt.s32.totalorder %s9, 1
        %s132 = scalar_select %p131, %s9, 1
        %s133 = smul.addr %s132, 7
        %s134 = smul.addr %s133, 4
        %s135 = scalar_lea.vmem %s0, %s134
      $region28: #{convnet_forward.4} parent=23 // pred_fallthru
        _
    $region24: #{convnet_forward.4} parent=5 // pred_fallthru
      _
    %p136 = scmp.le.s32.totalorder 1, %s9
    %p137 = scmp.lt.s32.totalorder %s9, 3
    %p138 = pnand %p136, %p137
    %p139 = pneg %p138
    // Predicated region
    $region29: #{convnet_forward.4} parent=5 // pred_check
      _
    $region30: #{convnet_forward.4} parent=5 // pred_check_branch
      %141 = sbr.rel (%p138) target = $region32
    $region31: #{convnet_forward.4} parent=5 // pred_region
      %s142 = ssub.s32 %s9, 1
      %p143 = scmp.lt.s32.totalorder %s14, 1
      %s144 = scalar_select %p143, %s14, 1
      %s145 = smul.addr %s144, 7
      %s146 = smul.addr %s145, 4
      %s147 = scalar_lea.vmem %s0, %s146
      %p148 = pneg %p35
      %p149 = pneg %p32
      %p150 = pneg %p56
      %p151 = pneg %p53
      %p152 = pneg %p77
      %p153 = pneg %p74
      %p154 = pneg %p103
      %p155 = pneg %p100
      %p156 = scmp.lt.s32.totalorder %s14, 1
      %s157 = scalar_select %p156, %s14, 1
      %s158 = smul.addr %s157, 2
      %s159 = scalar_lea.vmem %s3, %s158
      %p160 = scmp.lt.s32.totalorder %s14, 1
      %s161 = scalar_select %p160, %s14, 1
      %s162 = smul.addr %s161, 7
      %s163 = smul.addr %s162, 4
      %s164 = scalar_lea.vmem %s0, %s163
      %p165 = scmp.lt.s32.totalorder %s14, 1
      %s166 = scalar_select %p165, %s14, 1
      %s167 = smul.addr %s166, 2
      %s168 = scalar_lea.vmem %s3, %s167
      %v170 = vld [vmem:[%s164] sm:$0xf]
      %v171 = vld [vmem:[%s164 + $0x4] sm:$0xf]
      %v172 = vld [vmem:[%s164 + $0x8] sm:$0xf]
      %v173 = vld [vmem:[%s164 + $0xc] sm:$0xf]
      %v174 = vld [vmem:[%s164 + $0x10] sm:$0x1]
      %v175 = vld [vmem:[%s1] sm:$0x7]
      %v181 = vunpack.c.l.b16 %v170
      %v182 = vunpack.c.l.b16 %v171
      %v183 = vunpack.c.l.b16 %v172
      %v184 = vunpack.c.l.b16 %v173
      %v185 = vunpack.c.l.b16 %v174
      %v186 = vpack.c.b16 %v182, %v181
      %v187 = vpack.c.b16 %v184, %v183
      %v188 = vpack.c.b16 %v185, %v185
      %vm189 = vcmask 48128
      %v191 = vsel %vm189, %v186, 0
      %v194 = vsel %vm189, %v187, 0
      %v197 = vsel %vm189, %v188, 0
      %vm199 = vcmask 1042432
      %v201 = vsel %vm199, %v175, 0
      %203 = vmatprep.subr.bf16.mxu0 0
      %204 = vmatpush1.bf16.msra.mxu0 %v201
      %205 = vmatprep.subr.bf16.mxu0 0
      %206 = vmatpush1.bf16.msra.mxu0 0
      %207 = vmatprep.subr.bf16.mxu0 0
      %208 = vmatpush1.bf16.msra.mxu0 0
      %209 = vmatprep.subr.bf16.mxu0 0
      %210 = vmatpush1.bf16.msra.mxu0 0
      %211 = vmatprep.subr.bf16.mxu0 0
      %212 = vmatpush1.bf16.msra.mxu0 0
      %213 = vmatprep.subr.bf16.mxu0 0
      %214 = vmatpush1.bf16.msra.mxu0 0
      %215 = vmatprep.subr.bf16.mxu0 0
      %216 = vmatpush1.bf16.msra.mxu0 0
      %217 = vmatprep.subr.bf16.mxu0 0
      %218 = vmatpush1.bf16.msra.mxu0 0
      %219 = vmatprep.subr.bf16.mxu0 0
      %220 = vmatpush1.bf16.msra.mxu0 0
      %221 = vmatprep.subr.bf16.mxu0 0
      %222 = vmatpush1.bf16.msra.mxu0 0
      %223 = vmatprep.subr.bf16.mxu0 0
      %224 = vmatpush1.bf16.msra.mxu0 0
      %225 = vmatprep.subr.bf16.mxu0 0
      %226 = vmatpush1.bf16.msra.mxu0 0
      %227 = vmatprep.subr.bf16.mxu0 0
      %228 = vmatpush1.bf16.msra.mxu0 0
      %229 = vmatprep.subr.bf16.mxu0 0
      %230 = vmatpush1.bf16.msra.mxu0 0
      %231 = vmatprep.subr.bf16.mxu0 0
      %232 = vmatpush1.bf16.msra.mxu0 0
      %233 = vmatprep.subr.bf16.mxu0 0
      %234 = vmatpush1.bf16.msra.mxu0 0
      %235 = vmatprep.mubr.bf16.mxu0 0
      %236 = vmatmul.mubr.bf16.gmra.mrb[0].mxu0 %v191
      %v237 = vpop.f32.mrb[0].mxu0
      %v238 = vadd.f32 0.0, %v237
      %v239 = vpop.f32.mrb[0].mxu0
      %v240 = vpop.f32.mrb[0].mxu0
      %v241 = vadd.f32 0.0, %v240
      %v242 = vpop.f32.mrb[0].mxu0
      %243 = vmatprep.mubr.bf16.mxu0 0
      %244 = vmatmul.mubr.bf16.gmra.mrb[0].mxu0 %v194
      %v245 = vpop.f32.mrb[0].mxu0
      %v246 = vadd.f32 0.0, %v245
      %v247 = vpop.f32.mrb[0].mxu0
      %v248 = vpop.f32.mrb[0].mxu0
      %v249 = vadd.f32 0.0, %v248
      %v250 = vpop.f32.mrb[0].mxu0
      %251 = vmatprep.mubr.bf16.mxu0 0
      %252 = vmatmul.mubr.bf16.gmra.mrb[0].mxu0 %v197
      %v253 = vpop.f32.mrb[0].mxu0
      %v254 = vadd.f32 0.0, %v253
      %v255 = vpop.f32.mrb[0].mxu0
      %v256 = vpop.f32.mrb[0].mxu0
      %v257 = vpop.f32.mrb[0].mxu0
      %258 = vdwg.mxu0
      %259 = vst [vmem:[#allocation2] sm:$0xff] %v238
      %260 = vst [vmem:[#allocation2 + $0x8] sm:$0xff] %v241
      %261 = vst [vmem:[#allocation2 + $0x10] sm:$0xff] %v246
      %262 = vst [vmem:[#allocation2 + $0x18] sm:$0xff] %v249
      %263 = vst [vmem:[#allocation2 + $0x20] sm:$0x1] %v254
      %v264 = vld [vmem:[%s164] sm:$0xf]
      %v265 = vld [vmem:[%s164 + $0x4] sm:$0xf]
      %v266 = vld [vmem:[%s164 + $0x8] sm:$0xf]
      %v267 = vld [vmem:[%s164 + $0xc] sm:$0xf]
      %v268 = vld [vmem:[%s164 + $0x10] sm:$0x1]
      %s269 = scalar_lea.vmem %s1, 4
      %v270 = vld [vmem:[%s269] sm:$0x7]
      %v276 = vunpack.c.l.b16 %v264
      %v277 = vunpack.c.l.b16 %v265
      %v278 = vunpack.c.l.b16 %v266
      %v279 = vunpack.c.l.b16 %v267
      %v280 = vunpack.c.l.b16 %v268
      %v281 = vpack.c.b16 %v277, %v276
      %v282 = vpack.c.b16 %v279, %v278
      %v283 = vpack.c.b16 %v280, %v280
      %vm284 = vsmask.f32 7424
      %v286 = vshrl.u32 %v281, 16
      %v288 = vshll.u32 %v281, 16
      %v290 = vrot.slane %v288, 1
      %v291 = vor.u32 %v286, %v290
      %v293 = vshll.u32 %v282, 16
      %v295 = vrot.slane %v293, 1
      %v296 = vsel %vm284, %v291, %v295
      %v297 = vshrl.u32 %v282, 16
      %v299 = vor.u32 %v297, %v295
      %v301 = vshll.u32 %v283, 16
      %v303 = vrot.slane %v301, 1
      %v304 = vsel %vm284, %v299, %v303
      %v305 = vshrl.u32 %v283, 16
      %v308 = vsel %vm189, %v296, 0
      %v311 = vsel %vm189, %v304, 0
      %v314 = vsel %vm189, %v305, 0
      %v317 = vsel %vm199, %v270, 0
      %319 = vmatprep.subr.bf16.mxu0 0
      %320 = vmatpush1.bf16.msra.mxu0 %v317
      %321 = vmatprep.subr.bf16.mxu0 0
      %322 = vmatpush1.bf16.msra.mxu0 0
      %323 = vmatprep.subr.bf16.mxu0 0
      %324 = vmatpush1.bf16.msra.mxu0 0
      %325 = vmatprep.subr.bf16.mxu0 0
      %326 = vmatpush1.bf16.msra.mxu0 0
      %327 = vmatprep.subr.bf16.mxu0 0
      %328 = vmatpush1.bf16.msra.mxu0 0
      %329 = vmatprep.subr.bf16.mxu0 0
      %330 = vmatpush1.bf16.msra.mxu0 0
      %331 = vmatprep.subr.bf16.mxu0 0
      %332 = vmatpush1.bf16.msra.mxu0 0
      %333 = vmatprep.subr.bf16.mxu0 0
      %334 = vmatpush1.bf16.msra.mxu0 0
      %335 = vmatprep.subr.bf16.mxu0 0
      %336 = vmatpush1.bf16.msra.mxu0 0
      %337 = vmatprep.subr.bf16.mxu0 0
      %338 = vmatpush1.bf16.msra.mxu0 0
      %339 = vmatprep.subr.bf16.mxu0 0
      %340 = vmatpush1.bf16.msra.mxu0 0
      %341 = vmatprep.subr.bf16.mxu0 0
      %342 = vmatpush1.bf16.msra.mxu0 0
      %343 = vmatprep.subr.bf16.mxu0 0
      %344 = vmatpush1.bf16.msra.mxu0 0
      %345 = vmatprep.subr.bf16.mxu0 0
      %346 = vmatpush1.bf16.msra.mxu0 0
      %347 = vmatprep.subr.bf16.mxu0 0
      %348 = vmatpush1.bf16.msra.mxu0 0
      %349 = vmatprep.subr.bf16.mxu0 0
      %350 = vmatpush1.bf16.msra.mxu0 0
      %351 = vmatprep.mubr.bf16.mxu0 0
      %352 = vmatmul.mubr.bf16.gmra.mrb[0].mxu0 %v308
      %v353 = vpop.f32.mrb[0].mxu0
      %v354 = vadd.f32 0.0, %v353
      %v355 = vpop.f32.mrb[0].mxu0
      %v356 = vpop.f32.mrb[0].mxu0
      %v357 = vadd.f32 0.0, %v356
      %v358 = vpop.f32.mrb[0].mxu0
      %359 = vmatprep.mubr.bf16.mxu0 0
      %360 = vmatmul.mubr.bf16.gmra.mrb[0].mxu0 %v311
      %v361 = vpop.f32.mrb[0].mxu0
      %v362 = vadd.f32 0.0, %v361
      %v363 = vpop.f32.mrb[0].mxu0
      %v364 = vpop.f32.mrb[0].mxu0
      %v365 = vadd.f32 0.0, %v364
      %v366 = vpop.f32.mrb[0].mxu0
      %367 = vmatprep.mubr.bf16.mxu0 0
      %368 = vmatmul.mubr.bf16.gmra.mrb[0].mxu0 %v314
      %v369 = vpop.f32.mrb[0].mxu0
      %v370 = vadd.f32 0.0, %v369
      %v371 = vpop.f32.mrb[0].mxu0
      %v372 = vpop.f32.mrb[0].mxu0
      %v373 = vpop.f32.mrb[0].mxu0
      %374 = vdwg.mxu0
      %v375 = vld [vmem:[#allocation2] sm:$0xff]
      %v376 = vld [vmem:[#allocation2 + $0x8] sm:$0xff]
      %v377 = vld [vmem:[#allocation2 + $0x10] sm:$0xff]
      %v378 = vld [vmem:[#allocation2 + $0x18] sm:$0xff]
      %v379 = vld [vmem:[#allocation2 + $0x20] sm:$0x1]
      %v380 = vadd.f32 %v375, %v354
      %v381 = vadd.f32 %v376, %v357
      %v382 = vadd.f32 %v377, %v362
      %v383 = vadd.f32 %v378, %v365
      %v384 = vadd.f32 %v379, %v370
      %385 = vst [vmem:[#allocation2] sm:$0xff] %v380
      %386 = vst [vmem:[#allocation2 + $0x8] sm:$0xff] %v381
      %387 = vst [vmem:[#allocation2 + $0x10] sm:$0xff] %v382
      %388 = vst [vmem:[#allocation2 + $0x18] sm:$0xff] %v383
      %389 = vst [vmem:[#allocation2 + $0x20] sm:$0x1] %v384
      %v390 = vld [vmem:[%s164] sm:$0xe]
      %v391 = vld [vmem:[%s164 + $0x4] sm:$0xf]
      %v392 = vld [vmem:[%s164 + $0x8] sm:$0xf]
      %v393 = vld [vmem:[%s164 + $0xc] sm:$0xf]
      %v394 = vld [vmem:[%s164 + $0x10] sm:$0x3]
      %s395 = scalar_lea.vmem %s1, 8
      %v396 = vld [vmem:[%s395] sm:$0x7]
      %v402 = vunpack.c.l.b16 %v390
      %v403 = vunpack.c.l.b16 %v391
      %v404 = vunpack.c.l.b16 %v392
      %v405 = vunpack.c.l.b16 %v393
      %v406 = vunpack.c.l.b16 %v394
      %v407 = vpack.c.b16 %v403, %v402
      %v408 = vpack.c.b16 %v405, %v404
      %v409 = vpack.c.b16 %v406, %v406
      %vm410 = vcmask 1046528
      %v411 = vrot.slane %v407, 1
      %v412 = vrot.slane %v408, 1
      %v413 = vsel %vm410, %v411, %v412
      %v414 = vrot.slane %v409, 1
      %v415 = vsel %vm410, %v412, %v414
      %v417 = vsel %vm189, %v413, 0
      %v420 = vsel %vm189, %v415, 0
      %v423 = vsel %vm189, %v414, 0
      %v426 = vsel %vm199, %v396, 0
      %428 = vmatprep.subr.bf16.mxu0 0
      %429 = vmatpush1.bf16.msra.mxu0 %v426
      %430 = vmatprep.subr.bf16.mxu0 0
      %431 = vmatpush1.bf16.msra.mxu0 0
      %432 = vmatprep.subr.bf16.mxu0 0
      %433 = vmatpush1.bf16.msra.mxu0 0
      %434 = vmatprep.subr.bf16.mxu0 0
      %435 = vmatpush1.bf16.msra.mxu0 0
      %436 = vmatprep.subr.bf16.mxu0 0
      %437 = vmatpush1.bf16.msra.mxu0 0
      %438 = vmatprep.subr.bf16.mxu0 0
      %439 = vmatpush1.bf16.msra.mxu0 0
      %440 = vmatprep.subr.bf16.mxu0 0
      %441 = vmatpush1.bf16.msra.mxu0 0
      %442 = vmatprep.subr.bf16.mxu0 0
      %443 = vmatpush1.bf16.msra.mxu0 0
      %444 = vmatprep.subr.bf16.mxu0 0
      %445 = vmatpush1.bf16.msra.mxu0 0
      %446 = vmatprep.subr.bf16.mxu0 0
      %447 = vmatpush1.bf16.msra.mxu0 0
      %448 = vmatprep.subr.bf16.mxu0 0
      %449 = vmatpush1.bf16.msra.mxu0 0
      %450 = vmatprep.subr.bf16.mxu0 0
      %451 = vmatpush1.bf16.msra.mxu0 0
      %452 = vmatprep.subr.bf16.mxu0 0
      %453 = vmatpush1.bf16.msra.mxu0 0
      %454 = vmatprep.subr.bf16.mxu0 0
      %455 = vmatpush1.bf16.msra.mxu0 0
      %456 = vmatprep.subr.bf16.mxu0 0
      %457 = vmatpush1.bf16.msra.mxu0 0
      %458 = vmatprep.subr.bf16.mxu0 0
      %459 = vmatpush1.bf16.msra.mxu0 0
      %460 = vmatprep.mubr.bf16.mxu0 0
      %461 = vmatmul.mubr.bf16.gmra.mrb[0].mxu0 %v417
      %v462 = vpop.f32.mrb[0].mxu0
      %v463 = vadd.f32 0.0, %v462
      %v464 = vpop.f32.mrb[0].mxu0
      %v465 = vpop.f32.mrb[0].mxu0
      %v466 = vadd.f32 0.0, %v465
      %v467 = vpop.f32.mrb[0].mxu0
      %468 = vmatprep.mubr.bf16.mxu0 0
      %469 = vmatmul.mubr.bf16.gmra.mrb[0].mxu0 %v420
      %v470 = vpop.f32.mrb[0].mxu0
      %v471 = vadd.f32 0.0, %v470
      %v472 = vpop.f32.mrb[0].mxu0
      %v473 = vpop.f32.mrb[0].mxu0
      %v474 = vadd.f32 0.0, %v473
      %v475 = vpop.f32.mrb[0].mxu0
      %476 = vmatprep.mubr.bf16.mxu0 0
      %477 = vmatmul.mubr.bf16.gmra.mrb[0].mxu0 %v423
      %v478 = vpop.f32.mrb[0].mxu0
      %v479 = vadd.f32 0.0, %v478
      %v480 = vpop.f32.mrb[0].mxu0
      %v481 = vpop.f32.mrb[0].mxu0
      %v482 = vpop.f32.mrb[0].mxu0
      %483 = vdwg.mxu0
      %v484 = vld [vmem:[#allocation2] sm:$0xff]
      %v485 = vld [vmem:[#allocation2 + $0x8] sm:$0xff]
      %v486 = vld [vmem:[#allocation2 + $0x10] sm:$0xff]
      %v487 = vld [vmem:[#allocation2 + $0x18] sm:$0xff]
      %v488 = vld [vmem:[#allocation2 + $0x20] sm:$0x1]
      %v489 = vadd.f32 %v484, %v463
      %v490 = vadd.f32 %v485, %v466
      %v491 = vadd.f32 %v486, %v471
      %v492 = vadd.f32 %v487, %v474
      %v493 = vadd.f32 %v488, %v479
      %494 = vst [vmem:[#allocation2] sm:$0xff] %v489
      %495 = vst [vmem:[#allocation2 + $0x8] sm:$0xff] %v490
      %496 = vst [vmem:[#allocation2 + $0x10] sm:$0xff] %v491
      %497 = vst [vmem:[#allocation2 + $0x18] sm:$0xff] %v492
      %498 = vst [vmem:[#allocation2 + $0x20] sm:$0x1] %v493
      %v499 = vld [vmem:[%s164] sm:$0x8]
      %v500 = vld [vmem:[%s164 + $0x4] sm:$0xf]
      %v501 = vld [vmem:[%s164 + $0x8] sm:$0xf]
      %v502 = vld [vmem:[%s164 + $0xc] sm:$0xf]
      %v503 = vld [vmem:[%s164 + $0x10] sm:$0xf]
      %s504 = scalar_lea.vmem %s1, 12
      %v505 = vld [vmem:[%s504] sm:$0x7]
      %v511 = vunpack.c.l.b16 %v499
      %v512 = vunpack.c.l.b16 %v500
      %v513 = vunpack.c.l.b16 %v501
      %v514 = vunpack.c.l.b16 %v502
      %v515 = vunpack.c.l.b16 %v503
      %v516 = vpack.c.b16 %v512, %v511
      %v517 = vpack.c.b16 %v514, %v513
      %v518 = vpack.c.b16 %v515, %v515
      %vm519 = vsmask.f32 4352
      %v521 = vshrl.u32 %v516, 16
      %v523 = vrot.slane %v521, 3
      %v524 = vshll.u32 %v516, 16
      %v526 = vrot.slane %v524, 4
      %v527 = vor.u32 %v523, %v526
      %v529 = vshrl.u32 %v517, 16
      %v531 = vrot.slane %v529, 3
      %v532 = vshll.u32 %v517, 16
      %v534 = vrot.slane %v532, 4
      %v535 = vor.u32 %v531, %v534
      %v536 = vsel %vm519, %v527, %v535
      %v538 = vshrl.u32 %v518, 16
      %v540 = vrot.slane %v538, 3
      %v541 = vshll.u32 %v518, 16
      %v543 = vrot.slane %v541, 4
      %v544 = vor.u32 %v540, %v543
      %v545 = vsel %vm519, %v535, %v544
      %v547 = vsel %vm189, %v536, 0
      %v550 = vsel %vm189, %v545, 0
      %v553 = vsel %vm189, %v540, 0
      %v556 = vsel %vm199, %v505, 0
      %558 = vmatprep.subr.bf16.mxu0 0
      %559 = vmatpush1.bf16.msra.mxu0 %v556
      %560 = vmatprep.subr.bf16.mxu0 0
      %561 = vmatpush1.bf16.msra.mxu0 0
      %562 = vmatprep.subr.bf16.mxu0 0
      %563 = vmatpush1.bf16.msra.mxu0 0
      %564 = vmatprep.subr.bf16.mxu0 0
      %565 = vmatpush1.bf16.msra.mxu0 0
      %566 = vmatprep.subr.bf16.mxu0 0
      %567 = vmatpush1.bf16.msra.mxu0 0
      %568 = vmatprep.subr.bf16.mxu0 0
      %569 = vmatpush1.bf16.msra.mxu0 0
      %570 = vmatprep.subr.bf16.mxu0 0
      %571 = vmatpush1.bf16.msra.mxu0 0
      %572 = vmatprep.subr.bf16.mxu0 0
      %573 = vmatpush1.bf16.msra.mxu0 0
      %574 = vmatprep.subr.bf16.mxu0 0
      %575 = vmatpush1.bf16.msra.mxu0 0
      %576 = vmatprep.subr.bf16.mxu0 0
      %577 = vmatpush1.bf16.msra.mxu0 0
      %578 = vmatprep.subr.bf16.mxu0 0
      %579 = vmatpush1.bf16.msra.mxu0 0
      %580 = vmatprep.subr.bf16.mxu0 0
      %581 = vmatpush1.bf16.msra.mxu0 0
      %582 = vmatprep.subr.bf16.mxu0 0
      %583 = vmatpush1.bf16.msra.mxu0 0
      %584 = vmatprep.subr.bf16.mxu0 0
      %585 = vmatpush1.bf16.msra.mxu0 0
      %586 = vmatprep.subr.bf16.mxu0 0
      %587 = vmatpush1.bf16.msra.mxu0 0
      %588 = vmatprep.subr.bf16.mxu0 0
      %589 = vmatpush1.bf16.msra.mxu0 0
      %590 = vmatprep.mubr.bf16.mxu0 0
      %591 = vmatmul.mubr.bf16.gmra.mrb[0].mxu0 %v547
      %v592 = vpop.f32.mrb[0].mxu0
      %v593 = vadd.f32 0.0, %v592
      %v594 = vpop.f32.mrb[0].mxu0
      %v595 = vpop.f32.mrb[0].mxu0
      %v596 = vadd.f32 0.0, %v595
      %v597 = vpop.f32.mrb[0].mxu0
      %598 = vmatprep.mubr.bf16.mxu0 0
      %599 = vmatmul.mubr.bf16.gmra.mrb[0].mxu0 %v550
      %v600 = vpop.f32.mrb[0].mxu0
      %v601 = vadd.f32 0.0, %v600
      %v602 = vpop.f32.mrb[0].mxu0
      %v603 = vpop.f32.mrb[0].mxu0
      %v604 = vadd.f32 0.0, %v603
      %v605 = vpop.f32.mrb[0].mxu0
      %606 = vmatprep.mubr.bf16.mxu0 0
      %607 = vmatmul.mubr.bf16.gmra.mrb[0].mxu0 %v553
      %v608 = vpop.f32.mrb[0].mxu0
      %v609 = vadd.f32 0.0, %v608
      %v610 = vpop.f32.mrb[0].mxu0
      %v611 = vpop.f32.mrb[0].mxu0
      %v612 = vpop.f32.mrb[0].mxu0
      %613 = vdwg.mxu0
      %v614 = vld [vmem:[#allocation2] sm:$0xff]
      %v615 = vld [vmem:[#allocation2 + $0x8] sm:$0xff]
      %v616 = vld [vmem:[#allocation2 + $0x10] sm:$0xff]
      %v617 = vld [vmem:[#allocation2 + $0x18] sm:$0xff]
      %v618 = vld [vmem:[#allocation2 + $0x20] sm:$0x1]
      %v619 = vadd.f32 %v614, %v593
      %v620 = vadd.f32 %v615, %v596
      %v621 = vadd.f32 %v616, %v601
      %v622 = vadd.f32 %v617, %v604
      %v623 = vadd.f32 %v618, %v609
      %624 = vst [vmem:[#allocation2] sm:$0xff] %v619
      %625 = vst [vmem:[#allocation2 + $0x8] sm:$0xff] %v620
      %626 = vst [vmem:[#allocation2 + $0x10] sm:$0xff] %v621
      %627 = vst [vmem:[#allocation2 + $0x18] sm:$0xff] %v622
      %628 = vst [vmem:[#allocation2 + $0x20] sm:$0x1] %v623
      %v629 = vld [vmem:[%s164 + $0x4] sm:$0xf]
      %v630 = vld [vmem:[%s164 + $0x8] sm:$0xf]
      %v631 = vld [vmem:[%s164 + $0xc] sm:$0xf]
      %v632 = vld [vmem:[%s164 + $0x10] sm:$0xf]
      %v633 = vld [vmem:[%s164 + $0x14] sm:$0x1]
      %s634 = scalar_lea.vmem %s1, 16
      %v635 = vld [vmem:[%s634] sm:$0x7]
      %v641 = vunpack.c.l.b16 %v629
      %v642 = vunpack.c.l.b16 %v630
      %v643 = vunpack.c.l.b16 %v631
      %v644 = vunpack.c.l.b16 %v632
      %v645 = vunpack.c.l.b16 %v633
      %v646 = vpack.c.b16 %v642, %v641
      %v647 = vpack.c.b16 %v644, %v643
      %v648 = vpack.c.b16 %v645, %v645
      %v650 = vsel %vm189, %v646, 0
      %v653 = vsel %vm189, %v647, 0
      %v656 = vsel %vm189, %v648, 0
      %v659 = vsel %vm199, %v635, 0
      %661 = vmatprep.subr.bf16.mxu0 0
      %662 = vmatpush1.bf16.msra.mxu0 %v659
      %663 = vmatprep.subr.bf16.mxu0 0
      %664 = vmatpush1.bf16.msra.mxu0 0
      %665 = vmatprep.subr.bf16.mxu0 0
      %666 = vmatpush1.bf16.msra.mxu0 0
      %667 = vmatprep.subr.bf16.mxu0 0
      %668 = vmatpush1.bf16.msra.mxu0 0
      %669 = vmatprep.subr.bf16.mxu0 0
      %670 = vmatpush1.bf16.msra.mxu0 0
      %671 = vmatprep.subr.bf16.mxu0 0
      %672 = vmatpush1.bf16.msra.mxu0 0
      %673 = vmatprep.subr.bf16.mxu0 0
      %674 = vmatpush1.bf16.msra.mxu0 0
      %675 = vmatprep.subr.bf16.mxu0 0
      %676 = vmatpush1.bf16.msra.mxu0 0
      %677 = vmatprep.subr.bf16.mxu0 0
      %678 = vmatpush1.bf16.msra.mxu0 0
      %679 = vmatprep.subr.bf16.mxu0 0
      %680 = vmatpush1.bf16.msra.mxu0 0
      %681 = vmatprep.subr.bf16.mxu0 0
      %682 = vmatpush1.bf16.msra.mxu0 0
      %683 = vmatprep.subr.bf16.mxu0 0
      %684 = vmatpush1.bf16.msra.mxu0 0
      %685 = vmatprep.subr.bf16.mxu0 0
      %686 = vmatpush1.bf16.msra.mxu0 0
      %687 = vmatprep.subr.bf16.mxu0 0
      %688 = vmatpush1.bf16.msra.mxu0 0
      %689 = vmatprep.subr.bf16.mxu0 0
      %690 = vmatpush1.bf16.msra.mxu0 0
      %691 = vmatprep.subr.bf16.mxu0 0
      %692 = vmatpush1.bf16.msra.mxu0 0
      %693 = vmatprep.mubr.bf16.mxu0 0
      %694 = vmatmul.mubr.bf16.gmra.mrb[0].mxu0 %v650
      %v695 = vpop.f32.mrb[0].mxu0
      %v696 = vadd.f32 0.0, %v695
      %v697 = vpop.f32.mrb[0].mxu0
      %v698 = vpop.f32.mrb[0].mxu0
      %v699 = vadd.f32 0.0, %v698
      %v700 = vpop.f32.mrb[0].mxu0
      %701 = vmatprep.mubr.bf16.mxu0 0
      %702 = vmatmul.mubr.bf16.gmra.mrb[0].mxu0 %v653
      %v703 = vpop.f32.mrb[0].mxu0
      %v704 = vadd.f32 0.0, %v703
      %v705 = vpop.f32.mrb[0].mxu0
      %v706 = vpop.f32.mrb[0].mxu0
      %v707 = vadd.f32 0.0, %v706
      %v708 = vpop.f32.mrb[0].mxu0
      %709 = vmatprep.mubr.bf16.mxu0 0
      %710 = vmatmul.mubr.bf16.gmra.mrb[0].mxu0 %v656
      %v711 = vpop.f32.mrb[0].mxu0
      %v712 = vadd.f32 0.0, %v711
      %v713 = vpop.f32.mrb[0].mxu0
      %v714 = vpop.f32.mrb[0].mxu0
      %v715 = vpop.f32.mrb[0].mxu0
      %716 = vdwg.mxu0
      %v717 = vld [vmem:[#allocation2] sm:$0xff]
      %v718 = vld [vmem:[#allocation2 + $0x8] sm:$0xff]
      %v719 = vld [vmem:[#allocation2 + $0x10] sm:$0xff]
      %v720 = vld [vmem:[#allocation2 + $0x18] sm:$0xff]
      %v721 = vld [vmem:[#allocation2 + $0x20] sm:$0x1]
      %v722 = vadd.f32 %v717, %v696
      %v723 = vadd.f32 %v718, %v699
      %v724 = vadd.f32 %v719, %v704
      %v725 = vadd.f32 %v720, %v707
      %v726 = vadd.f32 %v721, %v712
      %727 = vst [vmem:[#allocation2] sm:$0xff] %v722
      %728 = vst [vmem:[#allocation2 + $0x8] sm:$0xff] %v723
      %729 = vst [vmem:[#allocation2 + $0x10] sm:$0xff] %v724
      %730 = vst [vmem:[#allocation2 + $0x18] sm:$0xff] %v725
      %731 = vst [vmem:[#allocation2 + $0x20] sm:$0x1] %v726
      %v732 = vld [vmem:[%s164 + $0x4] sm:$0xf]
      %v733 = vld [vmem:[%s164 + $0x8] sm:$0xf]
      %v734 = vld [vmem:[%s164 + $0xc] sm:$0xf]
      %v735 = vld [vmem:[%s164 + $0x10] sm:$0xf]
      %v736 = vld [vmem:[%s164 + $0x14] sm:$0x1]
      %s737 = scalar_lea.vmem %s1, 20
      %v738 = vld [vmem:[%s737] sm:$0x7]
      %v744 = vunpack.c.l.b16 %v732
      %v745 = vunpack.c.l.b16 %v733
      %v746 = vunpack.c.l.b16 %v734
      %v747 = vunpack.c.l.b16 %v735
      %v748 = vunpack.c.l.b16 %v736
      %v749 = vpack.c.b16 %v745, %v744
      %v750 = vpack.c.b16 %v747, %v746
      %v751 = vpack.c.b16 %v748, %v748
      %v753 = vshrl.u32 %v749, 16
      %v755 = vshll.u32 %v749, 16
      %v757 = vrot.slane %v755, 1
      %v758 = vor.u32 %v753, %v757
      %v760 = vshll.u32 %v750, 16
      %v762 = vrot.slane %v760, 1
      %v763 = vsel %vm284, %v758, %v762
      %v764 = vshrl.u32 %v750, 16
      %v766 = vor.u32 %v764, %v762
      %v768 = vshll.u32 %v751, 16
      %v770 = vrot.slane %v768, 1
      %v771 = vsel %vm284, %v766, %v770
      %v772 = vshrl.u32 %v751, 16
      %v775 = vsel %vm189, %v763, 0
      %v778 = vsel %vm189, %v771, 0
      %v781 = vsel %vm189, %v772, 0
      %v784 = vsel %vm199, %v738, 0
      %786 = vmatprep.subr.bf16.mxu0 0
      %787 = vmatpush1.bf16.msra.mxu0 %v784
      %788 = vmatprep.subr.bf16.mxu0 0
      %789 = vmatpush1.bf16.msra.mxu0 0
      %790 = vmatprep.subr.bf16.mxu0 0
      %791 = vmatpush1.bf16.msra.mxu0 0
      %792 = vmatprep.subr.bf16.mxu0 0
      %793 = vmatpush1.bf16.msra.mxu0 0
      %794 = vmatprep.subr.bf16.mxu0 0
      %795 = vmatpush1.bf16.msra.mxu0 0
      %796 = vmatprep.subr.bf16.mxu0 0
      %797 = vmatpush1.bf16.msra.mxu0 0
      %798 = vmatprep.subr.bf16.mxu0 0
      %799 = vmatpush1.bf16.msra.mxu0 0
      %800 = vmatprep.subr.bf16.mxu0 0
      %801 = vmatpush1.bf16.msra.mxu0 0
      %802 = vmatprep.subr.bf16.mxu0 0
      %803 = vmatpush1.bf16.msra.mxu0 0
      %804 = vmatprep.subr.bf16.mxu0 0
      %805 = vmatpush1.bf16.msra.mxu0 0
      %806 = vmatprep.subr.bf16.mxu0 0
      %807 = vmatpush1.bf16.msra.mxu0 0
      %808 = vmatprep.subr.bf16.mxu0 0
      %809 = vmatpush1.bf16.msra.mxu0 0
      %810 = vmatprep.subr.bf16.mxu0 0
      %811 = vmatpush1.bf16.msra.mxu0 0
      %812 = vmatprep.subr.bf16.mxu0 0
      %813 = vmatpush1.bf16.msra.mxu0 0
      %814 = vmatprep.subr.bf16.mxu0 0
      %815 = vmatpush1.bf16.msra.mxu0 0
      %816 = vmatprep.subr.bf16.mxu0 0
      %817 = vmatpush1.bf16.msra.mxu0 0
      %818 = vmatprep.mubr.bf16.mxu0 0
      %819 = vmatmul.mubr.bf16.gmra.mrb[0].mxu0 %v775
      %v820 = vpop.f32.mrb[0].mxu0
      %v821 = vadd.f32 0.0, %v820
      %v822 = vpop.f32.mrb[0].mxu0
      %v823 = vpop.f32.mrb[0].mxu0
      %v824 = vadd.f32 0.0, %v823
      %v825 = vpop.f32.mrb[0].mxu0
      %826 = vmatprep.mubr.bf16.mxu0 0
      %827 = vmatmul.mubr.bf16.gmra.mrb[0].mxu0 %v778
      %v828 = vpop.f32.mrb[0].mxu0
      %v829 = vadd.f32 0.0, %v828
      %v830 = vpop.f32.mrb[0].mxu0
      %v831 = vpop.f32.mrb[0].mxu0
      %v832 = vadd.f32 0.0, %v831
      %v833 = vpop.f32.mrb[0].mxu0
      %834 = vmatprep.mubr.bf16.mxu0 0
      %835 = vmatmul.mubr.bf16.gmra.mrb[0].mxu0 %v781
      %v836 = vpop.f32.mrb[0].mxu0
      %v837 = vadd.f32 0.0, %v836
      %v838 = vpop.f32.mrb[0].mxu0
      %v839 = vpop.f32.mrb[0].mxu0
      %v840 = vpop.f32.mrb[0].mxu0
      %841 = vdwg.mxu0
      %v842 = vld [vmem:[#allocation2] sm:$0xff]
      %v843 = vld [vmem:[#allocation2 + $0x8] sm:$0xff]
      %v844 = vld [vmem:[#allocation2 + $0x10] sm:$0xff]
      %v845 = vld [vmem:[#allocation2 + $0x18] sm:$0xff]
      %v846 = vld [vmem:[#allocation2 + $0x20] sm:$0x1]
      %v847 = vadd.f32 %v842, %v821
      %v848 = vadd.f32 %v843, %v824
      %v849 = vadd.f32 %v844, %v829
      %v850 = vadd.f32 %v845, %v832
      %v851 = vadd.f32 %v846, %v837
      %852 = vst [vmem:[#allocation2] sm:$0xff] %v847
      %853 = vst [vmem:[#allocation2 + $0x8] sm:$0xff] %v848
      %854 = vst [vmem:[#allocation2 + $0x10] sm:$0xff] %v849
      %855 = vst [vmem:[#allocation2 + $0x18] sm:$0xff] %v850
      %856 = vst [vmem:[#allocation2 + $0x20] sm:$0x1] %v851
      %v857 = vld [vmem:[%s164 + $0x4] sm:$0x8]
      %v858 = vld [vmem:[%s164 + $0x8] sm:$0xf]
      %v859 = vld [vmem:[%s164 + $0xc] sm:$0xf]
      %v860 = vld [vmem:[%s164 + $0x10] sm:$0xf]
      %v861 = vld [vmem:[%s164 + $0x14] sm:$0xf]
      %s862 = scalar_lea.vmem %s1, 24
      %v863 = vld [vmem:[%s862] sm:$0x7]
      %v869 = vunpack.c.l.b16 %v857
      %v870 = vunpack.c.l.b16 %v858
      %v871 = vunpack.c.l.b16 %v859
      %v872 = vunpack.c.l.b16 %v860
      %v873 = vunpack.c.l.b16 %v861
      %v874 = vpack.c.b16 %v870, %v869
      %v875 = vpack.c.b16 %v872, %v871
      %v876 = vpack.c.b16 %v873, %v873
      %vm877 = vcmask 1044480
      %v878 = vrot.slane %v874, 3
      %v879 = vrot.slane %v875, 3
      %v880 = vsel %vm877, %v878, %v879
      %v881 = vrot.slane %v876, 3
      %v882 = vsel %vm877, %v879, %v881
      %v884 = vsel %vm189, %v880, 0
      %v887 = vsel %vm189, %v882, 0
      %v890 = vsel %vm189, %v881, 0
      %v893 = vsel %vm199, %v863, 0
      %895 = vmatprep.subr.bf16.mxu0 0
      %896 = vmatpush1.bf16.msra.mxu0 %v893
      %897 = vmatprep.subr.bf16.mxu0 0
      %898 = vmatpush1.bf16.msra.mxu0 0
      %899 = vmatprep.subr.bf16.mxu0 0
      %900 = vmatpush1.bf16.msra.mxu0 0
      %901 = vmatprep.subr.bf16.mxu0 0
      %902 = vmatpush1.bf16.msra.mxu0 0
      %903 = vmatprep.subr.bf16.mxu0 0
      %904 = vmatpush1.bf16.msra.mxu0 0
      %905 = vmatprep.subr.bf16.mxu0 0
      %906 = vmatpush1.bf16.msra.mxu0 0
      %907 = vmatprep.subr.bf16.mxu0 0
      %908 = vmatpush1.bf16.msra.mxu0 0
      %909 = vmatprep.subr.bf16.mxu0 0
      %910 = vmatpush1.bf16.msra.mxu0 0
      %911 = vmatprep.subr.bf16.mxu0 0
      %912 = vmatpush1.bf16.msra.mxu0 0
      %913 = vmatprep.subr.bf16.mxu0 0
      %914 = vmatpush1.bf16.msra.mxu0 0
      %915 = vmatprep.subr.bf16.mxu0 0
      %916 = vmatpush1.bf16.msra.mxu0 0
      %917 = vmatprep.subr.bf16.mxu0 0
      %918 = vmatpush1.bf16.msra.mxu0 0
      %919 = vmatprep.subr.bf16.mxu0 0
      %920 = vmatpush1.bf16.msra.mxu0 0
      %921 = vmatprep.subr.bf16.mxu0 0
      %922 = vmatpush1.bf16.msra.mxu0 0
      %923 = vmatprep.subr.bf16.mxu0 0
      %924 = vmatpush1.bf16.msra.mxu0 0
      %925 = vmatprep.subr.bf16.mxu0 0
      %926 = vmatpush1.bf16.msra.mxu0 0
      %927 = vmatprep.mubr.bf16.mxu0 0
      %928 = vmatmul.mubr.bf16.gmra.mrb[0].mxu0 %v884
      %v929 = vpop.f32.mrb[0].mxu0
      %v930 = vadd.f32 0.0, %v929
      %v931 = vpop.f32.mrb[0].mxu0
      %v932 = vpop.f32.mrb[0].mxu0
      %v933 = vadd.f32 0.0, %v932
      %v934 = vpop.f32.mrb[0].mxu0
      %935 = vmatprep.mubr.bf16.mxu0 0
      %936 = vmatmul.mubr.bf16.gmra.mrb[0].mxu0 %v887
      %v937 = vpop.f32.mrb[0].mxu0
      %v938 = vadd.f32 0.0, %v937
      %v939 = vpop.f32.mrb[0].mxu0
      %v940 = vpop.f32.mrb[0].mxu0
      %v941 = vadd.f32 0.0, %v940
      %v942 = vpop.f32.mrb[0].mxu0
      %943 = vmatprep.mubr.bf16.mxu0 0
      %944 = vmatmul.mubr.bf16.gmra.mrb[0].mxu0 %v890
      %v945 = vpop.f32.mrb[0].mxu0
      %v946 = vadd.f32 0.0, %v945
      %v947 = vpop.f32.mrb[0].mxu0
      %v948 = vpop.f32.mrb[0].mxu0
      %v949 = vpop.f32.mrb[0].mxu0
      %950 = vdwg.mxu0
      %v951 = vld [vmem:[#allocation2] sm:$0xff]
      %v952 = vld [vmem:[#allocation2 + $0x8] sm:$0xff]
      %v953 = vld [vmem:[#allocation2 + $0x10] sm:$0xff]
      %v954 = vld [vmem:[#allocation2 + $0x18] sm:$0xff]
      %v955 = vld [vmem:[#allocation2 + $0x20] sm:$0x1]
      %v956 = vadd.f32 %v951, %v930
      %v957 = vadd.f32 %v952, %v933
      %v958 = vadd.f32 %v953, %v938
      %v959 = vadd.f32 %v954, %v941
      %v960 = vadd.f32 %v955, %v946
      %961 = vst [vmem:[#allocation2] sm:$0xff] %v956
      %962 = vst [vmem:[#allocation2 + $0x8] sm:$0xff] %v957
      %963 = vst [vmem:[#allocation2 + $0x10] sm:$0xff] %v958
      %964 = vst [vmem:[#allocation2 + $0x18] sm:$0xff] %v959
      %965 = vst [vmem:[#allocation2 + $0x20] sm:$0x1] %v960
      %v966 = vld [vmem:[%s164 + $0x4] sm:$0x8]
      %v967 = vld [vmem:[%s164 + $0x8] sm:$0xf]
      %v968 = vld [vmem:[%s164 + $0xc] sm:$0xf]
      %v969 = vld [vmem:[%s164 + $0x10] sm:$0xf]
      %v970 = vld [vmem:[%s164 + $0x14] sm:$0xf]
      %s971 = scalar_lea.vmem %s1, 28
      %v972 = vld [vmem:[%s971] sm:$0x7]
      %v978 = vunpack.c.l.b16 %v966
      %v979 = vunpack.c.l.b16 %v967
      %v980 = vunpack.c.l.b16 %v968
      %v981 = vunpack.c.l.b16 %v969
      %v982 = vunpack.c.l.b16 %v970
      %v983 = vpack.c.b16 %v979, %v978
      %v984 = vpack.c.b16 %v981, %v980
      %v985 = vpack.c.b16 %v982, %v982
      %v987 = vshrl.u32 %v983, 16
      %v989 = vrot.slane %v987, 3
      %v990 = vshll.u32 %v983, 16
      %v992 = vrot.slane %v990, 4
      %v993 = vor.u32 %v989, %v992
      %v995 = vshrl.u32 %v984, 16
      %v997 = vrot.slane %v995, 3
      %v998 = vshll.u32 %v984, 16
      %v1000 = vrot.slane %v998, 4
      %v1001 = vor.u32 %v997, %v1000
      %v1002 = vsel %vm519, %v993, %v1001
      %v1004 = vshrl.u32 %v985, 16
      %v1006 = vrot.slane %v1004, 3
      %v1007 = vshll.u32 %v985, 16
      %v1009 = vrot.slane %v1007, 4
      %v1010 = vor.u32 %v1006, %v1009
      %v1011 = vsel %vm519, %v1001, %v1010
      %v1013 = vsel %vm189, %v1002, 0
      %v1016 = vsel %vm189, %v1011, 0
      %v1019 = vsel %vm189, %v1006, 0
      %v1022 = vsel %vm199, %v972, 0
      %1024 = vmatprep.subr.bf16.mxu0 0
      %1025 = vmatpush1.bf16.msra.mxu0 %v1022
      %1026 = vmatprep.subr.bf16.mxu0 0
      %1027 = vmatpush1.bf16.msra.mxu0 0
      %1028 = vmatprep.subr.bf16.mxu0 0
      %1029 = vmatpush1.bf16.msra.mxu0 0
      %1030 = vmatprep.subr.bf16.mxu0 0
      %1031 = vmatpush1.bf16.msra.mxu0 0
      %1032 = vmatprep.subr.bf16.mxu0 0
      %1033 = vmatpush1.bf16.msra.mxu0 0
      %1034 = vmatprep.subr.bf16.mxu0 0
      %1035 = vmatpush1.bf16.msra.mxu0 0
      %1036 = vmatprep.subr.bf16.mxu0 0
      %1037 = vmatpush1.bf16.msra.mxu0 0
      %1038 = vmatprep.subr.bf16.mxu0 0
      %1039 = vmatpush1.bf16.msra.mxu0 0
      %1040 = vmatprep.subr.bf16.mxu0 0
      %1041 = vmatpush1.bf16.msra.mxu0 0
      %1042 = vmatprep.subr.bf16.mxu0 0
      %1043 = vmatpush1.bf16.msra.mxu0 0
      %1044 = vmatprep.subr.bf16.mxu0 0
      %1045 = vmatpush1.bf16.msra.mxu0 0
      %1046 = vmatprep.subr.bf16.mxu0 0
      %1047 = vmatpush1.bf16.msra.mxu0 0
      %1048 = vmatprep.subr.bf16.mxu0 0
      %1049 = vmatpush1.bf16.msra.mxu0 0
      %1050 = vmatprep.subr.bf16.mxu0 0
      %1051 = vmatpush1.bf16.msra.mxu0 0
      %1052 = vmatprep.subr.bf16.mxu0 0
      %1053 = vmatpush1.bf16.msra.mxu0 0
      %1054 = vmatprep.subr.bf16.mxu0 0
      %1055 = vmatpush1.bf16.msra.mxu0 0
      %1056 = vmatprep.mubr.bf16.mxu0 0
      %1057 = vmatmul.mubr.bf16.gmra.mrb[0].mxu0 %v1013
      %v1058 = vpop.f32.mrb[0].mxu0
      %v1059 = vadd.f32 0.0, %v1058
      %v1060 = vpop.f32.mrb[0].mxu0
      %v1061 = vpop.f32.mrb[0].mxu0
      %v1062 = vadd.f32 0.0, %v1061
      %v1063 = vpop.f32.mrb[0].mxu0
      %1064 = vmatprep.mubr.bf16.mxu0 0
      %1065 = vmatmul.mubr.bf16.gmra.mrb[0].mxu0 %v1016
      %v1066 = vpop.f32.mrb[0].mxu0
      %v1067 = vadd.f32 0.0, %v1066
      %v1068 = vpop.f32.mrb[0].mxu0
      %v1069 = vpop.f32.mrb[0].mxu0
      %v1070 = vadd.f32 0.0, %v1069
      %v1071 = vpop.f32.mrb[0].mxu0
      %1072 = vmatprep.mubr.bf16.mxu0 0
      %1073 = vmatmul.mubr.bf16.gmra.mrb[0].mxu0 %v1019
      %v1074 = vpop.f32.mrb[0].mxu0
      %v1075 = vadd.f32 0.0, %v1074
      %v1076 = vpop.f32.mrb[0].mxu0
      %v1077 = vpop.f32.mrb[0].mxu0
      %v1078 = vpop.f32.mrb[0].mxu0
      %1079 = vdwg.mxu0
      %v1080 = vld [vmem:[#allocation2] sm:$0xff]
      %v1081 = vld [vmem:[#allocation2 + $0x8] sm:$0xff]
      %v1082 = vld [vmem:[#allocation2 + $0x10] sm:$0xff]
      %v1083 = vld [vmem:[#allocation2 + $0x18] sm:$0xff]
      %v1084 = vld [vmem:[#allocation2 + $0x20] sm:$0x1]
      %v1085 = vadd.f32 %v1080, %v1059
      %v1086 = vadd.f32 %v1081, %v1062
      %v1087 = vadd.f32 %v1082, %v1067
      %v1088 = vadd.f32 %v1083, %v1070
      %v1089 = vadd.f32 %v1084, %v1075
      %1090 = vst [vmem:[#allocation2] sm:$0xff] %v1085
      %1091 = vst [vmem:[#allocation2 + $0x8] sm:$0xff] %v1086
      %1092 = vst [vmem:[#allocation2 + $0x10] sm:$0xff] %v1087
      %1093 = vst [vmem:[#allocation2 + $0x18] sm:$0xff] %v1088
      %1094 = vst [vmem:[#allocation2 + $0x20] sm:$0x1] %v1089
      %v1095 = vld [vmem:[%s164 + $0x8] sm:$0xf]
      %v1096 = vld [vmem:[%s164 + $0xc] sm:$0xf]
      %v1097 = vld [vmem:[%s164 + $0x10] sm:$0xf]
      %v1098 = vld [vmem:[%s164 + $0x14] sm:$0xf]
      %v1099 = vld [vmem:[%s164 + $0x18] sm:$0x1]
      %s1100 = scalar_lea.vmem %s1, 32
      %v1101 = vld [vmem:[%s1100] sm:$0x7]
      %v1107 = vunpack.c.l.b16 %v1095
      %v1108 = vunpack.c.l.b16 %v1096
      %v1109 = vunpack.c.l.b16 %v1097
      %v1110 = vunpack.c.l.b16 %v1098
      %v1111 = vunpack.c.l.b16 %v1099
      %v1112 = vpack.c.b16 %v1108, %v1107
      %v1113 = vpack.c.b16 %v1110, %v1109
      %v1114 = vpack.c.b16 %v1111, %v1111
      %v1116 = vsel %vm189, %v1112, 0
      %v1119 = vsel %vm189, %v1113, 0
      %v1122 = vsel %vm189, %v1114, 0
      %v1125 = vsel %vm199, %v1101, 0
      %1127 = vmatprep.subr.bf16.mxu0 0
      %1128 = vmatpush1.bf16.msra.mxu0 %v1125
      %1129 = vmatprep.subr.bf16.mxu0 0
      %1130 = vmatpush1.bf16.msra.mxu0 0
      %1131 = vmatprep.subr.bf16.mxu0 0
      %1132 = vmatpush1.bf16.msra.mxu0 0
      %1133 = vmatprep.subr.bf16.mxu0 0
      %1134 = vmatpush1.bf16.msra.mxu0 0
      %1135 = vmatprep.subr.bf16.mxu0 0
      %1136 = vmatpush1.bf16.msra.mxu0 0
      %1137 = vmatprep.subr.bf16.mxu0 0
      %1138 = vmatpush1.bf16.msra.mxu0 0
      %1139 = vmatprep.subr.bf16.mxu0 0
      %1140 = vmatpush1.bf16.msra.mxu0 0
      %1141 = vmatprep.subr.bf16.mxu0 0
      %1142 = vmatpush1.bf16.msra.mxu0 0
      %1143 = vmatprep.subr.bf16.mxu0 0
      %1144 = vmatpush1.bf16.msra.mxu0 0
      %1145 = vmatprep.subr.bf16.mxu0 0
      %1146 = vmatpush1.bf16.msra.mxu0 0
      %1147 = vmatprep.subr.bf16.mxu0 0
      %1148 = vmatpush1.bf16.msra.mxu0 0
      %1149 = vmatprep.subr.bf16.mxu0 0
      %1150 = vmatpush1.bf16.msra.mxu0 0
      %1151 = vmatprep.subr.bf16.mxu0 0
      %1152 = vmatpush1.bf16.msra.mxu0 0
      %1153 = vmatprep.subr.bf16.mxu0 0
      %1154 = vmatpush1.bf16.msra.mxu0 0
      %1155 = vmatprep.subr.bf16.mxu0 0
      %1156 = vmatpush1.bf16.msra.mxu0 0
      %1157 = vmatprep.subr.bf16.mxu0 0
      %1158 = vmatpush1.bf16.msra.mxu0 0
      %1159 = vmatprep.mubr.bf16.mxu0 0
      %1160 = vmatmul.mubr.bf16.gmra.mrb[0].mxu0 %v1116
      %v1161 = vpop.f32.mrb[0].mxu0
      %v1162 = vadd.f32 0.0, %v1161
      %v1163 = vpop.f32.mrb[0].mxu0
      %v1164 = vpop.f32.mrb[0].mxu0
      %v1165 = vadd.f32 0.0, %v1164
      %v1166 = vpop.f32.mrb[0].mxu0
      %1167 = vmatprep.mubr.bf16.mxu0 0
      %1168 = vmatmul.mubr.bf16.gmra.mrb[0].mxu0 %v1119
      %v1169 = vpop.f32.mrb[0].mxu0
      %v1170 = vadd.f32 0.0, %v1169
      %v1171 = vpop.f32.mrb[0].mxu0
      %v1172 = vpop.f32.mrb[0].mxu0
      %v1173 = vadd.f32 0.0, %v1172
      %v1174 = vpop.f32.mrb[0].mxu0
      %1175 = vmatprep.mubr.bf16.mxu0 0
      %1176 = vmatmul.mubr.bf16.gmra.mrb[0].mxu0 %v1122
      %v1177 = vpop.f32.mrb[0].mxu0
      %v1178 = vadd.f32 0.0, %v1177
      %v1179 = vpop.f32.mrb[0].mxu0
      %v1180 = vpop.f32.mrb[0].mxu0
      %v1181 = vpop.f32.mrb[0].mxu0
      %1182 = vdwg.mxu0
      %v1183 = vld [vmem:[#allocation2] sm:$0xff]
      %v1184 = vld [vmem:[#allocation2 + $0x8] sm:$0xff]
      %v1185 = vld [vmem:[#allocation2 + $0x10] sm:$0xff]
      %v1186 = vld [vmem:[#allocation2 + $0x18] sm:$0xff]
      %v1187 = vld [vmem:[#allocation2 + $0x20] sm:$0x1]
      %v1188 = vadd.f32 %v1183, %v1162
      %v1189 = vadd.f32 %v1184, %v1165
      %v1190 = vadd.f32 %v1185, %v1170
      %v1191 = vadd.f32 %v1186, %v1173
      %v1192 = vadd.f32 %v1187, %v1178
      %1193 = vst [vmem:[#allocation2] sm:$0xff] %v1188
      %1194 = vst [vmem:[#allocation2 + $0x8] sm:$0xff] %v1189
      %1195 = vst [vmem:[#allocation2 + $0x10] sm:$0xff] %v1190
      %1196 = vst [vmem:[#allocation2 + $0x18] sm:$0xff] %v1191
      %1197 = vst [vmem:[#allocation2 + $0x20] sm:$0x1] %v1192
      %v1198 = vld [vmem:[#allocation2] sm:$0xff]
      %v1199 = vld [vmem:[#allocation2 + $0x8] sm:$0xff]
      %v1200 = vld [vmem:[#allocation2 + $0x10] sm:$0xff]
      %v1201 = vld [vmem:[#allocation2 + $0x18] sm:$0xff]
      %v1202 = vld [vmem:[#allocation2 + $0x20] sm:$0x1]
      %v1203 = vld [vmem:[%s2] sm:$0x1]
      %v1205 = vlaneseq
      %v1206 = vshrl.u32 %v1205, 7
      %v1207 = vsub.s32 0, %v1206
      %v1208 = vrot.slane %v1203, %v1207
      %v1210 = vadd.f32 %v1198, %v1208
      %v1211 = vadd.f32 %v1199, %v1208
      %v1212 = vadd.f32 %v1200, %v1208
      %v1213 = vadd.f32 %v1201, %v1208
      %v1214 = vadd.f32 %v1202, %v1208
      %v1215 = vmax.f32 %v1210, 0.0
      %v1216 = vmax.f32 %v1211, 0.0
      %v1217 = vmax.f32 %v1212, 0.0
      %v1218 = vmax.f32 %v1213, 0.0
      %v1219 = vmax.f32 %v1214, 0.0
      %1220 = vst [vmem:[#allocation2] sm:$0xff] %v1215
      %1221 = vst [vmem:[#allocation2 + $0x8] sm:$0xff] %v1216
      %1222 = vst [vmem:[#allocation2 + $0x10] sm:$0xff] %v1217
      %1223 = vst [vmem:[#allocation2 + $0x18] sm:$0xff] %v1218
      %1224 = vst [vmem:[#allocation2 + $0x20] sm:$0x1] %v1219
      %v1225 = vld [vmem:[#allocation2] ss:$2 sm:$0x3]
      %s1226 = scalar_lea.vmem [#allocation2], 1
      %v1227 = vld [vmem:[%s1226] ss:$2 sm:$0x3]
      %v1228 = vmax.f32 %v1225, %v1227
      %s1229 = scalar_lea.vmem [#allocation2], 7
      %v1230 = vld [vmem:[%s1229] ss:$2 sm:$0x3]
      %v1231 = vmax.f32 %v1228, %v1230
      %s1232 = scalar_lea.vmem [#allocation2], 8
      %v1233 = vld [vmem:[%s1232] ss:$2 sm:$0x3]
      %v1234 = vmax.f32 %v1231, %v1233
      %v1235 = vpack.c.bf16 %v1234, %v1234
      %vm1236 = vcmask 122880
      %1237 = vst.msk [vmem:[%s168] sm:$0x1] %vm1236, %v1235
      %s1238 = scalar_lea.vmem [#allocation2], 14
      %v1239 = vld [vmem:[%s1238] ss:$2 sm:$0x3]
      %s1240 = scalar_lea.vmem [#allocation2], 15
      %v1241 = vld [vmem:[%s1240] ss:$2 sm:$0x3]
      %v1242 = vmax.f32 %v1239, %v1241
      %s1243 = scalar_lea.vmem [#allocation2], 21
      %v1244 = vld [vmem:[%s1243] ss:$2 sm:$0x3]
      %v1245 = vmax.f32 %v1242, %v1244
      %s1246 = scalar_lea.vmem [#allocation2], 22
      %v1247 = vld [vmem:[%s1246] ss:$2 sm:$0x3]
      %v1248 = vmax.f32 %v1245, %v1247
      %v1249 = vpack.c.bf16 %v1248, %v1248
      %s1250 = scalar_lea.vmem %s168, 1
      %1251 = vst.msk [vmem:[%s1250] sm:$0x1] %vm1236, %v1249
      %p1252 = scmp.lt.s32.totalorder %s14, 1
      %s1253 = scalar_select %p1252, %s14, 1
      %s1254 = smul.addr %s1253, 2
      %s1255 = scalar_lea.vmem %s3, %s1254
      // Predicated region
      $region33: #{convnet_forward.4} parent=31 // pred_check
        %p1256 = pneg %p100
      $region34: #{convnet_forward.4} parent=31 // pred_check_branch
        %1258 = sbr.rel (%p1256) target = $region36
      $region35: #{convnet_forward.4} parent=31 // pred_region
        _
      $region36: #{convnet_forward.4} parent=31 // pred_fallthru
        _
    $region32: #{convnet_forward.4} parent=5 // pred_fallthru
      _
    %p1259 = scmp.le.s32.totalorder 2, %s9
    // Predicated region
    $region37: #{convnet_forward.4} parent=5 // pred_check
      %p1260 = pneg %p1259
    $region38: #{convnet_forward.4} parent=5 // pred_check_branch
      %1262 = sbr.rel (%p1260) target = $region40
    $region39: #{convnet_forward.4} parent=5 // pred_region
      %s1263 = ssub.s32 %s9, 2
      // Predicated region
      $region41: #{convnet_forward.4} parent=39 // pred_check
        %p1264 = pneg %p106
      $region42: #{convnet_forward.4} parent=39 // pred_check_branch
        %1266 = sbr.rel (%p1264) target = $region44
      $region43: #{convnet_forward.4} parent=39 // pred_region
        %p1267 = scmp.lt.s32.totalorder %s15, 1
        %s1268 = scalar_select %p1267, %s15, 1
        %s1269 = smul.addr %s1268, 2
        %s1270 = scalar_lea.vmem %s3, %s1269
      $region44: #{convnet_forward.4} parent=39 // pred_fallthru
        _
    $region40: #{convnet_forward.4} parent=5 // pred_fallthru
      _
  $region6: #{convnet_forward.4} parent=0 // loop_footer
    %s13 = sadd.s32 1, %s9
  $region7: #{convnet_forward.4} parent=0 // loop_footer_branch
    %8 = sbr.rel target = $region3
  $region8: #{convnet_forward.4} parent=0 // loop_exit
    _

// kernel: convnet_forward.3
$region0: #{convnet_forward.3}
  #allocation0 [shape = 'u32[]', space=smem, size = 0x4, offset = 0x4, fixed_abs, tag = 'smem constant byte address 0x4 - core index']
  #allocation1 [shape = 'u32[144,128]{1,0:T(1,128)}', space=vmem, size = 0x12000, scoped, tag = 'internal scratch']
  #allocation2 [shape = 'f32[222,128]{1,0:T(8,128)}', space=vmem, size = 0x1c000, scoped, tag = 'scratch operand']
  %s0 = inlined_call_operand.vmem [shape: bf16[2,256,3], index: 0, kind: input, shape index: {}]
  %s1 = inlined_call_operand.vmem [shape: bf16[9,3,128], index: 1, kind: input, shape index: {}]
  %s2 = inlined_call_operand.vmem [shape: f32[1,128], index: 2, kind: input, shape index: {}]
  %s3 = inlined_call_operand.vmem [shape: bf16[2,7,7,6], index: 3, kind: output, shape index: {}]
  %s4 = sld [smem:[#allocation0]]
  $region45: #{convnet_forward.3} parent=0
    _
  %s6 = ssub.s32 1, %s4
  %s7 = scalar_select 0, %s6, %s4
  loop: start=0, step=1, limit=4
  $region2: #{convnet_forward.3} parent=0 // loop_pre_header
    _
  $region3: #{convnet_forward.3} parent=0 // loop_header
    %s9 = sphi 0, %s13
    %p10 = scmp.ge.s32.totalorder %s9, 4
    %s19 = sphi 0, %s21
    %s22 = sphi 0, %s19
    %s23 = sphi 0, %s22
    %s39 = sphi 0, %s23
    %s43 = sphi 0, %s43
    %s45 = sphi 0, %s43
    %s46 = sphi 0, %s45
    %s60 = sphi 0, %s46
    %s64 = sphi 0, %s64
    %s66 = sphi 0, %s64
    %s67 = sphi 0, %s66
    %s81 = sphi 0, %s67
    %s87 = sphi 0, %s89
    %s90 = sphi 0, %s87
    %s91 = sphi 0, %s90
    %s107 = sphi 0, %s91
  $region4: #{convnet_forward.3} parent=0 // loop_header_branch
    %12 = sbr.rel (%p10) target = $region8
  $region5: #{convnet_forward.3} parent=0 // loop_body
    %s14 = ssub.s32 %s9, 1
    %s15 = ssub.s32 %s9, 2
    %s16 = sadd.s32 %s9, 1
    %s17 = ssub.s32 %s9, %s16
    %p18 = scmp.eq.s32.totalorder %s17, 0
    %s20 = sadd.s32 %s19, 1
    %s21 = scalar_select %p18, %s19, %s20
    %p24 = pneg %p18
    %p25 = scmp.eq.s32.totalorder %s9, 1
    %p26 = por %p24, %p25
    %p27 = scmp.ne.s32.totalorder %s19, %s22
    %p28 = scmp.eq.s32.totalorder %s9, 0
    %p29 = por %p27, %p28
    %p30 = scmp.ne.s32.totalorder %s19, %s22
    %p31 = scmp.eq.s32.totalorder %s14, 1
    %p32 = por %p30, %p31
    %p33 = scmp.ne.s32.totalorder %s22, %s23
    %p34 = scmp.eq.s32.totalorder %s14, 0
    %p35 = por %p33, %p34
    %p36 = scmp.ne.s32.totalorder %s22, %s23
    %p37 = scmp.eq.s32.totalorder %s15, 1
    %p38 = por %p36, %p37
    %p40 = scmp.ne.s32.totalorder %s23, %s39
    %p41 = scmp.eq.s32.totalorder %s15, 0
    %p42 = por %p40, %p41
    %s44 = sadd.s32 %s43, 1
    %p47 = scmp.eq.s32.totalorder %s9, 1
    %p48 = scmp.ne.s32.totalorder %s43, %s45
    %p49 = scmp.eq.s32.totalorder %s9, 0
    %p50 = por %p48, %p49
    %p51 = scmp.ne.s32.totalorder %s43, %s45
    %p52 = scmp.eq.s32.totalorder %s14, 1
    %p53 = por %p51, %p52
    %p54 = scmp.ne.s32.totalorder %s45, %s46
    %p55 = scmp.eq.s32.totalorder %s14, 0
    %p56 = por %p54, %p55
    %p57 = scmp.ne.s32.totalorder %s45, %s46
    %p58 = scmp.eq.s32.totalorder %s15, 1
    %p59 = por %p57, %p58
    %p61 = scmp.ne.s32.totalorder %s46, %s60
    %p62 = scmp.eq.s32.totalorder %s15, 0
    %p63 = por %p61, %p62
    %s65 = sadd.s32 %s64, 1
    %p68 = scmp.eq.s32.totalorder %s9, 1
    %p69 = scmp.ne.s32.totalorder %s64, %s66
    %p70 = scmp.eq.s32.totalorder %s9, 0
    %p71 = por %p69, %p70
    %p72 = scmp.ne.s32.totalorder %s64, %s66
    %p73 = scmp.eq.s32.totalorder %s14, 1
    %p74 = por %p72, %p73
    %p75 = scmp.ne.s32.totalorder %s66, %s67
    %p76 = scmp.eq.s32.totalorder %s14, 0
    %p77 = por %p75, %p76
    %p78 = scmp.ne.s32.totalorder %s66, %s67
    %p79 = scmp.eq.s32.totalorder %s15, 1
    %p80 = por %p78, %p79
    %p82 = scmp.ne.s32.totalorder %s67, %s81
    %p83 = scmp.eq.s32.totalorder %s15, 0
    %p84 = por %p82, %p83
    %s85 = ssub.s32 %s9, %s16
    %p86 = scmp.eq.s32.totalorder %s85, 0
    %s88 = sadd.s32 %s87, 1
    %s89 = scalar_select %p86, %s87, %s88
    %p92 = pneg %p86
    %p93 = scmp.eq.s32.totalorder %s9, 1
    %p94 = por %p92, %p93
    %p95 = scmp.ne.s32.totalorder %s87, %s90
    %p96 = scmp.eq.s32.totalorder %s9, 0
    %p97 = por %p95, %p96
    %p98 = scmp.ne.s32.totalorder %s87, %s90
    %p99 = scmp.eq.s32.totalorder %s14, 1
    %p100 = por %p98, %p99
    %p101 = scmp.ne.s32.totalorder %s90, %s91
    %p102 = scmp.eq.s32.totalorder %s14, 0
    %p103 = por %p101, %p102
    %p104 = scmp.ne.s32.totalorder %s90, %s91
    %p105 = scmp.eq.s32.totalorder %s15, 1
    %p106 = por %p104, %p105
    %p108 = scmp.ne.s32.totalorder %s91, %s107
    %p109 = scmp.eq.s32.totalorder %s15, 0
    %p110 = por %p108, %p109
    %p111 = scmp.le.s32.totalorder 1, %s9
    %p112 = scmp.lt.s32.totalorder %s9, 3
    %p113 = pnand %p111, %p112
    %p114 = pneg %p113
    // Predicated region
    $region9: #{convnet_forward.3} parent=5 // pred_check
      _
    $region10: #{convnet_forward.3} parent=5 // pred_check_branch
      %116 = sbr.rel (%p113) target = $region12
    $region11: #{convnet_forward.3} parent=5 // pred_region
      %s117 = ssub.s32 %s9, 1
      // Predicated region
      $region13: #{convnet_forward.3} parent=11 // pred_check
        %p118 = pneg %p56
      $region14: #{convnet_forward.3} parent=11 // pred_check_branch
        %120 = sbr.rel (%p118) target = $region16
      $region15: #{convnet_forward.3} parent=11 // pred_region
        _
      $region16: #{convnet_forward.3} parent=11 // pred_fallthru
        _
      // Predicated region
      $region17: #{convnet_forward.3} parent=11 // pred_check
        %p121 = pneg %p77
      $region18: #{convnet_forward.3} parent=11 // pred_check_branch
        %123 = sbr.rel (%p121) target = $region20
      $region19: #{convnet_forward.3} parent=11 // pred_region
        _
      $region20: #{convnet_forward.3} parent=11 // pred_fallthru
        _
    $region12: #{convnet_forward.3} parent=5 // pred_fallthru
      _
    %p124 = scmp.lt.s32.totalorder %s9, 2
    // Predicated region
    $region21: #{convnet_forward.3} parent=5 // pred_check
      %p125 = pneg %p124
    $region22: #{convnet_forward.3} parent=5 // pred_check_branch
      %127 = sbr.rel (%p125) target = $region24
    $region23: #{convnet_forward.3} parent=5 // pred_region
      // Predicated region
      $region25: #{convnet_forward.3} parent=23 // pred_check
        %p128 = pneg %p29
      $region26: #{convnet_forward.3} parent=23 // pred_check_branch
        %130 = sbr.rel (%p128) target = $region28
      $region27: #{convnet_forward.3} parent=23 // pred_region
        %p131 = scmp.lt.s32.totalorder %s9, 1
        %s132 = scalar_select %p131, %s9, 1
        %s133 = smul.addr %s132, 32
        %s134 = smul.addr %s133, 4
        %s135 = scalar_lea.vmem %s0, %s134
      $region28: #{convnet_forward.3} parent=23 // pred_fallthru
        _
    $region24: #{convnet_forward.3} parent=5 // pred_fallthru
      _
    %p136 = scmp.le.s32.totalorder 1, %s9
    %p137 = scmp.lt.s32.totalorder %s9, 3
    %p138 = pnand %p136, %p137
    %p139 = pneg %p138
    // Predicated region
    $region29: #{convnet_forward.3} parent=5 // pred_check
      _
    $region30: #{convnet_forward.3} parent=5 // pred_check_branch
      %141 = sbr.rel (%p138) target = $region32
    $region31: #{convnet_forward.3} parent=5 // pred_region
      %s142 = ssub.s32 %s9, 1
      %p143 = scmp.lt.s32.totalorder %s14, 1
      %s144 = scalar_select %p143, %s14, 1
      %s145 = smul.addr %s144, 32
      %s146 = smul.addr %s145, 4
      %s147 = scalar_lea.vmem %s0, %s146
      %p148 = pneg %p35
      %p149 = pneg %p32
      %p150 = pneg %p56
      %p151 = pneg %p53
      %p152 = pneg %p77
      %p153 = pneg %p74
      %p154 = pneg %p103
      %p155 = pneg %p100
      %p156 = scmp.lt.s32.totalorder %s14, 1
      %s157 = scalar_select %p156, %s14, 1
      %s158 = smul.addr %s157, 7
      %s159 = smul.addr %s158, 4
      %s160 = scalar_lea.vmem %s3, %s159
      %p161 = scmp.lt.s32.totalorder %s14, 1
      %s162 = scalar_select %p161, %s14, 1
      %s163 = smul.addr %s162, 32
      %s164 = smul.addr %s163, 4
      %s165 = scalar_lea.vmem %s0, %s164
      %p166 = scmp.lt.s32.totalorder %s14, 1
      %s167 = scalar_select %p166, %s14, 1
      %s168 = smul.addr %s167, 7
      %s169 = smul.addr %s168, 4
      %s170 = scalar_lea.vmem %s3, %s169
      %v172 = vld [vmem:[%s165] sm:$0xf]
      %v173 = vld [vmem:[%s165 + $0x4] sm:$0xf]
      %v174 = vld [vmem:[%s165 + $0x8] sm:$0xf]
      %v175 = vld [vmem:[%s165 + $0xc] sm:$0xf]
      %v176 = vld [vmem:[%s165 + $0x10] sm:$0xf]
      %v177 = vld [vmem:[%s165 + $0x14] sm:$0xf]
      %v178 = vld [vmem:[%s165 + $0x18] sm:$0xf]
      %v179 = vld [vmem:[%s165 + $0x1c] sm:$0xf]
      %v180 = vld [vmem:[%s165 + $0x20] sm:$0xf]
      %v181 = vld [vmem:[%s165 + $0x24] sm:$0xf]
      %v182 = vld [vmem:[%s165 + $0x28] sm:$0xf]
      %v183 = vld [vmem:[%s165 + $0x2c] sm:$0xf]
      %v184 = vld [vmem:[%s165 + $0x30] sm:$0xf]
      %v185 = vld [vmem:[%s165 + $0x34] sm:$0xf]
      %v186 = vld [vmem:[%s165 + $0x38] sm:$0xf]
      %v187 = vld [vmem:[%s165 + $0x3c] sm:$0xf]
      %v188 = vld [vmem:[%s165 + $0x40] sm:$0xf]
      %v189 = vld [vmem:[%s165 + $0x44] sm:$0xf]
      %v190 = vld [vmem:[%s165 + $0x48] sm:$0xf]
      %v191 = vld [vmem:[%s165 + $0x4c] sm:$0xf]
      %v192 = vld [vmem:[%s165 + $0x50] sm:$0xf]
      %v193 = vld [vmem:[%s165 + $0x54] sm:$0xf]
      %v194 = vld [vmem:[%s165 + $0x58] sm:$0xf]
      %v195 = vld [vmem:[%s165 + $0x5c] sm:$0xf]
      %v196 = vld [vmem:[%s165 + $0x60] sm:$0xf]
      %v197 = vld [vmem:[%s165 + $0x64] sm:$0xf]
      %v198 = vld [vmem:[%s165 + $0x68] sm:$0xf]
      %v199 = vld [vmem:[%s165 + $0x6c] sm:$0x7]
      %v200 = vld [vmem:[%s1] sm:$0x3]
      %v229 = vunpack.c.l.b16 %v172
      %v230 = vunpack.c.l.b16 %v173
      %v231 = vunpack.c.l.b16 %v174
      %v232 = vunpack.c.l.b16 %v175
      %v233 = vunpack.c.l.b16 %v176
      %v234 = vunpack.c.l.b16 %v177
      %v235 = vunpack.c.l.b16 %v178
      %v236 = vunpack.c.l.b16 %v179
      %v237 = vunpack.c.l.b16 %v180
      %v238 = vunpack.c.l.b16 %v181
      %v239 = vunpack.c.l.b16 %v182
      %v240 = vunpack.c.l.b16 %v183
      %v241 = vunpack.c.l.b16 %v184
      %v242 = vunpack.c.l.b16 %v185
      %v243 = vunpack.c.l.b16 %v186
      %v244 = vunpack.c.l.b16 %v187
      %v245 = vunpack.c.l.b16 %v188
      %v246 = vunpack.c.l.b16 %v189
      %v247 = vunpack.c.l.b16 %v190
      %v248 = vunpack.c.l.b16 %v191
      %v249 = vunpack.c.l.b16 %v192
      %v250 = vunpack.c.l.b16 %v193
      %v251 = vunpack.c.l.b16 %v194
      %v252 = vunpack.c.l.b16 %v195
      %v253 = vunpack.c.l.b16 %v196
      %v254 = vunpack.c.l.b16 %v197
      %v255 = vunpack.c.l.b16 %v198
      %v256 = vunpack.c.l.b16 %v199
      %v257 = vpack.c.b16 %v230, %v229
      %v258 = vpack.c.b16 %v232, %v231
      %v259 = vpack.c.b16 %v234, %v233
      %v260 = vpack.c.b16 %v236, %v235
      %v261 = vpack.c.b16 %v238, %v237
      %v262 = vpack.c.b16 %v240, %v239
      %v263 = vpack.c.b16 %v242, %v241
      %v264 = vpack.c.b16 %v244, %v243
      %v265 = vpack.c.b16 %v246, %v245
      %v266 = vpack.c.b16 %v248, %v247
      %v267 = vpack.c.b16 %v250, %v249
      %v268 = vpack.c.b16 %v252, %v251
      %v269 = vpack.c.b16 %v254, %v253
      %v270 = vpack.c.b16 %v256, %v255
      %vm271 = vcmask 23552
      %v273 = vsel %vm271, %v257, 0
      %v276 = vsel %vm271, %v258, 0
      %v279 = vsel %vm271, %v259, 0
      %v282 = vsel %vm271, %v260, 0
      %v285 = vsel %vm271, %v261, 0
      %v288 = vsel %vm271, %v262, 0
      %v291 = vsel %vm271, %v263, 0
      %v294 = vsel %vm271, %v264, 0
      %v297 = vsel %vm271, %v265, 0
      %v300 = vsel %vm271, %v266, 0
      %v303 = vsel %vm271, %v267, 0
      %v306 = vsel %vm271, %v268, 0
      %v309 = vsel %vm271, %v269, 0
      %v312 = vsel %vm271, %v270, 0
      %vm314 = vcmask 1040384
      %vm315 = vcmask 1041408
      %v316 = vsel %vm314, 4294967295, 65535
      %v317 = vsel %vm315, %v316, 0
      %v319 = vand.u32 %v200, %v317
      %321 = vmatprep.subr.bf16.mxu0 0
      %322 = vmatpush1.bf16.msra.mxu0 %v319
      %323 = vmatprep.subr.bf16.mxu0 0
      %324 = vmatpush1.bf16.msra.mxu0 0
      %325 = vmatprep.subr.bf16.mxu0 0
      %326 = vmatpush1.bf16.msra.mxu0 0
      %327 = vmatprep.subr.bf16.mxu0 0
      %328 = vmatpush1.bf16.msra.mxu0 0
      %329 = vmatprep.subr.bf16.mxu0 0
      %330 = vmatpush1.bf16.msra.mxu0 0
      %331 = vmatprep.subr.bf16.mxu0 0
      %332 = vmatpush1.bf16.msra.mxu0 0
      %333 = vmatprep.subr.bf16.mxu0 0
      %334 = vmatpush1.bf16.msra.mxu0 0
      %335 = vmatprep.subr.bf16.mxu0 0
      %336 = vmatpush1.bf16.msra.mxu0 0
      %337 = vmatprep.subr.bf16.mxu0 0
      %338 = vmatpush1.bf16.msra.mxu0 0
      %339 = vmatprep.subr.bf16.mxu0 0
      %340 = vmatpush1.bf16.msra.mxu0 0
      %341 = vmatprep.subr.bf16.mxu0 0
      %342 = vmatpush1.bf16.msra.mxu0 0
      %343 = vmatprep.subr.bf16.mxu0 0
      %344 = vmatpush1.bf16.msra.mxu0 0
      %345 = vmatprep.subr.bf16.mxu0 0
      %346 = vmatpush1.bf16.msra.mxu0 0
      %347 = vmatprep.subr.bf16.mxu0 0
      %348 = vmatpush1.bf16.msra.mxu0 0
      %349 = vmatprep.subr.bf16.mxu0 0
      %350 = vmatpush1.bf16.msra.mxu0 0
      %351 = vmatprep.subr.bf16.mxu0 0
      %352 = vmatpush1.bf16.msra.mxu0 0
      %353 = vmatprep.mubr.bf16.mxu0 0
      %354 = vmatmul.mubr.bf16.gmra.mrb[0].mxu0 %v273
      %v355 = vpop.f32.mrb[0].mxu0
      %v356 = vadd.f32 0.0, %v355
      %v357 = vpop.f32.mrb[0].mxu0
      %v358 = vpop.f32.mrb[0].mxu0
      %v359 = vadd.f32 0.0, %v358
      %v360 = vpop.f32.mrb[0].mxu0
      %361 = vmatprep.mubr.bf16.mxu0 0
      %362 = vmatmul.mubr.bf16.gmra.mrb[0].mxu0 %v276
      %v363 = vpop.f32.mrb[0].mxu0
      %v364 = vadd.f32 0.0, %v363
      %v365 = vpop.f32.mrb[0].mxu0
      %v366 = vpop.f32.mrb[0].mxu0
      %v367 = vadd.f32 0.0, %v366
      %v368 = vpop.f32.mrb[0].mxu0
      %369 = vmatprep.mubr.bf16.mxu0 0
      %370 = vmatmul.mubr.bf16.gmra.mrb[0].mxu0 %v279
      %v371 = vpop.f32.mrb[0].mxu0
      %v372 = vadd.f32 0.0, %v371
      %v373 = vpop.f32.mrb[0].mxu0
      %v374 = vpop.f32.mrb[0].mxu0
      %v375 = vadd.f32 0.0, %v374
      %v376 = vpop.f32.mrb[0].mxu0
      %377 = vmatprep.mubr.bf16.mxu0 0
      %378 = vmatmul.mubr.bf16.gmra.mrb[0].mxu0 %v282
      %v379 = vpop.f32.mrb[0].mxu0
      %v380 = vadd.f32 0.0, %v379
      %v381 = vpop.f32.mrb[0].mxu0
      %v382 = vpop.f32.mrb[0].mxu0
      %v383 = vadd.f32 0.0, %v382
      %v384 = vpop.f32.mrb[0].mxu0
      %385 = vmatprep.mubr.bf16.mxu0 0
      %386 = vmatmul.mubr.bf16.gmra.mrb[0].mxu0 %v285
      %v387 = vpop.f32.mrb[0].mxu0
      %v388 = vadd.f32 0.0, %v387
      %v389 = vpop.f32.mrb[0].mxu0
      %v390 = vpop.f32.mrb[0].mxu0
      %v391 = vadd.f32 0.0, %v390
      %v392 = vpop.f32.mrb[0].mxu0
      %393 = vmatprep.mubr.bf16.mxu0 0
      %394 = vmatmul.mubr.bf16.gmra.mrb[0].mxu0 %v288
      %v395 = vpop.f32.mrb[0].mxu0
      %v396 = vadd.f32 0.0, %v395
      %v397 = vpop.f32.mrb[0].mxu0
      %v398 = vpop.f32.mrb[0].mxu0
      %v399 = vadd.f32 0.0, %v398
      %v400 = vpop.f32.mrb[0].mxu0
      %401 = vmatprep.mubr.bf16.mxu0 0
      %402 = vmatmul.mubr.bf16.gmra.mrb[0].mxu0 %v291
      %v403 = vpop.f32.mrb[0].mxu0
      %v404 = vadd.f32 0.0, %v403
      %v405 = vpop.f32.mrb[0].mxu0
      %v406 = vpop.f32.mrb[0].mxu0
      %v407 = vadd.f32 0.0, %v406
      %v408 = vpop.f32.mrb[0].mxu0
      %409 = vmatprep.mubr.bf16.mxu0 0
      %410 = vmatmul.mubr.bf16.gmra.mrb[0].mxu0 %v294
      %v411 = vpop.f32.mrb[0].mxu0
      %v412 = vadd.f32 0.0, %v411
      %v413 = vpop.f32.mrb[0].mxu0
      %v414 = vpop.f32.mrb[0].mxu0
      %v415 = vadd.f32 0.0, %v414
      %v416 = vpop.f32.mrb[0].mxu0
      %417 = vmatprep.mubr.bf16.mxu0 0
      %418 = vmatmul.mubr.bf16.gmra.mrb[0].mxu0 %v297
      %v419 = vpop.f32.mrb[0].mxu0
      %v420 = vadd.f32 0.0, %v419
      %v421 = vpop.f32.mrb[0].mxu0
      %v422 = vpop.f32.mrb[0].mxu0
      %v423 = vadd.f32 0.0, %v422
      %v424 = vpop.f32.mrb[0].mxu0
      %425 = vmatprep.mubr.bf16.mxu0 0
      %426 = vmatmul.mubr.bf16.gmra.mrb[0].mxu0 %v300
      %v427 = vpop.f32.mrb[0].mxu0
      %v428 = vadd.f32 0.0, %v427
      %v429 = vpop.f32.mrb[0].mxu0
      %v430 = vpop.f32.mrb[0].mxu0
      %v431 = vadd.f32 0.0, %v430
      %v432 = vpop.f32.mrb[0].mxu0
      %433 = vmatprep.mubr.bf16.mxu0 0
      %434 = vmatmul.mubr.bf16.gmra.mrb[0].mxu0 %v303
      %v435 = vpop.f32.mrb[0].mxu0
      %v436 = vadd.f32 0.0, %v435
      %v437 = vpop.f32.mrb[0].mxu0
      %v438 = vpop.f32.mrb[0].mxu0
      %v439 = vadd.f32 0.0, %v438
      %v440 = vpop.f32.mrb[0].mxu0
      %441 = vmatprep.mubr.bf16.mxu0 0
      %442 = vmatmul.mubr.bf16.gmra.mrb[0].mxu0 %v306
      %v443 = vpop.f32.mrb[0].mxu0
      %v444 = vadd.f32 0.0, %v443
      %v445 = vpop.f32.mrb[0].mxu0
      %v446 = vpop.f32.mrb[0].mxu0
      %v447 = vadd.f32 0.0, %v446
      %v448 = vpop.f32.mrb[0].mxu0
      %449 = vmatprep.mubr.bf16.mxu0 0
      %450 = vmatmul.mubr.bf16.gmra.mrb[0].mxu0 %v309
      %v451 = vpop.f32.mrb[0].mxu0
      %v452 = vadd.f32 0.0, %v451
      %v453 = vpop.f32.mrb[0].mxu0
      %v454 = vpop.f32.mrb[0].mxu0
      %v455 = vadd.f32 0.0, %v454
      %v456 = vpop.f32.mrb[0].mxu0
      %457 = vmatprep.mubr.bf16.mxu0 0
      %458 = vmatmul.mubr.bf16.gmra.mrb[0].mxu0 %v312
      %v459 = vpop.f32.mrb[0].mxu0
      %v460 = vadd.f32 0.0, %v459
      %v461 = vpop.f32.mrb[0].mxu0
      %v462 = vpop.f32.mrb[0].mxu0
      %v463 = vadd.f32 0.0, %v462
      %v464 = vpop.f32.mrb[0].mxu0
      %465 = vdwg.mxu0
      %466 = vst [vmem:[#allocation2] sm:$0xff] %v356
      %467 = vst [vmem:[#allocation2 + $0x8] sm:$0xff] %v359
      %468 = vst [vmem:[#allocation2 + $0x10] sm:$0xff] %v364
      %469 = vst [vmem:[#allocation2 + $0x18] sm:$0xff] %v367
      %470 = vst [vmem:[#allocation2 + $0x20] sm:$0xff] %v372
      %471 = vst [vmem:[#allocation2 + $0x28] sm:$0xff] %v375
      %472 = vst [vmem:[#allocation2 + $0x30] sm:$0xff] %v380
      %473 = vst [vmem:[#allocation2 + $0x38] sm:$0xff] %v383
      %474 = vst [vmem:[#allocation2 + $0x40] sm:$0xff] %v388
      %475 = vst [vmem:[#allocation2 + $0x48] sm:$0xff] %v391
      %476 = vst [vmem:[#allocation2 + $0x50] sm:$0xff] %v396
      %477 = vst [vmem:[#allocation2 + $0x58] sm:$0xff] %v399
      %478 = vst [vmem:[#allocation2 + $0x60] sm:$0xff] %v404
      %479 = vst [vmem:[#allocation2 + $0x68] sm:$0xff] %v407
      %480 = vst [vmem:[#allocation2 + $0x70] sm:$0xff] %v412
      %481 = vst [vmem:[#allocation2 + $0x78] sm:$0xff] %v415
      %482 = vst [vmem:[#allocation2 + $0x80] sm:$0xff] %v420
      %483 = vst [vmem:[#allocation2 + $0x88] sm:$0xff] %v423
      %484 = vst [vmem:[#allocation2 + $0x90] sm:$0xff] %v428
      %485 = vst [vmem:[#allocation2 + $0x98] sm:$0xff] %v431
      %486 = vst [vmem:[#allocation2 + $0xa0] sm:$0xff] %v436
      %487 = vst [vmem:[#allocation2 + $0xa8] sm:$0xff] %v439
      %488 = vst [vmem:[#allocation2 + $0xb0] sm:$0xff] %v444
      %489 = vst [vmem:[#allocation2 + $0xb8] sm:$0xff] %v447
      %490 = vst [vmem:[#allocation2 + $0xc0] sm:$0xff] %v452
      %491 = vst [vmem:[#allocation2 + $0xc8] sm:$0xff] %v455
      %492 = vst [vmem:[#allocation2 + $0xd0] sm:$0xff] %v460
      %493 = vst [vmem:[#allocation2 + $0xd8] sm:$0x3f] %v463
      %v494 = vld [vmem:[%s165] sm:$0xf]
      %v495 = vld [vmem:[%s165 + $0x4] sm:$0xf]
      %v496 = vld [vmem:[%s165 + $0x8] sm:$0xf]
      %v497 = vld [vmem:[%s165 + $0xc] sm:$0xf]
      %v498 = vld [vmem:[%s165 + $0x10] sm:$0xf]
      %v499 = vld [vmem:[%s165 + $0x14] sm:$0xf]
      %v500 = vld [vmem:[%s165 + $0x18] sm:$0xf]
      %v501 = vld [vmem:[%s165 + $0x1c] sm:$0xf]
      %v502 = vld [vmem:[%s165 + $0x20] sm:$0xf]
      %v503 = vld [vmem:[%s165 + $0x24] sm:$0xf]
      %v504 = vld [vmem:[%s165 + $0x28] sm:$0xf]
      %v505 = vld [vmem:[%s165 + $0x2c] sm:$0xf]
      %v506 = vld [vmem:[%s165 + $0x30] sm:$0xf]
      %v507 = vld [vmem:[%s165 + $0x34] sm:$0xf]
      %v508 = vld [vmem:[%s165 + $0x38] sm:$0xf]
      %v509 = vld [vmem:[%s165 + $0x3c] sm:$0xf]
      %v510 = vld [vmem:[%s165 + $0x40] sm:$0xf]
      %v511 = vld [vmem:[%s165 + $0x44] sm:$0xf]
      %v512 = vld [vmem:[%s165 + $0x48] sm:$0xf]
      %v513 = vld [vmem:[%s165 + $0x4c] sm:$0xf]
      %v514 = vld [vmem:[%s165 + $0x50] sm:$0xf]
      %v515 = vld [vmem:[%s165 + $0x54] sm:$0xf]
      %v516 = vld [vmem:[%s165 + $0x58] sm:$0xf]
      %v517 = vld [vmem:[%s165 + $0x5c] sm:$0xf]
      %v518 = vld [vmem:[%s165 + $0x60] sm:$0xf]
      %v519 = vld [vmem:[%s165 + $0x64] sm:$0xf]
      %v520 = vld [vmem:[%s165 + $0x68] sm:$0xf]
      %v521 = vld [vmem:[%s165 + $0x6c] sm:$0xf]
      %s522 = scalar_lea.vmem %s1, 2
      %v523 = vld [vmem:[%s522] sm:$0x3]
      %v552 = vunpack.c.l.b16 %v494
      %v553 = vunpack.c.l.b16 %v495
      %v554 = vunpack.c.l.b16 %v496
      %v555 = vunpack.c.l.b16 %v497
      %v556 = vunpack.c.l.b16 %v498
      %v557 = vunpack.c.l.b16 %v499
      %v558 = vunpack.c.l.b16 %v500
      %v559 = vunpack.c.l.b16 %v501
      %v560 = vunpack.c.l.b16 %v502
      %v561 = vunpack.c.l.b16 %v503
      %v562 = vunpack.c.l.b16 %v504
      %v563 = vunpack.c.l.b16 %v505
      %v564 = vunpack.c.l.b16 %v506
      %v565 = vunpack.c.l.b16 %v507
      %v566 = vunpack.c.l.b16 %v508
      %v567 = vunpack.c.l.b16 %v509
      %v568 = vunpack.c.l.b16 %v510
      %v569 = vunpack.c.l.b16 %v511
      %v570 = vunpack.c.l.b16 %v512
      %v571 = vunpack.c.l.b16 %v513
      %v572 = vunpack.c.l.b16 %v514
      %v573 = vunpack.c.l.b16 %v515
      %v574 = vunpack.c.l.b16 %v516
      %v575 = vunpack.c.l.b16 %v517
      %v576 = vunpack.c.l.b16 %v518
      %v577 = vunpack.c.l.b16 %v519
      %v578 = vunpack.c.l.b16 %v520
      %v579 = vunpack.c.l.b16 %v521
      %v580 = vpack.c.b16 %v553, %v552
      %v581 = vpack.c.b16 %v555, %v554
      %v582 = vpack.c.b16 %v557, %v556
      %v583 = vpack.c.b16 %v559, %v558
      %v584 = vpack.c.b16 %v561, %v560
      %v585 = vpack.c.b16 %v563, %v562
      %v586 = vpack.c.b16 %v565, %v564
      %v587 = vpack.c.b16 %v567, %v566
      %v588 = vpack.c.b16 %v569, %v568
      %v589 = vpack.c.b16 %v571, %v570
      %v590 = vpack.c.b16 %v573, %v572
      %v591 = vpack.c.b16 %v575, %v574
      %v592 = vpack.c.b16 %v577, %v576
      %v593 = vpack.c.b16 %v579, %v578
      %vm594 = vsmask.f32 7424
      %v596 = vshrl.u32 %v580, 16
      %v598 = vshll.u32 %v580, 16
      %v600 = vrot.slane %v598, 1
      %v601 = vor.u32 %v596, %v600
      %v603 = vshll.u32 %v581, 16
      %v605 = vrot.slane %v603, 1
      %v606 = vsel %vm594, %v601, %v605
      %v607 = vshrl.u32 %v581, 16
      %v609 = vor.u32 %v607, %v605
      %v611 = vshll.u32 %v582, 16
      %v613 = vrot.slane %v611, 1
      %v614 = vsel %vm594, %v609, %v613
      %v615 = vshrl.u32 %v582, 16
      %v617 = vor.u32 %v615, %v613
      %v619 = vshll.u32 %v583, 16
      %v621 = vrot.slane %v619, 1
      %v622 = vsel %vm594, %v617, %v621
      %v623 = vshrl.u32 %v583, 16
      %v625 = vor.u32 %v623, %v621
      %v627 = vshll.u32 %v584, 16
      %v629 = vrot.slane %v627, 1
      %v630 = vsel %vm594, %v625, %v629
      %v631 = vshrl.u32 %v584, 16
      %v633 = vor.u32 %v631, %v629
      %v635 = vshll.u32 %v585, 16
      %v637 = vrot.slane %v635, 1
      %v638 = vsel %vm594, %v633, %v637
      %v639 = vshrl.u32 %v585, 16
      %v641 = vor.u32 %v639, %v637
      %v643 = vshll.u32 %v586, 16
      %v645 = vrot.slane %v643, 1
      %v646 = vsel %vm594, %v641, %v645
      %v647 = vshrl.u32 %v586, 16
      %v649 = vor.u32 %v647, %v645
      %v651 = vshll.u32 %v587, 16
      %v653 = vrot.slane %v651, 1
      %v654 = vsel %vm594, %v649, %v653
      %v655 = vshrl.u32 %v587, 16
      %v657 = vor.u32 %v655, %v653
      %v659 = vshll.u32 %v588, 16
      %v661 = vrot.slane %v659, 1
      %v662 = vsel %vm594, %v657, %v661
      %v663 = vshrl.u32 %v588, 16
      %v665 = vor.u32 %v663, %v661
      %v667 = vshll.u32 %v589, 16
      %v669 = vrot.slane %v667, 1
      %v670 = vsel %vm594, %v665, %v669
      %v671 = vshrl.u32 %v589, 16
      %v673 = vor.u32 %v671, %v669
      %v675 = vshll.u32 %v590, 16
      %v677 = vrot.slane %v675, 1
      %v678 = vsel %vm594, %v673, %v677
      %v679 = vshrl.u32 %v590, 16
      %v681 = vor.u32 %v679, %v677
      %v683 = vshll.u32 %v591, 16
      %v685 = vrot.slane %v683, 1
      %v686 = vsel %vm594, %v681, %v685
      %v687 = vshrl.u32 %v591, 16
      %v689 = vor.u32 %v687, %v685
      %v691 = vshll.u32 %v592, 16
      %v693 = vrot.slane %v691, 1
      %v694 = vsel %vm594, %v689, %v693
      %v695 = vshrl.u32 %v592, 16
      %v697 = vor.u32 %v695, %v693
      %v699 = vshll.u32 %v593, 16
      %v701 = vrot.slane %v699, 1
      %v702 = vsel %vm594, %v697, %v701
      %v703 = vshrl.u32 %v593, 16
      %v705 = vor.u32 %v703, %v701
      %v707 = vsel %vm271, %v606, 0
      %v710 = vsel %vm271, %v614, 0
      %v713 = vsel %vm271, %v622, 0
      %v716 = vsel %vm271, %v630, 0
      %v719 = vsel %vm271, %v638, 0
      %v722 = vsel %vm271, %v646, 0
      %v725 = vsel %vm271, %v654, 0
      %v728 = vsel %vm271, %v662, 0
      %v731 = vsel %vm271, %v670, 0
      %v734 = vsel %vm271, %v678, 0
      %v737 = vsel %vm271, %v686, 0
      %v740 = vsel %vm271, %v694, 0
      %v743 = vsel %vm271, %v702, 0
      %v746 = vsel %vm271, %v705, 0
      %v749 = vand.u32 %v523, %v317
      %751 = vmatprep.subr.bf16.mxu0 0
      %752 = vmatpush1.bf16.msra.mxu0 %v749
      %753 = vmatprep.subr.bf16.mxu0 0
      %754 = vmatpush1.bf16.msra.mxu0 0
      %755 = vmatprep.subr.bf16.mxu0 0
      %756 = vmatpush1.bf16.msra.mxu0 0
      %757 = vmatprep.subr.bf16.mxu0 0
      %758 = vmatpush1.bf16.msra.mxu0 0
      %759 = vmatprep.subr.bf16.mxu0 0
      %760 = vmatpush1.bf16.msra.mxu0 0
      %761 = vmatprep.subr.bf16.mxu0 0
      %762 = vmatpush1.bf16.msra.mxu0 0
      %763 = vmatprep.subr.bf16.mxu0 0
      %764 = vmatpush1.bf16.msra.mxu0 0
      %765 = vmatprep.subr.bf16.mxu0 0
      %766 = vmatpush1.bf16.msra.mxu0 0
      %767 = vmatprep.subr.bf16.mxu0 0
      %768 = vmatpush1.bf16.msra.mxu0 0
      %769 = vmatprep.subr.bf16.mxu0 0
      %770 = vmatpush1.bf16.msra.mxu0 0
      %771 = vmatprep.subr.bf16.mxu0 0
      %772 = vmatpush1.bf16.msra.mxu0 0
      %773 = vmatprep.subr.bf16.mxu0 0
      %774 = vmatpush1.bf16.msra.mxu0 0
      %775 = vmatprep.subr.bf16.mxu0 0
      %776 = vmatpush1.bf16.msra.mxu0 0
      %777 = vmatprep.subr.bf16.mxu0 0
      %778 = vmatpush1.bf16.msra.mxu0 0
      %779 = vmatprep.subr.bf16.mxu0 0
      %780 = vmatpush1.bf16.msra.mxu0 0
      %781 = vmatprep.subr.bf16.mxu0 0
      %782 = vmatpush1.bf16.msra.mxu0 0
      %783 = vmatprep.mubr.bf16.mxu0 0
      %784 = vmatmul.mubr.bf16.gmra.mrb[0].mxu0 %v707
      %v785 = vpop.f32.mrb[0].mxu0
      %v786 = vadd.f32 0.0, %v785
      %v787 = vpop.f32.mrb[0].mxu0
      %v788 = vpop.f32.mrb[0].mxu0
      %v789 = vadd.f32 0.0, %v788
      %v790 = vpop.f32.mrb[0].mxu0
      %791 = vmatprep.mubr.bf16.mxu0 0
      %792 = vmatmul.mubr.bf16.gmra.mrb[0].mxu0 %v710
      %v793 = vpop.f32.mrb[0].mxu0
      %v794 = vadd.f32 0.0, %v793
      %v795 = vpop.f32.mrb[0].mxu0
      %v796 = vpop.f32.mrb[0].mxu0
      %v797 = vadd.f32 0.0, %v796
      %v798 = vpop.f32.mrb[0].mxu0
      %799 = vmatprep.mubr.bf16.mxu0 0
      %800 = vmatmul.mubr.bf16.gmra.mrb[0].mxu0 %v713
      %v801 = vpop.f32.mrb[0].mxu0
      %v802 = vadd.f32 0.0, %v801
      %v803 = vpop.f32.mrb[0].mxu0
      %v804 = vpop.f32.mrb[0].mxu0
      %v805 = vadd.f32 0.0, %v804
      %v806 = vpop.f32.mrb[0].mxu0
      %807 = vmatprep.mubr.bf16.mxu0 0
      %808 = vmatmul.mubr.bf16.gmra.mrb[0].mxu0 %v716
      %v809 = vpop.f32.mrb[0].mxu0
      %v810 = vadd.f32 0.0, %v809
      %v811 = vpop.f32.mrb[0].mxu0
      %v812 = vpop.f32.mrb[0].mxu0
      %v813 = vadd.f32 0.0, %v812
      %v814 = vpop.f32.mrb[0].mxu0
      %815 = vmatprep.mubr.bf16.mxu0 0
      %816 = vmatmul.mubr.bf16.gmra.mrb[0].mxu0 %v719
      %v817 = vpop.f32.mrb[0].mxu0
      %v818 = vadd.f32 0.0, %v817
      %v819 = vpop.f32.mrb[0].mxu0
      %v820 = vpop.f32.mrb[0].mxu0
      %v821 = vadd.f32 0.0, %v820
      %v822 = vpop.f32.mrb[0].mxu0
      %823 = vmatprep.mubr.bf16.mxu0 0
      %824 = vmatmul.mubr.bf16.gmra.mrb[0].mxu0 %v722
      %v825 = vpop.f32.mrb[0].mxu0
      %v826 = vadd.f32 0.0, %v825
      %v827 = vpop.f32.mrb[0].mxu0
      %v828 = vpop.f32.mrb[0].mxu0
      %v829 = vadd.f32 0.0, %v828
      %v830 = vpop.f32.mrb[0].mxu0
      %831 = vmatprep.mubr.bf16.mxu0 0
      %832 = vmatmul.mubr.bf16.gmra.mrb[0].mxu0 %v725
      %v833 = vpop.f32.mrb[0].mxu0
      %v834 = vadd.f32 0.0, %v833
      %v835 = vpop.f32.mrb[0].mxu0
      %v836 = vpop.f32.mrb[0].mxu0
      %v837 = vadd.f32 0.0, %v836
      %v838 = vpop.f32.mrb[0].mxu0
      %839 = vmatprep.mubr.bf16.mxu0 0
      %840 = vmatmul.mubr.bf16.gmra.mrb[0].mxu0 %v728
      %v841 = vpop.f32.mrb[0].mxu0
      %v842 = vadd.f32 0.0, %v841
      %v843 = vpop.f32.mrb[0].mxu0
      %v844 = vpop.f32.mrb[0].mxu0
      %v845 = vadd.f32 0.0, %v844
      %v846 = vpop.f32.mrb[0].mxu0
      %847 = vmatprep.mubr.bf16.mxu0 0
      %848 = vmatmul.mubr.bf16.gmra.mrb[0].mxu0 %v731
      %v849 = vpop.f32.mrb[0].mxu0
      %v850 = vadd.f32 0.0, %v849
      %v851 = vpop.f32.mrb[0].mxu0
      %v852 = vpop.f32.mrb[0].mxu0
      %v853 = vadd.f32 0.0, %v852
      %v854 = vpop.f32.mrb[0].mxu0
      %855 = vmatprep.mubr.bf16.mxu0 0
      %856 = vmatmul.mubr.bf16.gmra.mrb[0].mxu0 %v734
      %v857 = vpop.f32.mrb[0].mxu0
      %v858 = vadd.f32 0.0, %v857
      %v859 = vpop.f32.mrb[0].mxu0
      %v860 = vpop.f32.mrb[0].mxu0
      %v861 = vadd.f32 0.0, %v860
      %v862 = vpop.f32.mrb[0].mxu0
      %863 = vmatprep.mubr.bf16.mxu0 0
      %864 = vmatmul.mubr.bf16.gmra.mrb[0].mxu0 %v737
      %v865 = vpop.f32.mrb[0].mxu0
      %v866 = vadd.f32 0.0, %v865
      %v867 = vpop.f32.mrb[0].mxu0
      %v868 = vpop.f32.mrb[0].mxu0
      %v869 = vadd.f32 0.0, %v868
      %v870 = vpop.f32.mrb[0].mxu0
      %871 = vmatprep.mubr.bf16.mxu0 0
      %872 = vmatmul.mubr.bf16.gmra.mrb[0].mxu0 %v740
      %v873 = vpop.f32.mrb[0].mxu0
      %v874 = vadd.f32 0.0, %v873
      %v875 = vpop.f32.mrb[0].mxu0
      %v876 = vpop.f32.mrb[0].mxu0
      %v877 = vadd.f32 0.0, %v876
      %v878 = vpop.f32.mrb[0].mxu0
      %879 = vmatprep.mubr.bf16.mxu0 0
      %880 = vmatmul.mubr.bf16.gmra.mrb[0].mxu0 %v743
      %v881 = vpop.f32.mrb[0].mxu0
      %v882 = vadd.f32 0.0, %v881
      %v883 = vpop.f32.mrb[0].mxu0
      %v884 = vpop.f32.mrb[0].mxu0
      %v885 = vadd.f32 0.0, %v884
      %v886 = vpop.f32.mrb[0].mxu0
      %887 = vmatprep.mubr.bf16.mxu0 0
      %888 = vmatmul.mubr.bf16.gmra.mrb[0].mxu0 %v746
      %v889 = vpop.f32.mrb[0].mxu0
      %v890 = vadd.f32 0.0, %v889
      %v891 = vpop.f32.mrb[0].mxu0
      %v892 = vpop.f32.mrb[0].mxu0
      %v893 = vadd.f32 0.0, %v892
      %v894 = vpop.f32.mrb[0].mxu0
      %895 = vdwg.mxu0
      %v896 = vld [vmem:[#allocation2] sm:$0xff]
      %v897 = vld [vmem:[#allocation2 + $0x8] sm:$0xff]
      %v898 = vld [vmem:[#allocation2 + $0x10] sm:$0xff]
      %v899 = vld [vmem:[#allocation2 + $0x18] sm:$0xff]
      %v900 = vld [vmem:[#allocation2 + $0x20] sm:$0xff]
      %v901 = vld [vmem:[#allocation2 + $0x28] sm:$0xff]
      %v902 = vld [vmem:[#allocation2 + $0x30] sm:$0xff]
      %v903 = vld [vmem:[#allocation2 + $0x38] sm:$0xff]
      %v904 = vld [vmem:[#allocation2 + $0x40] sm:$0xff]
      %v905 = vld [vmem:[#allocation2 + $0x48] sm:$0xff]
      %v906 = vld [vmem:[#allocation2 + $0x50] sm:$0xff]
      %v907 = vld [vmem:[#allocation2 + $0x58] sm:$0xff]
      %v908 = vld [vmem:[#allocation2 + $0x60] sm:$0xff]
      %v909 = vld [vmem:[#allocation2 + $0x68] sm:$0xff]
      %v910 = vld [vmem:[#allocation2 + $0x70] sm:$0xff]
      %v911 = vld [vmem:[#allocation2 + $0x78] sm:$0xff]
      %v912 = vld [vmem:[#allocation2 + $0x80] sm:$0xff]
      %v913 = vld [vmem:[#allocation2 + $0x88] sm:$0xff]
      %v914 = vld [vmem:[#allocation2 + $0x90] sm:$0xff]
      %v915 = vld [vmem:[#allocation2 + $0x98] sm:$0xff]
      %v916 = vld [vmem:[#allocation2 + $0xa0] sm:$0xff]
      %v917 = vld [vmem:[#allocation2 + $0xa8] sm:$0xff]
      %v918 = vld [vmem:[#allocation2 + $0xb0] sm:$0xff]
      %v919 = vld [vmem:[#allocation2 + $0xb8] sm:$0xff]
      %v920 = vld [vmem:[#allocation2 + $0xc0] sm:$0xff]
      %v921 = vld [vmem:[#allocation2 + $0xc8] sm:$0xff]
      %v922 = vld [vmem:[#allocation2 + $0xd0] sm:$0xff]
      %v923 = vld [vmem:[#allocation2 + $0xd8] sm:$0x3f]
      %v924 = vadd.f32 %v896, %v786
      %v925 = vadd.f32 %v897, %v789
      %v926 = vadd.f32 %v898, %v794
      %v927 = vadd.f32 %v899, %v797
      %v928 = vadd.f32 %v900, %v802
      %v929 = vadd.f32 %v901, %v805
      %v930 = vadd.f32 %v902, %v810
      %v931 = vadd.f32 %v903, %v813
      %v932 = vadd.f32 %v904, %v818
      %v933 = vadd.f32 %v905, %v821
      %v934 = vadd.f32 %v906, %v826
      %v935 = vadd.f32 %v907, %v829
      %v936 = vadd.f32 %v908, %v834
      %v937 = vadd.f32 %v909, %v837
      %v938 = vadd.f32 %v910, %v842
      %v939 = vadd.f32 %v911, %v845
      %v940 = vadd.f32 %v912, %v850
      %v941 = vadd.f32 %v913, %v853
      %v942 = vadd.f32 %v914, %v858
      %v943 = vadd.f32 %v915, %v861
      %v944 = vadd.f32 %v916, %v866
      %v945 = vadd.f32 %v917, %v869
      %v946 = vadd.f32 %v918, %v874
      %v947 = vadd.f32 %v919, %v877
      %v948 = vadd.f32 %v920, %v882
      %v949 = vadd.f32 %v921, %v885
      %v950 = vadd.f32 %v922, %v890
      %v951 = vadd.f32 %v923, %v893
      %952 = vst [vmem:[#allocation2] sm:$0xff] %v924
      %953 = vst [vmem:[#allocation2 + $0x8] sm:$0xff] %v925
      %954 = vst [vmem:[#allocation2 + $0x10] sm:$0xff] %v926
      %955 = vst [vmem:[#allocation2 + $0x18] sm:$0xff] %v927
      %956 = vst [vmem:[#allocation2 + $0x20] sm:$0xff] %v928
      %957 = vst [vmem:[#allocation2 + $0x28] sm:$0xff] %v929
      %958 = vst [vmem:[#allocation2 + $0x30] sm:$0xff] %v930
      %959 = vst [vmem:[#allocation2 + $0x38] sm:$0xff] %v931
      %960 = vst [vmem:[#allocation2 + $0x40] sm:$0xff] %v932
      %961 = vst [vmem:[#allocation2 + $0x48] sm:$0xff] %v933
      %962 = vst [vmem:[#allocation2 + $0x50] sm:$0xff] %v934
      %963 = vst [vmem:[#allocation2 + $0x58] sm:$0xff] %v935
      %964 = vst [vmem:[#allocation2 + $0x60] sm:$0xff] %v936
      %965 = vst [vmem:[#allocation2 + $0x68] sm:$0xff] %v937
      %966 = vst [vmem:[#allocation2 + $0x70] sm:$0xff] %v938
      %967 = vst [vmem:[#allocation2 + $0x78] sm:$0xff] %v939
      %968 = vst [vmem:[#allocation2 + $0x80] sm:$0xff] %v940
      %969 = vst [vmem:[#allocation2 + $0x88] sm:$0xff] %v941
      %970 = vst [vmem:[#allocation2 + $0x90] sm:$0xff] %v942
      %971 = vst [vmem:[#allocation2 + $0x98] sm:$0xff] %v943
      %972 = vst [vmem:[#allocation2 + $0xa0] sm:$0xff] %v944
      %973 = vst [vmem:[#allocation2 + $0xa8] sm:$0xff] %v945
      %974 = vst [vmem:[#allocation2 + $0xb0] sm:$0xff] %v946
      %975 = vst [vmem:[#allocation2 + $0xb8] sm:$0xff] %v947
      %976 = vst [vmem:[#allocation2 + $0xc0] sm:$0xff] %v948
      %977 = vst [vmem:[#allocation2 + $0xc8] sm:$0xff] %v949
      %978 = vst [vmem:[#allocation2 + $0xd0] sm:$0xff] %v950
      %979 = vst [vmem:[#allocation2 + $0xd8] sm:$0x3f] %v951
      %v980 = vld [vmem:[%s165] sm:$0xe]
      %v981 = vld [vmem:[%s165 + $0x4] sm:$0xf]
      %v982 = vld [vmem:[%s165 + $0x8] sm:$0xf]
      %v983 = vld [vmem:[%s165 + $0xc] sm:$0xf]
      %v984 = vld [vmem:[%s165 + $0x10] sm:$0xf]
      %v985 = vld [vmem:[%s165 + $0x14] sm:$0xf]
      %v986 = vld [vmem:[%s165 + $0x18] sm:$0xf]
      %v987 = vld [vmem:[%s165 + $0x1c] sm:$0xf]
      %v988 = vld [vmem:[%s165 + $0x20] sm:$0xf]
      %v989 = vld [vmem:[%s165 + $0x24] sm:$0xf]
      %v990 = vld [vmem:[%s165 + $0x28] sm:$0xf]
      %v991 = vld [vmem:[%s165 + $0x2c] sm:$0xf]
      %v992 = vld [vmem:[%s165 + $0x30] sm:$0xf]
      %v993 = vld [vmem:[%s165 + $0x34] sm:$0xf]
      %v994 = vld [vmem:[%s165 + $0x38] sm:$0xf]
      %v995 = vld [vmem:[%s165 + $0x3c] sm:$0xf]
      %v996 = vld [vmem:[%s165 + $0x40] sm:$0xf]
      %v997 = vld [vmem:[%s165 + $0x44] sm:$0xf]
      %v998 = vld [vmem:[%s165 + $0x48] sm:$0xf]
      %v999 = vld [vmem:[%s165 + $0x4c] sm:$0xf]
      %v1000 = vld [vmem:[%s165 + $0x50] sm:$0xf]
      %v1001 = vld [vmem:[%s165 + $0x54] sm:$0xf]
      %v1002 = vld [vmem:[%s165 + $0x58] sm:$0xf]
      %v1003 = vld [vmem:[%s165 + $0x5c] sm:$0xf]
      %v1004 = vld [vmem:[%s165 + $0x60] sm:$0xf]
      %v1005 = vld [vmem:[%s165 + $0x64] sm:$0xf]
      %v1006 = vld [vmem:[%s165 + $0x68] sm:$0xf]
      %v1007 = vld [vmem:[%s165 + $0x6c] sm:$0xf]
      %s1008 = scalar_lea.vmem %s1, 4
      %v1009 = vld [vmem:[%s1008] sm:$0x3]
      %v1038 = vunpack.c.l.b16 %v980
      %v1039 = vunpack.c.l.b16 %v981
      %v1040 = vunpack.c.l.b16 %v982
      %v1041 = vunpack.c.l.b16 %v983
      %v1042 = vunpack.c.l.b16 %v984
      %v1043 = vunpack.c.l.b16 %v985
      %v1044 = vunpack.c.l.b16 %v986
      %v1045 = vunpack.c.l.b16 %v987
      %v1046 = vunpack.c.l.b16 %v988
      %v1047 = vunpack.c.l.b16 %v989
      %v1048 = vunpack.c.l.b16 %v990
      %v1049 = vunpack.c.l.b16 %v991
      %v1050 = vunpack.c.l.b16 %v992
      %v1051 = vunpack.c.l.b16 %v993
      %v1052 = vunpack.c.l.b16 %v994
      %v1053 = vunpack.c.l.b16 %v995
      %v1054 = vunpack.c.l.b16 %v996
      %v1055 = vunpack.c.l.b16 %v997
      %v1056 = vunpack.c.l.b16 %v998
      %v1057 = vunpack.c.l.b16 %v999
      %v1058 = vunpack.c.l.b16 %v1000
      %v1059 = vunpack.c.l.b16 %v1001
      %v1060 = vunpack.c.l.b16 %v1002
      %v1061 = vunpack.c.l.b16 %v1003
      %v1062 = vunpack.c.l.b16 %v1004
      %v1063 = vunpack.c.l.b16 %v1005
      %v1064 = vunpack.c.l.b16 %v1006
      %v1065 = vunpack.c.l.b16 %v1007
      %v1066 = vpack.c.b16 %v1039, %v1038
      %v1067 = vpack.c.b16 %v1041, %v1040
      %v1068 = vpack.c.b16 %v1043, %v1042
      %v1069 = vpack.c.b16 %v1045, %v1044
      %v1070 = vpack.c.b16 %v1047, %v1046
      %v1071 = vpack.c.b16 %v1049, %v1048
      %v1072 = vpack.c.b16 %v1051, %v1050
      %v1073 = vpack.c.b16 %v1053, %v1052
      %v1074 = vpack.c.b16 %v1055, %v1054
      %v1075 = vpack.c.b16 %v1057, %v1056
      %v1076 = vpack.c.b16 %v1059, %v1058
      %v1077 = vpack.c.b16 %v1061, %v1060
      %v1078 = vpack.c.b16 %v1063, %v1062
      %v1079 = vpack.c.b16 %v1065, %v1064
      %vm1080 = vcmask 1046528
      %v1081 = vrot.slane %v1066, 1
      %v1082 = vrot.slane %v1067, 1
      %v1083 = vsel %vm1080, %v1081, %v1082
      %v1084 = vrot.slane %v1068, 1
      %v1085 = vsel %vm1080, %v1082, %v1084
      %v1086 = vrot.slane %v1069, 1
      %v1087 = vsel %vm1080, %v1084, %v1086
      %v1088 = vrot.slane %v1070, 1
      %v1089 = vsel %vm1080, %v1086, %v1088
      %v1090 = vrot.slane %v1071, 1
      %v1091 = vsel %vm1080, %v1088, %v1090
      %v1092 = vrot.slane %v1072, 1
      %v1093 = vsel %vm1080, %v1090, %v1092
      %v1094 = vrot.slane %v1073, 1
      %v1095 = vsel %vm1080, %v1092, %v1094
      %v1096 = vrot.slane %v1074, 1
      %v1097 = vsel %vm1080, %v1094, %v1096
      %v1098 = vrot.slane %v1075, 1
      %v1099 = vsel %vm1080, %v1096, %v1098
      %v1100 = vrot.slane %v1076, 1
      %v1101 = vsel %vm1080, %v1098, %v1100
      %v1102 = vrot.slane %v1077, 1
      %v1103 = vsel %vm1080, %v1100, %v1102
      %v1104 = vrot.slane %v1078, 1
      %v1105 = vsel %vm1080, %v1102, %v1104
      %v1106 = vrot.slane %v1079, 1
      %v1107 = vsel %vm1080, %v1104, %v1106
      %v1109 = vsel %vm271, %v1083, 0
      %v1112 = vsel %vm271, %v1085, 0
      %v1115 = vsel %vm271, %v1087, 0
      %v1118 = vsel %vm271, %v1089, 0
      %v1121 = vsel %vm271, %v1091, 0
      %v1124 = vsel %vm271, %v1093, 0
      %v1127 = vsel %vm271, %v1095, 0
      %v1130 = vsel %vm271, %v1097, 0
      %v1133 = vsel %vm271, %v1099, 0
      %v1136 = vsel %vm271, %v1101, 0
      %v1139 = vsel %vm271, %v1103, 0
      %v1142 = vsel %vm271, %v1105, 0
      %v1145 = vsel %vm271, %v1107, 0
      %v1148 = vsel %vm271, %v1106, 0
      %v1151 = vand.u32 %v1009, %v317
      %1153 = vmatprep.subr.bf16.mxu0 0
      %1154 = vmatpush1.bf16.msra.mxu0 %v1151
      %1155 = vmatprep.subr.bf16.mxu0 0
      %1156 = vmatpush1.bf16.msra.mxu0 0
      %1157 = vmatprep.subr.bf16.mxu0 0
      %1158 = vmatpush1.bf16.msra.mxu0 0
      %1159 = vmatprep.subr.bf16.mxu0 0
      %1160 = vmatpush1.bf16.msra.mxu0 0
      %1161 = vmatprep.subr.bf16.mxu0 0
      %1162 = vmatpush1.bf16.msra.mxu0 0
      %1163 = vmatprep.subr.bf16.mxu0 0
      %1164 = vmatpush1.bf16.msra.mxu0 0
      %1165 = vmatprep.subr.bf16.mxu0 0
      %1166 = vmatpush1.bf16.msra.mxu0 0
      %1167 = vmatprep.subr.bf16.mxu0 0
      %1168 = vmatpush1.bf16.msra.mxu0 0
      %1169 = vmatprep.subr.bf16.mxu0 0
      %1170 = vmatpush1.bf16.msra.mxu0 0
      %1171 = vmatprep.subr.bf16.mxu0 0
      %1172 = vmatpush1.bf16.msra.mxu0 0
      %1173 = vmatprep.subr.bf16.mxu0 0
      %1174 = vmatpush1.bf16.msra.mxu0 0
      %1175 = vmatprep.subr.bf16.mxu0 0
      %1176 = vmatpush1.bf16.msra.mxu0 0
      %1177 = vmatprep.subr.bf16.mxu0 0
      %1178 = vmatpush1.bf16.msra.mxu0 0
      %1179 = vmatprep.subr.bf16.mxu0 0
      %1180 = vmatpush1.bf16.msra.mxu0 0
      %1181 = vmatprep.subr.bf16.mxu0 0
      %1182 = vmatpush1.bf16.msra.mxu0 0
      %1183 = vmatprep.subr.bf16.mxu0 0
      %1184 = vmatpush1.bf16.msra.mxu0 0
      %1185 = vmatprep.mubr.bf16.mxu0 0
      %1186 = vmatmul.mubr.bf16.gmra.mrb[0].mxu0 %v1109
      %v1187 = vpop.f32.mrb[0].mxu0
      %v1188 = vadd.f32 0.0, %v1187
      %v1189 = vpop.f32.mrb[0].mxu0
      %v1190 = vpop.f32.mrb[0].mxu0
      %v1191 = vadd.f32 0.0, %v1190
      %v1192 = vpop.f32.mrb[0].mxu0
      %1193 = vmatprep.mubr.bf16.mxu0 0
      %1194 = vmatmul.mubr.bf16.gmra.mrb[0].mxu0 %v1112
      %v1195 = vpop.f32.mrb[0].mxu0
      %v1196 = vadd.f32 0.0, %v1195
      %v1197 = vpop.f32.mrb[0].mxu0
      %v1198 = vpop.f32.mrb[0].mxu0
      %v1199 = vadd.f32 0.0, %v1198
      %v1200 = vpop.f32.mrb[0].mxu0
      %1201 = vmatprep.mubr.bf16.mxu0 0
      %1202 = vmatmul.mubr.bf16.gmra.mrb[0].mxu0 %v1115
      %v1203 = vpop.f32.mrb[0].mxu0
      %v1204 = vadd.f32 0.0, %v1203
      %v1205 = vpop.f32.mrb[0].mxu0
      %v1206 = vpop.f32.mrb[0].mxu0
      %v1207 = vadd.f32 0.0, %v1206
      %v1208 = vpop.f32.mrb[0].mxu0
      %1209 = vmatprep.mubr.bf16.mxu0 0
      %1210 = vmatmul.mubr.bf16.gmra.mrb[0].mxu0 %v1118
      %v1211 = vpop.f32.mrb[0].mxu0
      %v1212 = vadd.f32 0.0, %v1211
      %v1213 = vpop.f32.mrb[0].mxu0
      %v1214 = vpop.f32.mrb[0].mxu0
      %v1215 = vadd.f32 0.0, %v1214
      %v1216 = vpop.f32.mrb[0].mxu0
      %1217 = vmatprep.mubr.bf16.mxu0 0
      %1218 = vmatmul.mubr.bf16.gmra.mrb[0].mxu0 %v1121
      %v1219 = vpop.f32.mrb[0].mxu0
      %v1220 = vadd.f32 0.0, %v1219
      %v1221 = vpop.f32.mrb[0].mxu0
      %v1222 = vpop.f32.mrb[0].mxu0
      %v1223 = vadd.f32 0.0, %v1222
      %v1224 = vpop.f32.mrb[0].mxu0
      %1225 = vmatprep.mubr.bf16.mxu0 0
      %1226 = vmatmul.mubr.bf16.gmra.mrb[0].mxu0 %v1124
      %v1227 = vpop.f32.mrb[0].mxu0
      %v1228 = vadd.f32 0.0, %v1227
      %v1229 = vpop.f32.mrb[0].mxu0
      %v1230 = vpop.f32.mrb[0].mxu0
      %v1231 = vadd.f32 0.0, %v1230
      %v1232 = vpop.f32.mrb[0].mxu0
      %1233 = vmatprep.mubr.bf16.mxu0 0
      %1234 = vmatmul.mubr.bf16.gmra.mrb[0].mxu0 %v1127
      %v1235 = vpop.f32.mrb[0].mxu0
      %v1236 = vadd.f32 0.0, %v1235
      %v1237 = vpop.f32.mrb[0].mxu0
      %v1238 = vpop.f32.mrb[0].mxu0
      %v1239 = vadd.f32 0.0, %v1238
      %v1240 = vpop.f32.mrb[0].mxu0
      %1241 = vmatprep.mubr.bf16.mxu0 0
      %1242 = vmatmul.mubr.bf16.gmra.mrb[0].mxu0 %v1130
      %v1243 = vpop.f32.mrb[0].mxu0
      %v1244 = vadd.f32 0.0, %v1243
      %v1245 = vpop.f32.mrb[0].mxu0
      %v1246 = vpop.f32.mrb[0].mxu0
      %v1247 = vadd.f32 0.0, %v1246
      %v1248 = vpop.f32.mrb[0].mxu0
      %1249 = vmatprep.mubr.bf16.mxu0 0
      %1250 = vmatmul.mubr.bf16.gmra.mrb[0].mxu0 %v1133
      %v1251 = vpop.f32.mrb[0].mxu0
      %v1252 = vadd.f32 0.0, %v1251
      %v1253 = vpop.f32.mrb[0].mxu0
      %v1254 = vpop.f32.mrb[0].mxu0
      %v1255 = vadd.f32 0.0, %v1254
      %v1256 = vpop.f32.mrb[0].mxu0
      %1257 = vmatprep.mubr.bf16.mxu0 0
      %1258 = vmatmul.mubr.bf16.gmra.mrb[0].mxu0 %v1136
      %v1259 = vpop.f32.mrb[0].mxu0
      %v1260 = vadd.f32 0.0, %v1259
      %v1261 = vpop.f32.mrb[0].mxu0
      %v1262 = vpop.f32.mrb[0].mxu0
      %v1263 = vadd.f32 0.0, %v1262
      %v1264 = vpop.f32.mrb[0].mxu0
      %1265 = vmatprep.mubr.bf16.mxu0 0
      %1266 = vmatmul.mubr.bf16.gmra.mrb[0].mxu0 %v1139
      %v1267 = vpop.f32.mrb[0].mxu0
      %v1268 = vadd.f32 0.0, %v1267
      %v1269 = vpop.f32.mrb[0].mxu0
      %v1270 = vpop.f32.mrb[0].mxu0
      %v1271 = vadd.f32 0.0, %v1270
      %v1272 = vpop.f32.mrb[0].mxu0
      %1273 = vmatprep.mubr.bf16.mxu0 0
      %1274 = vmatmul.mubr.bf16.gmra.mrb[0].mxu0 %v1142
      %v1275 = vpop.f32.mrb[0].mxu0
      %v1276 = vadd.f32 0.0, %v1275
      %v1277 = vpop.f32.mrb[0].mxu0
      %v1278 = vpop.f32.mrb[0].mxu0
      %v1279 = vadd.f32 0.0, %v1278
      %v1280 = vpop.f32.mrb[0].mxu0
      %1281 = vmatprep.mubr.bf16.mxu0 0
      %1282 = vmatmul.mubr.bf16.gmra.mrb[0].mxu0 %v1145
      %v1283 = vpop.f32.mrb[0].mxu0
      %v1284 = vadd.f32 0.0, %v1283
      %v1285 = vpop.f32.mrb[0].mxu0
      %v1286 = vpop.f32.mrb[0].mxu0
      %v1287 = vadd.f32 0.0, %v1286
      %v1288 = vpop.f32.mrb[0].mxu0
      %1289 = vmatprep.mubr.bf16.mxu0 0
      %1290 = vmatmul.mubr.bf16.gmra.mrb[0].mxu0 %v1148
      %v1291 = vpop.f32.mrb[0].mxu0
      %v1292 = vadd.f32 0.0, %v1291
      %v1293 = vpop.f32.mrb[0].mxu0
      %v1294 = vpop.f32.mrb[0].mxu0
      %v1295 = vadd.f32 0.0, %v1294
      %v1296 = vpop.f32.mrb[0].mxu0
      %1297 = vdwg.mxu0
      %v1298 = vld [vmem:[#allocation2] sm:$0xff]
      %v1299 = vld [vmem:[#allocation2 + $0x8] sm:$0xff]
      %v1300 = vld [vmem:[#allocation2 + $0x10] sm:$0xff]
      %v1301 = vld [vmem:[#allocation2 + $0x18] sm:$0xff]
      %v1302 = vld [vmem:[#allocation2 + $0x20] sm:$0xff]
      %v1303 = vld [vmem:[#allocation2 + $0x28] sm:$0xff]
      %v1304 = vld [vmem:[#allocation2 + $0x30] sm:$0xff]
      %v1305 = vld [vmem:[#allocation2 + $0x38] sm:$0xff]
      %v1306 = vld [vmem:[#allocation2 + $0x40] sm:$0xff]
      %v1307 = vld [vmem:[#allocation2 + $0x48] sm:$0xff]
      %v1308 = vld [vmem:[#allocation2 + $0x50] sm:$0xff]
      %v1309 = vld [vmem:[#allocation2 + $0x58] sm:$0xff]
      %v1310 = vld [vmem:[#allocation2 + $0x60] sm:$0xff]
      %v1311 = vld [vmem:[#allocation2 + $0x68] sm:$0xff]
      %v1312 = vld [vmem:[#allocation2 + $0x70] sm:$0xff]
      %v1313 = vld [vmem:[#allocation2 + $0x78] sm:$0xff]
      %v1314 = vld [vmem:[#allocation2 + $0x80] sm:$0xff]
      %v1315 = vld [vmem:[#allocation2 + $0x88] sm:$0xff]
      %v1316 = vld [vmem:[#allocation2 + $0x90] sm:$0xff]
      %v1317 = vld [vmem:[#allocation2 + $0x98] sm:$0xff]
      %v1318 = vld [vmem:[#allocation2 + $0xa0] sm:$0xff]
      %v1319 = vld [vmem:[#allocation2 + $0xa8] sm:$0xff]
      %v1320 = vld [vmem:[#allocation2 + $0xb0] sm:$0xff]
      %v1321 = vld [vmem:[#allocation2 + $0xb8] sm:$0xff]
      %v1322 = vld [vmem:[#allocation2 + $0xc0] sm:$0xff]
      %v1323 = vld [vmem:[#allocation2 + $0xc8] sm:$0xff]
      %v1324 = vld [vmem:[#allocation2 + $0xd0] sm:$0xff]
      %v1325 = vld [vmem:[#allocation2 + $0xd8] sm:$0x3f]
      %v1326 = vadd.f32 %v1298, %v1188
      %v1327 = vadd.f32 %v1299, %v1191
      %v1328 = vadd.f32 %v1300, %v1196
      %v1329 = vadd.f32 %v1301, %v1199
      %v1330 = vadd.f32 %v1302, %v1204
      %v1331 = vadd.f32 %v1303, %v1207
      %v1332 = vadd.f32 %v1304, %v1212
      %v1333 = vadd.f32 %v1305, %v1215
      %v1334 = vadd.f32 %v1306, %v1220
      %v1335 = vadd.f32 %v1307, %v1223
      %v1336 = vadd.f32 %v1308, %v1228
      %v1337 = vadd.f32 %v1309, %v1231
      %v1338 = vadd.f32 %v1310, %v1236
      %v1339 = vadd.f32 %v1311, %v1239
      %v1340 = vadd.f32 %v1312, %v1244
      %v1341 = vadd.f32 %v1313, %v1247
      %v1342 = vadd.f32 %v1314, %v1252
      %v1343 = vadd.f32 %v1315, %v1255
      %v1344 = vadd.f32 %v1316, %v1260
      %v1345 = vadd.f32 %v1317, %v1263
      %v1346 = vadd.f32 %v1318, %v1268
      %v1347 = vadd.f32 %v1319, %v1271
      %v1348 = vadd.f32 %v1320, %v1276
      %v1349 = vadd.f32 %v1321, %v1279
      %v1350 = vadd.f32 %v1322, %v1284
      %v1351 = vadd.f32 %v1323, %v1287
      %v1352 = vadd.f32 %v1324, %v1292
      %v1353 = vadd.f32 %v1325, %v1295
      %1354 = vst [vmem:[#allocation2] sm:$0xff] %v1326
      %1355 = vst [vmem:[#allocation2 + $0x8] sm:$0xff] %v1327
      %1356 = vst [vmem:[#allocation2 + $0x10] sm:$0xff] %v1328
      %1357 = vst [vmem:[#allocation2 + $0x18] sm:$0xff] %v1329
      %1358 = vst [vmem:[#allocation2 + $0x20] sm:$0xff] %v1330
      %1359 = vst [vmem:[#allocation2 + $0x28] sm:$0xff] %v1331
      %1360 = vst [vmem:[#allocation2 + $0x30] sm:$0xff] %v1332
      %1361 = vst [vmem:[#allocation2 + $0x38] sm:$0xff] %v1333
      %1362 = vst [vmem:[#allocation2 + $0x40] sm:$0xff] %v1334
      %1363 = vst [vmem:[#allocation2 + $0x48] sm:$0xff] %v1335
      %1364 = vst [vmem:[#allocation2 + $0x50] sm:$0xff] %v1336
      %1365 = vst [vmem:[#allocation2 + $0x58] sm:$0xff] %v1337
      %1366 = vst [vmem:[#allocation2 + $0x60] sm:$0xff] %v1338
      %1367 = vst [vmem:[#allocation2 + $0x68] sm:$0xff] %v1339
      %1368 = vst [vmem:[#allocation2 + $0x70] sm:$0xff] %v1340
      %1369 = vst [vmem:[#allocation2 + $0x78] sm:$0xff] %v1341
      %1370 = vst [vmem:[#allocation2 + $0x80] sm:$0xff] %v1342
      %1371 = vst [vmem:[#allocation2 + $0x88] sm:$0xff] %v1343
      %1372 = vst [vmem:[#allocation2 + $0x90] sm:$0xff] %v1344
      %1373 = vst [vmem:[#allocation2 + $0x98] sm:$0xff] %v1345
      %1374 = vst [vmem:[#allocation2 + $0xa0] sm:$0xff] %v1346
      %1375 = vst [vmem:[#allocation2 + $0xa8] sm:$0xff] %v1347
      %1376 = vst [vmem:[#allocation2 + $0xb0] sm:$0xff] %v1348
      %1377 = vst [vmem:[#allocation2 + $0xb8] sm:$0xff] %v1349
      %1378 = vst [vmem:[#allocation2 + $0xc0] sm:$0xff] %v1350
      %1379 = vst [vmem:[#allocation2 + $0xc8] sm:$0xff] %v1351
      %1380 = vst [vmem:[#allocation2 + $0xd0] sm:$0xff] %v1352
      %1381 = vst [vmem:[#allocation2 + $0xd8] sm:$0x3f] %v1353
      %v1382 = vld [vmem:[%s165 + $0x8] sm:$0xf]
      %v1383 = vld [vmem:[%s165 + $0xc] sm:$0xf]
      %v1384 = vld [vmem:[%s165 + $0x10] sm:$0xf]
      %v1385 = vld [vmem:[%s165 + $0x14] sm:$0xf]
      %v1386 = vld [vmem:[%s165 + $0x18] sm:$0xf]
      %v1387 = vld [vmem:[%s165 + $0x1c] sm:$0xf]
      %v1388 = vld [vmem:[%s165 + $0x20] sm:$0xf]
      %v1389 = vld [vmem:[%s165 + $0x24] sm:$0xf]
      %v1390 = vld [vmem:[%s165 + $0x28] sm:$0xf]
      %v1391 = vld [vmem:[%s165 + $0x2c] sm:$0xf]
      %v1392 = vld [vmem:[%s165 + $0x30] sm:$0xf]
      %v1393 = vld [vmem:[%s165 + $0x34] sm:$0xf]
      %v1394 = vld [vmem:[%s165 + $0x38] sm:$0xf]
      %v1395 = vld [vmem:[%s165 + $0x3c] sm:$0xf]
      %v1396 = vld [vmem:[%s165 + $0x40] sm:$0xf]
      %v1397 = vld [vmem:[%s165 + $0x44] sm:$0xf]
      %v1398 = vld [vmem:[%s165 + $0x48] sm:$0xf]
      %v1399 = vld [vmem:[%s165 + $0x4c] sm:$0xf]
      %v1400 = vld [vmem:[%s165 + $0x50] sm:$0xf]
      %v1401 = vld [vmem:[%s165 + $0x54] sm:$0xf]
      %v1402 = vld [vmem:[%s165 + $0x58] sm:$0xf]
      %v1403 = vld [vmem:[%s165 + $0x5c] sm:$0xf]
      %v1404 = vld [vmem:[%s165 + $0x60] sm:$0xf]
      %v1405 = vld [vmem:[%s165 + $0x64] sm:$0xf]
      %v1406 = vld [vmem:[%s165 + $0x68] sm:$0xf]
      %v1407 = vld [vmem:[%s165 + $0x6c] sm:$0xf]
      %v1408 = vld [vmem:[%s165 + $0x70] sm:$0xf]
      %v1409 = vld [vmem:[%s165 + $0x74] sm:$0x7]
      %s1410 = scalar_lea.vmem %s1, 6
      %v1411 = vld [vmem:[%s1410] sm:$0x3]
      %v1440 = vunpack.c.l.b16 %v1382
      %v1441 = vunpack.c.l.b16 %v1383
      %v1442 = vunpack.c.l.b16 %v1384
      %v1443 = vunpack.c.l.b16 %v1385
      %v1444 = vunpack.c.l.b16 %v1386
      %v1445 = vunpack.c.l.b16 %v1387
      %v1446 = vunpack.c.l.b16 %v1388
      %v1447 = vunpack.c.l.b16 %v1389
      %v1448 = vunpack.c.l.b16 %v1390
      %v1449 = vunpack.c.l.b16 %v1391
      %v1450 = vunpack.c.l.b16 %v1392
      %v1451 = vunpack.c.l.b16 %v1393
      %v1452 = vunpack.c.l.b16 %v1394
      %v1453 = vunpack.c.l.b16 %v1395
      %v1454 = vunpack.c.l.b16 %v1396
      %v1455 = vunpack.c.l.b16 %v1397
      %v1456 = vunpack.c.l.b16 %v1398
      %v1457 = vunpack.c.l.b16 %v1399
      %v1458 = vunpack.c.l.b16 %v1400
      %v1459 = vunpack.c.l.b16 %v1401
      %v1460 = vunpack.c.l.b16 %v1402
      %v1461 = vunpack.c.l.b16 %v1403
      %v1462 = vunpack.c.l.b16 %v1404
      %v1463 = vunpack.c.l.b16 %v1405
      %v1464 = vunpack.c.l.b16 %v1406
      %v1465 = vunpack.c.l.b16 %v1407
      %v1466 = vunpack.c.l.b16 %v1408
      %v1467 = vunpack.c.l.b16 %v1409
      %v1468 = vpack.c.b16 %v1441, %v1440
      %v1469 = vpack.c.b16 %v1443, %v1442
      %v1470 = vpack.c.b16 %v1445, %v1444
      %v1471 = vpack.c.b16 %v1447, %v1446
      %v1472 = vpack.c.b16 %v1449, %v1448
      %v1473 = vpack.c.b16 %v1451, %v1450
      %v1474 = vpack.c.b16 %v1453, %v1452
      %v1475 = vpack.c.b16 %v1455, %v1454
      %v1476 = vpack.c.b16 %v1457, %v1456
      %v1477 = vpack.c.b16 %v1459, %v1458
      %v1478 = vpack.c.b16 %v1461, %v1460
      %v1479 = vpack.c.b16 %v1463, %v1462
      %v1480 = vpack.c.b16 %v1465, %v1464
      %v1481 = vpack.c.b16 %v1467, %v1466
      %v1483 = vsel %vm271, %v1468, 0
      %v1486 = vsel %vm271, %v1469, 0
      %v1489 = vsel %vm271, %v1470, 0
      %v1492 = vsel %vm271, %v1471, 0
      %v1495 = vsel %vm271, %v1472, 0
      %v1498 = vsel %vm271, %v1473, 0
      %v1501 = vsel %vm271, %v1474, 0
      %v1504 = vsel %vm271, %v1475, 0
      %v1507 = vsel %vm271, %v1476, 0
      %v1510 = vsel %vm271, %v1477, 0
      %v1513 = vsel %vm271, %v1478, 0
      %v1516 = vsel %vm271, %v1479, 0
      %v1519 = vsel %vm271, %v1480, 0
      %v1522 = vsel %vm271, %v1481, 0
      %v1525 = vand.u32 %v1411, %v317
      %1527 = vmatprep.subr.bf16.mxu0 0
      %1528 = vmatpush1.bf16.msra.mxu0 %v1525
      %1529 = vmatprep.subr.bf16.mxu0 0
      %1530 = vmatpush1.bf16.msra.mxu0 0
      %1531 = vmatprep.subr.bf16.mxu0 0
      %1532 = vmatpush1.bf16.msra.mxu0 0
      %1533 = vmatprep.subr.bf16.mxu0 0
      %1534 = vmatpush1.bf16.msra.mxu0 0
      %1535 = vmatprep.subr.bf16.mxu0 0
      %1536 = vmatpush1.bf16.msra.mxu0 0
      %1537 = vmatprep.subr.bf16.mxu0 0
      %1538 = vmatpush1.bf16.msra.mxu0 0
      %1539 = vmatprep.subr.bf16.mxu0 0
      %1540 = vmatpush1.bf16.msra.mxu0 0
      %1541 = vmatprep.subr.bf16.mxu0 0
      %1542 = vmatpush1.bf16.msra.mxu0 0
      %1543 = vmatprep.subr.bf16.mxu0 0
      %1544 = vmatpush1.bf16.msra.mxu0 0
      %1545 = vmatprep.subr.bf16.mxu0 0
      %1546 = vmatpush1.bf16.msra.mxu0 0
      %1547 = vmatprep.subr.bf16.mxu0 0
      %1548 = vmatpush1.bf16.msra.mxu0 0
      %1549 = vmatprep.subr.bf16.mxu0 0
      %1550 = vmatpush1.bf16.msra.mxu0 0
      %1551 = vmatprep.subr.bf16.mxu0 0
      %1552 = vmatpush1.bf16.msra.mxu0 0
      %1553 = vmatprep.subr.bf16.mxu0 0
      %1554 = vmatpush1.bf16.msra.mxu0 0
      %1555 = vmatprep.subr.bf16.mxu0 0
      %1556 = vmatpush1.bf16.msra.mxu0 0
      %1557 = vmatprep.subr.bf16.mxu0 0
      %1558 = vmatpush1.bf16.msra.mxu0 0
      %1559 = vmatprep.mubr.bf16.mxu0 0
      %1560 = vmatmul.mubr.bf16.gmra.mrb[0].mxu0 %v1483
      %v1561 = vpop.f32.mrb[0].mxu0
      %v1562 = vadd.f32 0.0, %v1561
      %v1563 = vpop.f32.mrb[0].mxu0
      %v1564 = vpop.f32.mrb[0].mxu0
      %v1565 = vadd.f32 0.0, %v1564
      %v1566 = vpop.f32.mrb[0].mxu0
      %1567 = vmatprep.mubr.bf16.mxu0 0
      %1568 = vmatmul.mubr.bf16.gmra.mrb[0].mxu0 %v1486
      %v1569 = vpop.f32.mrb[0].mxu0
      %v1570 = vadd.f32 0.0, %v1569
      %v1571 = vpop.f32.mrb[0].mxu0
      %v1572 = vpop.f32.mrb[0].mxu0
      %v1573 = vadd.f32 0.0, %v1572
      %v1574 = vpop.f32.mrb[0].mxu0
      %1575 = vmatprep.mubr.bf16.mxu0 0
      %1576 = vmatmul.mubr.bf16.gmra.mrb[0].mxu0 %v1489
      %v1577 = vpop.f32.mrb[0].mxu0
      %v1578 = vadd.f32 0.0, %v1577
      %v1579 = vpop.f32.mrb[0].mxu0
      %v1580 = vpop.f32.mrb[0].mxu0
      %v1581 = vadd.f32 0.0, %v1580
      %v1582 = vpop.f32.mrb[0].mxu0
      %1583 = vmatprep.mubr.bf16.mxu0 0
      %1584 = vmatmul.mubr.bf16.gmra.mrb[0].mxu0 %v1492
      %v1585 = vpop.f32.mrb[0].mxu0
      %v1586 = vadd.f32 0.0, %v1585
      %v1587 = vpop.f32.mrb[0].mxu0
      %v1588 = vpop.f32.mrb[0].mxu0
      %v1589 = vadd.f32 0.0, %v1588
      %v1590 = vpop.f32.mrb[0].mxu0
      %1591 = vmatprep.mubr.bf16.mxu0 0
      %1592 = vmatmul.mubr.bf16.gmra.mrb[0].mxu0 %v1495
      %v1593 = vpop.f32.mrb[0].mxu0
      %v1594 = vadd.f32 0.0, %v1593
      %v1595 = vpop.f32.mrb[0].mxu0
      %v1596 = vpop.f32.mrb[0].mxu0
      %v1597 = vadd.f32 0.0, %v1596
      %v1598 = vpop.f32.mrb[0].mxu0
      %1599 = vmatprep.mubr.bf16.mxu0 0
      %1600 = vmatmul.mubr.bf16.gmra.mrb[0].mxu0 %v1498
      %v1601 = vpop.f32.mrb[0].mxu0
      %v1602 = vadd.f32 0.0, %v1601
      %v1603 = vpop.f32.mrb[0].mxu0
      %v1604 = vpop.f32.mrb[0].mxu0
      %v1605 = vadd.f32 0.0, %v1604
      %v1606 = vpop.f32.mrb[0].mxu0
      %1607 = vmatprep.mubr.bf16.mxu0 0
      %1608 = vmatmul.mubr.bf16.gmra.mrb[0].mxu0 %v1501
      %v1609 = vpop.f32.mrb[0].mxu0
      %v1610 = vadd.f32 0.0, %v1609
      %v1611 = vpop.f32.mrb[0].mxu0
      %v1612 = vpop.f32.mrb[0].mxu0
      %v1613 = vadd.f32 0.0, %v1612
      %v1614 = vpop.f32.mrb[0].mxu0
      %1615 = vmatprep.mubr.bf16.mxu0 0
      %1616 = vmatmul.mubr.bf16.gmra.mrb[0].mxu0 %v1504
      %v1617 = vpop.f32.mrb[0].mxu0
      %v1618 = vadd.f32 0.0, %v1617
      %v1619 = vpop.f32.mrb[0].mxu0
      %v1620 = vpop.f32.mrb[0].mxu0
      %v1621 = vadd.f32 0.0, %v1620
      %v1622 = vpop.f32.mrb[0].mxu0
      %1623 = vmatprep.mubr.bf16.mxu0 0
      %1624 = vmatmul.mubr.bf16.gmra.mrb[0].mxu0 %v1507
      %v1625 = vpop.f32.mrb[0].mxu0
      %v1626 = vadd.f32 0.0, %v1625
      %v1627 = vpop.f32.mrb[0].mxu0
      %v1628 = vpop.f32.mrb[0].mxu0
      %v1629 = vadd.f32 0.0, %v1628
      %v1630 = vpop.f32.mrb[0].mxu0
      %1631 = vmatprep.mubr.bf16.mxu0 0
      %1632 = vmatmul.mubr.bf16.gmra.mrb[0].mxu0 %v1510
      %v1633 = vpop.f32.mrb[0].mxu0
      %v1634 = vadd.f32 0.0, %v1633
      %v1635 = vpop.f32.mrb[0].mxu0
      %v1636 = vpop.f32.mrb[0].mxu0
      %v1637 = vadd.f32 0.0, %v1636
      %v1638 = vpop.f32.mrb[0].mxu0
      %1639 = vmatprep.mubr.bf16.mxu0 0
      %1640 = vmatmul.mubr.bf16.gmra.mrb[0].mxu0 %v1513
      %v1641 = vpop.f32.mrb[0].mxu0
      %v1642 = vadd.f32 0.0, %v1641
      %v1643 = vpop.f32.mrb[0].mxu0
      %v1644 = vpop.f32.mrb[0].mxu0
      %v1645 = vadd.f32 0.0, %v1644
      %v1646 = vpop.f32.mrb[0].mxu0
      %1647 = vmatprep.mubr.bf16.mxu0 0
      %1648 = vmatmul.mubr.bf16.gmra.mrb[0].mxu0 %v1516
      %v1649 = vpop.f32.mrb[0].mxu0
      %v1650 = vadd.f32 0.0, %v1649
      %v1651 = vpop.f32.mrb[0].mxu0
      %v1652 = vpop.f32.mrb[0].mxu0
      %v1653 = vadd.f32 0.0, %v1652
      %v1654 = vpop.f32.mrb[0].mxu0
      %1655 = vmatprep.mubr.bf16.mxu0 0
      %1656 = vmatmul.mubr.bf16.gmra.mrb[0].mxu0 %v1519
      %v1657 = vpop.f32.mrb[0].mxu0
      %v1658 = vadd.f32 0.0, %v1657
      %v1659 = vpop.f32.mrb[0].mxu0
      %v1660 = vpop.f32.mrb[0].mxu0
      %v1661 = vadd.f32 0.0, %v1660
      %v1662 = vpop.f32.mrb[0].mxu0
      %1663 = vmatprep.mubr.bf16.mxu0 0
      %1664 = vmatmul.mubr.bf16.gmra.mrb[0].mxu0 %v1522
      %v1665 = vpop.f32.mrb[0].mxu0
      %v1666 = vadd.f32 0.0, %v1665
      %v1667 = vpop.f32.mrb[0].mxu0
      %v1668 = vpop.f32.mrb[0].mxu0
      %v1669 = vadd.f32 0.0, %v1668
      %v1670 = vpop.f32.mrb[0].mxu0
      %1671 = vdwg.mxu0
      %v1672 = vld [vmem:[#allocation2] sm:$0xff]
      %v1673 = vld [vmem:[#allocation2 + $0x8] sm:$0xff]
      %v1674 = vld [vmem:[#allocation2 + $0x10] sm:$0xff]
      %v1675 = vld [vmem:[#allocation2 + $0x18] sm:$0xff]
      %v1676 = vld [vmem:[#allocation2 + $0x20] sm:$0xff]
      %v1677 = vld [vmem:[#allocation2 + $0x28] sm:$0xff]
      %v1678 = vld [vmem:[#allocation2 + $0x30] sm:$0xff]
      %v1679 = vld [vmem:[#allocation2 + $0x38] sm:$0xff]
      %v1680 = vld [vmem:[#allocation2 + $0x40] sm:$0xff]
      %v1681 = vld [vmem:[#allocation2 + $0x48] sm:$0xff]
      %v1682 = vld [vmem:[#allocation2 + $0x50] sm:$0xff]
      %v1683 = vld [vmem:[#allocation2 + $0x58] sm:$0xff]
      %v1684 = vld [vmem:[#allocation2 + $0x60] sm:$0xff]
      %v1685 = vld [vmem:[#allocation2 + $0x68] sm:$0xff]
      %v1686 = vld [vmem:[#allocation2 + $0x70] sm:$0xff]
      %v1687 = vld [vmem:[#allocation2 + $0x78] sm:$0xff]
      %v1688 = vld [vmem:[#allocation2 + $0x80] sm:$0xff]
      %v1689 = vld [vmem:[#allocation2 + $0x88] sm:$0xff]
      %v1690 = vld [vmem:[#allocation2 + $0x90] sm:$0xff]
      %v1691 = vld [vmem:[#allocation2 + $0x98] sm:$0xff]
      %v1692 = vld [vmem:[#allocation2 + $0xa0] sm:$0xff]
      %v1693 = vld [vmem:[#allocation2 + $0xa8] sm:$0xff]
      %v1694 = vld [vmem:[#allocation2 + $0xb0] sm:$0xff]
      %v1695 = vld [vmem:[#allocation2 + $0xb8] sm:$0xff]
      %v1696 = vld [vmem:[#allocation2 + $0xc0] sm:$0xff]
      %v1697 = vld [vmem:[#allocation2 + $0xc8] sm:$0xff]
      %v1698 = vld [vmem:[#allocation2 + $0xd0] sm:$0xff]
      %v1699 = vld [vmem:[#allocation2 + $0xd8] sm:$0x3f]
      %v1700 = vadd.f32 %v1672, %v1562
      %v1701 = vadd.f32 %v1673, %v1565
      %v1702 = vadd.f32 %v1674, %v1570
      %v1703 = vadd.f32 %v1675, %v1573
      %v1704 = vadd.f32 %v1676, %v1578
      %v1705 = vadd.f32 %v1677, %v1581
      %v1706 = vadd.f32 %v1678, %v1586
      %v1707 = vadd.f32 %v1679, %v1589
      %v1708 = vadd.f32 %v1680, %v1594
      %v1709 = vadd.f32 %v1681, %v1597
      %v1710 = vadd.f32 %v1682, %v1602
      %v1711 = vadd.f32 %v1683, %v1605
      %v1712 = vadd.f32 %v1684, %v1610
      %v1713 = vadd.f32 %v1685, %v1613
      %v1714 = vadd.f32 %v1686, %v1618
      %v1715 = vadd.f32 %v1687, %v1621
      %v1716 = vadd.f32 %v1688, %v1626
      %v1717 = vadd.f32 %v1689, %v1629
      %v1718 = vadd.f32 %v1690, %v1634
      %v1719 = vadd.f32 %v1691, %v1637
      %v1720 = vadd.f32 %v1692, %v1642
      %v1721 = vadd.f32 %v1693, %v1645
      %v1722 = vadd.f32 %v1694, %v1650
      %v1723 = vadd.f32 %v1695, %v1653
      %v1724 = vadd.f32 %v1696, %v1658
      %v1725 = vadd.f32 %v1697, %v1661
      %v1726 = vadd.f32 %v1698, %v1666
      %v1727 = vadd.f32 %v1699, %v1669
      %1728 = vst [vmem:[#allocation2] sm:$0xff] %v1700
      %1729 = vst [vmem:[#allocation2 + $0x8] sm:$0xff] %v1701
      %1730 = vst [vmem:[#allocation2 + $0x10] sm:$0xff] %v1702
      %1731 = vst [vmem:[#allocation2 + $0x18] sm:$0xff] %v1703
      %1732 = vst [vmem:[#allocation2 + $0x20] sm:$0xff] %v1704
      %1733 = vst [vmem:[#allocation2 + $0x28] sm:$0xff] %v1705
      %1734 = vst [vmem:[#allocation2 + $0x30] sm:$0xff] %v1706
      %1735 = vst [vmem:[#allocation2 + $0x38] sm:$0xff] %v1707
      %1736 = vst [vmem:[#allocation2 + $0x40] sm:$0xff] %v1708
      %1737 = vst [vmem:[#allocation2 + $0x48] sm:$0xff] %v1709
      %1738 = vst [vmem:[#allocation2 + $0x50] sm:$0xff] %v1710
      %1739 = vst [vmem:[#allocation2 + $0x58] sm:$0xff] %v1711
      %1740 = vst [vmem:[#allocation2 + $0x60] sm:$0xff] %v1712
      %1741 = vst [vmem:[#allocation2 + $0x68] sm:$0xff] %v1713
      %1742 = vst [vmem:[#allocation2 + $0x70] sm:$0xff] %v1714
      %1743 = vst [vmem:[#allocation2 + $0x78] sm:$0xff] %v1715
      %1744 = vst [vmem:[#allocation2 + $0x80] sm:$0xff] %v1716
      %1745 = vst [vmem:[#allocation2 + $0x88] sm:$0xff] %v1717
      %1746 = vst [vmem:[#allocation2 + $0x90] sm:$0xff] %v1718
      %1747 = vst [vmem:[#allocation2 + $0x98] sm:$0xff] %v1719
      %1748 = vst [vmem:[#allocation2 + $0xa0] sm:$0xff] %v1720
      %1749 = vst [vmem:[#allocation2 + $0xa8] sm:$0xff] %v1721
      %1750 = vst [vmem:[#allocation2 + $0xb0] sm:$0xff] %v1722
      %1751 = vst [vmem:[#allocation2 + $0xb8] sm:$0xff] %v1723
      %1752 = vst [vmem:[#allocation2 + $0xc0] sm:$0xff] %v1724
      %1753 = vst [vmem:[#allocation2 + $0xc8] sm:$0xff] %v1725
      %1754 = vst [vmem:[#allocation2 + $0xd0] sm:$0xff] %v1726
      %1755 = vst [vmem:[#allocation2 + $0xd8] sm:$0x3f] %v1727
      %v1756 = vld [vmem:[%s165 + $0x8] sm:$0xf]
      %v1757 = vld [vmem:[%s165 + $0xc] sm:$0xf]
      %v1758 = vld [vmem:[%s165 + $0x10] sm:$0xf]
      %v1759 = vld [vmem:[%s165 + $0x14] sm:$0xf]
      %v1760 = vld [vmem:[%s165 + $0x18] sm:$0xf]
      %v1761 = vld [vmem:[%s165 + $0x1c] sm:$0xf]
      %v1762 = vld [vmem:[%s165 + $0x20] sm:$0xf]
      %v1763 = vld [vmem:[%s165 + $0x24] sm:$0xf]
      %v1764 = vld [vmem:[%s165 + $0x28] sm:$0xf]
      %v1765 = vld [vmem:[%s165 + $0x2c] sm:$0xf]
      %v1766 = vld [vmem:[%s165 + $0x30] sm:$0xf]
      %v1767 = vld [vmem:[%s165 + $0x34] sm:$0xf]
      %v1768 = vld [vmem:[%s165 + $0x38] sm:$0xf]
      %v1769 = vld [vmem:[%s165 + $0x3c] sm:$0xf]
      %v1770 = vld [vmem:[%s165 + $0x40] sm:$0xf]
      %v1771 = vld [vmem:[%s165 + $0x44] sm:$0xf]
      %v1772 = vld [vmem:[%s165 + $0x48] sm:$0xf]
      %v1773 = vld [vmem:[%s165 + $0x4c] sm:$0xf]
      %v1774 = vld [vmem:[%s165 + $0x50] sm:$0xf]
      %v1775 = vld [vmem:[%s165 + $0x54] sm:$0xf]
      %v1776 = vld [vmem:[%s165 + $0x58] sm:$0xf]
      %v1777 = vld [vmem:[%s165 + $0x5c] sm:$0xf]
      %v1778 = vld [vmem:[%s165 + $0x60] sm:$0xf]
      %v1779 = vld [vmem:[%s165 + $0x64] sm:$0xf]
      %v1780 = vld [vmem:[%s165 + $0x68] sm:$0xf]
      %v1781 = vld [vmem:[%s165 + $0x6c] sm:$0xf]
      %v1782 = vld [vmem:[%s165 + $0x70] sm:$0xf]
      %v1783 = vld [vmem:[%s165 + $0x74] sm:$0xf]
      %s1784 = scalar_lea.vmem %s1, 8
      %v1785 = vld [vmem:[%s1784] sm:$0x3]
      %v1814 = vunpack.c.l.b16 %v1756
      %v1815 = vunpack.c.l.b16 %v1757
      %v1816 = vunpack.c.l.b16 %v1758
      %v1817 = vunpack.c.l.b16 %v1759
      %v1818 = vunpack.c.l.b16 %v1760
      %v1819 = vunpack.c.l.b16 %v1761
      %v1820 = vunpack.c.l.b16 %v1762
      %v1821 = vunpack.c.l.b16 %v1763
      %v1822 = vunpack.c.l.b16 %v1764
      %v1823 = vunpack.c.l.b16 %v1765
      %v1824 = vunpack.c.l.b16 %v1766
      %v1825 = vunpack.c.l.b16 %v1767
      %v1826 = vunpack.c.l.b16 %v1768
      %v1827 = vunpack.c.l.b16 %v1769
      %v1828 = vunpack.c.l.b16 %v1770
      %v1829 = vunpack.c.l.b16 %v1771
      %v1830 = vunpack.c.l.b16 %v1772
      %v1831 = vunpack.c.l.b16 %v1773
      %v1832 = vunpack.c.l.b16 %v1774
      %v1833 = vunpack.c.l.b16 %v1775
      %v1834 = vunpack.c.l.b16 %v1776
      %v1835 = vunpack.c.l.b16 %v1777
      %v1836 = vunpack.c.l.b16 %v1778
      %v1837 = vunpack.c.l.b16 %v1779
      %v1838 = vunpack.c.l.b16 %v1780
      %v1839 = vunpack.c.l.b16 %v1781
      %v1840 = vunpack.c.l.b16 %v1782
      %v1841 = vunpack.c.l.b16 %v1783
      %v1842 = vpack.c.b16 %v1815, %v1814
      %v1843 = vpack.c.b16 %v1817, %v1816
      %v1844 = vpack.c.b16 %v1819, %v1818
      %v1845 = vpack.c.b16 %v1821, %v1820
      %v1846 = vpack.c.b16 %v1823, %v1822
      %v1847 = vpack.c.b16 %v1825, %v1824
      %v1848 = vpack.c.b16 %v1827, %v1826
      %v1849 = vpack.c.b16 %v1829, %v1828
      %v1850 = vpack.c.b16 %v1831, %v1830
      %v1851 = vpack.c.b16 %v1833, %v1832
      %v1852 = vpack.c.b16 %v1835, %v1834
      %v1853 = vpack.c.b16 %v1837, %v1836
      %v1854 = vpack.c.b16 %v1839, %v1838
      %v1855 = vpack.c.b16 %v1841, %v1840
      %v1857 = vshrl.u32 %v1842, 16
      %v1859 = vshll.u32 %v1842, 16
      %v1861 = vrot.slane %v1859, 1
      %v1862 = vor.u32 %v1857, %v1861
      %v1864 = vshll.u32 %v1843, 16
      %v1866 = vrot.slane %v1864, 1
      %v1867 = vsel %vm594, %v1862, %v1866
      %v1868 = vshrl.u32 %v1843, 16
      %v1870 = vor.u32 %v1868, %v1866
      %v1872 = vshll.u32 %v1844, 16
      %v1874 = vrot.slane %v1872, 1
      %v1875 = vsel %vm594, %v1870, %v1874
      %v1876 = vshrl.u32 %v1844, 16
      %v1878 = vor.u32 %v1876, %v1874
      %v1880 = vshll.u32 %v1845, 16
      %v1882 = vrot.slane %v1880, 1
      %v1883 = vsel %vm594, %v1878, %v1882
      %v1884 = vshrl.u32 %v1845, 16
      %v1886 = vor.u32 %v1884, %v1882
      %v1888 = vshll.u32 %v1846, 16
      %v1890 = vrot.slane %v1888, 1
      %v1891 = vsel %vm594, %v1886, %v1890
      %v1892 = vshrl.u32 %v1846, 16
      %v1894 = vor.u32 %v1892, %v1890
      %v1896 = vshll.u32 %v1847, 16
      %v1898 = vrot.slane %v1896, 1
      %v1899 = vsel %vm594, %v1894, %v1898
      %v1900 = vshrl.u32 %v1847, 16
      %v1902 = vor.u32 %v1900, %v1898
      %v1904 = vshll.u32 %v1848, 16
      %v1906 = vrot.slane %v1904, 1
      %v1907 = vsel %vm594, %v1902, %v1906
      %v1908 = vshrl.u32 %v1848, 16
      %v1910 = vor.u32 %v1908, %v1906
      %v1912 = vshll.u32 %v1849, 16
      %v1914 = vrot.slane %v1912, 1
      %v1915 = vsel %vm594, %v1910, %v1914
      %v1916 = vshrl.u32 %v1849, 16
      %v1918 = vor.u32 %v1916, %v1914
      %v1920 = vshll.u32 %v1850, 16
      %v1922 = vrot.slane %v1920, 1
      %v1923 = vsel %vm594, %v1918, %v1922
      %v1924 = vshrl.u32 %v1850, 16
      %v1926 = vor.u32 %v1924, %v1922
      %v1928 = vshll.u32 %v1851, 16
      %v1930 = vrot.slane %v1928, 1
      %v1931 = vsel %vm594, %v1926, %v1930
      %v1932 = vshrl.u32 %v1851, 16
      %v1934 = vor.u32 %v1932, %v1930
      %v1936 = vshll.u32 %v1852, 16
      %v1938 = vrot.slane %v1936, 1
      %v1939 = vsel %vm594, %v1934, %v1938
      %v1940 = vshrl.u32 %v1852, 16
      %v1942 = vor.u32 %v1940, %v1938
      %v1944 = vshll.u32 %v1853, 16
      %v1946 = vrot.slane %v1944, 1
      %v1947 = vsel %vm594, %v1942, %v1946
      %v1948 = vshrl.u32 %v1853, 16
      %v1950 = vor.u32 %v1948, %v1946
      %v1952 = vshll.u32 %v1854, 16
      %v1954 = vrot.slane %v1952, 1
      %v1955 = vsel %vm594, %v1950, %v1954
      %v1956 = vshrl.u32 %v1854, 16
      %v1958 = vor.u32 %v1956, %v1954
      %v1960 = vshll.u32 %v1855, 16
      %v1962 = vrot.slane %v1960, 1
      %v1963 = vsel %vm594, %v1958, %v1962
      %v1964 = vshrl.u32 %v1855, 16
      %v1966 = vor.u32 %v1964, %v1962
      %v1968 = vsel %vm271, %v1867, 0
      %v1971 = vsel %vm271, %v1875, 0
      %v1974 = vsel %vm271, %v1883, 0
      %v1977 = vsel %vm271, %v1891, 0
      %v1980 = vsel %vm271, %v1899, 0
      %v1983 = vsel %vm271, %v1907, 0
      %v1986 = vsel %vm271, %v1915, 0
      %v1989 = vsel %vm271, %v1923, 0
      %v1992 = vsel %vm271, %v1931, 0
      %v1995 = vsel %vm271, %v1939, 0
      %v1998 = vsel %vm271, %v1947, 0
      %v2001 = vsel %vm271, %v1955, 0
      %v2004 = vsel %vm271, %v1963, 0
      %v2007 = vsel %vm271, %v1966, 0
      %v2010 = vand.u32 %v1785, %v317
      %2012 = vmatprep.subr.bf16.mxu0 0
      %2013 = vmatpush1.bf16.msra.mxu0 %v2010
      %2014 = vmatprep.subr.bf16.mxu0 0
      %2015 = vmatpush1.bf16.msra.mxu0 0
      %2016 = vmatprep.subr.bf16.mxu0 0
      %2017 = vmatpush1.bf16.msra.mxu0 0
      %2018 = vmatprep.subr.bf16.mxu0 0
      %2019 = vmatpush1.bf16.msra.mxu0 0
      %2020 = vmatprep.subr.bf16.mxu0 0
      %2021 = vmatpush1.bf16.msra.mxu0 0
      %2022 = vmatprep.subr.bf16.mxu0 0
      %2023 = vmatpush1.bf16.msra.mxu0 0
      %2024 = vmatprep.subr.bf16.mxu0 0
      %2025 = vmatpush1.bf16.msra.mxu0 0
      %2026 = vmatprep.subr.bf16.mxu0 0
      %2027 = vmatpush1.bf16.msra.mxu0 0
      %2028 = vmatprep.subr.bf16.mxu0 0
      %2029 = vmatpush1.bf16.msra.mxu0 0
      %2030 = vmatprep.subr.bf16.mxu0 0
      %2031 = vmatpush1.bf16.msra.mxu0 0
      %2032 = vmatprep.subr.bf16.mxu0 0
      %2033 = vmatpush1.bf16.msra.mxu0 0
      %2034 = vmatprep.subr.bf16.mxu0 0
      %2035 = vmatpush1.bf16.msra.mxu0 0
      %2036 = vmatprep.subr.bf16.mxu0 0
      %2037 = vmatpush1.bf16.msra.mxu0 0
      %2038 = vmatprep.subr.bf16.mxu0 0
      %2039 = vmatpush1.bf16.msra.mxu0 0
      %2040 = vmatprep.subr.bf16.mxu0 0
      %2041 = vmatpush1.bf16.msra.mxu0 0
      %2042 = vmatprep.subr.bf16.mxu0 0
      %2043 = vmatpush1.bf16.msra.mxu0 0
      %2044 = vmatprep.mubr.bf16.mxu0 0
      %2045 = vmatmul.mubr.bf16.gmra.mrb[0].mxu0 %v1968
      %v2046 = vpop.f32.mrb[0].mxu0
      %v2047 = vadd.f32 0.0, %v2046
      %v2048 = vpop.f32.mrb[0].mxu0
      %v2049 = vpop.f32.mrb[0].mxu0
      %v2050 = vadd.f32 0.0, %v2049
      %v2051 = vpop.f32.mrb[0].mxu0
      %2052 = vmatprep.mubr.bf16.mxu0 0
      %2053 = vmatmul.mubr.bf16.gmra.mrb[0].mxu0 %v1971
      %v2054 = vpop.f32.mrb[0].mxu0
      %v2055 = vadd.f32 0.0, %v2054
      %v2056 = vpop.f32.mrb[0].mxu0
      %v2057 = vpop.f32.mrb[0].mxu0
      %v2058 = vadd.f32 0.0, %v2057
      %v2059 = vpop.f32.mrb[0].mxu0
      %2060 = vmatprep.mubr.bf16.mxu0 0
      %2061 = vmatmul.mubr.bf16.gmra.mrb[0].mxu0 %v1974
      %v2062 = vpop.f32.mrb[0].mxu0
      %v2063 = vadd.f32 0.0, %v2062
      %v2064 = vpop.f32.mrb[0].mxu0
      %v2065 = vpop.f32.mrb[0].mxu0
      %v2066 = vadd.f32 0.0, %v2065
      %v2067 = vpop.f32.mrb[0].mxu0
      %2068 = vmatprep.mubr.bf16.mxu0 0
      %2069 = vmatmul.mubr.bf16.gmra.mrb[0].mxu0 %v1977
      %v2070 = vpop.f32.mrb[0].mxu0
      %v2071 = vadd.f32 0.0, %v2070
      %v2072 = vpop.f32.mrb[0].mxu0
      %v2073 = vpop.f32.mrb[0].mxu0
      %v2074 = vadd.f32 0.0, %v2073
      %v2075 = vpop.f32.mrb[0].mxu0
      %2076 = vmatprep.mubr.bf16.mxu0 0
      %2077 = vmatmul.mubr.bf16.gmra.mrb[0].mxu0 %v1980
      %v2078 = vpop.f32.mrb[0].mxu0
      %v2079 = vadd.f32 0.0, %v2078
      %v2080 = vpop.f32.mrb[0].mxu0
      %v2081 = vpop.f32.mrb[0].mxu0
      %v2082 = vadd.f32 0.0, %v2081
      %v2083 = vpop.f32.mrb[0].mxu0
      %2084 = vmatprep.mubr.bf16.mxu0 0
      %2085 = vmatmul.mubr.bf16.gmra.mrb[0].mxu0 %v1983
      %v2086 = vpop.f32.mrb[0].mxu0
      %v2087 = vadd.f32 0.0, %v2086
      %v2088 = vpop.f32.mrb[0].mxu0
      %v2089 = vpop.f32.mrb[0].mxu0
      %v2090 = vadd.f32 0.0, %v2089
      %v2091 = vpop.f32.mrb[0].mxu0
      %2092 = vmatprep.mubr.bf16.mxu0 0
      %2093 = vmatmul.mubr.bf16.gmra.mrb[0].mxu0 %v1986
      %v2094 = vpop.f32.mrb[0].mxu0
      %v2095 = vadd.f32 0.0, %v2094
      %v2096 = vpop.f32.mrb[0].mxu0
      %v2097 = vpop.f32.mrb[0].mxu0
      %v2098 = vadd.f32 0.0, %v2097
      %v2099 = vpop.f32.mrb[0].mxu0
      %2100 = vmatprep.mubr.bf16.mxu0 0
      %2101 = vmatmul.mubr.bf16.gmra.mrb[0].mxu0 %v1989
      %v2102 = vpop.f32.mrb[0].mxu0
      %v2103 = vadd.f32 0.0, %v2102
      %v2104 = vpop.f32.mrb[0].mxu0
      %v2105 = vpop.f32.mrb[0].mxu0
      %v2106 = vadd.f32 0.0, %v2105
      %v2107 = vpop.f32.mrb[0].mxu0
      %2108 = vmatprep.mubr.bf16.mxu0 0
      %2109 = vmatmul.mubr.bf16.gmra.mrb[0].mxu0 %v1992
      %v2110 = vpop.f32.mrb[0].mxu0
      %v2111 = vadd.f32 0.0, %v2110
      %v2112 = vpop.f32.mrb[0].mxu0
      %v2113 = vpop.f32.mrb[0].mxu0
      %v2114 = vadd.f32 0.0, %v2113
      %v2115 = vpop.f32.mrb[0].mxu0
      %2116 = vmatprep.mubr.bf16.mxu0 0
      %2117 = vmatmul.mubr.bf16.gmra.mrb[0].mxu0 %v1995
      %v2118 = vpop.f32.mrb[0].mxu0
      %v2119 = vadd.f32 0.0, %v2118
      %v2120 = vpop.f32.mrb[0].mxu0
      %v2121 = vpop.f32.mrb[0].mxu0
      %v2122 = vadd.f32 0.0, %v2121
      %v2123 = vpop.f32.mrb[0].mxu0
      %2124 = vmatprep.mubr.bf16.mxu0 0
      %2125 = vmatmul.mubr.bf16.gmra.mrb[0].mxu0 %v1998
      %v2126 = vpop.f32.mrb[0].mxu0
      %v2127 = vadd.f32 0.0, %v2126
      %v2128 = vpop.f32.mrb[0].mxu0
      %v2129 = vpop.f32.mrb[0].mxu0
      %v2130 = vadd.f32 0.0, %v2129
      %v2131 = vpop.f32.mrb[0].mxu0
      %2132 = vmatprep.mubr.bf16.mxu0 0
      %2133 = vmatmul.mubr.bf16.gmra.mrb[0].mxu0 %v2001
      %v2134 = vpop.f32.mrb[0].mxu0
      %v2135 = vadd.f32 0.0, %v2134
      %v2136 = vpop.f32.mrb[0].mxu0
      %v2137 = vpop.f32.mrb[0].mxu0
      %v2138 = vadd.f32 0.0, %v2137
      %v2139 = vpop.f32.mrb[0].mxu0
      %2140 = vmatprep.mubr.bf16.mxu0 0
      %2141 = vmatmul.mubr.bf16.gmra.mrb[0].mxu0 %v2004
      %v2142 = vpop.f32.mrb[0].mxu0
      %v2143 = vadd.f32 0.0, %v2142
      %v2144 = vpop.f32.mrb[0].mxu0
      %v2145 = vpop.f32.mrb[0].mxu0
      %v2146 = vadd.f32 0.0, %v2145
      %v2147 = vpop.f32.mrb[0].mxu0
      %2148 = vmatprep.mubr.bf16.mxu0 0
      %2149 = vmatmul.mubr.bf16.gmra.mrb[0].mxu0 %v2007
      %v2150 = vpop.f32.mrb[0].mxu0
      %v2151 = vadd.f32 0.0, %v2150
      %v2152 = vpop.f32.mrb[0].mxu0
      %v2153 = vpop.f32.mrb[0].mxu0
      %v2154 = vadd.f32 0.0, %v2153
      %v2155 = vpop.f32.mrb[0].mxu0
      %2156 = vdwg.mxu0
      %v2157 = vld [vmem:[#allocation2] sm:$0xff]
      %v2158 = vld [vmem:[#allocation2 + $0x8] sm:$0xff]
      %v2159 = vld [vmem:[#allocation2 + $0x10] sm:$0xff]
      %v2160 = vld [vmem:[#allocation2 + $0x18] sm:$0xff]
      %v2161 = vld [vmem:[#allocation2 + $0x20] sm:$0xff]
      %v2162 = vld [vmem:[#allocation2 + $0x28] sm:$0xff]
      %v2163 = vld [vmem:[#allocation2 + $0x30] sm:$0xff]
      %v2164 = vld [vmem:[#allocation2 + $0x38] sm:$0xff]
      %v2165 = vld [vmem:[#allocation2 + $0x40] sm:$0xff]
      %v2166 = vld [vmem:[#allocation2 + $0x48] sm:$0xff]
      %v2167 = vld [vmem:[#allocation2 + $0x50] sm:$0xff]
      %v2168 = vld [vmem:[#allocation2 + $0x58] sm:$0xff]
      %v2169 = vld [vmem:[#allocation2 + $0x60] sm:$0xff]
      %v2170 = vld [vmem:[#allocation2 + $0x68] sm:$0xff]
      %v2171 = vld [vmem:[#allocation2 + $0x70] sm:$0xff]
      %v2172 = vld [vmem:[#allocation2 + $0x78] sm:$0xff]
      %v2173 = vld [vmem:[#allocation2 + $0x80] sm:$0xff]
      %v2174 = vld [vmem:[#allocation2 + $0x88] sm:$0xff]
      %v2175 = vld [vmem:[#allocation2 + $0x90] sm:$0xff]
      %v2176 = vld [vmem:[#allocation2 + $0x98] sm:$0xff]
      %v2177 = vld [vmem:[#allocation2 + $0xa0] sm:$0xff]
      %v2178 = vld [vmem:[#allocation2 + $0xa8] sm:$0xff]
      %v2179 = vld [vmem:[#allocation2 + $0xb0] sm:$0xff]
      %v2180 = vld [vmem:[#allocation2 + $0xb8] sm:$0xff]
      %v2181 = vld [vmem:[#allocation2 + $0xc0] sm:$0xff]
      %v2182 = vld [vmem:[#allocation2 + $0xc8] sm:$0xff]
      %v2183 = vld [vmem:[#allocation2 + $0xd0] sm:$0xff]
      %v2184 = vld [vmem:[#allocation2 + $0xd8] sm:$0x3f]
      %v2185 = vadd.f32 %v2157, %v2047
      %v2186 = vadd.f32 %v2158, %v2050
      %v2187 = vadd.f32 %v2159, %v2055
      %v2188 = vadd.f32 %v2160, %v2058
      %v2189 = vadd.f32 %v2161, %v2063
      %v2190 = vadd.f32 %v2162, %v2066
      %v2191 = vadd.f32 %v2163, %v2071
      %v2192 = vadd.f32 %v2164, %v2074
      %v2193 = vadd.f32 %v2165, %v2079
      %v2194 = vadd.f32 %v2166, %v2082
      %v2195 = vadd.f32 %v2167, %v2087
      %v2196 = vadd.f32 %v2168, %v2090
      %v2197 = vadd.f32 %v2169, %v2095
      %v2198 = vadd.f32 %v2170, %v2098
      %v2199 = vadd.f32 %v2171, %v2103
      %v2200 = vadd.f32 %v2172, %v2106
      %v2201 = vadd.f32 %v2173, %v2111
      %v2202 = vadd.f32 %v2174, %v2114
      %v2203 = vadd.f32 %v2175, %v2119
      %v2204 = vadd.f32 %v2176, %v2122
      %v2205 = vadd.f32 %v2177, %v2127
      %v2206 = vadd.f32 %v2178, %v2130
      %v2207 = vadd.f32 %v2179, %v2135
      %v2208 = vadd.f32 %v2180, %v2138
      %v2209 = vadd.f32 %v2181, %v2143
      %v2210 = vadd.f32 %v2182, %v2146
      %v2211 = vadd.f32 %v2183, %v2151
      %v2212 = vadd.f32 %v2184, %v2154
      %2213 = vst [vmem:[#allocation2] sm:$0xff] %v2185
      %2214 = vst [vmem:[#allocation2 + $0x8] sm:$0xff] %v2186
      %2215 = vst [vmem:[#allocation2 + $0x10] sm:$0xff] %v2187
      %2216 = vst [vmem:[#allocation2 + $0x18] sm:$0xff] %v2188
      %2217 = vst [vmem:[#allocation2 + $0x20] sm:$0xff] %v2189
      %2218 = vst [vmem:[#allocation2 + $0x28] sm:$0xff] %v2190
      %2219 = vst [vmem:[#allocation2 + $0x30] sm:$0xff] %v2191
      %2220 = vst [vmem:[#allocation2 + $0x38] sm:$0xff] %v2192
      %2221 = vst [vmem:[#allocation2 + $0x40] sm:$0xff] %v2193
      %2222 = vst [vmem:[#allocation2 + $0x48] sm:$0xff] %v2194
      %2223 = vst [vmem:[#allocation2 + $0x50] sm:$0xff] %v2195
      %2224 = vst [vmem:[#allocation2 + $0x58] sm:$0xff] %v2196
      %2225 = vst [vmem:[#allocation2 + $0x60] sm:$0xff] %v2197
      %2226 = vst [vmem:[#allocation2 + $0x68] sm:$0xff] %v2198
      %2227 = vst [vmem:[#allocation2 + $0x70] sm:$0xff] %v2199
      %2228 = vst [vmem:[#allocation2 + $0x78] sm:$0xff] %v2200
      %2229 = vst [vmem:[#allocation2 + $0x80] sm:$0xff] %v2201
      %2230 = vst [vmem:[#allocation2 + $0x88] sm:$0xff] %v2202
      %2231 = vst [vmem:[#allocation2 + $0x90] sm:$0xff] %v2203
      %2232 = vst [vmem:[#allocation2 + $0x98] sm:$0xff] %v2204
      %2233 = vst [vmem:[#allocation2 + $0xa0] sm:$0xff] %v2205
      %2234 = vst [vmem:[#allocation2 + $0xa8] sm:$0xff] %v2206
      %2235 = vst [vmem:[#allocation2 + $0xb0] sm:$0xff] %v2207
      %2236 = vst [vmem:[#allocation2 + $0xb8] sm:$0xff] %v2208
      %2237 = vst [vmem:[#allocation2 + $0xc0] sm:$0xff] %v2209
      %2238 = vst [vmem:[#allocation2 + $0xc8] sm:$0xff] %v2210
      %2239 = vst [vmem:[#allocation2 + $0xd0] sm:$0xff] %v2211
      %2240 = vst [vmem:[#allocation2 + $0xd8] sm:$0x3f] %v2212
      %v2241 = vld [vmem:[%s165 + $0x8] sm:$0xe]
      %v2242 = vld [vmem:[%s165 + $0xc] sm:$0xf]
      %v2243 = vld [vmem:[%s165 + $0x10] sm:$0xf]
      %v2244 = vld [vmem:[%s165 + $0x14] sm:$0xf]
      %v2245 = vld [vmem:[%s165 + $0x18] sm:$0xf]
      %v2246 = vld [vmem:[%s165 + $0x1c] sm:$0xf]
      %v2247 = vld [vmem:[%s165 + $0x20] sm:$0xf]
      %v2248 = vld [vmem:[%s165 + $0x24] sm:$0xf]
      %v2249 = vld [vmem:[%s165 + $0x28] sm:$0xf]
      %v2250 = vld [vmem:[%s165 + $0x2c] sm:$0xf]
      %v2251 = vld [vmem:[%s165 + $0x30] sm:$0xf]
      %v2252 = vld [vmem:[%s165 + $0x34] sm:$0xf]
      %v2253 = vld [vmem:[%s165 + $0x38] sm:$0xf]
      %v2254 = vld [vmem:[%s165 + $0x3c] sm:$0xf]
      %v2255 = vld [vmem:[%s165 + $0x40] sm:$0xf]
      %v2256 = vld [vmem:[%s165 + $0x44] sm:$0xf]
      %v2257 = vld [vmem:[%s165 + $0x48] sm:$0xf]
      %v2258 = vld [vmem:[%s165 + $0x4c] sm:$0xf]
      %v2259 = vld [vmem:[%s165 + $0x50] sm:$0xf]
      %v2260 = vld [vmem:[%s165 + $0x54] sm:$0xf]
      %v2261 = vld [vmem:[%s165 + $0x58] sm:$0xf]
      %v2262 = vld [vmem:[%s165 + $0x5c] sm:$0xf]
      %v2263 = vld [vmem:[%s165 + $0x60] sm:$0xf]
      %v2264 = vld [vmem:[%s165 + $0x64] sm:$0xf]
      %v2265 = vld [vmem:[%s165 + $0x68] sm:$0xf]
      %v2266 = vld [vmem:[%s165 + $0x6c] sm:$0xf]
      %v2267 = vld [vmem:[%s165 + $0x70] sm:$0xf]
      %v2268 = vld [vmem:[%s165 + $0x74] sm:$0xf]
      %s2269 = scalar_lea.vmem %s1, 10
      %v2270 = vld [vmem:[%s2269] sm:$0x3]
      %v2299 = vunpack.c.l.b16 %v2241
      %v2300 = vunpack.c.l.b16 %v2242
      %v2301 = vunpack.c.l.b16 %v2243
      %v2302 = vunpack.c.l.b16 %v2244
      %v2303 = vunpack.c.l.b16 %v2245
      %v2304 = vunpack.c.l.b16 %v2246
      %v2305 = vunpack.c.l.b16 %v2247
      %v2306 = vunpack.c.l.b16 %v2248
      %v2307 = vunpack.c.l.b16 %v2249
      %v2308 = vunpack.c.l.b16 %v2250
      %v2309 = vunpack.c.l.b16 %v2251
      %v2310 = vunpack.c.l.b16 %v2252
      %v2311 = vunpack.c.l.b16 %v2253
      %v2312 = vunpack.c.l.b16 %v2254
      %v2313 = vunpack.c.l.b16 %v2255
      %v2314 = vunpack.c.l.b16 %v2256
      %v2315 = vunpack.c.l.b16 %v2257
      %v2316 = vunpack.c.l.b16 %v2258
      %v2317 = vunpack.c.l.b16 %v2259
      %v2318 = vunpack.c.l.b16 %v2260
      %v2319 = vunpack.c.l.b16 %v2261
      %v2320 = vunpack.c.l.b16 %v2262
      %v2321 = vunpack.c.l.b16 %v2263
      %v2322 = vunpack.c.l.b16 %v2264
      %v2323 = vunpack.c.l.b16 %v2265
      %v2324 = vunpack.c.l.b16 %v2266
      %v2325 = vunpack.c.l.b16 %v2267
      %v2326 = vunpack.c.l.b16 %v2268
      %v2327 = vpack.c.b16 %v2300, %v2299
      %v2328 = vpack.c.b16 %v2302, %v2301
      %v2329 = vpack.c.b16 %v2304, %v2303
      %v2330 = vpack.c.b16 %v2306, %v2305
      %v2331 = vpack.c.b16 %v2308, %v2307
      %v2332 = vpack.c.b16 %v2310, %v2309
      %v2333 = vpack.c.b16 %v2312, %v2311
      %v2334 = vpack.c.b16 %v2314, %v2313
      %v2335 = vpack.c.b16 %v2316, %v2315
      %v2336 = vpack.c.b16 %v2318, %v2317
      %v2337 = vpack.c.b16 %v2320, %v2319
      %v2338 = vpack.c.b16 %v2322, %v2321
      %v2339 = vpack.c.b16 %v2324, %v2323
      %v2340 = vpack.c.b16 %v2326, %v2325
      %v2341 = vrot.slane %v2327, 1
      %v2342 = vrot.slane %v2328, 1
      %v2343 = vsel %vm1080, %v2341, %v2342
      %v2344 = vrot.slane %v2329, 1
      %v2345 = vsel %vm1080, %v2342, %v2344
      %v2346 = vrot.slane %v2330, 1
      %v2347 = vsel %vm1080, %v2344, %v2346
      %v2348 = vrot.slane %v2331, 1
      %v2349 = vsel %vm1080, %v2346, %v2348
      %v2350 = vrot.slane %v2332, 1
      %v2351 = vsel %vm1080, %v2348, %v2350
      %v2352 = vrot.slane %v2333, 1
      %v2353 = vsel %vm1080, %v2350, %v2352
      %v2354 = vrot.slane %v2334, 1
      %v2355 = vsel %vm1080, %v2352, %v2354
      %v2356 = vrot.slane %v2335, 1
      %v2357 = vsel %vm1080, %v2354, %v2356
      %v2358 = vrot.slane %v2336, 1
      %v2359 = vsel %vm1080, %v2356, %v2358
      %v2360 = vrot.slane %v2337, 1
      %v2361 = vsel %vm1080, %v2358, %v2360
      %v2362 = vrot.slane %v2338, 1
      %v2363 = vsel %vm1080, %v2360, %v2362
      %v2364 = vrot.slane %v2339, 1
      %v2365 = vsel %vm1080, %v2362, %v2364
      %v2366 = vrot.slane %v2340, 1
      %v2367 = vsel %vm1080, %v2364, %v2366
      %v2369 = vsel %vm271, %v2343, 0
      %v2372 = vsel %vm271, %v2345, 0
      %v2375 = vsel %vm271, %v2347, 0
      %v2378 = vsel %vm271, %v2349, 0
      %v2381 = vsel %vm271, %v2351, 0
      %v2384 = vsel %vm271, %v2353, 0
      %v2387 = vsel %vm271, %v2355, 0
      %v2390 = vsel %vm271, %v2357, 0
      %v2393 = vsel %vm271, %v2359, 0
      %v2396 = vsel %vm271, %v2361, 0
      %v2399 = vsel %vm271, %v2363, 0
      %v2402 = vsel %vm271, %v2365, 0
      %v2405 = vsel %vm271, %v2367, 0
      %v2408 = vsel %vm271, %v2366, 0
      %v2411 = vand.u32 %v2270, %v317
      %2413 = vmatprep.subr.bf16.mxu0 0
      %2414 = vmatpush1.bf16.msra.mxu0 %v2411
      %2415 = vmatprep.subr.bf16.mxu0 0
      %2416 = vmatpush1.bf16.msra.mxu0 0
      %2417 = vmatprep.subr.bf16.mxu0 0
      %2418 = vmatpush1.bf16.msra.mxu0 0
      %2419 = vmatprep.subr.bf16.mxu0 0
      %2420 = vmatpush1.bf16.msra.mxu0 0
      %2421 = vmatprep.subr.bf16.mxu0 0
      %2422 = vmatpush1.bf16.msra.mxu0 0
      %2423 = vmatprep.subr.bf16.mxu0 0
      %2424 = vmatpush1.bf16.msra.mxu0 0
      %2425 = vmatprep.subr.bf16.mxu0 0
      %2426 = vmatpush1.bf16.msra.mxu0 0
      %2427 = vmatprep.subr.bf16.mxu0 0
      %2428 = vmatpush1.bf16.msra.mxu0 0
      %2429 = vmatprep.subr.bf16.mxu0 0
      %2430 = vmatpush1.bf16.msra.mxu0 0
      %2431 = vmatprep.subr.bf16.mxu0 0
      %2432 = vmatpush1.bf16.msra.mxu0 0
      %2433 = vmatprep.subr.bf16.mxu0 0
      %2434 = vmatpush1.bf16.msra.mxu0 0
      %2435 = vmatprep.subr.bf16.mxu0 0
      %2436 = vmatpush1.bf16.msra.mxu0 0
      %2437 = vmatprep.subr.bf16.mxu0 0
      %2438 = vmatpush1.bf16.msra.mxu0 0
      %2439 = vmatprep.subr.bf16.mxu0 0
      %2440 = vmatpush1.bf16.msra.mxu0 0
      %2441 = vmatprep.subr.bf16.mxu0 0
      %2442 = vmatpush1.bf16.msra.mxu0 0
      %2443 = vmatprep.subr.bf16.mxu0 0
      %2444 = vmatpush1.bf16.msra.mxu0 0
      %2445 = vmatprep.mubr.bf16.mxu0 0
      %2446 = vmatmul.mubr.bf16.gmra.mrb[0].mxu0 %v2369
      %v2447 = vpop.f32.mrb[0].mxu0
      %v2448 = vadd.f32 0.0, %v2447
      %v2449 = vpop.f32.mrb[0].mxu0
      %v2450 = vpop.f32.mrb[0].mxu0
      %v2451 = vadd.f32 0.0, %v2450
      %v2452 = vpop.f32.mrb[0].mxu0
      %2453 = vmatprep.mubr.bf16.mxu0 0
      %2454 = vmatmul.mubr.bf16.gmra.mrb[0].mxu0 %v2372
      %v2455 = vpop.f32.mrb[0].mxu0
      %v2456 = vadd.f32 0.0, %v2455
      %v2457 = vpop.f32.mrb[0].mxu0
      %v2458 = vpop.f32.mrb[0].mxu0
      %v2459 = vadd.f32 0.0, %v2458
      %v2460 = vpop.f32.mrb[0].mxu0
      %2461 = vmatprep.mubr.bf16.mxu0 0
      %2462 = vmatmul.mubr.bf16.gmra.mrb[0].mxu0 %v2375
      %v2463 = vpop.f32.mrb[0].mxu0
      %v2464 = vadd.f32 0.0, %v2463
      %v2465 = vpop.f32.mrb[0].mxu0
      %v2466 = vpop.f32.mrb[0].mxu0
      %v2467 = vadd.f32 0.0, %v2466
      %v2468 = vpop.f32.mrb[0].mxu0
      %2469 = vmatprep.mubr.bf16.mxu0 0
      %2470 = vmatmul.mubr.bf16.gmra.mrb[0].mxu0 %v2378
      %v2471 = vpop.f32.mrb[0].mxu0
      %v2472 = vadd.f32 0.0, %v2471
      %v2473 = vpop.f32.mrb[0].mxu0
      %v2474 = vpop.f32.mrb[0].mxu0
      %v2475 = vadd.f32 0.0, %v2474
      %v2476 = vpop.f32.mrb[0].mxu0
      %2477 = vmatprep.mubr.bf16.mxu0 0
      %2478 = vmatmul.mubr.bf16.gmra.mrb[0].mxu0 %v2381
      %v2479 = vpop.f32.mrb[0].mxu0
      %v2480 = vadd.f32 0.0, %v2479
      %v2481 = vpop.f32.mrb[0].mxu0
      %v2482 = vpop.f32.mrb[0].mxu0
      %v2483 = vadd.f32 0.0, %v2482
      %v2484 = vpop.f32.mrb[0].mxu0
      %2485 = vmatprep.mubr.bf16.mxu0 0
      %2486 = vmatmul.mubr.bf16.gmra.mrb[0].mxu0 %v2384
      %v2487 = vpop.f32.mrb[0].mxu0
      %v2488 = vadd.f32 0.0, %v2487
      %v2489 = vpop.f32.mrb[0].mxu0
      %v2490 = vpop.f32.mrb[0].mxu0
      %v2491 = vadd.f32 0.0, %v2490
      %v2492 = vpop.f32.mrb[0].mxu0
      %2493 = vmatprep.mubr.bf16.mxu0 0
      %2494 = vmatmul.mubr.bf16.gmra.mrb[0].mxu0 %v2387
      %v2495 = vpop.f32.mrb[0].mxu0
      %v2496 = vadd.f32 0.0, %v2495
      %v2497 = vpop.f32.mrb[0].mxu0
      %v2498 = vpop.f32.mrb[0].mxu0
      %v2499 = vadd.f32 0.0, %v2498
      %v2500 = vpop.f32.mrb[0].mxu0
      %2501 = vmatprep.mubr.bf16.mxu0 0
      %2502 = vmatmul.mubr.bf16.gmra.mrb[0].mxu0 %v2390
      %v2503 = vpop.f32.mrb[0].mxu0
      %v2504 = vadd.f32 0.0, %v2503
      %v2505 = vpop.f32.mrb[0].mxu0
      %v2506 = vpop.f32.mrb[0].mxu0
      %v2507 = vadd.f32 0.0, %v2506
      %v2508 = vpop.f32.mrb[0].mxu0
      %2509 = vmatprep.mubr.bf16.mxu0 0
      %2510 = vmatmul.mubr.bf16.gmra.mrb[0].mxu0 %v2393
      %v2511 = vpop.f32.mrb[0].mxu0
      %v2512 = vadd.f32 0.0, %v2511
      %v2513 = vpop.f32.mrb[0].mxu0
      %v2514 = vpop.f32.mrb[0].mxu0
      %v2515 = vadd.f32 0.0, %v2514
      %v2516 = vpop.f32.mrb[0].mxu0
      %2517 = vmatprep.mubr.bf16.mxu0 0
      %2518 = vmatmul.mubr.bf16.gmra.mrb[0].mxu0 %v2396
      %v2519 = vpop.f32.mrb[0].mxu0
      %v2520 = vadd.f32 0.0, %v2519
      %v2521 = vpop.f32.mrb[0].mxu0
      %v2522 = vpop.f32.mrb[0].mxu0
      %v2523 = vadd.f32 0.0, %v2522
      %v2524 = vpop.f32.mrb[0].mxu0
      %2525 = vmatprep.mubr.bf16.mxu0 0
      %2526 = vmatmul.mubr.bf16.gmra.mrb[0].mxu0 %v2399
      %v2527 = vpop.f32.mrb[0].mxu0
      %v2528 = vadd.f32 0.0, %v2527
      %v2529 = vpop.f32.mrb[0].mxu0
      %v2530 = vpop.f32.mrb[0].mxu0
      %v2531 = vadd.f32 0.0, %v2530
      %v2532 = vpop.f32.mrb[0].mxu0
      %2533 = vmatprep.mubr.bf16.mxu0 0
      %2534 = vmatmul.mubr.bf16.gmra.mrb[0].mxu0 %v2402
      %v2535 = vpop.f32.mrb[0].mxu0
      %v2536 = vadd.f32 0.0, %v2535
      %v2537 = vpop.f32.mrb[0].mxu0
      %v2538 = vpop.f32.mrb[0].mxu0
      %v2539 = vadd.f32 0.0, %v2538
      %v2540 = vpop.f32.mrb[0].mxu0
      %2541 = vmatprep.mubr.bf16.mxu0 0
      %2542 = vmatmul.mubr.bf16.gmra.mrb[0].mxu0 %v2405
      %v2543 = vpop.f32.mrb[0].mxu0
      %v2544 = vadd.f32 0.0, %v2543
      %v2545 = vpop.f32.mrb[0].mxu0
      %v2546 = vpop.f32.mrb[0].mxu0
      %v2547 = vadd.f32 0.0, %v2546
      %v2548 = vpop.f32.mrb[0].mxu0
      %2549 = vmatprep.mubr.bf16.mxu0 0
      %2550 = vmatmul.mubr.bf16.gmra.mrb[0].mxu0 %v2408
      %v2551 = vpop.f32.mrb[0].mxu0
      %v2552 = vadd.f32 0.0, %v2551
      %v2553 = vpop.f32.mrb[0].mxu0
      %v2554 = vpop.f32.mrb[0].mxu0
      %v2555 = vadd.f32 0.0, %v2554
      %v2556 = vpop.f32.mrb[0].mxu0
      %2557 = vdwg.mxu0
      %v2558 = vld [vmem:[#allocation2] sm:$0xff]
      %v2559 = vld [vmem:[#allocation2 + $0x8] sm:$0xff]
      %v2560 = vld [vmem:[#allocation2 + $0x10] sm:$0xff]
      %v2561 = vld [vmem:[#allocation2 + $0x18] sm:$0xff]
      %v2562 = vld [vmem:[#allocation2 + $0x20] sm:$0xff]
      %v2563 = vld [vmem:[#allocation2 + $0x28] sm:$0xff]
      %v2564 = vld [vmem:[#allocation2 + $0x30] sm:$0xff]
      %v2565 = vld [vmem:[#allocation2 + $0x38] sm:$0xff]
      %v2566 = vld [vmem:[#allocation2 + $0x40] sm:$0xff]
      %v2567 = vld [vmem:[#allocation2 + $0x48] sm:$0xff]
      %v2568 = vld [vmem:[#allocation2 + $0x50] sm:$0xff]
      %v2569 = vld [vmem:[#allocation2 + $0x58] sm:$0xff]
      %v2570 = vld [vmem:[#allocation2 + $0x60] sm:$0xff]
      %v2571 = vld [vmem:[#allocation2 + $0x68] sm:$0xff]
      %v2572 = vld [vmem:[#allocation2 + $0x70] sm:$0xff]
      %v2573 = vld [vmem:[#allocation2 + $0x78] sm:$0xff]
      %v2574 = vld [vmem:[#allocation2 + $0x80] sm:$0xff]
      %v2575 = vld [vmem:[#allocation2 + $0x88] sm:$0xff]
      %v2576 = vld [vmem:[#allocation2 + $0x90] sm:$0xff]
      %v2577 = vld [vmem:[#allocation2 + $0x98] sm:$0xff]
      %v2578 = vld [vmem:[#allocation2 + $0xa0] sm:$0xff]
      %v2579 = vld [vmem:[#allocation2 + $0xa8] sm:$0xff]
      %v2580 = vld [vmem:[#allocation2 + $0xb0] sm:$0xff]
      %v2581 = vld [vmem:[#allocation2 + $0xb8] sm:$0xff]
      %v2582 = vld [vmem:[#allocation2 + $0xc0] sm:$0xff]
      %v2583 = vld [vmem:[#allocation2 + $0xc8] sm:$0xff]
      %v2584 = vld [vmem:[#allocation2 + $0xd0] sm:$0xff]
      %v2585 = vld [vmem:[#allocation2 + $0xd8] sm:$0x3f]
      %v2586 = vadd.f32 %v2558, %v2448
      %v2587 = vadd.f32 %v2559, %v2451
      %v2588 = vadd.f32 %v2560, %v2456
      %v2589 = vadd.f32 %v2561, %v2459
      %v2590 = vadd.f32 %v2562, %v2464
      %v2591 = vadd.f32 %v2563, %v2467
      %v2592 = vadd.f32 %v2564, %v2472
      %v2593 = vadd.f32 %v2565, %v2475
      %v2594 = vadd.f32 %v2566, %v2480
      %v2595 = vadd.f32 %v2567, %v2483
      %v2596 = vadd.f32 %v2568, %v2488
      %v2597 = vadd.f32 %v2569, %v2491
      %v2598 = vadd.f32 %v2570, %v2496
      %v2599 = vadd.f32 %v2571, %v2499
      %v2600 = vadd.f32 %v2572, %v2504
      %v2601 = vadd.f32 %v2573, %v2507
      %v2602 = vadd.f32 %v2574, %v2512
      %v2603 = vadd.f32 %v2575, %v2515
      %v2604 = vadd.f32 %v2576, %v2520
      %v2605 = vadd.f32 %v2577, %v2523
      %v2606 = vadd.f32 %v2578, %v2528
      %v2607 = vadd.f32 %v2579, %v2531
      %v2608 = vadd.f32 %v2580, %v2536
      %v2609 = vadd.f32 %v2581, %v2539
      %v2610 = vadd.f32 %v2582, %v2544
      %v2611 = vadd.f32 %v2583, %v2547
      %v2612 = vadd.f32 %v2584, %v2552
      %v2613 = vadd.f32 %v2585, %v2555
      %2614 = vst [vmem:[#allocation2] sm:$0xff] %v2586
      %2615 = vst [vmem:[#allocation2 + $0x8] sm:$0xff] %v2587
      %2616 = vst [vmem:[#allocation2 + $0x10] sm:$0xff] %v2588
      %2617 = vst [vmem:[#allocation2 + $0x18] sm:$0xff] %v2589
      %2618 = vst [vmem:[#allocation2 + $0x20] sm:$0xff] %v2590
      %2619 = vst [vmem:[#allocation2 + $0x28] sm:$0xff] %v2591
      %2620 = vst [vmem:[#allocation2 + $0x30] sm:$0xff] %v2592
      %2621 = vst [vmem:[#allocation2 + $0x38] sm:$0xff] %v2593
      %2622 = vst [vmem:[#allocation2 + $0x40] sm:$0xff] %v2594
      %2623 = vst [vmem:[#allocation2 + $0x48] sm:$0xff] %v2595
      %2624 = vst [vmem:[#allocation2 + $0x50] sm:$0xff] %v2596
      %2625 = vst [vmem:[#allocation2 + $0x58] sm:$0xff] %v2597
      %2626 = vst [vmem:[#allocation2 + $0x60] sm:$0xff] %v2598
      %2627 = vst [vmem:[#allocation2 + $0x68] sm:$0xff] %v2599
      %2628 = vst [vmem:[#allocation2 + $0x70] sm:$0xff] %v2600
      %2629 = vst [vmem:[#allocation2 + $0x78] sm:$0xff] %v2601
      %2630 = vst [vmem:[#allocation2 + $0x80] sm:$0xff] %v2602
      %2631 = vst [vmem:[#allocation2 + $0x88] sm:$0xff] %v2603
      %2632 = vst [vmem:[#allocation2 + $0x90] sm:$0xff] %v2604
      %2633 = vst [vmem:[#allocation2 + $0x98] sm:$0xff] %v2605
      %2634 = vst [vmem:[#allocation2 + $0xa0] sm:$0xff] %v2606
      %2635 = vst [vmem:[#allocation2 + $0xa8] sm:$0xff] %v2607
      %2636 = vst [vmem:[#allocation2 + $0xb0] sm:$0xff] %v2608
      %2637 = vst [vmem:[#allocation2 + $0xb8] sm:$0xff] %v2609
      %2638 = vst [vmem:[#allocation2 + $0xc0] sm:$0xff] %v2610
      %2639 = vst [vmem:[#allocation2 + $0xc8] sm:$0xff] %v2611
      %2640 = vst [vmem:[#allocation2 + $0xd0] sm:$0xff] %v2612
      %2641 = vst [vmem:[#allocation2 + $0xd8] sm:$0x3f] %v2613
      %v2642 = vld [vmem:[%s165 + $0x10] sm:$0xf]
      %v2643 = vld [vmem:[%s165 + $0x14] sm:$0xf]
      %v2644 = vld [vmem:[%s165 + $0x18] sm:$0xf]
      %v2645 = vld [vmem:[%s165 + $0x1c] sm:$0xf]
      %v2646 = vld [vmem:[%s165 + $0x20] sm:$0xf]
      %v2647 = vld [vmem:[%s165 + $0x24] sm:$0xf]
      %v2648 = vld [vmem:[%s165 + $0x28] sm:$0xf]
      %v2649 = vld [vmem:[%s165 + $0x2c] sm:$0xf]
      %v2650 = vld [vmem:[%s165 + $0x30] sm:$0xf]
      %v2651 = vld [vmem:[%s165 + $0x34] sm:$0xf]
      %v2652 = vld [vmem:[%s165 + $0x38] sm:$0xf]
      %v2653 = vld [vmem:[%s165 + $0x3c] sm:$0xf]
      %v2654 = vld [vmem:[%s165 + $0x40] sm:$0xf]
      %v2655 = vld [vmem:[%s165 + $0x44] sm:$0xf]
      %v2656 = vld [vmem:[%s165 + $0x48] sm:$0xf]
      %v2657 = vld [vmem:[%s165 + $0x4c] sm:$0xf]
      %v2658 = vld [vmem:[%s165 + $0x50] sm:$0xf]
      %v2659 = vld [vmem:[%s165 + $0x54] sm:$0xf]
      %v2660 = vld [vmem:[%s165 + $0x58] sm:$0xf]
      %v2661 = vld [vmem:[%s165 + $0x5c] sm:$0xf]
      %v2662 = vld [vmem:[%s165 + $0x60] sm:$0xf]
      %v2663 = vld [vmem:[%s165 + $0x64] sm:$0xf]
      %v2664 = vld [vmem:[%s165 + $0x68] sm:$0xf]
      %v2665 = vld [vmem:[%s165 + $0x6c] sm:$0xf]
      %v2666 = vld [vmem:[%s165 + $0x70] sm:$0xf]
      %v2667 = vld [vmem:[%s165 + $0x74] sm:$0xf]
      %v2668 = vld [vmem:[%s165 + $0x78] sm:$0xf]
      %v2669 = vld [vmem:[%s165 + $0x7c] sm:$0x7]
      %s2670 = scalar_lea.vmem %s1, 12
      %v2671 = vld [vmem:[%s2670] sm:$0x3]
      %v2700 = vunpack.c.l.b16 %v2642
      %v2701 = vunpack.c.l.b16 %v2643
      %v2702 = vunpack.c.l.b16 %v2644
      %v2703 = vunpack.c.l.b16 %v2645
      %v2704 = vunpack.c.l.b16 %v2646
      %v2705 = vunpack.c.l.b16 %v2647
      %v2706 = vunpack.c.l.b16 %v2648
      %v2707 = vunpack.c.l.b16 %v2649
      %v2708 = vunpack.c.l.b16 %v2650
      %v2709 = vunpack.c.l.b16 %v2651
      %v2710 = vunpack.c.l.b16 %v2652
      %v2711 = vunpack.c.l.b16 %v2653
      %v2712 = vunpack.c.l.b16 %v2654
      %v2713 = vunpack.c.l.b16 %v2655
      %v2714 = vunpack.c.l.b16 %v2656
      %v2715 = vunpack.c.l.b16 %v2657
      %v2716 = vunpack.c.l.b16 %v2658
      %v2717 = vunpack.c.l.b16 %v2659
      %v2718 = vunpack.c.l.b16 %v2660
      %v2719 = vunpack.c.l.b16 %v2661
      %v2720 = vunpack.c.l.b16 %v2662
      %v2721 = vunpack.c.l.b16 %v2663
      %v2722 = vunpack.c.l.b16 %v2664
      %v2723 = vunpack.c.l.b16 %v2665
      %v2724 = vunpack.c.l.b16 %v2666
      %v2725 = vunpack.c.l.b16 %v2667
      %v2726 = vunpack.c.l.b16 %v2668
      %v2727 = vunpack.c.l.b16 %v2669
      %v2728 = vpack.c.b16 %v2701, %v2700
      %v2729 = vpack.c.b16 %v2703, %v2702
      %v2730 = vpack.c.b16 %v2705, %v2704
      %v2731 = vpack.c.b16 %v2707, %v2706
      %v2732 = vpack.c.b16 %v2709, %v2708
      %v2733 = vpack.c.b16 %v2711, %v2710
      %v2734 = vpack.c.b16 %v2713, %v2712
      %v2735 = vpack.c.b16 %v2715, %v2714
      %v2736 = vpack.c.b16 %v2717, %v2716
      %v2737 = vpack.c.b16 %v2719, %v2718
      %v2738 = vpack.c.b16 %v2721, %v2720
      %v2739 = vpack.c.b16 %v2723, %v2722
      %v2740 = vpack.c.b16 %v2725, %v2724
      %v2741 = vpack.c.b16 %v2727, %v2726
      %v2743 = vsel %vm271, %v2728, 0
      %v2746 = vsel %vm271, %v2729, 0
      %v2749 = vsel %vm271, %v2730, 0
      %v2752 = vsel %vm271, %v2731, 0
      %v2755 = vsel %vm271, %v2732, 0
      %v2758 = vsel %vm271, %v2733, 0
      %v2761 = vsel %vm271, %v2734, 0
      %v2764 = vsel %vm271, %v2735, 0
      %v2767 = vsel %vm271, %v2736, 0
      %v2770 = vsel %vm271, %v2737, 0
      %v2773 = vsel %vm271, %v2738, 0
      %v2776 = vsel %vm271, %v2739, 0
      %v2779 = vsel %vm271, %v2740, 0
      %v2782 = vsel %vm271, %v2741, 0
      %v2785 = vand.u32 %v2671, %v317
      %2787 = vmatprep.subr.bf16.mxu0 0
      %2788 = vmatpush1.bf16.msra.mxu0 %v2785
      %2789 = vmatprep.subr.bf16.mxu0 0
      %2790 = vmatpush1.bf16.msra.mxu0 0
      %2791 = vmatprep.subr.bf16.mxu0 0
      %2792 = vmatpush1.bf16.msra.mxu0 0
      %2793 = vmatprep.subr.bf16.mxu0 0
      %2794 = vmatpush1.bf16.msra.mxu0 0
      %2795 = vmatprep.subr.bf16.mxu0 0
      %2796 = vmatpush1.bf16.msra.mxu0 0
      %2797 = vmatprep.subr.bf16.mxu0 0
      %2798 = vmatpush1.bf16.msra.mxu0 0
      %2799 = vmatprep.subr.bf16.mxu0 0
      %2800 = vmatpush1.bf16.msra.mxu0 0
      %2801 = vmatprep.subr.bf16.mxu0 0
      %2802 = vmatpush1.bf16.msra.mxu0 0
      %2803 = vmatprep.subr.bf16.mxu0 0
      %2804 = vmatpush1.bf16.msra.mxu0 0
      %2805 = vmatprep.subr.bf16.mxu0 0
      %2806 = vmatpush1.bf16.msra.mxu0 0
      %2807 = vmatprep.subr.bf16.mxu0 0
      %2808 = vmatpush1.bf16.msra.mxu0 0
      %2809 = vmatprep.subr.bf16.mxu0 0
      %2810 = vmatpush1.bf16.msra.mxu0 0
      %2811 = vmatprep.subr.bf16.mxu0 0
      %2812 = vmatpush1.bf16.msra.mxu0 0
      %2813 = vmatprep.subr.bf16.mxu0 0
      %2814 = vmatpush1.bf16.msra.mxu0 0
      %2815 = vmatprep.subr.bf16.mxu0 0
      %2816 = vmatpush1.bf16.msra.mxu0 0
      %2817 = vmatprep.subr.bf16.mxu0 0
      %2818 = vmatpush1.bf16.msra.mxu0 0
      %2819 = vmatprep.mubr.bf16.mxu0 0
      %2820 = vmatmul.mubr.bf16.gmra.mrb[0].mxu0 %v2743
      %v2821 = vpop.f32.mrb[0].mxu0
      %v2822 = vadd.f32 0.0, %v2821
      %v2823 = vpop.f32.mrb[0].mxu0
      %v2824 = vpop.f32.mrb[0].mxu0
      %v2825 = vadd.f32 0.0, %v2824
      %v2826 = vpop.f32.mrb[0].mxu0
      %2827 = vmatprep.mubr.bf16.mxu0 0
      %2828 = vmatmul.mubr.bf16.gmra.mrb[0].mxu0 %v2746
      %v2829 = vpop.f32.mrb[0].mxu0
      %v2830 = vadd.f32 0.0, %v2829
      %v2831 = vpop.f32.mrb[0].mxu0
      %v2832 = vpop.f32.mrb[0].mxu0
      %v2833 = vadd.f32 0.0, %v2832
      %v2834 = vpop.f32.mrb[0].mxu0
      %2835 = vmatprep.mubr.bf16.mxu0 0
      %2836 = vmatmul.mubr.bf16.gmra.mrb[0].mxu0 %v2749
      %v2837 = vpop.f32.mrb[0].mxu0
      %v2838 = vadd.f32 0.0, %v2837
      %v2839 = vpop.f32.mrb[0].mxu0
      %v2840 = vpop.f32.mrb[0].mxu0
      %v2841 = vadd.f32 0.0, %v2840
      %v2842 = vpop.f32.mrb[0].mxu0
      %2843 = vmatprep.mubr.bf16.mxu0 0
      %2844 = vmatmul.mubr.bf16.gmra.mrb[0].mxu0 %v2752
      %v2845 = vpop.f32.mrb[0].mxu0
      %v2846 = vadd.f32 0.0, %v2845
      %v2847 = vpop.f32.mrb[0].mxu0
      %v2848 = vpop.f32.mrb[0].mxu0
      %v2849 = vadd.f32 0.0, %v2848
      %v2850 = vpop.f32.mrb[0].mxu0
      %2851 = vmatprep.mubr.bf16.mxu0 0
      %2852 = vmatmul.mubr.bf16.gmra.mrb[0].mxu0 %v2755
      %v2853 = vpop.f32.mrb[0].mxu0
      %v2854 = vadd.f32 0.0, %v2853
      %v2855 = vpop.f32.mrb[0].mxu0
      %v2856 = vpop.f32.mrb[0].mxu0
      %v2857 = vadd.f32 0.0, %v2856
      %v2858 = vpop.f32.mrb[0].mxu0
      %2859 = vmatprep.mubr.bf16.mxu0 0
      %2860 = vmatmul.mubr.bf16.gmra.mrb[0].mxu0 %v2758
      %v2861 = vpop.f32.mrb[0].mxu0
      %v2862 = vadd.f32 0.0, %v2861
      %v2863 = vpop.f32.mrb[0].mxu0
      %v2864 = vpop.f32.mrb[0].mxu0
      %v2865 = vadd.f32 0.0, %v2864
      %v2866 = vpop.f32.mrb[0].mxu0
      %2867 = vmatprep.mubr.bf16.mxu0 0
      %2868 = vmatmul.mubr.bf16.gmra.mrb[0].mxu0 %v2761
      %v2869 = vpop.f32.mrb[0].mxu0
      %v2870 = vadd.f32 0.0, %v2869
      %v2871 = vpop.f32.mrb[0].mxu0
      %v2872 = vpop.f32.mrb[0].mxu0
      %v2873 = vadd.f32 0.0, %v2872
      %v2874 = vpop.f32.mrb[0].mxu0
      %2875 = vmatprep.mubr.bf16.mxu0 0
      %2876 = vmatmul.mubr.bf16.gmra.mrb[0].mxu0 %v2764
      %v2877 = vpop.f32.mrb[0].mxu0
      %v2878 = vadd.f32 0.0, %v2877
      %v2879 = vpop.f32.mrb[0].mxu0
      %v2880 = vpop.f32.mrb[0].mxu0
      %v2881 = vadd.f32 0.0, %v2880
      %v2882 = vpop.f32.mrb[0].mxu0
      %2883 = vmatprep.mubr.bf16.mxu0 0
      %2884 = vmatmul.mubr.bf16.gmra.mrb[0].mxu0 %v2767
      %v2885 = vpop.f32.mrb[0].mxu0
      %v2886 = vadd.f32 0.0, %v2885
      %v2887 = vpop.f32.mrb[0].mxu0
      %v2888 = vpop.f32.mrb[0].mxu0
      %v2889 = vadd.f32 0.0, %v2888
      %v2890 = vpop.f32.mrb[0].mxu0
      %2891 = vmatprep.mubr.bf16.mxu0 0
      %2892 = vmatmul.mubr.bf16.gmra.mrb[0].mxu0 %v2770
      %v2893 = vpop.f32.mrb[0].mxu0
      %v2894 = vadd.f32 0.0, %v2893
      %v2895 = vpop.f32.mrb[0].mxu0
      %v2896 = vpop.f32.mrb[0].mxu0
      %v2897 = vadd.f32 0.0, %v2896
      %v2898 = vpop.f32.mrb[0].mxu0
      %2899 = vmatprep.mubr.bf16.mxu0 0
      %2900 = vmatmul.mubr.bf16.gmra.mrb[0].mxu0 %v2773
      %v2901 = vpop.f32.mrb[0].mxu0
      %v2902 = vadd.f32 0.0, %v2901
      %v2903 = vpop.f32.mrb[0].mxu0
      %v2904 = vpop.f32.mrb[0].mxu0
      %v2905 = vadd.f32 0.0, %v2904
      %v2906 = vpop.f32.mrb[0].mxu0
      %2907 = vmatprep.mubr.bf16.mxu0 0
      %2908 = vmatmul.mubr.bf16.gmra.mrb[0].mxu0 %v2776
      %v2909 = vpop.f32.mrb[0].mxu0
      %v2910 = vadd.f32 0.0, %v2909
      %v2911 = vpop.f32.mrb[0].mxu0
      %v2912 = vpop.f32.mrb[0].mxu0
      %v2913 = vadd.f32 0.0, %v2912
      %v2914 = vpop.f32.mrb[0].mxu0
      %2915 = vmatprep.mubr.bf16.mxu0 0
      %2916 = vmatmul.mubr.bf16.gmra.mrb[0].mxu0 %v2779
      %v2917 = vpop.f32.mrb[0].mxu0
      %v2918 = vadd.f32 0.0, %v2917
      %v2919 = vpop.f32.mrb[0].mxu0
      %v2920 = vpop.f32.mrb[0].mxu0
      %v2921 = vadd.f32 0.0, %v2920
      %v2922 = vpop.f32.mrb[0].mxu0
      %2923 = vmatprep.mubr.bf16.mxu0 0
      %2924 = vmatmul.mubr.bf16.gmra.mrb[0].mxu0 %v2782
      %v2925 = vpop.f32.mrb[0].mxu0
      %v2926 = vadd.f32 0.0, %v2925
      %v2927 = vpop.f32.mrb[0].mxu0
      %v2928 = vpop.f32.mrb[0].mxu0
      %v2929 = vadd.f32 0.0, %v2928
      %v2930 = vpop.f32.mrb[0].mxu0
      %2931 = vdwg.mxu0
      %v2932 = vld [vmem:[#allocation2] sm:$0xff]
      %v2933 = vld [vmem:[#allocation2 + $0x8] sm:$0xff]
      %v2934 = vld [vmem:[#allocation2 + $0x10] sm:$0xff]
      %v2935 = vld [vmem:[#allocation2 + $0x18] sm:$0xff]
      %v2936 = vld [vmem:[#allocation2 + $0x20] sm:$0xff]
      %v2937 = vld [vmem:[#allocation2 + $0x28] sm:$0xff]
      %v2938 = vld [vmem:[#allocation2 + $0x30] sm:$0xff]
      %v2939 = vld [vmem:[#allocation2 + $0x38] sm:$0xff]
      %v2940 = vld [vmem:[#allocation2 + $0x40] sm:$0xff]
      %v2941 = vld [vmem:[#allocation2 + $0x48] sm:$0xff]
      %v2942 = vld [vmem:[#allocation2 + $0x50] sm:$0xff]
      %v2943 = vld [vmem:[#allocation2 + $0x58] sm:$0xff]
      %v2944 = vld [vmem:[#allocation2 + $0x60] sm:$0xff]
      %v2945 = vld [vmem:[#allocation2 + $0x68] sm:$0xff]
      %v2946 = vld [vmem:[#allocation2 + $0x70] sm:$0xff]
      %v2947 = vld [vmem:[#allocation2 + $0x78] sm:$0xff]
      %v2948 = vld [vmem:[#allocation2 + $0x80] sm:$0xff]
      %v2949 = vld [vmem:[#allocation2 + $0x88] sm:$0xff]
      %v2950 = vld [vmem:[#allocation2 + $0x90] sm:$0xff]
      %v2951 = vld [vmem:[#allocation2 + $0x98] sm:$0xff]
      %v2952 = vld [vmem:[#allocation2 + $0xa0] sm:$0xff]
      %v2953 = vld [vmem:[#allocation2 + $0xa8] sm:$0xff]
      %v2954 = vld [vmem:[#allocation2 + $0xb0] sm:$0xff]
      %v2955 = vld [vmem:[#allocation2 + $0xb8] sm:$0xff]
      %v2956 = vld [vmem:[#allocation2 + $0xc0] sm:$0xff]
      %v2957 = vld [vmem:[#allocation2 + $0xc8] sm:$0xff]
      %v2958 = vld [vmem:[#allocation2 + $0xd0] sm:$0xff]
      %v2959 = vld [vmem:[#allocation2 + $0xd8] sm:$0x3f]
      %v2960 = vadd.f32 %v2932, %v2822
      %v2961 = vadd.f32 %v2933, %v2825
      %v2962 = vadd.f32 %v2934, %v2830
      %v2963 = vadd.f32 %v2935, %v2833
      %v2964 = vadd.f32 %v2936, %v2838
      %v2965 = vadd.f32 %v2937, %v2841
      %v2966 = vadd.f32 %v2938, %v2846
      %v2967 = vadd.f32 %v2939, %v2849
      %v2968 = vadd.f32 %v2940, %v2854
      %v2969 = vadd.f32 %v2941, %v2857
      %v2970 = vadd.f32 %v2942, %v2862
      %v2971 = vadd.f32 %v2943, %v2865
      %v2972 = vadd.f32 %v2944, %v2870
      %v2973 = vadd.f32 %v2945, %v2873
      %v2974 = vadd.f32 %v2946, %v2878
      %v2975 = vadd.f32 %v2947, %v2881
      %v2976 = vadd.f32 %v2948, %v2886
      %v2977 = vadd.f32 %v2949, %v2889
      %v2978 = vadd.f32 %v2950, %v2894
      %v2979 = vadd.f32 %v2951, %v2897
      %v2980 = vadd.f32 %v2952, %v2902
      %v2981 = vadd.f32 %v2953, %v2905
      %v2982 = vadd.f32 %v2954, %v2910
      %v2983 = vadd.f32 %v2955, %v2913
      %v2984 = vadd.f32 %v2956, %v2918
      %v2985 = vadd.f32 %v2957, %v2921
      %v2986 = vadd.f32 %v2958, %v2926
      %v2987 = vadd.f32 %v2959, %v2929
      %2988 = vst [vmem:[#allocation2] sm:$0xff] %v2960
      %2989 = vst [vmem:[#allocation2 + $0x8] sm:$0xff] %v2961
      %2990 = vst [vmem:[#allocation2 + $0x10] sm:$0xff] %v2962
      %2991 = vst [vmem:[#allocation2 + $0x18] sm:$0xff] %v2963
      %2992 = vst [vmem:[#allocation2 + $0x20] sm:$0xff] %v2964
      %2993 = vst [vmem:[#allocation2 + $0x28] sm:$0xff] %v2965
      %2994 = vst [vmem:[#allocation2 + $0x30] sm:$0xff] %v2966
      %2995 = vst [vmem:[#allocation2 + $0x38] sm:$0xff] %v2967
      %2996 = vst [vmem:[#allocation2 + $0x40] sm:$0xff] %v2968
      %2997 = vst [vmem:[#allocation2 + $0x48] sm:$0xff] %v2969
      %2998 = vst [vmem:[#allocation2 + $0x50] sm:$0xff] %v2970
      %2999 = vst [vmem:[#allocation2 + $0x58] sm:$0xff] %v2971
      %3000 = vst [vmem:[#allocation2 + $0x60] sm:$0xff] %v2972
      %3001 = vst [vmem:[#allocation2 + $0x68] sm:$0xff] %v2973
      %3002 = vst [vmem:[#allocation2 + $0x70] sm:$0xff] %v2974
      %3003 = vst [vmem:[#allocation2 + $0x78] sm:$0xff] %v2975
      %3004 = vst [vmem:[#allocation2 + $0x80] sm:$0xff] %v2976
      %3005 = vst [vmem:[#allocation2 + $0x88] sm:$0xff] %v2977
      %3006 = vst [vmem:[#allocation2 + $0x90] sm:$0xff] %v2978
      %3007 = vst [vmem:[#allocation2 + $0x98] sm:$0xff] %v2979
      %3008 = vst [vmem:[#allocation2 + $0xa0] sm:$0xff] %v2980
      %3009 = vst [vmem:[#allocation2 + $0xa8] sm:$0xff] %v2981
      %3010 = vst [vmem:[#allocation2 + $0xb0] sm:$0xff] %v2982
      %3011 = vst [vmem:[#allocation2 + $0xb8] sm:$0xff] %v2983
      %3012 = vst [vmem:[#allocation2 + $0xc0] sm:$0xff] %v2984
      %3013 = vst [vmem:[#allocation2 + $0xc8] sm:$0xff] %v2985
      %3014 = vst [vmem:[#allocation2 + $0xd0] sm:$0xff] %v2986
      %3015 = vst [vmem:[#allocation2 + $0xd8] sm:$0x3f] %v2987
      %v3016 = vld [vmem:[%s165 + $0x10] sm:$0xf]
      %v3017 = vld [vmem:[%s165 + $0x14] sm:$0xf]
      %v3018 = vld [vmem:[%s165 + $0x18] sm:$0xf]
      %v3019 = vld [vmem:[%s165 + $0x1c] sm:$0xf]
      %v3020 = vld [vmem:[%s165 + $0x20] sm:$0xf]
      %v3021 = vld [vmem:[%s165 + $0x24] sm:$0xf]
      %v3022 = vld [vmem:[%s165 + $0x28] sm:$0xf]
      %v3023 = vld [vmem:[%s165 + $0x2c] sm:$0xf]
      %v3024 = vld [vmem:[%s165 + $0x30] sm:$0xf]
      %v3025 = vld [vmem:[%s165 + $0x34] sm:$0xf]
      %v3026 = vld [vmem:[%s165 + $0x38] sm:$0xf]
      %v3027 = vld [vmem:[%s165 + $0x3c] sm:$0xf]
      %v3028 = vld [vmem:[%s165 + $0x40] sm:$0xf]
      %v3029 = vld [vmem:[%s165 + $0x44] sm:$0xf]
      %v3030 = vld [vmem:[%s165 + $0x48] sm:$0xf]
      %v3031 = vld [vmem:[%s165 + $0x4c] sm:$0xf]
      %v3032 = vld [vmem:[%s165 + $0x50] sm:$0xf]
      %v3033 = vld [vmem:[%s165 + $0x54] sm:$0xf]
      %v3034 = vld [vmem:[%s165 + $0x58] sm:$0xf]
      %v3035 = vld [vmem:[%s165 + $0x5c] sm:$0xf]
      %v3036 = vld [vmem:[%s165 + $0x60] sm:$0xf]
      %v3037 = vld [vmem:[%s165 + $0x64] sm:$0xf]
      %v3038 = vld [vmem:[%s165 + $0x68] sm:$0xf]
      %v3039 = vld [vmem:[%s165 + $0x6c] sm:$0xf]
      %v3040 = vld [vmem:[%s165 + $0x70] sm:$0xf]
      %v3041 = vld [vmem:[%s165 + $0x74] sm:$0xf]
      %v3042 = vld [vmem:[%s165 + $0x78] sm:$0xf]
      %v3043 = vld [vmem:[%s165 + $0x7c] sm:$0xf]
      %s3044 = scalar_lea.vmem %s1, 14
      %v3045 = vld [vmem:[%s3044] sm:$0x3]
      %v3074 = vunpack.c.l.b16 %v3016
      %v3075 = vunpack.c.l.b16 %v3017
      %v3076 = vunpack.c.l.b16 %v3018
      %v3077 = vunpack.c.l.b16 %v3019
      %v3078 = vunpack.c.l.b16 %v3020
      %v3079 = vunpack.c.l.b16 %v3021
      %v3080 = vunpack.c.l.b16 %v3022
      %v3081 = vunpack.c.l.b16 %v3023
      %v3082 = vunpack.c.l.b16 %v3024
      %v3083 = vunpack.c.l.b16 %v3025
      %v3084 = vunpack.c.l.b16 %v3026
      %v3085 = vunpack.c.l.b16 %v3027
      %v3086 = vunpack.c.l.b16 %v3028
      %v3087 = vunpack.c.l.b16 %v3029
      %v3088 = vunpack.c.l.b16 %v3030
      %v3089 = vunpack.c.l.b16 %v3031
      %v3090 = vunpack.c.l.b16 %v3032
      %v3091 = vunpack.c.l.b16 %v3033
      %v3092 = vunpack.c.l.b16 %v3034
      %v3093 = vunpack.c.l.b16 %v3035
      %v3094 = vunpack.c.l.b16 %v3036
      %v3095 = vunpack.c.l.b16 %v3037
      %v3096 = vunpack.c.l.b16 %v3038
      %v3097 = vunpack.c.l.b16 %v3039
      %v3098 = vunpack.c.l.b16 %v3040
      %v3099 = vunpack.c.l.b16 %v3041
      %v3100 = vunpack.c.l.b16 %v3042
      %v3101 = vunpack.c.l.b16 %v3043
      %v3102 = vpack.c.b16 %v3075, %v3074
      %v3103 = vpack.c.b16 %v3077, %v3076
      %v3104 = vpack.c.b16 %v3079, %v3078
      %v3105 = vpack.c.b16 %v3081, %v3080
      %v3106 = vpack.c.b16 %v3083, %v3082
      %v3107 = vpack.c.b16 %v3085, %v3084
      %v3108 = vpack.c.b16 %v3087, %v3086
      %v3109 = vpack.c.b16 %v3089, %v3088
      %v3110 = vpack.c.b16 %v3091, %v3090
      %v3111 = vpack.c.b16 %v3093, %v3092
      %v3112 = vpack.c.b16 %v3095, %v3094
      %v3113 = vpack.c.b16 %v3097, %v3096
      %v3114 = vpack.c.b16 %v3099, %v3098
      %v3115 = vpack.c.b16 %v3101, %v3100
      %v3117 = vshrl.u32 %v3102, 16
      %v3119 = vshll.u32 %v3102, 16
      %v3121 = vrot.slane %v3119, 1
      %v3122 = vor.u32 %v3117, %v3121
      %v3124 = vshll.u32 %v3103, 16
      %v3126 = vrot.slane %v3124, 1
      %v3127 = vsel %vm594, %v3122, %v3126
      %v3128 = vshrl.u32 %v3103, 16
      %v3130 = vor.u32 %v3128, %v3126
      %v3132 = vshll.u32 %v3104, 16
      %v3134 = vrot.slane %v3132, 1
      %v3135 = vsel %vm594, %v3130, %v3134
      %v3136 = vshrl.u32 %v3104, 16
      %v3138 = vor.u32 %v3136, %v3134
      %v3140 = vshll.u32 %v3105, 16
      %v3142 = vrot.slane %v3140, 1
      %v3143 = vsel %vm594, %v3138, %v3142
      %v3144 = vshrl.u32 %v3105, 16
      %v3146 = vor.u32 %v3144, %v3142
      %v3148 = vshll.u32 %v3106, 16
      %v3150 = vrot.slane %v3148, 1
      %v3151 = vsel %vm594, %v3146, %v3150
      %v3152 = vshrl.u32 %v3106, 16
      %v3154 = vor.u32 %v3152, %v3150
      %v3156 = vshll.u32 %v3107, 16
      %v3158 = vrot.slane %v3156, 1
      %v3159 = vsel %vm594, %v3154, %v3158
      %v3160 = vshrl.u32 %v3107, 16
      %v3162 = vor.u32 %v3160, %v3158
      %v3164 = vshll.u32 %v3108, 16
      %v3166 = vrot.slane %v3164, 1
      %v3167 = vsel %vm594, %v3162, %v3166
      %v3168 = vshrl.u32 %v3108, 16
      %v3170 = vor.u32 %v3168, %v3166
      %v3172 = vshll.u32 %v3109, 16
      %v3174 = vrot.slane %v3172, 1
      %v3175 = vsel %vm594, %v3170, %v3174
      %v3176 = vshrl.u32 %v3109, 16
      %v3178 = vor.u32 %v3176, %v3174
      %v3180 = vshll.u32 %v3110, 16
      %v3182 = vrot.slane %v3180, 1
      %v3183 = vsel %vm594, %v3178, %v3182
      %v3184 = vshrl.u32 %v3110, 16
      %v3186 = vor.u32 %v3184, %v3182
      %v3188 = vshll.u32 %v3111, 16
      %v3190 = vrot.slane %v3188, 1
      %v3191 = vsel %vm594, %v3186, %v3190
      %v3192 = vshrl.u32 %v3111, 16
      %v3194 = vor.u32 %v3192, %v3190
      %v3196 = vshll.u32 %v3112, 16
      %v3198 = vrot.slane %v3196, 1
      %v3199 = vsel %vm594, %v3194, %v3198
      %v3200 = vshrl.u32 %v3112, 16
      %v3202 = vor.u32 %v3200, %v3198
      %v3204 = vshll.u32 %v3113, 16
      %v3206 = vrot.slane %v3204, 1
      %v3207 = vsel %vm594, %v3202, %v3206
      %v3208 = vshrl.u32 %v3113, 16
      %v3210 = vor.u32 %v3208, %v3206
      %v3212 = vshll.u32 %v3114, 16
      %v3214 = vrot.slane %v3212, 1
      %v3215 = vsel %vm594, %v3210, %v3214
      %v3216 = vshrl.u32 %v3114, 16
      %v3218 = vor.u32 %v3216, %v3214
      %v3220 = vshll.u32 %v3115, 16
      %v3222 = vrot.slane %v3220, 1
      %v3223 = vsel %vm594, %v3218, %v3222
      %v3224 = vshrl.u32 %v3115, 16
      %v3226 = vor.u32 %v3224, %v3222
      %v3228 = vsel %vm271, %v3127, 0
      %v3231 = vsel %vm271, %v3135, 0
      %v3234 = vsel %vm271, %v3143, 0
      %v3237 = vsel %vm271, %v3151, 0
      %v3240 = vsel %vm271, %v3159, 0
      %v3243 = vsel %vm271, %v3167, 0
      %v3246 = vsel %vm271, %v3175, 0
      %v3249 = vsel %vm271, %v3183, 0
      %v3252 = vsel %vm271, %v3191, 0
      %v3255 = vsel %vm271, %v3199, 0
      %v3258 = vsel %vm271, %v3207, 0
      %v3261 = vsel %vm271, %v3215, 0
      %v3264 = vsel %vm271, %v3223, 0
      %v3267 = vsel %vm271, %v3226, 0
      %v3270 = vand.u32 %v3045, %v317
      %3272 = vmatprep.subr.bf16.mxu0 0
      %3273 = vmatpush1.bf16.msra.mxu0 %v3270
      %3274 = vmatprep.subr.bf16.mxu0 0
      %3275 = vmatpush1.bf16.msra.mxu0 0
      %3276 = vmatprep.subr.bf16.mxu0 0
      %3277 = vmatpush1.bf16.msra.mxu0 0
      %3278 = vmatprep.subr.bf16.mxu0 0
      %3279 = vmatpush1.bf16.msra.mxu0 0
      %3280 = vmatprep.subr.bf16.mxu0 0
      %3281 = vmatpush1.bf16.msra.mxu0 0
      %3282 = vmatprep.subr.bf16.mxu0 0
      %3283 = vmatpush1.bf16.msra.mxu0 0
      %3284 = vmatprep.subr.bf16.mxu0 0
      %3285 = vmatpush1.bf16.msra.mxu0 0
      %3286 = vmatprep.subr.bf16.mxu0 0
      %3287 = vmatpush1.bf16.msra.mxu0 0
      %3288 = vmatprep.subr.bf16.mxu0 0
      %3289 = vmatpush1.bf16.msra.mxu0 0
      %3290 = vmatprep.subr.bf16.mxu0 0
      %3291 = vmatpush1.bf16.msra.mxu0 0
      %3292 = vmatprep.subr.bf16.mxu0 0
      %3293 = vmatpush1.bf16.msra.mxu0 0
      %3294 = vmatprep.subr.bf16.mxu0 0
      %3295 = vmatpush1.bf16.msra.mxu0 0
      %3296 = vmatprep.subr.bf16.mxu0 0
      %3297 = vmatpush1.bf16.msra.mxu0 0
      %3298 = vmatprep.subr.bf16.mxu0 0
      %3299 = vmatpush1.bf16.msra.mxu0 0
      %3300 = vmatprep.subr.bf16.mxu0 0
      %3301 = vmatpush1.bf16.msra.mxu0 0
      %3302 = vmatprep.subr.bf16.mxu0 0
      %3303 = vmatpush1.bf16.msra.mxu0 0
      %3304 = vmatprep.mubr.bf16.mxu0 0
      %3305 = vmatmul.mubr.bf16.gmra.mrb[0].mxu0 %v3228
      %v3306 = vpop.f32.mrb[0].mxu0
      %v3307 = vadd.f32 0.0, %v3306
      %v3308 = vpop.f32.mrb[0].mxu0
      %v3309 = vpop.f32.mrb[0].mxu0
      %v3310 = vadd.f32 0.0, %v3309
      %v3311 = vpop.f32.mrb[0].mxu0
      %3312 = vmatprep.mubr.bf16.mxu0 0
      %3313 = vmatmul.mubr.bf16.gmra.mrb[0].mxu0 %v3231
      %v3314 = vpop.f32.mrb[0].mxu0
      %v3315 = vadd.f32 0.0, %v3314
      %v3316 = vpop.f32.mrb[0].mxu0
      %v3317 = vpop.f32.mrb[0].mxu0
      %v3318 = vadd.f32 0.0, %v3317
      %v3319 = vpop.f32.mrb[0].mxu0
      %3320 = vmatprep.mubr.bf16.mxu0 0
      %3321 = vmatmul.mubr.bf16.gmra.mrb[0].mxu0 %v3234
      %v3322 = vpop.f32.mrb[0].mxu0
      %v3323 = vadd.f32 0.0, %v3322
      %v3324 = vpop.f32.mrb[0].mxu0
      %v3325 = vpop.f32.mrb[0].mxu0
      %v3326 = vadd.f32 0.0, %v3325
      %v3327 = vpop.f32.mrb[0].mxu0
      %3328 = vmatprep.mubr.bf16.mxu0 0
      %3329 = vmatmul.mubr.bf16.gmra.mrb[0].mxu0 %v3237
      %v3330 = vpop.f32.mrb[0].mxu0
      %v3331 = vadd.f32 0.0, %v3330
      %v3332 = vpop.f32.mrb[0].mxu0
      %v3333 = vpop.f32.mrb[0].mxu0
      %v3334 = vadd.f32 0.0, %v3333
      %v3335 = vpop.f32.mrb[0].mxu0
      %3336 = vmatprep.mubr.bf16.mxu0 0
      %3337 = vmatmul.mubr.bf16.gmra.mrb[0].mxu0 %v3240
      %v3338 = vpop.f32.mrb[0].mxu0
      %v3339 = vadd.f32 0.0, %v3338
      %v3340 = vpop.f32.mrb[0].mxu0
      %v3341 = vpop.f32.mrb[0].mxu0
      %v3342 = vadd.f32 0.0, %v3341
      %v3343 = vpop.f32.mrb[0].mxu0
      %3344 = vmatprep.mubr.bf16.mxu0 0
      %3345 = vmatmul.mubr.bf16.gmra.mrb[0].mxu0 %v3243
      %v3346 = vpop.f32.mrb[0].mxu0
      %v3347 = vadd.f32 0.0, %v3346
      %v3348 = vpop.f32.mrb[0].mxu0
      %v3349 = vpop.f32.mrb[0].mxu0
      %v3350 = vadd.f32 0.0, %v3349
      %v3351 = vpop.f32.mrb[0].mxu0
      %3352 = vmatprep.mubr.bf16.mxu0 0
      %3353 = vmatmul.mubr.bf16.gmra.mrb[0].mxu0 %v3246
      %v3354 = vpop.f32.mrb[0].mxu0
      %v3355 = vadd.f32 0.0, %v3354
      %v3356 = vpop.f32.mrb[0].mxu0
      %v3357 = vpop.f32.mrb[0].mxu0
      %v3358 = vadd.f32 0.0, %v3357
      %v3359 = vpop.f32.mrb[0].mxu0
      %3360 = vmatprep.mubr.bf16.mxu0 0
      %3361 = vmatmul.mubr.bf16.gmra.mrb[0].mxu0 %v3249
      %v3362 = vpop.f32.mrb[0].mxu0
      %v3363 = vadd.f32 0.0, %v3362
      %v3364 = vpop.f32.mrb[0].mxu0
      %v3365 = vpop.f32.mrb[0].mxu0
      %v3366 = vadd.f32 0.0, %v3365
      %v3367 = vpop.f32.mrb[0].mxu0
      %3368 = vmatprep.mubr.bf16.mxu0 0
      %3369 = vmatmul.mubr.bf16.gmra.mrb[0].mxu0 %v3252
      %v3370 = vpop.f32.mrb[0].mxu0
      %v3371 = vadd.f32 0.0, %v3370
      %v3372 = vpop.f32.mrb[0].mxu0
      %v3373 = vpop.f32.mrb[0].mxu0
      %v3374 = vadd.f32 0.0, %v3373
      %v3375 = vpop.f32.mrb[0].mxu0
      %3376 = vmatprep.mubr.bf16.mxu0 0
      %3377 = vmatmul.mubr.bf16.gmra.mrb[0].mxu0 %v3255
      %v3378 = vpop.f32.mrb[0].mxu0
      %v3379 = vadd.f32 0.0, %v3378
      %v3380 = vpop.f32.mrb[0].mxu0
      %v3381 = vpop.f32.mrb[0].mxu0
      %v3382 = vadd.f32 0.0, %v3381
      %v3383 = vpop.f32.mrb[0].mxu0
      %3384 = vmatprep.mubr.bf16.mxu0 0
      %3385 = vmatmul.mubr.bf16.gmra.mrb[0].mxu0 %v3258
      %v3386 = vpop.f32.mrb[0].mxu0
      %v3387 = vadd.f32 0.0, %v3386
      %v3388 = vpop.f32.mrb[0].mxu0
      %v3389 = vpop.f32.mrb[0].mxu0
      %v3390 = vadd.f32 0.0, %v3389
      %v3391 = vpop.f32.mrb[0].mxu0
      %3392 = vmatprep.mubr.bf16.mxu0 0
      %3393 = vmatmul.mubr.bf16.gmra.mrb[0].mxu0 %v3261
      %v3394 = vpop.f32.mrb[0].mxu0
      %v3395 = vadd.f32 0.0, %v3394
      %v3396 = vpop.f32.mrb[0].mxu0
      %v3397 = vpop.f32.mrb[0].mxu0
      %v3398 = vadd.f32 0.0, %v3397
      %v3399 = vpop.f32.mrb[0].mxu0
      %3400 = vmatprep.mubr.bf16.mxu0 0
      %3401 = vmatmul.mubr.bf16.gmra.mrb[0].mxu0 %v3264
      %v3402 = vpop.f32.mrb[0].mxu0
      %v3403 = vadd.f32 0.0, %v3402
      %v3404 = vpop.f32.mrb[0].mxu0
      %v3405 = vpop.f32.mrb[0].mxu0
      %v3406 = vadd.f32 0.0, %v3405
      %v3407 = vpop.f32.mrb[0].mxu0
      %3408 = vmatprep.mubr.bf16.mxu0 0
      %3409 = vmatmul.mubr.bf16.gmra.mrb[0].mxu0 %v3267
      %v3410 = vpop.f32.mrb[0].mxu0
      %v3411 = vadd.f32 0.0, %v3410
      %v3412 = vpop.f32.mrb[0].mxu0
      %v3413 = vpop.f32.mrb[0].mxu0
      %v3414 = vadd.f32 0.0, %v3413
      %v3415 = vpop.f32.mrb[0].mxu0
      %3416 = vdwg.mxu0
      %v3417 = vld [vmem:[#allocation2] sm:$0xff]
      %v3418 = vld [vmem:[#allocation2 + $0x8] sm:$0xff]
      %v3419 = vld [vmem:[#allocation2 + $0x10] sm:$0xff]
      %v3420 = vld [vmem:[#allocation2 + $0x18] sm:$0xff]
      %v3421 = vld [vmem:[#allocation2 + $0x20] sm:$0xff]
      %v3422 = vld [vmem:[#allocation2 + $0x28] sm:$0xff]
      %v3423 = vld [vmem:[#allocation2 + $0x30] sm:$0xff]
      %v3424 = vld [vmem:[#allocation2 + $0x38] sm:$0xff]
      %v3425 = vld [vmem:[#allocation2 + $0x40] sm:$0xff]
      %v3426 = vld [vmem:[#allocation2 + $0x48] sm:$0xff]
      %v3427 = vld [vmem:[#allocation2 + $0x50] sm:$0xff]
      %v3428 = vld [vmem:[#allocation2 + $0x58] sm:$0xff]
      %v3429 = vld [vmem:[#allocation2 + $0x60] sm:$0xff]
      %v3430 = vld [vmem:[#allocation2 + $0x68] sm:$0xff]
      %v3431 = vld [vmem:[#allocation2 + $0x70] sm:$0xff]
      %v3432 = vld [vmem:[#allocation2 + $0x78] sm:$0xff]
      %v3433 = vld [vmem:[#allocation2 + $0x80] sm:$0xff]
      %v3434 = vld [vmem:[#allocation2 + $0x88] sm:$0xff]
      %v3435 = vld [vmem:[#allocation2 + $0x90] sm:$0xff]
      %v3436 = vld [vmem:[#allocation2 + $0x98] sm:$0xff]
      %v3437 = vld [vmem:[#allocation2 + $0xa0] sm:$0xff]
      %v3438 = vld [vmem:[#allocation2 + $0xa8] sm:$0xff]
      %v3439 = vld [vmem:[#allocation2 + $0xb0] sm:$0xff]
      %v3440 = vld [vmem:[#allocation2 + $0xb8] sm:$0xff]
      %v3441 = vld [vmem:[#allocation2 + $0xc0] sm:$0xff]
      %v3442 = vld [vmem:[#allocation2 + $0xc8] sm:$0xff]
      %v3443 = vld [vmem:[#allocation2 + $0xd0] sm:$0xff]
      %v3444 = vld [vmem:[#allocation2 + $0xd8] sm:$0x3f]
      %v3445 = vadd.f32 %v3417, %v3307
      %v3446 = vadd.f32 %v3418, %v3310
      %v3447 = vadd.f32 %v3419, %v3315
      %v3448 = vadd.f32 %v3420, %v3318
      %v3449 = vadd.f32 %v3421, %v3323
      %v3450 = vadd.f32 %v3422, %v3326
      %v3451 = vadd.f32 %v3423, %v3331
      %v3452 = vadd.f32 %v3424, %v3334
      %v3453 = vadd.f32 %v3425, %v3339
      %v3454 = vadd.f32 %v3426, %v3342
      %v3455 = vadd.f32 %v3427, %v3347
      %v3456 = vadd.f32 %v3428, %v3350
      %v3457 = vadd.f32 %v3429, %v3355
      %v3458 = vadd.f32 %v3430, %v3358
      %v3459 = vadd.f32 %v3431, %v3363
      %v3460 = vadd.f32 %v3432, %v3366
      %v3461 = vadd.f32 %v3433, %v3371
      %v3462 = vadd.f32 %v3434, %v3374
      %v3463 = vadd.f32 %v3435, %v3379
      %v3464 = vadd.f32 %v3436, %v3382
      %v3465 = vadd.f32 %v3437, %v3387
      %v3466 = vadd.f32 %v3438, %v3390
      %v3467 = vadd.f32 %v3439, %v3395
      %v3468 = vadd.f32 %v3440, %v3398
      %v3469 = vadd.f32 %v3441, %v3403
      %v3470 = vadd.f32 %v3442, %v3406
      %v3471 = vadd.f32 %v3443, %v3411
      %v3472 = vadd.f32 %v3444, %v3414
      %3473 = vst [vmem:[#allocation2] sm:$0xff] %v3445
      %3474 = vst [vmem:[#allocation2 + $0x8] sm:$0xff] %v3446
      %3475 = vst [vmem:[#allocation2 + $0x10] sm:$0xff] %v3447
      %3476 = vst [vmem:[#allocation2 + $0x18] sm:$0xff] %v3448
      %3477 = vst [vmem:[#allocation2 + $0x20] sm:$0xff] %v3449
      %3478 = vst [vmem:[#allocation2 + $0x28] sm:$0xff] %v3450
      %3479 = vst [vmem:[#allocation2 + $0x30] sm:$0xff] %v3451
      %3480 = vst [vmem:[#allocation2 + $0x38] sm:$0xff] %v3452
      %3481 = vst [vmem:[#allocation2 + $0x40] sm:$0xff] %v3453
      %3482 = vst [vmem:[#allocation2 + $0x48] sm:$0xff] %v3454
      %3483 = vst [vmem:[#allocation2 + $0x50] sm:$0xff] %v3455
      %3484 = vst [vmem:[#allocation2 + $0x58] sm:$0xff] %v3456
      %3485 = vst [vmem:[#allocation2 + $0x60] sm:$0xff] %v3457
      %3486 = vst [vmem:[#allocation2 + $0x68] sm:$0xff] %v3458
      %3487 = vst [vmem:[#allocation2 + $0x70] sm:$0xff] %v3459
      %3488 = vst [vmem:[#allocation2 + $0x78] sm:$0xff] %v3460
      %3489 = vst [vmem:[#allocation2 + $0x80] sm:$0xff] %v3461
      %3490 = vst [vmem:[#allocation2 + $0x88] sm:$0xff] %v3462
      %3491 = vst [vmem:[#allocation2 + $0x90] sm:$0xff] %v3463
      %3492 = vst [vmem:[#allocation2 + $0x98] sm:$0xff] %v3464
      %3493 = vst [vmem:[#allocation2 + $0xa0] sm:$0xff] %v3465
      %3494 = vst [vmem:[#allocation2 + $0xa8] sm:$0xff] %v3466
      %3495 = vst [vmem:[#allocation2 + $0xb0] sm:$0xff] %v3467
      %3496 = vst [vmem:[#allocation2 + $0xb8] sm:$0xff] %v3468
      %3497 = vst [vmem:[#allocation2 + $0xc0] sm:$0xff] %v3469
      %3498 = vst [vmem:[#allocation2 + $0xc8] sm:$0xff] %v3470
      %3499 = vst [vmem:[#allocation2 + $0xd0] sm:$0xff] %v3471
      %3500 = vst [vmem:[#allocation2 + $0xd8] sm:$0x3f] %v3472
      %v3501 = vld [vmem:[%s165 + $0x10] sm:$0xe]
      %v3502 = vld [vmem:[%s165 + $0x14] sm:$0xf]
      %v3503 = vld [vmem:[%s165 + $0x18] sm:$0xf]
      %v3504 = vld [vmem:[%s165 + $0x1c] sm:$0xf]
      %v3505 = vld [vmem:[%s165 + $0x20] sm:$0xf]
      %v3506 = vld [vmem:[%s165 + $0x24] sm:$0xf]
      %v3507 = vld [vmem:[%s165 + $0x28] sm:$0xf]
      %v3508 = vld [vmem:[%s165 + $0x2c] sm:$0xf]
      %v3509 = vld [vmem:[%s165 + $0x30] sm:$0xf]
      %v3510 = vld [vmem:[%s165 + $0x34] sm:$0xf]
      %v3511 = vld [vmem:[%s165 + $0x38] sm:$0xf]
      %v3512 = vld [vmem:[%s165 + $0x3c] sm:$0xf]
      %v3513 = vld [vmem:[%s165 + $0x40] sm:$0xf]
      %v3514 = vld [vmem:[%s165 + $0x44] sm:$0xf]
      %v3515 = vld [vmem:[%s165 + $0x48] sm:$0xf]
      %v3516 = vld [vmem:[%s165 + $0x4c] sm:$0xf]
      %v3517 = vld [vmem:[%s165 + $0x50] sm:$0xf]
      %v3518 = vld [vmem:[%s165 + $0x54] sm:$0xf]
      %v3519 = vld [vmem:[%s165 + $0x58] sm:$0xf]
      %v3520 = vld [vmem:[%s165 + $0x5c] sm:$0xf]
      %v3521 = vld [vmem:[%s165 + $0x60] sm:$0xf]
      %v3522 = vld [vmem:[%s165 + $0x64] sm:$0xf]
      %v3523 = vld [vmem:[%s165 + $0x68] sm:$0xf]
      %v3524 = vld [vmem:[%s165 + $0x6c] sm:$0xf]
      %v3525 = vld [vmem:[%s165 + $0x70] sm:$0xf]
      %v3526 = vld [vmem:[%s165 + $0x74] sm:$0xf]
      %v3527 = vld [vmem:[%s165 + $0x78] sm:$0xf]
      %v3528 = vld [vmem:[%s165 + $0x7c] sm:$0xf]
      %s3529 = scalar_lea.vmem %s1, 16
      %v3530 = vld [vmem:[%s3529] sm:$0x3]
      %v3559 = vunpack.c.l.b16 %v3501
      %v3560 = vunpack.c.l.b16 %v3502
      %v3561 = vunpack.c.l.b16 %v3503
      %v3562 = vunpack.c.l.b16 %v3504
      %v3563 = vunpack.c.l.b16 %v3505
      %v3564 = vunpack.c.l.b16 %v3506
      %v3565 = vunpack.c.l.b16 %v3507
      %v3566 = vunpack.c.l.b16 %v3508
      %v3567 = vunpack.c.l.b16 %v3509
      %v3568 = vunpack.c.l.b16 %v3510
      %v3569 = vunpack.c.l.b16 %v3511
      %v3570 = vunpack.c.l.b16 %v3512
      %v3571 = vunpack.c.l.b16 %v3513
      %v3572 = vunpack.c.l.b16 %v3514
      %v3573 = vunpack.c.l.b16 %v3515
      %v3574 = vunpack.c.l.b16 %v3516
      %v3575 = vunpack.c.l.b16 %v3517
      %v3576 = vunpack.c.l.b16 %v3518
      %v3577 = vunpack.c.l.b16 %v3519
      %v3578 = vunpack.c.l.b16 %v3520
      %v3579 = vunpack.c.l.b16 %v3521
      %v3580 = vunpack.c.l.b16 %v3522
      %v3581 = vunpack.c.l.b16 %v3523
      %v3582 = vunpack.c.l.b16 %v3524
      %v3583 = vunpack.c.l.b16 %v3525
      %v3584 = vunpack.c.l.b16 %v3526
      %v3585 = vunpack.c.l.b16 %v3527
      %v3586 = vunpack.c.l.b16 %v3528
      %v3587 = vpack.c.b16 %v3560, %v3559
      %v3588 = vpack.c.b16 %v3562, %v3561
      %v3589 = vpack.c.b16 %v3564, %v3563
      %v3590 = vpack.c.b16 %v3566, %v3565
      %v3591 = vpack.c.b16 %v3568, %v3567
      %v3592 = vpack.c.b16 %v3570, %v3569
      %v3593 = vpack.c.b16 %v3572, %v3571
      %v3594 = vpack.c.b16 %v3574, %v3573
      %v3595 = vpack.c.b16 %v3576, %v3575
      %v3596 = vpack.c.b16 %v3578, %v3577
      %v3597 = vpack.c.b16 %v3580, %v3579
      %v3598 = vpack.c.b16 %v3582, %v3581
      %v3599 = vpack.c.b16 %v3584, %v3583
      %v3600 = vpack.c.b16 %v3586, %v3585
      %v3601 = vrot.slane %v3587, 1
      %v3602 = vrot.slane %v3588, 1
      %v3603 = vsel %vm1080, %v3601, %v3602
      %v3604 = vrot.slane %v3589, 1
      %v3605 = vsel %vm1080, %v3602, %v3604
      %v3606 = vrot.slane %v3590, 1
      %v3607 = vsel %vm1080, %v3604, %v3606
      %v3608 = vrot.slane %v3591, 1
      %v3609 = vsel %vm1080, %v3606, %v3608
      %v3610 = vrot.slane %v3592, 1
      %v3611 = vsel %vm1080, %v3608, %v3610
      %v3612 = vrot.slane %v3593, 1
      %v3613 = vsel %vm1080, %v3610, %v3612
      %v3614 = vrot.slane %v3594, 1
      %v3615 = vsel %vm1080, %v3612, %v3614
      %v3616 = vrot.slane %v3595, 1
      %v3617 = vsel %vm1080, %v3614, %v3616
      %v3618 = vrot.slane %v3596, 1
      %v3619 = vsel %vm1080, %v3616, %v3618
      %v3620 = vrot.slane %v3597, 1
      %v3621 = vsel %vm1080, %v3618, %v3620
      %v3622 = vrot.slane %v3598, 1
      %v3623 = vsel %vm1080, %v3620, %v3622
      %v3624 = vrot.slane %v3599, 1
      %v3625 = vsel %vm1080, %v3622, %v3624
      %v3626 = vrot.slane %v3600, 1
      %v3627 = vsel %vm1080, %v3624, %v3626
      %v3629 = vsel %vm271, %v3603, 0
      %v3632 = vsel %vm271, %v3605, 0
      %v3635 = vsel %vm271, %v3607, 0
      %v3638 = vsel %vm271, %v3609, 0
      %v3641 = vsel %vm271, %v3611, 0
      %v3644 = vsel %vm271, %v3613, 0
      %v3647 = vsel %vm271, %v3615, 0
      %v3650 = vsel %vm271, %v3617, 0
      %v3653 = vsel %vm271, %v3619, 0
      %v3656 = vsel %vm271, %v3621, 0
      %v3659 = vsel %vm271, %v3623, 0
      %v3662 = vsel %vm271, %v3625, 0
      %v3665 = vsel %vm271, %v3627, 0
      %v3668 = vsel %vm271, %v3626, 0
      %v3671 = vand.u32 %v3530, %v317
      %3673 = vmatprep.subr.bf16.mxu0 0
      %3674 = vmatpush1.bf16.msra.mxu0 %v3671
      %3675 = vmatprep.subr.bf16.mxu0 0
      %3676 = vmatpush1.bf16.msra.mxu0 0
      %3677 = vmatprep.subr.bf16.mxu0 0
      %3678 = vmatpush1.bf16.msra.mxu0 0
      %3679 = vmatprep.subr.bf16.mxu0 0
      %3680 = vmatpush1.bf16.msra.mxu0 0
      %3681 = vmatprep.subr.bf16.mxu0 0
      %3682 = vmatpush1.bf16.msra.mxu0 0
      %3683 = vmatprep.subr.bf16.mxu0 0
      %3684 = vmatpush1.bf16.msra.mxu0 0
      %3685 = vmatprep.subr.bf16.mxu0 0
      %3686 = vmatpush1.bf16.msra.mxu0 0
      %3687 = vmatprep.subr.bf16.mxu0 0
      %3688 = vmatpush1.bf16.msra.mxu0 0
      %3689 = vmatprep.subr.bf16.mxu0 0
      %3690 = vmatpush1.bf16.msra.mxu0 0
      %3691 = vmatprep.subr.bf16.mxu0 0
      %3692 = vmatpush1.bf16.msra.mxu0 0
      %3693 = vmatprep.subr.bf16.mxu0 0
      %3694 = vmatpush1.bf16.msra.mxu0 0
      %3695 = vmatprep.subr.bf16.mxu0 0
      %3696 = vmatpush1.bf16.msra.mxu0 0
      %3697 = vmatprep.subr.bf16.mxu0 0
      %3698 = vmatpush1.bf16.msra.mxu0 0
      %3699 = vmatprep.subr.bf16.mxu0 0
      %3700 = vmatpush1.bf16.msra.mxu0 0
      %3701 = vmatprep.subr.bf16.mxu0 0
      %3702 = vmatpush1.bf16.msra.mxu0 0
      %3703 = vmatprep.subr.bf16.mxu0 0
      %3704 = vmatpush1.bf16.msra.mxu0 0
      %3705 = vmatprep.mubr.bf16.mxu0 0
      %3706 = vmatmul.mubr.bf16.gmra.mrb[0].mxu0 %v3629
      %v3707 = vpop.f32.mrb[0].mxu0
      %v3708 = vadd.f32 0.0, %v3707
      %v3709 = vpop.f32.mrb[0].mxu0
      %v3710 = vpop.f32.mrb[0].mxu0
      %v3711 = vadd.f32 0.0, %v3710
      %v3712 = vpop.f32.mrb[0].mxu0
      %3713 = vmatprep.mubr.bf16.mxu0 0
      %3714 = vmatmul.mubr.bf16.gmra.mrb[0].mxu0 %v3632
      %v3715 = vpop.f32.mrb[0].mxu0
      %v3716 = vadd.f32 0.0, %v3715
      %v3717 = vpop.f32.mrb[0].mxu0
      %v3718 = vpop.f32.mrb[0].mxu0
      %v3719 = vadd.f32 0.0, %v3718
      %v3720 = vpop.f32.mrb[0].mxu0
      %3721 = vmatprep.mubr.bf16.mxu0 0
      %3722 = vmatmul.mubr.bf16.gmra.mrb[0].mxu0 %v3635
      %v3723 = vpop.f32.mrb[0].mxu0
      %v3724 = vadd.f32 0.0, %v3723
      %v3725 = vpop.f32.mrb[0].mxu0
      %v3726 = vpop.f32.mrb[0].mxu0
      %v3727 = vadd.f32 0.0, %v3726
      %v3728 = vpop.f32.mrb[0].mxu0
      %3729 = vmatprep.mubr.bf16.mxu0 0
      %3730 = vmatmul.mubr.bf16.gmra.mrb[0].mxu0 %v3638
      %v3731 = vpop.f32.mrb[0].mxu0
      %v3732 = vadd.f32 0.0, %v3731
      %v3733 = vpop.f32.mrb[0].mxu0
      %v3734 = vpop.f32.mrb[0].mxu0
      %v3735 = vadd.f32 0.0, %v3734
      %v3736 = vpop.f32.mrb[0].mxu0
      %3737 = vmatprep.mubr.bf16.mxu0 0
      %3738 = vmatmul.mubr.bf16.gmra.mrb[0].mxu0 %v3641
      %v3739 = vpop.f32.mrb[0].mxu0
      %v3740 = vadd.f32 0.0, %v3739
      %v3741 = vpop.f32.mrb[0].mxu0
      %v3742 = vpop.f32.mrb[0].mxu0
      %v3743 = vadd.f32 0.0, %v3742
      %v3744 = vpop.f32.mrb[0].mxu0
      %3745 = vmatprep.mubr.bf16.mxu0 0
      %3746 = vmatmul.mubr.bf16.gmra.mrb[0].mxu0 %v3644
      %v3747 = vpop.f32.mrb[0].mxu0
      %v3748 = vadd.f32 0.0, %v3747
      %v3749 = vpop.f32.mrb[0].mxu0
      %v3750 = vpop.f32.mrb[0].mxu0
      %v3751 = vadd.f32 0.0, %v3750
      %v3752 = vpop.f32.mrb[0].mxu0
      %3753 = vmatprep.mubr.bf16.mxu0 0
      %3754 = vmatmul.mubr.bf16.gmra.mrb[0].mxu0 %v3647
      %v3755 = vpop.f32.mrb[0].mxu0
      %v3756 = vadd.f32 0.0, %v3755
      %v3757 = vpop.f32.mrb[0].mxu0
      %v3758 = vpop.f32.mrb[0].mxu0
      %v3759 = vadd.f32 0.0, %v3758
      %v3760 = vpop.f32.mrb[0].mxu0
      %3761 = vmatprep.mubr.bf16.mxu0 0
      %3762 = vmatmul.mubr.bf16.gmra.mrb[0].mxu0 %v3650
      %v3763 = vpop.f32.mrb[0].mxu0
      %v3764 = vadd.f32 0.0, %v3763
      %v3765 = vpop.f32.mrb[0].mxu0
      %v3766 = vpop.f32.mrb[0].mxu0
      %v3767 = vadd.f32 0.0, %v3766
      %v3768 = vpop.f32.mrb[0].mxu0
      %3769 = vmatprep.mubr.bf16.mxu0 0
      %3770 = vmatmul.mubr.bf16.gmra.mrb[0].mxu0 %v3653
      %v3771 = vpop.f32.mrb[0].mxu0
      %v3772 = vadd.f32 0.0, %v3771
      %v3773 = vpop.f32.mrb[0].mxu0
      %v3774 = vpop.f32.mrb[0].mxu0
      %v3775 = vadd.f32 0.0, %v3774
      %v3776 = vpop.f32.mrb[0].mxu0
      %3777 = vmatprep.mubr.bf16.mxu0 0
      %3778 = vmatmul.mubr.bf16.gmra.mrb[0].mxu0 %v3656
      %v3779 = vpop.f32.mrb[0].mxu0
      %v3780 = vadd.f32 0.0, %v3779
      %v3781 = vpop.f32.mrb[0].mxu0
      %v3782 = vpop.f32.mrb[0].mxu0
      %v3783 = vadd.f32 0.0, %v3782
      %v3784 = vpop.f32.mrb[0].mxu0
      %3785 = vmatprep.mubr.bf16.mxu0 0
      %3786 = vmatmul.mubr.bf16.gmra.mrb[0].mxu0 %v3659
      %v3787 = vpop.f32.mrb[0].mxu0
      %v3788 = vadd.f32 0.0, %v3787
      %v3789 = vpop.f32.mrb[0].mxu0
      %v3790 = vpop.f32.mrb[0].mxu0
      %v3791 = vadd.f32 0.0, %v3790
      %v3792 = vpop.f32.mrb[0].mxu0
      %3793 = vmatprep.mubr.bf16.mxu0 0
      %3794 = vmatmul.mubr.bf16.gmra.mrb[0].mxu0 %v3662
      %v3795 = vpop.f32.mrb[0].mxu0
      %v3796 = vadd.f32 0.0, %v3795
      %v3797 = vpop.f32.mrb[0].mxu0
      %v3798 = vpop.f32.mrb[0].mxu0
      %v3799 = vadd.f32 0.0, %v3798
      %v3800 = vpop.f32.mrb[0].mxu0
      %3801 = vmatprep.mubr.bf16.mxu0 0
      %3802 = vmatmul.mubr.bf16.gmra.mrb[0].mxu0 %v3665
      %v3803 = vpop.f32.mrb[0].mxu0
      %v3804 = vadd.f32 0.0, %v3803
      %v3805 = vpop.f32.mrb[0].mxu0
      %v3806 = vpop.f32.mrb[0].mxu0
      %v3807 = vadd.f32 0.0, %v3806
      %v3808 = vpop.f32.mrb[0].mxu0
      %3809 = vmatprep.mubr.bf16.mxu0 0
      %3810 = vmatmul.mubr.bf16.gmra.mrb[0].mxu0 %v3668
      %v3811 = vpop.f32.mrb[0].mxu0
      %v3812 = vadd.f32 0.0, %v3811
      %v3813 = vpop.f32.mrb[0].mxu0
      %v3814 = vpop.f32.mrb[0].mxu0
      %v3815 = vadd.f32 0.0, %v3814
      %v3816 = vpop.f32.mrb[0].mxu0
      %3817 = vdwg.mxu0
      %v3818 = vld [vmem:[#allocation2] sm:$0xff]
      %v3819 = vld [vmem:[#allocation2 + $0x8] sm:$0xff]
      %v3820 = vld [vmem:[#allocation2 + $0x10] sm:$0xff]
      %v3821 = vld [vmem:[#allocation2 + $0x18] sm:$0xff]
      %v3822 = vld [vmem:[#allocation2 + $0x20] sm:$0xff]
      %v3823 = vld [vmem:[#allocation2 + $0x28] sm:$0xff]
      %v3824 = vld [vmem:[#allocation2 + $0x30] sm:$0xff]
      %v3825 = vld [vmem:[#allocation2 + $0x38] sm:$0xff]
      %v3826 = vld [vmem:[#allocation2 + $0x40] sm:$0xff]
      %v3827 = vld [vmem:[#allocation2 + $0x48] sm:$0xff]
      %v3828 = vld [vmem:[#allocation2 + $0x50] sm:$0xff]
      %v3829 = vld [vmem:[#allocation2 + $0x58] sm:$0xff]
      %v3830 = vld [vmem:[#allocation2 + $0x60] sm:$0xff]
      %v3831 = vld [vmem:[#allocation2 + $0x68] sm:$0xff]
      %v3832 = vld [vmem:[#allocation2 + $0x70] sm:$0xff]
      %v3833 = vld [vmem:[#allocation2 + $0x78] sm:$0xff]
      %v3834 = vld [vmem:[#allocation2 + $0x80] sm:$0xff]
      %v3835 = vld [vmem:[#allocation2 + $0x88] sm:$0xff]
      %v3836 = vld [vmem:[#allocation2 + $0x90] sm:$0xff]
      %v3837 = vld [vmem:[#allocation2 + $0x98] sm:$0xff]
      %v3838 = vld [vmem:[#allocation2 + $0xa0] sm:$0xff]
      %v3839 = vld [vmem:[#allocation2 + $0xa8] sm:$0xff]
      %v3840 = vld [vmem:[#allocation2 + $0xb0] sm:$0xff]
      %v3841 = vld [vmem:[#allocation2 + $0xb8] sm:$0xff]
      %v3842 = vld [vmem:[#allocation2 + $0xc0] sm:$0xff]
      %v3843 = vld [vmem:[#allocation2 + $0xc8] sm:$0xff]
      %v3844 = vld [vmem:[#allocation2 + $0xd0] sm:$0xff]
      %v3845 = vld [vmem:[#allocation2 + $0xd8] sm:$0x3f]
      %v3846 = vadd.f32 %v3818, %v3708
      %v3847 = vadd.f32 %v3819, %v3711
      %v3848 = vadd.f32 %v3820, %v3716
      %v3849 = vadd.f32 %v3821, %v3719
      %v3850 = vadd.f32 %v3822, %v3724
      %v3851 = vadd.f32 %v3823, %v3727
      %v3852 = vadd.f32 %v3824, %v3732
      %v3853 = vadd.f32 %v3825, %v3735
      %v3854 = vadd.f32 %v3826, %v3740
      %v3855 = vadd.f32 %v3827, %v3743
      %v3856 = vadd.f32 %v3828, %v3748
      %v3857 = vadd.f32 %v3829, %v3751
      %v3858 = vadd.f32 %v3830, %v3756
      %v3859 = vadd.f32 %v3831, %v3759
      %v3860 = vadd.f32 %v3832, %v3764
      %v3861 = vadd.f32 %v3833, %v3767
      %v3862 = vadd.f32 %v3834, %v3772
      %v3863 = vadd.f32 %v3835, %v3775
      %v3864 = vadd.f32 %v3836, %v3780
      %v3865 = vadd.f32 %v3837, %v3783
      %v3866 = vadd.f32 %v3838, %v3788
      %v3867 = vadd.f32 %v3839, %v3791
      %v3868 = vadd.f32 %v3840, %v3796
      %v3869 = vadd.f32 %v3841, %v3799
      %v3870 = vadd.f32 %v3842, %v3804
      %v3871 = vadd.f32 %v3843, %v3807
      %v3872 = vadd.f32 %v3844, %v3812
      %v3873 = vadd.f32 %v3845, %v3815
      %3874 = vst [vmem:[#allocation2] sm:$0xff] %v3846
      %3875 = vst [vmem:[#allocation2 + $0x8] sm:$0xff] %v3847
      %3876 = vst [vmem:[#allocation2 + $0x10] sm:$0xff] %v3848
      %3877 = vst [vmem:[#allocation2 + $0x18] sm:$0xff] %v3849
      %3878 = vst [vmem:[#allocation2 + $0x20] sm:$0xff] %v3850
      %3879 = vst [vmem:[#allocation2 + $0x28] sm:$0xff] %v3851
      %3880 = vst [vmem:[#allocation2 + $0x30] sm:$0xff] %v3852
      %3881 = vst [vmem:[#allocation2 + $0x38] sm:$0xff] %v3853
      %3882 = vst [vmem:[#allocation2 + $0x40] sm:$0xff] %v3854
      %3883 = vst [vmem:[#allocation2 + $0x48] sm:$0xff] %v3855
      %3884 = vst [vmem:[#allocation2 + $0x50] sm:$0xff] %v3856
      %3885 = vst [vmem:[#allocation2 + $0x58] sm:$0xff] %v3857
      %3886 = vst [vmem:[#allocation2 + $0x60] sm:$0xff] %v3858
      %3887 = vst [vmem:[#allocation2 + $0x68] sm:$0xff] %v3859
      %3888 = vst [vmem:[#allocation2 + $0x70] sm:$0xff] %v3860
      %3889 = vst [vmem:[#allocation2 + $0x78] sm:$0xff] %v3861
      %3890 = vst [vmem:[#allocation2 + $0x80] sm:$0xff] %v3862
      %3891 = vst [vmem:[#allocation2 + $0x88] sm:$0xff] %v3863
      %3892 = vst [vmem:[#allocation2 + $0x90] sm:$0xff] %v3864
      %3893 = vst [vmem:[#allocation2 + $0x98] sm:$0xff] %v3865
      %3894 = vst [vmem:[#allocation2 + $0xa0] sm:$0xff] %v3866
      %3895 = vst [vmem:[#allocation2 + $0xa8] sm:$0xff] %v3867
      %3896 = vst [vmem:[#allocation2 + $0xb0] sm:$0xff] %v3868
      %3897 = vst [vmem:[#allocation2 + $0xb8] sm:$0xff] %v3869
      %3898 = vst [vmem:[#allocation2 + $0xc0] sm:$0xff] %v3870
      %3899 = vst [vmem:[#allocation2 + $0xc8] sm:$0xff] %v3871
      %3900 = vst [vmem:[#allocation2 + $0xd0] sm:$0xff] %v3872
      %3901 = vst [vmem:[#allocation2 + $0xd8] sm:$0x3f] %v3873
      %v3902 = vld [vmem:[#allocation2] sm:$0xff]
      %v3903 = vld [vmem:[#allocation2 + $0x8] sm:$0xff]
      %v3904 = vld [vmem:[#allocation2 + $0x10] sm:$0xff]
      %v3905 = vld [vmem:[#allocation2 + $0x18] sm:$0xff]
      %v3906 = vld [vmem:[#allocation2 + $0x20] sm:$0xff]
      %v3907 = vld [vmem:[#allocation2 + $0x28] sm:$0xff]
      %v3908 = vld [vmem:[#allocation2 + $0x30] sm:$0xff]
      %v3909 = vld [vmem:[#allocation2 + $0x38] sm:$0xff]
      %v3910 = vld [vmem:[#allocation2 + $0x40] sm:$0xff]
      %v3911 = vld [vmem:[#allocation2 + $0x48] sm:$0xff]
      %v3912 = vld [vmem:[#allocation2 + $0x50] sm:$0xff]
      %v3913 = vld [vmem:[#allocation2 + $0x58] sm:$0xff]
      %v3914 = vld [vmem:[#allocation2 + $0x60] sm:$0xff]
      %v3915 = vld [vmem:[#allocation2 + $0x68] sm:$0xff]
      %v3916 = vld [vmem:[#allocation2 + $0x70] sm:$0xff]
      %v3917 = vld [vmem:[#allocation2 + $0x78] sm:$0xff]
      %v3918 = vld [vmem:[#allocation2 + $0x80] sm:$0xff]
      %v3919 = vld [vmem:[#allocation2 + $0x88] sm:$0xff]
      %v3920 = vld [vmem:[#allocation2 + $0x90] sm:$0xff]
      %v3921 = vld [vmem:[#allocation2 + $0x98] sm:$0xff]
      %v3922 = vld [vmem:[#allocation2 + $0xa0] sm:$0xff]
      %v3923 = vld [vmem:[#allocation2 + $0xa8] sm:$0xff]
      %v3924 = vld [vmem:[#allocation2 + $0xb0] sm:$0xff]
      %v3925 = vld [vmem:[#allocation2 + $0xb8] sm:$0xff]
      %v3926 = vld [vmem:[#allocation2 + $0xc0] sm:$0xff]
      %v3927 = vld [vmem:[#allocation2 + $0xc8] sm:$0xff]
      %v3928 = vld [vmem:[#allocation2 + $0xd0] sm:$0xff]
      %v3929 = vld [vmem:[#allocation2 + $0xd8] sm:$0x3f]
      %v3930 = vld [vmem:[%s2] sm:$0x1]
      %v3932 = vlaneseq
      %v3933 = vshrl.u32 %v3932, 7
      %v3934 = vsub.s32 0, %v3933
      %v3935 = vrot.slane %v3930, %v3934
      %v3937 = vadd.f32 %v3902, %v3935
      %v3938 = vadd.f32 %v3903, %v3935
      %v3939 = vadd.f32 %v3904, %v3935
      %v3940 = vadd.f32 %v3905, %v3935
      %v3941 = vadd.f32 %v3906, %v3935
      %v3942 = vadd.f32 %v3907, %v3935
      %v3943 = vadd.f32 %v3908, %v3935
      %v3944 = vadd.f32 %v3909, %v3935
      %v3945 = vadd.f32 %v3910, %v3935
      %v3946 = vadd.f32 %v3911, %v3935
      %v3947 = vadd.f32 %v3912, %v3935
      %v3948 = vadd.f32 %v3913, %v3935
      %v3949 = vadd.f32 %v3914, %v3935
      %v3950 = vadd.f32 %v3915, %v3935
      %v3951 = vadd.f32 %v3916, %v3935
      %v3952 = vadd.f32 %v3917, %v3935
      %v3953 = vadd.f32 %v3918, %v3935
      %v3954 = vadd.f32 %v3919, %v3935
      %v3955 = vadd.f32 %v3920, %v3935
      %v3956 = vadd.f32 %v3921, %v3935
      %v3957 = vadd.f32 %v3922, %v3935
      %v3958 = vadd.f32 %v3923, %v3935
      %v3959 = vadd.f32 %v3924, %v3935
      %v3960 = vadd.f32 %v3925, %v3935
      %v3961 = vadd.f32 %v3926, %v3935
      %v3962 = vadd.f32 %v3927, %v3935
      %v3963 = vadd.f32 %v3928, %v3935
      %v3964 = vadd.f32 %v3929, %v3935
      %v3965 = vmax.f32 %v3937, 0.0
      %v3966 = vmax.f32 %v3938, 0.0
      %v3967 = vmax.f32 %v3939, 0.0
      %v3968 = vmax.f32 %v3940, 0.0
      %v3969 = vmax.f32 %v3941, 0.0
      %v3970 = vmax.f32 %v3942, 0.0
      %v3971 = vmax.f32 %v3943, 0.0
      %v3972 = vmax.f32 %v3944, 0.0
      %v3973 = vmax.f32 %v3945, 0.0
      %v3974 = vmax.f32 %v3946, 0.0
      %v3975 = vmax.f32 %v3947, 0.0
      %v3976 = vmax.f32 %v3948, 0.0
      %v3977 = vmax.f32 %v3949, 0.0
      %v3978 = vmax.f32 %v3950, 0.0
      %v3979 = vmax.f32 %v3951, 0.0
      %v3980 = vmax.f32 %v3952, 0.0
      %v3981 = vmax.f32 %v3953, 0.0
      %v3982 = vmax.f32 %v3954, 0.0
      %v3983 = vmax.f32 %v3955, 0.0
      %v3984 = vmax.f32 %v3956, 0.0
      %v3985 = vmax.f32 %v3957, 0.0
      %v3986 = vmax.f32 %v3958, 0.0
      %v3987 = vmax.f32 %v3959, 0.0
      %v3988 = vmax.f32 %v3960, 0.0
      %v3989 = vmax.f32 %v3961, 0.0
      %v3990 = vmax.f32 %v3962, 0.0
      %v3991 = vmax.f32 %v3963, 0.0
      %v3992 = vmax.f32 %v3964, 0.0
      %3993 = vst [vmem:[#allocation2] sm:$0xff] %v3965
      %3994 = vst [vmem:[#allocation2 + $0x8] sm:$0xff] %v3966
      %3995 = vst [vmem:[#allocation2 + $0x10] sm:$0xff] %v3967
      %3996 = vst [vmem:[#allocation2 + $0x18] sm:$0xff] %v3968
      %3997 = vst [vmem:[#allocation2 + $0x20] sm:$0xff] %v3969
      %3998 = vst [vmem:[#allocation2 + $0x28] sm:$0xff] %v3970
      %3999 = vst [vmem:[#allocation2 + $0x30] sm:$0xff] %v3971
      %4000 = vst [vmem:[#allocation2 + $0x38] sm:$0xff] %v3972
      %4001 = vst [vmem:[#allocation2 + $0x40] sm:$0xff] %v3973
      %4002 = vst [vmem:[#allocation2 + $0x48] sm:$0xff] %v3974
      %4003 = vst [vmem:[#allocation2 + $0x50] sm:$0xff] %v3975
      %4004 = vst [vmem:[#allocation2 + $0x58] sm:$0xff] %v3976
      %4005 = vst [vmem:[#allocation2 + $0x60] sm:$0xff] %v3977
      %4006 = vst [vmem:[#allocation2 + $0x68] sm:$0xff] %v3978
      %4007 = vst [vmem:[#allocation2 + $0x70] sm:$0xff] %v3979
      %4008 = vst [vmem:[#allocation2 + $0x78] sm:$0xff] %v3980
      %4009 = vst [vmem:[#allocation2 + $0x80] sm:$0xff] %v3981
      %4010 = vst [vmem:[#allocation2 + $0x88] sm:$0xff] %v3982
      %4011 = vst [vmem:[#allocation2 + $0x90] sm:$0xff] %v3983
      %4012 = vst [vmem:[#allocation2 + $0x98] sm:$0xff] %v3984
      %4013 = vst [vmem:[#allocation2 + $0xa0] sm:$0xff] %v3985
      %4014 = vst [vmem:[#allocation2 + $0xa8] sm:$0xff] %v3986
      %4015 = vst [vmem:[#allocation2 + $0xb0] sm:$0xff] %v3987
      %4016 = vst [vmem:[#allocation2 + $0xb8] sm:$0xff] %v3988
      %4017 = vst [vmem:[#allocation2 + $0xc0] sm:$0xff] %v3989
      %4018 = vst [vmem:[#allocation2 + $0xc8] sm:$0xff] %v3990
      %4019 = vst [vmem:[#allocation2 + $0xd0] sm:$0xff] %v3991
      %4020 = vst [vmem:[#allocation2 + $0xd8] sm:$0x3f] %v3992
      %v4021 = vld [vmem:[#allocation2] ss:$2 sm:$0x7f]
      %s4022 = scalar_lea.vmem [#allocation2], 1
      %v4023 = vld [vmem:[%s4022] ss:$2 sm:$0x7f]
      %v4024 = vmax.f32 %v4021, %v4023
      %s4025 = scalar_lea.vmem [#allocation2], 16
      %v4026 = vld [vmem:[%s4025] ss:$2 sm:$0x7f]
      %v4027 = vmax.f32 %v4024, %v4026
      %s4028 = scalar_lea.vmem [#allocation2], 17
      %v4029 = vld [vmem:[%s4028] ss:$2 sm:$0x7f]
      %v4030 = vmax.f32 %v4027, %v4029
      %v4031 = vpack.c.bf16 %v4030, %v4030
      %vm4032 = vcmask 44032
      %vm4033 = vsmask.f32 3328
      %vm4034 = vmand %vm4032, %vm4033
      %v4035 = vld [vmem:[%s170] sm:$0xf]
      %v4036 = vsel %vm4034, %v4031, %v4035
      %4037 = vst [vmem:[%s170] sm:$0xf] %v4036
      %s4038 = scalar_lea.vmem [#allocation2], 32
      %v4039 = vld [vmem:[%s4038] ss:$2 sm:$0x7f]
      %s4040 = scalar_lea.vmem [#allocation2], 33
      %v4041 = vld [vmem:[%s4040] ss:$2 sm:$0x7f]
      %v4042 = vmax.f32 %v4039, %v4041
      %s4043 = scalar_lea.vmem [#allocation2], 48
      %v4044 = vld [vmem:[%s4043] ss:$2 sm:$0x7f]
      %v4045 = vmax.f32 %v4042, %v4044
      %s4046 = scalar_lea.vmem [#allocation2], 49
      %v4047 = vld [vmem:[%s4046] ss:$2 sm:$0x7f]
      %v4048 = vmax.f32 %v4045, %v4047
      %v4049 = vpack.c.bf16 %v4048, %v4048
      %s4050 = scalar_lea.vmem %s170, 4
      %v4051 = vld [vmem:[%s4050] sm:$0xf]
      %v4052 = vsel %vm4034, %v4049, %v4051
      %4053 = vst [vmem:[%s4050] sm:$0xf] %v4052
      %s4054 = scalar_lea.vmem [#allocation2], 64
      %v4055 = vld [vmem:[%s4054] ss:$2 sm:$0x7f]
      %s4056 = scalar_lea.vmem [#allocation2], 65
      %v4057 = vld [vmem:[%s4056] ss:$2 sm:$0x7f]
      %v4058 = vmax.f32 %v4055, %v4057
      %s4059 = scalar_lea.vmem [#allocation2], 80
      %v4060 = vld [vmem:[%s4059] ss:$2 sm:$0x7f]
      %v4061 = vmax.f32 %v4058, %v4060
      %s4062 = scalar_lea.vmem [#allocation2], 81
      %v4063 = vld [vmem:[%s4062] ss:$2 sm:$0x7f]
      %v4064 = vmax.f32 %v4061, %v4063
      %v4065 = vpack.c.bf16 %v4064, %v4064
      %s4066 = scalar_lea.vmem %s170, 8
      %v4067 = vld [vmem:[%s4066] sm:$0xf]
      %v4068 = vsel %vm4034, %v4065, %v4067
      %4069 = vst [vmem:[%s4066] sm:$0xf] %v4068
      %s4070 = scalar_lea.vmem [#allocation2], 96
      %v4071 = vld [vmem:[%s4070] ss:$2 sm:$0x7f]
      %s4072 = scalar_lea.vmem [#allocation2], 97
      %v4073 = vld [vmem:[%s4072] ss:$2 sm:$0x7f]
      %v4074 = vmax.f32 %v4071, %v4073
      %s4075 = scalar_lea.vmem [#allocation2], 112
      %v4076 = vld [vmem:[%s4075] ss:$2 sm:$0x7f]
      %v4077 = vmax.f32 %v4074, %v4076
      %s4078 = scalar_lea.vmem [#allocation2], 113
      %v4079 = vld [vmem:[%s4078] ss:$2 sm:$0x7f]
      %v4080 = vmax.f32 %v4077, %v4079
      %v4081 = vpack.c.bf16 %v4080, %v4080
      %s4082 = scalar_lea.vmem %s170, 12
      %v4083 = vld [vmem:[%s4082] sm:$0xf]
      %v4084 = vsel %vm4034, %v4081, %v4083
      %4085 = vst [vmem:[%s4082] sm:$0xf] %v4084
      %s4086 = scalar_lea.vmem [#allocation2], 128
      %v4087 = vld [vmem:[%s4086] ss:$2 sm:$0x7f]
      %s4088 = scalar_lea.vmem [#allocation2], 129
      %v4089 = vld [vmem:[%s4088] ss:$2 sm:$0x7f]
      %v4090 = vmax.f32 %v4087, %v4089
      %s4091 = scalar_lea.vmem [#allocation2], 144
      %v4092 = vld [vmem:[%s4091] ss:$2 sm:$0x7f]
      %v4093 = vmax.f32 %v4090, %v4092
      %s4094 = scalar_lea.vmem [#allocation2], 145
      %v4095 = vld [vmem:[%s4094] ss:$2 sm:$0x7f]
      %v4096 = vmax.f32 %v4093, %v4095
      %v4097 = vpack.c.bf16 %v4096, %v4096
      %s4098 = scalar_lea.vmem %s170, 16
      %v4099 = vld [vmem:[%s4098] sm:$0xf]
      %v4100 = vsel %vm4034, %v4097, %v4099
      %4101 = vst [vmem:[%s4098] sm:$0xf] %v4100
      %s4102 = scalar_lea.vmem [#allocation2], 160
      %v4103 = vld [vmem:[%s4102] ss:$2 sm:$0x7f]
      %s4104 = scalar_lea.vmem [#allocation2], 161
      %v4105 = vld [vmem:[%s4104] ss:$2 sm:$0x7f]
      %v4106 = vmax.f32 %v4103, %v4105
      %s4107 = scalar_lea.vmem [#allocation2], 176
      %v4108 = vld [vmem:[%s4107] ss:$2 sm:$0x7f]
      %v4109 = vmax.f32 %v4106, %v4108
      %s4110 = scalar_lea.vmem [#allocation2], 177
      %v4111 = vld [vmem:[%s4110] ss:$2 sm:$0x7f]
      %v4112 = vmax.f32 %v4109, %v4111
      %v4113 = vpack.c.bf16 %v4112, %v4112
      %s4114 = scalar_lea.vmem %s170, 20
      %v4115 = vld [vmem:[%s4114] sm:$0xf]
      %v4116 = vsel %vm4034, %v4113, %v4115
      %4117 = vst [vmem:[%s4114] sm:$0xf] %v4116
      %s4118 = scalar_lea.vmem [#allocation2], 192
      %v4119 = vld [vmem:[%s4118] ss:$2 sm:$0x7f]
      %s4120 = scalar_lea.vmem [#allocation2], 193
      %v4121 = vld [vmem:[%s4120] ss:$2 sm:$0x7f]
      %v4122 = vmax.f32 %v4119, %v4121
      %s4123 = scalar_lea.vmem [#allocation2], 208
      %v4124 = vld [vmem:[%s4123] ss:$2 sm:$0x7f]
      %v4125 = vmax.f32 %v4122, %v4124
      %s4126 = scalar_lea.vmem [#allocation2], 209
      %v4127 = vld [vmem:[%s4126] ss:$2 sm:$0x7f]
      %v4128 = vmax.f32 %v4125, %v4127
      %v4129 = vpack.c.bf16 %v4128, %v4128
      %s4130 = scalar_lea.vmem %s170, 24
      %v4131 = vld [vmem:[%s4130] sm:$0xf]
      %v4132 = vsel %vm4034, %v4129, %v4131
      %4133 = vst [vmem:[%s4130] sm:$0xf] %v4132
      %p4134 = scmp.lt.s32.totalorder %s14, 1
      %s4135 = scalar_select %p4134, %s14, 1
      %s4136 = smul.addr %s4135, 7
      %s4137 = smul.addr %s4136, 4
      %s4138 = scalar_lea.vmem %s3, %s4137
      // Predicated region
      $region33: #{convnet_forward.3} parent=31 // pred_check
        %p4139 = pneg %p100
      $region34: #{convnet_forward.3} parent=31 // pred_check_branch
        %4141 = sbr.rel (%p4139) target = $region36
      $region35: #{convnet_forward.3} parent=31 // pred_region
        _
      $region36: #{convnet_forward.3} parent=31 // pred_fallthru
        _
    $region32: #{convnet_forward.3} parent=5 // pred_fallthru
      _
    %p4142 = scmp.le.s32.totalorder 2, %s9
    // Predicated region
    $region37: #{convnet_forward.3} parent=5 // pred_check
      %p4143 = pneg %p4142
    $region38: #{convnet_forward.3} parent=5 // pred_check_branch
      %4145 = sbr.rel (%p4143) target = $region40
    $region39: #{convnet_forward.3} parent=5 // pred_region
      %s4146 = ssub.s32 %s9, 2
      // Predicated region
      $region41: #{convnet_forward.3} parent=39 // pred_check
        %p4147 = pneg %p106
      $region42: #{convnet_forward.3} parent=39 // pred_check_branch
        %4149 = sbr.rel (%p4147) target = $region44
      $region43: #{convnet_forward.3} parent=39 // pred_region
        %p4150 = scmp.lt.s32.totalorder %s15, 1
        %s4151 = scalar_select %p4150, %s15, 1
        %s4152 = smul.addr %s4151, 7
        %s4153 = smul.addr %s4152, 4
        %s4154 = scalar_lea.vmem %s3, %s4153
      $region44: #{convnet_forward.3} parent=39 // pred_fallthru
        _
    $region40: #{convnet_forward.3} parent=5 // pred_fallthru
      _
  $region6: #{convnet_forward.3} parent=0 // loop_footer
    %s13 = sadd.s32 1, %s9
  $region7: #{convnet_forward.3} parent=0 // loop_footer_branch
    %8 = sbr.rel target = $region3
  $region8: #{convnet_forward.3} parent=0 // loop_exit
    _

</llo_original>
